<compile_context>
chip_gen: v7x
topology: tpu7x:2x2x1
jax: 0.10.0
libtpu: 0.0.40
codegen_flags: <defaults>
</compile_context>

<pallas_src>
import jax
import jax.numpy as jnp
from jax import lax
from jax.experimental import pallas as pl
from jax.experimental.pallas import tpu as pltpu
import numpy as np


def aux_head_kernel(x_ref, m1_ref, b1_ref, w2_ref, wl_ref, bl_ref, out_ref):
    # x_ref: (TILE_N, C*H*W) bf16 block — channel-major flattening (raw NCHW
    # reshape; the layout permutation is folded into m1, no wrapper transpose).
    xr = jnp.maximum(x_ref[...], 0)                                      # ReLU (bf16)

    # AvgPool(5,2) + Conv1x1 + BN-scale folded into a single MXU matmul.
    feat = jnp.dot(xr, m1_ref[...], preferred_element_type=jnp.float32)  # (TILE_N, 4*128)
    # BN bias + ReLU (f32 elementwise).
    # TODO(synk): training-mode BN (batch statistics over N,H,W) not implemented;
    #             eval-mode running-stat affine is used instead.
    feat = jnp.maximum(feat + b1_ref[...], 0.0)

    # Conv2d(128, 768, 2): with HO=WO=1 the im2col patch row IS the flat feature
    # vector in (p, c) order, so `feat` feeds the matmul directly.
    y2 = jnp.maximum(
        jnp.dot(feat.astype(jnp.bfloat16), w2_ref[...],
                preferred_element_type=jnp.float32), 0.0)                # (TILE_N, 768)

    # Classifier Linear(768, nc_pad) (num_classes padded to 128 lanes).
    out_ref[...] = jnp.dot(y2.astype(jnp.bfloat16), wl_ref[...],
                           preferred_element_type=jnp.float32) + bl_ref[...]


def _round_up(a, b):
    return (a + b - 1) // b * b


def _num_tensorcores():
    """2 on parts with two TensorCores per chip (v7x), else 1. Never raises."""
    try:
        kind = jax.devices()[0].device_kind.lower()
    except Exception:
        return 1
    return 2 if "v7" in kind else 1


def fold_aux_head_params(params, C, H, W, num_classes):
    """One-time weight folding. Cache/reuse the result across forward calls."""
    KP, SP, KC = 5, 2, 2
    C1, C2 = 128, 768
    H2 = (H - KP) // SP + 1
    W2 = (W - KP) // SP + 1
    HO, WO = H2 - KC + 1, W2 - KC + 1
    assert HO * WO == 1, (
        f"flattened features ({HO*WO*C2}) must equal {C2} for Linear({C2}, ...)")
    NP = H2 * W2                      # pooled spatial positions (== KC*KC)
    HWC = C * H * W

    # AvgPool(5, stride 2, no pad) as a (NP, H*W) matrix over spatial positions.
    pool = np.zeros((NP, H * W), np.float32)
    for oy in range(H2):
        for ox in range(W2):
            p = oy * W2 + ox
            for ky in range(KP):
                for kx in range(KP):
                    pool[p, (oy * SP + ky) * W + (ox * SP + kx)] = 1.0 / (KP * KP)
    pool = jnp.asarray(pool)                                             # (NP, H*W)

    eps = 1e-5
    bn_scale = params["bn_gamma"] / jnp.sqrt(params["bn_var"] + eps)     # (128,)
    bn_bias = params["bn_beta"] - params["bn_mean"] * bn_scale           # (128,)
    w1 = params["conv1_w"][:, :, 0, 0].T * bn_scale[None, :]             # (C, 128)
    # Channel-major fold: m1[c*H*W + s, p*C1 + k] = pool[p, s] * w1[c, k], so the
    # kernel input is x_nchw.reshape(N, C*H*W) directly (no NCHW->NHWC transpose).
    m1 = jnp.einsum("ps,ck->cspk", pool, w1).reshape(HWC, NP * C1)
    b1 = jnp.tile(bn_bias, NP).reshape(1, NP * C1)

    # Conv2d(128,768,2): (kh, kw, in, out) flattening matches the (p, c) layout.
    w2 = jnp.transpose(params["conv2_w"], (2, 3, 1, 0)).reshape(KC * KC * C1, C2)

    # Classifier, padded to a lane-dense 128-wide output.
    nc_pad = _round_up(num_classes, 128)
    wl = jnp.pad(params["fc_w"].T, ((0, 0), (0, nc_pad - num_classes)))  # (768, nc_pad)
    bl = jnp.pad(params["fc_b"], (0, nc_pad - num_classes)).reshape(1, nc_pad)

    return {
        "m1": m1.astype(jnp.bfloat16),
        "b1": b1.astype(jnp.float32),
        "w2": w2.astype(jnp.bfloat16),
        "wl": wl.astype(jnp.bfloat16),
        "bl": bl.astype(jnp.float32),
        "meta": dict(C=C, H=H, W=W, HWC=HWC, NP=NP, C1=C1, C2=C2, KC=KC,
                     num_classes=num_classes, nc_pad=nc_pad),
    }


def aux_head_forward(x_nchw, folded, tile_n=512):
    meta = folded["meta"]
    C, H, W = meta["C"], meta["H"], meta["W"]
    HWC, NP, C1, C2 = meta["HWC"], meta["NP"], meta["C1"], meta["C2"]
    KC, num_classes, nc_pad = meta["KC"], meta["num_classes"], meta["nc_pad"]
    N = x_nchw.shape[0]
    assert x_nchw.shape[1:] == (C, H, W)

    # Fused reshape + bf16 downcast; no layout transpose (folded into m1).
    x_flat = x_nchw.reshape(N, HWC).astype(jnp.bfloat16)

    # Batch tiling: round to bf16 sublane packing (16 rows).
    SUB = 16
    n_base = _round_up(max(N, 1), SUB)
    ncores = _num_tensorcores()
    if ncores >= 2 and n_base > SUB:
        # v7x: two maximal "parallel" steps, one per TensorCore (VMEM-capped).
        tile = min(_round_up(-(-n_base // 2), SUB), max(tile_n, 1024))
    else:
        # Single-TC parts (v5e/v6e): one big tile when it fits — no splitting.
        tile = min(tile_n, n_base)
    n_pad = _round_up(n_base, tile)
    if n_pad != N:
        x_flat = jnp.pad(x_flat, ((0, n_pad - N), (0, 0)))

    # Rough VMEM working-set estimate; only raise the scoped limit when needed.
    weight_bytes = (folded["m1"].size + folded["w2"].size + folded["wl"].size) * 2
    bias_bytes = (folded["b1"].size + folded["bl"].size) * 4
    est_vmem = (2 * tile * HWC * 2            # double-buffered bf16 input tile
                + 2 * tile * nc_pad * 4       # double-buffered f32 output tile
                + 2 * (weight_bytes + bias_bytes)
                + 4 * tile * max(NP * C1, C2))
    cp_kwargs = dict(dimension_semantics=("parallel",))
    if est_vmem > (30 << 20):
        cap = (56 << 20) if ncores >= 2 else (100 << 20)
        cp_kwargs["vmem_limit_bytes"] = int(min(est_vmem + (4 << 20), cap))

    flops = 2 * n_pad * (HWC * NP * C1 + KC * KC * C1 * C2 + C2 * nc_pad)
    bytes_accessed = (n_pad * HWC * 2 + weight_bytes + bias_bytes
                      + n_pad * nc_pad * 4)

    def build(use_buffered_weights, use_cost_estimate):
        wkw = dict(pipeline_mode=pl.Buffered(1)) if use_buffered_weights else {}
        in_specs = [
            pl.BlockSpec((tile, HWC), lambda i: (i, 0)),
            pl.BlockSpec((HWC, NP * C1), lambda i: (0, 0), **wkw),
            pl.BlockSpec((1, NP * C1), lambda i: (0, 0), **wkw),
            pl.BlockSpec((KC * KC * C1, C2), lambda i: (0, 0), **wkw),
            pl.BlockSpec((C2, nc_pad), lambda i: (0, 0), **wkw),
            pl.BlockSpec((1, nc_pad), lambda i: (0, 0), **wkw),
        ]
        extra = {}
        if use_cost_estimate:
            extra["cost_estimate"] = pl.CostEstimate(
                flops=flops, transcendentals=0, bytes_accessed=bytes_accessed)
        return pl.pallas_call(
            aux_head_kernel,
            out_shape=jax.ShapeDtypeStruct((n_pad, nc_pad), jnp.float32),
            grid=(n_pad // tile,),
            in_specs=in_specs,
            out_specs=pl.BlockSpec((tile, nc_pad), lambda i: (i, 0)),
            compiler_params=pltpu.CompilerParams(**cp_kwargs),
            **extra,
        )

    args = (x_flat, folded["m1"], folded["b1"], folded["w2"],
            folded["wl"], folded["bl"])
    out = None
    last_err = None
    for opts in ((True, True), (False, True), (False, False)):
        try:
            out = build(*opts)(*args)
            break
        except Exception as e:  # fall back if Buffered(1)/cost_estimate rejected
            last_err = e
    if out is None:
        raise last_err
    return out[:N, :num_classes]


def aux_head_imagenet(x_nchw, params, num_classes, tile_n=512):
    """Convenience wrapper: fold + forward. Prefer calling fold once and reusing."""
    _, C, H, W = x_nchw.shape
    folded = fold_aux_head_params(params, C, H, W, num_classes)
    return aux_head_forward(x_nchw, folded, tile_n=tile_n)


def reference(x, p):
    """Pure-JAX NCHW reference (eval-mode BN), mirroring the PyTorch module."""
    eps = 1e-5
    h = jnp.maximum(x, 0.0)
    h = lax.reduce_window(h, 0.0, lax.add, (1, 1, 5, 5), (1, 1, 2, 2), "VALID") / 25.0
    h = lax.conv_general_dilated(h, p["conv1_w"], (1, 1), "VALID",
                                 dimension_numbers=("NCHW", "OIHW", "NCHW"))
    h = (h - p["bn_mean"][None, :, None, None]) / jnp.sqrt(
        p["bn_var"] + eps)[None, :, None, None]
    h = h * p["bn_gamma"][None, :, None, None] + p["bn_beta"][None, :, None, None]
    h = jnp.maximum(h, 0.0)
    h = lax.conv_general_dilated(h, p["conv2_w"], (1, 1), "VALID",
                                 dimension_numbers=("NCHW", "OIHW", "NCHW"))
    h = jnp.maximum(h, 0.0)
    h = h.reshape(h.shape[0], -1)
    return h @ p["fc_w"].T + p["fc_b"]


if __name__ == "__main__":
    N, C, H, W = 2, 8, 8, 8
    num_classes = 10

    key = jax.random.PRNGKey(0)
    kx, k1, k2, k3, k4, k5, k6, k7, k8 = jax.random.split(key, 9)
    params = {
        "conv1_w": jax.random.normal(k1, (128, C, 1, 1), jnp.float32) * 0.1,
        "bn_gamma": 1.0 + 0.1 * jax.random.normal(k2, (128,), jnp.float32),
        "bn_beta": 0.1 * jax.random.normal(k3, (128,), jnp.float32),
        "bn_mean": 0.1 * jax.random.normal(k4, (128,), jnp.float32),
        "bn_var": 1.0 + 0.1 * jnp.abs(jax.random.normal(k5, (128,), jnp.float32)),
        "conv2_w": jax.random.normal(k6, (768, 128, 2, 2), jnp.float32) * 0.05,
        "fc_w": jax.random.normal(k7, (num_classes, 768), jnp.float32) * 0.05,
        "fc_b": 0.1 * jax.random.normal(k8, (num_classes,), jnp.float32),
    }
    x = jax.random.normal(kx, (N, C, H, W), jnp.float32)

    # Fold weights once (cacheable per parameter set), then run the kernel.
    folded = fold_aux_head_params(params, C, H, W, num_classes)
    out = aux_head_forward(x, folded)
    out = jax.block_until_ready(out)

    ref = jax.block_until_ready(reference(x, params))
    assert out.shape == (N, num_classes)
    np.testing.assert_allclose(np.asarray(out), np.asarray(ref),
                               rtol=2e-2, atol=2e-2)
    print("KERNEL_OK")
</pallas_src>

<mosaic_0001>
module attributes {stable_mosaic.version = 11 : i64} {
  func.func @aux_head_kernel(%arg0: i32, %arg1: memref<16x512xbf16, #tpu.memory_space<vmem>>, %arg2: memref<512x512xbf16, #tpu.memory_space<vmem>>, %arg3: memref<1x512xf32, #tpu.memory_space<vmem>>, %arg4: memref<512x768xbf16, #tpu.memory_space<vmem>>, %arg5: memref<768x128xbf16, #tpu.memory_space<vmem>>, %arg6: memref<1x128xf32, #tpu.memory_space<vmem>>, %arg7: memref<16x128xf32, #tpu.memory_space<vmem>>) attributes {dimension_semantics = [#tpu.dimension_semantics<parallel>], iteration_bounds = array<i64: 1>, scalar_prefetch = 0 : i64, scratch_operands = 0 : i64, tpu.core_type = #tpu.core_type<tc>, window_params = [{transform_indices = @transform_0, window_bounds = array<i64: 16, 512>}, {pipeline_mode = #tpu.pipeline_mode<synchronous>, transform_indices = @transform_1, window_bounds = array<i64: 512, 512>}, {pipeline_mode = #tpu.pipeline_mode<synchronous>, transform_indices = @transform_2, window_bounds = array<i64: 1, 512>}, {pipeline_mode = #tpu.pipeline_mode<synchronous>, transform_indices = @transform_3, window_bounds = array<i64: 512, 768>}, {pipeline_mode = #tpu.pipeline_mode<synchronous>, transform_indices = @transform_4, window_bounds = array<i64: 768, 128>}, {pipeline_mode = #tpu.pipeline_mode<synchronous>, transform_indices = @transform_5, window_bounds = array<i64: 1, 128>}, {transform_indices = @transform_6, window_bounds = array<i64: 16, 128>}]} {
    %c0 = arith.constant 0 : index
    %c0_0 = arith.constant 0 : index
    %0 = vector.load %arg1[%c0, %c0_0] : memref<16x512xbf16, #tpu.memory_space<vmem>>, vector<16x512xbf16>
    %cst = arith.constant 0.000000e+00 : bf16
    %1 = vector.broadcast %cst : bf16 to vector<16x512xbf16>
    %2 = arith.maximumf %0, %1 : vector<16x512xbf16>
    %c0_1 = arith.constant 0 : index
    %c0_2 = arith.constant 0 : index
    %3 = vector.load %arg2[%c0_1, %c0_2] : memref<512x512xbf16, #tpu.memory_space<vmem>>, vector<512x512xbf16>
    %cst_3 = arith.constant dense<0.000000e+00> : vector<16x512xf32>
    %4 = tpu.matmul %2, %3, %cst_3 {dimension_numbers = #tpu.dot_dimension_numbers<[1], [0], [0], [1], [0, 0, 1, 1], [], []>} : vector<16x512xbf16>, vector<512x512xbf16>, vector<16x512xf32> -> vector<16x512xf32>
    %c0_4 = arith.constant 0 : index
    %c0_5 = arith.constant 0 : index
    %5 = vector.load %arg3[%c0_4, %c0_5] : memref<1x512xf32, #tpu.memory_space<vmem>>, vector<1x512xf32>
    %6 = vector.broadcast %5 : vector<1x512xf32> to vector<16x512xf32>
    %7 = arith.addf %4, %6 : vector<16x512xf32>
    %cst_6 = arith.constant 0.000000e+00 : f32
    %8 = vector.broadcast %cst_6 : f32 to vector<16x512xf32>
    %9 = arith.maximumf %7, %8 : vector<16x512xf32>
    %10 = arith.truncf %9 : vector<16x512xf32> to vector<16x512xbf16>
    %c0_7 = arith.constant 0 : index
    %c0_8 = arith.constant 0 : index
    %11 = vector.load %arg4[%c0_7, %c0_8] : memref<512x768xbf16, #tpu.memory_space<vmem>>, vector<512x768xbf16>
    %cst_9 = arith.constant dense<0.000000e+00> : vector<16x768xf32>
    %12 = tpu.matmul %10, %11, %cst_9 {dimension_numbers = #tpu.dot_dimension_numbers<[1], [0], [0], [1], [0, 0, 1, 1], [], []>} : vector<16x512xbf16>, vector<512x768xbf16>, vector<16x768xf32> -> vector<16x768xf32>
    %cst_10 = arith.constant 0.000000e+00 : f32
    %13 = vector.broadcast %cst_10 : f32 to vector<16x768xf32>
    %14 = arith.maximumf %12, %13 : vector<16x768xf32>
    %15 = arith.truncf %14 : vector<16x768xf32> to vector<16x768xbf16>
    %c0_11 = arith.constant 0 : index
    %c0_12 = arith.constant 0 : index
    %16 = vector.load %arg5[%c0_11, %c0_12] : memref<768x128xbf16, #tpu.memory_space<vmem>>, vector<768x128xbf16>
    %cst_13 = arith.constant dense<0.000000e+00> : vector<16x128xf32>
    %17 = tpu.matmul %15, %16, %cst_13 {dimension_numbers = #tpu.dot_dimension_numbers<[1], [0], [0], [1], [0, 0, 1, 1], [], []>} : vector<16x768xbf16>, vector<768x128xbf16>, vector<16x128xf32> -> vector<16x128xf32>
    %c0_14 = arith.constant 0 : index
    %c0_15 = arith.constant 0 : index
    %18 = vector.load %arg6[%c0_14, %c0_15] : memref<1x128xf32, #tpu.memory_space<vmem>>, vector<1x128xf32>
    %19 = vector.broadcast %18 : vector<1x128xf32> to vector<16x128xf32>
    %20 = arith.addf %17, %19 : vector<16x128xf32>
    %c0_16 = arith.constant 0 : index
    %c0_17 = arith.constant 0 : index
    %21 = vector.load %arg7[%c0_16, %c0_17] : memref<16x128xf32, #tpu.memory_space<vmem>>, vector<16x128xf32>
    tpu.vector_store %arg7[%c0_16, %c0_17], %20 {strides = array<i32>} : memref<16x128xf32, #tpu.memory_space<vmem>>, vector<16x128xf32>,
    return
  }
  func.func @transform_0(%arg0: i32) -> (i32, i32) {
    %c0_i32 = arith.constant 0 : i32
    %c0_i32_0 = arith.constant 0 : i32
    return %arg0, %c0_i32 : i32, i32
  }
  func.func @transform_1(%arg0: i32) -> (i32, i32) {
    %c0_i32 = arith.constant 0 : i32
    %c0_i32_0 = arith.constant 0 : i32
    %c0_i32_1 = arith.constant 0 : i32
    return %c0_i32, %c0_i32_0 : i32, i32
  }
  func.func @transform_2(%arg0: i32) -> (i32, i32) {
    %c0_i32 = arith.constant 0 : i32
    %c0_i32_0 = arith.constant 0 : i32
    %c0_i32_1 = arith.constant 0 : i32
    return %c0_i32, %c0_i32_0 : i32, i32
  }
  func.func @transform_3(%arg0: i32) -> (i32, i32) {
    %c0_i32 = arith.constant 0 : i32
    %c0_i32_0 = arith.constant 0 : i32
    %c0_i32_1 = arith.constant 0 : i32
    return %c0_i32, %c0_i32_0 : i32, i32
  }
  func.func @transform_4(%arg0: i32) -> (i32, i32) {
    %c0_i32 = arith.constant 0 : i32
    %c0_i32_0 = arith.constant 0 : i32
    %c0_i32_1 = arith.constant 0 : i32
    return %c0_i32, %c0_i32_0 : i32, i32
  }
  func.func @transform_5(%arg0: i32) -> (i32, i32) {
    %c0_i32 = arith.constant 0 : i32
    %c0_i32_0 = arith.constant 0 : i32
    %c0_i32_1 = arith.constant 0 : i32
    return %c0_i32, %c0_i32_0 : i32, i32
  }
  func.func @transform_6(%arg0: i32) -> (i32, i32) {
    %c0_i32 = arith.constant 0 : i32
    %c0_i32_0 = arith.constant 0 : i32
    return %arg0, %c0_i32 : i32, i32
  }
}

module attributes {stable_mosaic.version = 11 : i64} {
  func.func @aux_head_kernel(%arg0: i32, %arg1: memref<16x512xbf16, #tpu.memory_space<vmem>>, %arg2: memref<512x512xbf16, #tpu.memory_space<vmem>>, %arg3: memref<1x512xf32, #tpu.memory_space<vmem>>, %arg4: memref<512x768xbf16, #tpu.memory_space<vmem>>, %arg5: memref<768x128xbf16, #tpu.memory_space<vmem>>, %arg6: memref<1x128xf32, #tpu.memory_space<vmem>>, %arg7: memref<16x128xf32, #tpu.memory_space<vmem>>) attributes {dimension_semantics = [#tpu.dimension_semantics<parallel>], iteration_bounds = array<i64: 1>, scalar_prefetch = 0 : i64, scratch_operands = 0 : i64, tpu.core_type = #tpu.core_type<tc>, window_params = [{transform_indices = @transform_0, window_bounds = array<i64: 16, 512>}, {pipeline_mode = #tpu.pipeline_mode<synchronous>, transform_indices = @transform_1, window_bounds = array<i64: 512, 512>}, {pipeline_mode = #tpu.pipeline_mode<synchronous>, transform_indices = @transform_2, window_bounds = array<i64: 1, 512>}, {pipeline_mode = #tpu.pipeline_mode<synchronous>, transform_indices = @transform_3, window_bounds = array<i64: 512, 768>}, {pipeline_mode = #tpu.pipeline_mode<synchronous>, transform_indices = @transform_4, window_bounds = array<i64: 768, 128>}, {pipeline_mode = #tpu.pipeline_mode<synchronous>, transform_indices = @transform_5, window_bounds = array<i64: 1, 128>}, {transform_indices = @transform_6, window_bounds = array<i64: 16, 128>}]} {
    %c0 = arith.constant 0 : index
    %c0_0 = arith.constant 0 : index
    %0 = vector.load %arg1[%c0, %c0_0] : memref<16x512xbf16, #tpu.memory_space<vmem>>, vector<16x512xbf16>
    %cst = arith.constant 0.000000e+00 : bf16
    %1 = vector.broadcast %cst : bf16 to vector<16x512xbf16>
    %2 = arith.maximumf %0, %1 : vector<16x512xbf16>
    %c0_1 = arith.constant 0 : index
    %c0_2 = arith.constant 0 : index
    %3 = vector.load %arg2[%c0_1, %c0_2] : memref<512x512xbf16, #tpu.memory_space<vmem>>, vector<512x512xbf16>
    %cst_3 = arith.constant dense<0.000000e+00> : vector<16x512xf32>
    %4 = tpu.matmul %2, %3, %cst_3 {dimension_numbers = #tpu.dot_dimension_numbers<[1], [0], [0], [1], [0, 0, 1, 1], [], []>} : vector<16x512xbf16>, vector<512x512xbf16>, vector<16x512xf32> -> vector<16x512xf32>
    %c0_4 = arith.constant 0 : index
    %c0_5 = arith.constant 0 : index
    %5 = vector.load %arg3[%c0_4, %c0_5] : memref<1x512xf32, #tpu.memory_space<vmem>>, vector<1x512xf32>
    %6 = vector.broadcast %5 : vector<1x512xf32> to vector<16x512xf32>
    %7 = arith.addf %4, %6 : vector<16x512xf32>
    %cst_6 = arith.constant 0.000000e+00 : f32
    %8 = vector.broadcast %cst_6 : f32 to vector<16x512xf32>
    %9 = arith.maximumf %7, %8 : vector<16x512xf32>
    %10 = arith.truncf %9 : vector<16x512xf32> to vector<16x512xbf16>
    %c0_7 = arith.constant 0 : index
    %c0_8 = arith.constant 0 : index
    %11 = vector.load %arg4[%c0_7, %c0_8] : memref<512x768xbf16, #tpu.memory_space<vmem>>, vector<512x768xbf16>
    %cst_9 = arith.constant dense<0.000000e+00> : vector<16x768xf32>
    %12 = tpu.matmul %10, %11, %cst_9 {dimension_numbers = #tpu.dot_dimension_numbers<[1], [0], [0], [1], [0, 0, 1, 1], [], []>} : vector<16x512xbf16>, vector<512x768xbf16>, vector<16x768xf32> -> vector<16x768xf32>
    %cst_10 = arith.constant 0.000000e+00 : f32
    %13 = vector.broadcast %cst_10 : f32 to vector<16x768xf32>
    %14 = arith.maximumf %12, %13 : vector<16x768xf32>
    %15 = arith.truncf %14 : vector<16x768xf32> to vector<16x768xbf16>
    %c0_11 = arith.constant 0 : index
    %c0_12 = arith.constant 0 : index
    %16 = vector.load %arg5[%c0_11, %c0_12] : memref<768x128xbf16, #tpu.memory_space<vmem>>, vector<768x128xbf16>
    %cst_13 = arith.constant dense<0.000000e+00> : vector<16x128xf32>
    %17 = tpu.matmul %15, %16, %cst_13 {dimension_numbers = #tpu.dot_dimension_numbers<[1], [0], [0], [1], [0, 0, 1, 1], [], []>} : vector<16x768xbf16>, vector<768x128xbf16>, vector<16x128xf32> -> vector<16x128xf32>
    %c0_14 = arith.constant 0 : index
    %c0_15 = arith.constant 0 : index
    %18 = vector.load %arg6[%c0_14, %c0_15] : memref<1x128xf32, #tpu.memory_space<vmem>>, vector<1x128xf32>
    %19 = vector.broadcast %18 : vector<1x128xf32> to vector<16x128xf32>
    %20 = arith.addf %17, %19 : vector<16x128xf32>
    %c0_16 = arith.constant 0 : index
    %c0_17 = arith.constant 0 : index
    %21 = vector.load %arg7[%c0_16, %c0_17] : memref<16x128xf32, #tpu.memory_space<vmem>>, vector<16x128xf32>
    tpu.vector_store %arg7[%c0_16, %c0_17], %20 {strides = array<i32>} : memref<16x128xf32, #tpu.memory_space<vmem>>, vector<16x128xf32>,
    return
  }
  func.func @transform_0(%arg0: i32) -> (i32, i32) {
    %c0_i32 = arith.constant 0 : i32
    %c0_i32_0 = arith.constant 0 : i32
    return %arg0, %c0_i32 : i32, i32
  }
  func.func @transform_1(%arg0: i32) -> (i32, i32) {
    %c0_i32 = arith.constant 0 : i32
    %c0_i32_0 = arith.constant 0 : i32
    %c0_i32_1 = arith.constant 0 : i32
    return %c0_i32, %c0_i32_0 : i32, i32
  }
  func.func @transform_2(%arg0: i32) -> (i32, i32) {
    %c0_i32 = arith.constant 0 : i32
    %c0_i32_0 = arith.constant 0 : i32
    %c0_i32_1 = arith.constant 0 : i32
    return %c0_i32, %c0_i32_0 : i32, i32
  }
  func.func @transform_3(%arg0: i32) -> (i32, i32) {
    %c0_i32 = arith.constant 0 : i32
    %c0_i32_0 = arith.constant 0 : i32
    %c0_i32_1 = arith.constant 0 : i32
    return %c0_i32, %c0_i32_0 : i32, i32
  }
  func.func @transform_4(%arg0: i32) -> (i32, i32) {
    %c0_i32 = arith.constant 0 : i32
    %c0_i32_0 = arith.constant 0 : i32
    %c0_i32_1 = arith.constant 0 : i32
    return %c0_i32, %c0_i32_0 : i32, i32
  }
  func.func @transform_5(%arg0: i32) -> (i32, i32) {
    %c0_i32 = arith.constant 0 : i32
    %c0_i32_0 = arith.constant 0 : i32
    %c0_i32_1 = arith.constant 0 : i32
    return %c0_i32, %c0_i32_0 : i32, i32
  }
  func.func @transform_6(%arg0: i32) -> (i32, i32) {
    %c0_i32 = arith.constant 0 : i32
    %c0_i32_0 = arith.constant 0 : i32
    return %arg0, %c0_i32 : i32, i32
  }
}

module attributes {stable_mosaic.version = 11 : i64} {
  func.func @aux_head_kernel(%arg0: i32, %arg1: memref<16x512xbf16, #tpu.memory_space<vmem>>, %arg2: memref<512x512xbf16, #tpu.memory_space<vmem>>, %arg3: memref<1x512xf32, #tpu.memory_space<vmem>>, %arg4: memref<512x768xbf16, #tpu.memory_space<vmem>>, %arg5: memref<768x128xbf16, #tpu.memory_space<vmem>>, %arg6: memref<1x128xf32, #tpu.memory_space<vmem>>, %arg7: memref<16x128xf32, #tpu.memory_space<vmem>>) attributes {dimension_semantics = [#tpu.dimension_semantics<parallel>], iteration_bounds = array<i64: 1>, scalar_prefetch = 0 : i64, scratch_operands = 0 : i64, tpu.core_type = #tpu.core_type<tc>, window_params = [{transform_indices = @transform_0, window_bounds = array<i64: 16, 512>}, {pipeline_mode = #tpu.pipeline_mode<synchronous>, transform_indices = @transform_1, window_bounds = array<i64: 512, 512>}, {pipeline_mode = #tpu.pipeline_mode<synchronous>, transform_indices = @transform_2, window_bounds = array<i64: 1, 512>}, {pipeline_mode = #tpu.pipeline_mode<synchronous>, transform_indices = @transform_3, window_bounds = array<i64: 512, 768>}, {pipeline_mode = #tpu.pipeline_mode<synchronous>, transform_indices = @transform_4, window_bounds = array<i64: 768, 128>}, {pipeline_mode = #tpu.pipeline_mode<synchronous>, transform_indices = @transform_5, window_bounds = array<i64: 1, 128>}, {transform_indices = @transform_6, window_bounds = array<i64: 16, 128>}]} {
    %c0 = arith.constant 0 : index
    %c0_0 = arith.constant 0 : index
    %0 = vector.load %arg1[%c0, %c0_0] : memref<16x512xbf16, #tpu.memory_space<vmem>>, vector<16x512xbf16>
    %cst = arith.constant 0.000000e+00 : bf16
    %1 = vector.broadcast %cst : bf16 to vector<16x512xbf16>
    %2 = arith.maximumf %0, %1 : vector<16x512xbf16>
    %c0_1 = arith.constant 0 : index
    %c0_2 = arith.constant 0 : index
    %3 = vector.load %arg2[%c0_1, %c0_2] : memref<512x512xbf16, #tpu.memory_space<vmem>>, vector<512x512xbf16>
    %cst_3 = arith.constant dense<0.000000e+00> : vector<16x512xf32>
    %4 = tpu.matmul %2, %3, %cst_3 {dimension_numbers = #tpu.dot_dimension_numbers<[1], [0], [0], [1], [0, 0, 1, 1], [], []>} : vector<16x512xbf16>, vector<512x512xbf16>, vector<16x512xf32> -> vector<16x512xf32>
    %c0_4 = arith.constant 0 : index
    %c0_5 = arith.constant 0 : index
    %5 = vector.load %arg3[%c0_4, %c0_5] : memref<1x512xf32, #tpu.memory_space<vmem>>, vector<1x512xf32>
    %6 = vector.broadcast %5 : vector<1x512xf32> to vector<16x512xf32>
    %7 = arith.addf %4, %6 : vector<16x512xf32>
    %cst_6 = arith.constant 0.000000e+00 : f32
    %8 = vector.broadcast %cst_6 : f32 to vector<16x512xf32>
    %9 = arith.maximumf %7, %8 : vector<16x512xf32>
    %10 = arith.truncf %9 : vector<16x512xf32> to vector<16x512xbf16>
    %c0_7 = arith.constant 0 : index
    %c0_8 = arith.constant 0 : index
    %11 = vector.load %arg4[%c0_7, %c0_8] : memref<512x768xbf16, #tpu.memory_space<vmem>>, vector<512x768xbf16>
    %cst_9 = arith.constant dense<0.000000e+00> : vector<16x768xf32>
    %12 = tpu.matmul %10, %11, %cst_9 {dimension_numbers = #tpu.dot_dimension_numbers<[1], [0], [0], [1], [0, 0, 1, 1], [], []>} : vector<16x512xbf16>, vector<512x768xbf16>, vector<16x768xf32> -> vector<16x768xf32>
    %cst_10 = arith.constant 0.000000e+00 : f32
    %13 = vector.broadcast %cst_10 : f32 to vector<16x768xf32>
    %14 = arith.maximumf %12, %13 : vector<16x768xf32>
    %15 = arith.truncf %14 : vector<16x768xf32> to vector<16x768xbf16>
    %c0_11 = arith.constant 0 : index
    %c0_12 = arith.constant 0 : index
    %16 = vector.load %arg5[%c0_11, %c0_12] : memref<768x128xbf16, #tpu.memory_space<vmem>>, vector<768x128xbf16>
    %cst_13 = arith.constant dense<0.000000e+00> : vector<16x128xf32>
    %17 = tpu.matmul %15, %16, %cst_13 {dimension_numbers = #tpu.dot_dimension_numbers<[1], [0], [0], [1], [0, 0, 1, 1], [], []>} : vector<16x768xbf16>, vector<768x128xbf16>, vector<16x128xf32> -> vector<16x128xf32>
    %c0_14 = arith.constant 0 : index
    %c0_15 = arith.constant 0 : index
    %18 = vector.load %arg6[%c0_14, %c0_15] : memref<1x128xf32, #tpu.memory_space<vmem>>, vector<1x128xf32>
    %19 = vector.broadcast %18 : vector<1x128xf32> to vector<16x128xf32>
    %20 = arith.addf %17, %19 : vector<16x128xf32>
    %c0_16 = arith.constant 0 : index
    %c0_17 = arith.constant 0 : index
    %21 = vector.load %arg7[%c0_16, %c0_17] : memref<16x128xf32, #tpu.memory_space<vmem>>, vector<16x128xf32>
    tpu.vector_store %arg7[%c0_16, %c0_17], %20 {strides = array<i32>} : memref<16x128xf32, #tpu.memory_space<vmem>>, vector<16x128xf32>,
    return
  }
  func.func @transform_0(%arg0: i32) -> (i32, i32) {
    %c0_i32 = arith.constant 0 : i32
    %c0_i32_0 = arith.constant 0 : i32
    return %arg0, %c0_i32 : i32, i32
  }
  func.func @transform_1(%arg0: i32) -> (i32, i32) {
    %c0_i32 = arith.constant 0 : i32
    %c0_i32_0 = arith.constant 0 : i32
    %c0_i32_1 = arith.constant 0 : i32
    return %c0_i32, %c0_i32_0 : i32, i32
  }
  func.func @transform_2(%arg0: i32) -> (i32, i32) {
    %c0_i32 = arith.constant 0 : i32
    %c0_i32_0 = arith.constant 0 : i32
    %c0_i32_1 = arith.constant 0 : i32
    return %c0_i32, %c0_i32_0 : i32, i32
  }
  func.func @transform_3(%arg0: i32) -> (i32, i32) {
    %c0_i32 = arith.constant 0 : i32
    %c0_i32_0 = arith.constant 0 : i32
    %c0_i32_1 = arith.constant 0 : i32
    return %c0_i32, %c0_i32_0 : i32, i32
  }
  func.func @transform_4(%arg0: i32) -> (i32, i32) {
    %c0_i32 = arith.constant 0 : i32
    %c0_i32_0 = arith.constant 0 : i32
    %c0_i32_1 = arith.constant 0 : i32
    return %c0_i32, %c0_i32_0 : i32, i32
  }
  func.func @transform_5(%arg0: i32) -> (i32, i32) {
    %c0_i32 = arith.constant 0 : i32
    %c0_i32_0 = arith.constant 0 : i32
    %c0_i32_1 = arith.constant 0 : i32
    return %c0_i32, %c0_i32_0 : i32, i32
  }
  func.func @transform_6(%arg0: i32) -> (i32, i32) {
    %c0_i32 = arith.constant 0 : i32
    %c0_i32_0 = arith.constant 0 : i32
    return %arg0, %c0_i32 : i32, i32
  }
}

</mosaic_0001>

<llo_original>
// kernel: tpu_custom_call.1
$region0: #{tpu_custom_call.1}
  #allocation0 [shape = 'u32[]', space=smem, size = 0x4, offset = 0x4, fixed_abs, tag = 'smem constant byte address 0x4 - core index']
  #allocation1 [shape = 'u32[144,128]{1,0:T(1,128)}', space=vmem, size = 0x12000, scoped, tag = 'internal scratch']
  %s0 = inlined_call_operand.hbm [shape: bf16[16,512], index: 0, kind: input, shape index: {}]
  %s1 = inlined_call_operand.hbm [shape: bf16[512,512], index: 1, kind: input, shape index: {}]
  %s2 = inlined_call_operand.vmem [shape: f32[1,512], index: 2, kind: input, shape index: {}]
  %s3 = inlined_call_operand.hbm [shape: bf16[512,768], index: 3, kind: input, shape index: {}]
  %s4 = inlined_call_operand.hbm [shape: bf16[768,128], index: 4, kind: input, shape index: {}]
  %s5 = inlined_call_operand.vmem [shape: f32[1,128], index: 5, kind: input, shape index: {}]
  %s6 = inlined_call_operand.hbm [shape: f32[16,128], index: 6, kind: output, shape index: {}]
  %s7 = sld [smem:[#allocation0]]
  $region50: #{tpu_custom_call.1} parent=0
    _
  %s9 = ssub.s32 1, %s7
  %s10 = scalar_select 0, %s9, %s7
  $region1: #{tpu_custom_call.1} parent=0
    #allocation2 [shape = 'u8[16384]{0}', space=vmem, size = 0x4000, scoped, tag = 'input window, operand 0, single buffered']
    #allocation3 [shape = 's32[1]{0}', space=sflag, size = 0x4, scoped, tag = 'scoped memory for tpu_custom_call.1']
    #allocation4 [shape = 's32[1]{0}', space=sflag, size = 0x4, scoped, tag = 'scoped memory for tpu_custom_call.1']
    #allocation5 [shape = 'u8[524288]{0}', space=vmem, size = 0x80000, scoped, tag = 'input window, operand 1, single buffered']
    #allocation6 [shape = 's32[1]{0}', space=sflag, size = 0x4, scoped, tag = 'scoped memory for tpu_custom_call.1']
    #allocation7 [shape = 'u8[786432]{0}', space=vmem, size = 0xc0000, scoped, tag = 'input window, operand 3, single buffered']
    #allocation8 [shape = 'u8[196608]{0}', space=vmem, size = 0x30000, scoped, tag = 'input window, operand 4, single buffered']
    #allocation9 [shape = 's32[1]{0}', space=sflag, size = 0x4, scoped, tag = 'scoped memory for tpu_custom_call.1']
    #allocation10 [shape = 'u8[8192]{0}', space=vmem, size = 0x2000, scoped, tag = 'output window, operand 0, single buffered']
    %11 = vsyncpa [#allocation3], 0
    %12 = vsyncpa [#allocation6], 0
    %13 = vsyncpa [#allocation9], 0
    %14 = vsyncpa [#allocation4], 0
    // Predicated region
    $region2: #{tpu_custom_call.1} parent=1 // pred_check
      _
    $region3: #{tpu_custom_call.1} parent=1 // pred_check_branch
      %16 = sbr.rel (0) target = $region5
    $region4: #{tpu_custom_call.1} parent=1 // pred_region
      %s18 = ssub.s32 512, 512
      %19 = vsyncadd [#allocation3], %s18
      %s20 = sshll.u32 [#allocation2], 4
      %s21 = int_to_ptr.vmem [resolvable:$true] %s20
      %26 = dma.hbm_to_vmem [thread:$0]  %s0, 512, %s21, [#allocation3], 256, 256, 16
    $region5: #{tpu_custom_call.1} parent=1 // pred_fallthru
      _
    // Predicated region
    $region6: #{tpu_custom_call.1} parent=1 // pred_check
      _
    $region7: #{tpu_custom_call.1} parent=1 // pred_check_branch
      %28 = sbr.rel (0) target = $region9
    $region8: #{tpu_custom_call.1} parent=1 // pred_region
      %s30 = ssub.s32 16384, 16384
      %31 = vsyncadd [#allocation6], %s30
      %s32 = sshll.u32 [#allocation5], 4
      %s33 = int_to_ptr.vmem [resolvable:$true] %s32
      %38 = dma.hbm_to_vmem [thread:$0]  %s1, 16384, %s33, [#allocation6], 256, 256, 16
    $region9: #{tpu_custom_call.1} parent=1 // pred_fallthru
      _
    // Predicated region
    $region10: #{tpu_custom_call.1} parent=1 // pred_check
      _
    $region11: #{tpu_custom_call.1} parent=1 // pred_check_branch
      %40 = sbr.rel (0) target = $region13
    $region12: #{tpu_custom_call.1} parent=1 // pred_region
      _
    $region13: #{tpu_custom_call.1} parent=1 // pred_fallthru
      _
    // Predicated region
    $region14: #{tpu_custom_call.1} parent=1 // pred_check
      _
    $region15: #{tpu_custom_call.1} parent=1 // pred_check_branch
      %42 = sbr.rel (0) target = $region17
    $region16: #{tpu_custom_call.1} parent=1 // pred_region
      %s44 = ssub.s32 24576, 24576
      %45 = vsyncadd [#allocation6], %s44
      %s46 = sshll.u32 [#allocation7], 4
      %s47 = int_to_ptr.vmem [resolvable:$true] %s46
      %52 = dma.hbm_to_vmem [thread:$0]  %s3, 24576, %s47, [#allocation6], 384, 384, 24
    $region17: #{tpu_custom_call.1} parent=1 // pred_fallthru
      _
    // Predicated region
    $region18: #{tpu_custom_call.1} parent=1 // pred_check
      _
    $region19: #{tpu_custom_call.1} parent=1 // pred_check_branch
      %54 = sbr.rel (0) target = $region21
    $region20: #{tpu_custom_call.1} parent=1 // pred_region
      %s56 = ssub.s32 6144, 6144
      %57 = vsyncadd [#allocation9], %s56
      %s58 = sshll.u32 [#allocation8], 4
      %s59 = int_to_ptr.vmem [resolvable:$true] %s58
      %64 = dma.hbm_to_vmem [thread:$0]  %s4, 6144, %s59, [#allocation9], 64, 64, 4
    $region21: #{tpu_custom_call.1} parent=1 // pred_fallthru
      _
    // Predicated region
    $region22: #{tpu_custom_call.1} parent=1 // pred_check
      _
    $region23: #{tpu_custom_call.1} parent=1 // pred_check_branch
      %66 = sbr.rel (0) target = $region25
    $region24: #{tpu_custom_call.1} parent=1 // pred_region
      _
    $region25: #{tpu_custom_call.1} parent=1 // pred_fallthru
      _
    // Predicated region
    $region26: #{tpu_custom_call.1} parent=1 // pred_check
      _
    $region27: #{tpu_custom_call.1} parent=1 // pred_check_branch
      %68 = sbr.rel (0) target = $region29
    $region28: #{tpu_custom_call.1} parent=1 // pred_region
      %69 = dma.done [#allocation3], 512
    $region29: #{tpu_custom_call.1} parent=1 // pred_fallthru
      _
    // Predicated region
    $region30: #{tpu_custom_call.1} parent=1 // pred_check
      _
    $region31: #{tpu_custom_call.1} parent=1 // pred_check_branch
      %71 = sbr.rel (0) target = $region33
    $region32: #{tpu_custom_call.1} parent=1 // pred_region
      %72 = dma.done [#allocation6], 16384
    $region33: #{tpu_custom_call.1} parent=1 // pred_fallthru
      _
    // Predicated region
    $region34: #{tpu_custom_call.1} parent=1 // pred_check
      _
    $region35: #{tpu_custom_call.1} parent=1 // pred_check_branch
      %74 = sbr.rel (0) target = $region37
    $region36: #{tpu_custom_call.1} parent=1 // pred_region
      %75 = dma.done [#allocation6], 24576
    $region37: #{tpu_custom_call.1} parent=1 // pred_fallthru
      _
    // Predicated region
    $region38: #{tpu_custom_call.1} parent=1 // pred_check
      _
    $region39: #{tpu_custom_call.1} parent=1 // pred_check_branch
      %77 = sbr.rel (0) target = $region41
    $region40: #{tpu_custom_call.1} parent=1 // pred_region
      %78 = dma.done [#allocation9], 6144
    $region41: #{tpu_custom_call.1} parent=1 // pred_fallthru
      _
    %v80 = vld [vmem:[#allocation2] sm:$0xff]
    %v81 = vld [vmem:[#allocation2 + $0x8] sm:$0xff]
    %v82 = vld [vmem:[#allocation2 + $0x10] sm:$0xff]
    %v83 = vld [vmem:[#allocation2 + $0x18] sm:$0xff]
    %v84 = vmax.bf16 %v80, 0
    %v85 = vmax.bf16 %v81, 0
    %v86 = vmax.bf16 %v82, 0
    %v87 = vmax.bf16 %v83, 0
    %v88 = vld [vmem:[#allocation5] sm:$0xff]
    %v89 = vld [vmem:[#allocation5 + $0x8] sm:$0xff]
    %v90 = vld [vmem:[#allocation5 + $0x10] sm:$0xff]
    %v91 = vld [vmem:[#allocation5 + $0x18] sm:$0xff]
    %v92 = vld [vmem:[#allocation5 + $0x20] sm:$0xff]
    %v93 = vld [vmem:[#allocation5 + $0x28] sm:$0xff]
    %v94 = vld [vmem:[#allocation5 + $0x30] sm:$0xff]
    %v95 = vld [vmem:[#allocation5 + $0x38] sm:$0xff]
    %v96 = vld [vmem:[#allocation5 + $0x40] sm:$0xff]
    %v97 = vld [vmem:[#allocation5 + $0x48] sm:$0xff]
    %v98 = vld [vmem:[#allocation5 + $0x50] sm:$0xff]
    %v99 = vld [vmem:[#allocation5 + $0x58] sm:$0xff]
    %v100 = vld [vmem:[#allocation5 + $0x60] sm:$0xff]
    %v101 = vld [vmem:[#allocation5 + $0x68] sm:$0xff]
    %v102 = vld [vmem:[#allocation5 + $0x70] sm:$0xff]
    %v103 = vld [vmem:[#allocation5 + $0x78] sm:$0xff]
    %v104 = vld [vmem:[#allocation5 + $0x80] sm:$0xff]
    %v105 = vld [vmem:[#allocation5 + $0x88] sm:$0xff]
    %v106 = vld [vmem:[#allocation5 + $0x90] sm:$0xff]
    %v107 = vld [vmem:[#allocation5 + $0x98] sm:$0xff]
    %v108 = vld [vmem:[#allocation5 + $0xa0] sm:$0xff]
    %v109 = vld [vmem:[#allocation5 + $0xa8] sm:$0xff]
    %v110 = vld [vmem:[#allocation5 + $0xb0] sm:$0xff]
    %v111 = vld [vmem:[#allocation5 + $0xb8] sm:$0xff]
    %v112 = vld [vmem:[#allocation5 + $0xc0] sm:$0xff]
    %v113 = vld [vmem:[#allocation5 + $0xc8] sm:$0xff]
    %v114 = vld [vmem:[#allocation5 + $0xd0] sm:$0xff]
    %v115 = vld [vmem:[#allocation5 + $0xd8] sm:$0xff]
    %v116 = vld [vmem:[#allocation5 + $0xe0] sm:$0xff]
    %v117 = vld [vmem:[#allocation5 + $0xe8] sm:$0xff]
    %v118 = vld [vmem:[#allocation5 + $0xf0] sm:$0xff]
    %v119 = vld [vmem:[#allocation5 + $0xf8] sm:$0xff]
    %v120 = vld [vmem:[#allocation5 + $0x100] sm:$0xff]
    %v121 = vld [vmem:[#allocation5 + $0x108] sm:$0xff]
    %v122 = vld [vmem:[#allocation5 + $0x110] sm:$0xff]
    %v123 = vld [vmem:[#allocation5 + $0x118] sm:$0xff]
    %v124 = vld [vmem:[#allocation5 + $0x120] sm:$0xff]
    %v125 = vld [vmem:[#allocation5 + $0x128] sm:$0xff]
    %v126 = vld [vmem:[#allocation5 + $0x130] sm:$0xff]
    %v127 = vld [vmem:[#allocation5 + $0x138] sm:$0xff]
    %v128 = vld [vmem:[#allocation5 + $0x140] sm:$0xff]
    %v129 = vld [vmem:[#allocation5 + $0x148] sm:$0xff]
    %v130 = vld [vmem:[#allocation5 + $0x150] sm:$0xff]
    %v131 = vld [vmem:[#allocation5 + $0x158] sm:$0xff]
    %v132 = vld [vmem:[#allocation5 + $0x160] sm:$0xff]
    %v133 = vld [vmem:[#allocation5 + $0x168] sm:$0xff]
    %v134 = vld [vmem:[#allocation5 + $0x170] sm:$0xff]
    %v135 = vld [vmem:[#allocation5 + $0x178] sm:$0xff]
    %v136 = vld [vmem:[#allocation5 + $0x180] sm:$0xff]
    %v137 = vld [vmem:[#allocation5 + $0x188] sm:$0xff]
    %v138 = vld [vmem:[#allocation5 + $0x190] sm:$0xff]
    %v139 = vld [vmem:[#allocation5 + $0x198] sm:$0xff]
    %v140 = vld [vmem:[#allocation5 + $0x1a0] sm:$0xff]
    %v141 = vld [vmem:[#allocation5 + $0x1a8] sm:$0xff]
    %v142 = vld [vmem:[#allocation5 + $0x1b0] sm:$0xff]
    %v143 = vld [vmem:[#allocation5 + $0x1b8] sm:$0xff]
    %v144 = vld [vmem:[#allocation5 + $0x1c0] sm:$0xff]
    %v145 = vld [vmem:[#allocation5 + $0x1c8] sm:$0xff]
    %v146 = vld [vmem:[#allocation5 + $0x1d0] sm:$0xff]
    %v147 = vld [vmem:[#allocation5 + $0x1d8] sm:$0xff]
    %v148 = vld [vmem:[#allocation5 + $0x1e0] sm:$0xff]
    %v149 = vld [vmem:[#allocation5 + $0x1e8] sm:$0xff]
    %v150 = vld [vmem:[#allocation5 + $0x1f0] sm:$0xff]
    %v151 = vld [vmem:[#allocation5 + $0x1f8] sm:$0xff]
    %v152 = vld [vmem:[#allocation5 + $0x200] sm:$0xff]
    %v153 = vld [vmem:[#allocation5 + $0x208] sm:$0xff]
    %v154 = vld [vmem:[#allocation5 + $0x210] sm:$0xff]
    %v155 = vld [vmem:[#allocation5 + $0x218] sm:$0xff]
    %v156 = vld [vmem:[#allocation5 + $0x220] sm:$0xff]
    %v157 = vld [vmem:[#allocation5 + $0x228] sm:$0xff]
    %v158 = vld [vmem:[#allocation5 + $0x230] sm:$0xff]
    %v159 = vld [vmem:[#allocation5 + $0x238] sm:$0xff]
    %v160 = vld [vmem:[#allocation5 + $0x240] sm:$0xff]
    %v161 = vld [vmem:[#allocation5 + $0x248] sm:$0xff]
    %v162 = vld [vmem:[#allocation5 + $0x250] sm:$0xff]
    %v163 = vld [vmem:[#allocation5 + $0x258] sm:$0xff]
    %v164 = vld [vmem:[#allocation5 + $0x260] sm:$0xff]
    %v165 = vld [vmem:[#allocation5 + $0x268] sm:$0xff]
    %v166 = vld [vmem:[#allocation5 + $0x270] sm:$0xff]
    %v167 = vld [vmem:[#allocation5 + $0x278] sm:$0xff]
    %v168 = vld [vmem:[#allocation5 + $0x280] sm:$0xff]
    %v169 = vld [vmem:[#allocation5 + $0x288] sm:$0xff]
    %v170 = vld [vmem:[#allocation5 + $0x290] sm:$0xff]
    %v171 = vld [vmem:[#allocation5 + $0x298] sm:$0xff]
    %v172 = vld [vmem:[#allocation5 + $0x2a0] sm:$0xff]
    %v173 = vld [vmem:[#allocation5 + $0x2a8] sm:$0xff]
    %v174 = vld [vmem:[#allocation5 + $0x2b0] sm:$0xff]
    %v175 = vld [vmem:[#allocation5 + $0x2b8] sm:$0xff]
    %v176 = vld [vmem:[#allocation5 + $0x2c0] sm:$0xff]
    %v177 = vld [vmem:[#allocation5 + $0x2c8] sm:$0xff]
    %v178 = vld [vmem:[#allocation5 + $0x2d0] sm:$0xff]
    %v179 = vld [vmem:[#allocation5 + $0x2d8] sm:$0xff]
    %v180 = vld [vmem:[#allocation5 + $0x2e0] sm:$0xff]
    %v181 = vld [vmem:[#allocation5 + $0x2e8] sm:$0xff]
    %v182 = vld [vmem:[#allocation5 + $0x2f0] sm:$0xff]
    %v183 = vld [vmem:[#allocation5 + $0x2f8] sm:$0xff]
    %v184 = vld [vmem:[#allocation5 + $0x300] sm:$0xff]
    %v185 = vld [vmem:[#allocation5 + $0x308] sm:$0xff]
    %v186 = vld [vmem:[#allocation5 + $0x310] sm:$0xff]
    %v187 = vld [vmem:[#allocation5 + $0x318] sm:$0xff]
    %v188 = vld [vmem:[#allocation5 + $0x320] sm:$0xff]
    %v189 = vld [vmem:[#allocation5 + $0x328] sm:$0xff]
    %v190 = vld [vmem:[#allocation5 + $0x330] sm:$0xff]
    %v191 = vld [vmem:[#allocation5 + $0x338] sm:$0xff]
    %v192 = vld [vmem:[#allocation5 + $0x340] sm:$0xff]
    %v193 = vld [vmem:[#allocation5 + $0x348] sm:$0xff]
    %v194 = vld [vmem:[#allocation5 + $0x350] sm:$0xff]
    %v195 = vld [vmem:[#allocation5 + $0x358] sm:$0xff]
    %v196 = vld [vmem:[#allocation5 + $0x360] sm:$0xff]
    %v197 = vld [vmem:[#allocation5 + $0x368] sm:$0xff]
    %v198 = vld [vmem:[#allocation5 + $0x370] sm:$0xff]
    %v199 = vld [vmem:[#allocation5 + $0x378] sm:$0xff]
    %v200 = vld [vmem:[#allocation5 + $0x380] sm:$0xff]
    %v201 = vld [vmem:[#allocation5 + $0x388] sm:$0xff]
    %v202 = vld [vmem:[#allocation5 + $0x390] sm:$0xff]
    %v203 = vld [vmem:[#allocation5 + $0x398] sm:$0xff]
    %v204 = vld [vmem:[#allocation5 + $0x3a0] sm:$0xff]
    %v205 = vld [vmem:[#allocation5 + $0x3a8] sm:$0xff]
    %v206 = vld [vmem:[#allocation5 + $0x3b0] sm:$0xff]
    %v207 = vld [vmem:[#allocation5 + $0x3b8] sm:$0xff]
    %v208 = vld [vmem:[#allocation5 + $0x3c0] sm:$0xff]
    %v209 = vld [vmem:[#allocation5 + $0x3c8] sm:$0xff]
    %v210 = vld [vmem:[#allocation5 + $0x3d0] sm:$0xff]
    %v211 = vld [vmem:[#allocation5 + $0x3d8] sm:$0xff]
    %v212 = vld [vmem:[#allocation5 + $0x3e0] sm:$0xff]
    %v213 = vld [vmem:[#allocation5 + $0x3e8] sm:$0xff]
    %v214 = vld [vmem:[#allocation5 + $0x3f0] sm:$0xff]
    %v215 = vld [vmem:[#allocation5 + $0x3f8] sm:$0xff]
    %v216 = vld [vmem:[%s2] sm:$0xf]
    %v218 = vlaneseq
    %v219 = vshrl.u32 %v218, 7
    %v220 = vsub.s32 0, %v219
    %v221 = vrot.slane %v216, %v220
    %v222 = vlaneseq
    %v223 = vshrl.u32 %v222, 7
    %v224 = vsub.s32 1, %v223
    %v225 = vrot.slane %v216, %v224
    %v226 = vlaneseq
    %v227 = vshrl.u32 %v226, 7
    %v228 = vsub.s32 2, %v227
    %v229 = vrot.slane %v216, %v228
    %v230 = vlaneseq
    %v231 = vshrl.u32 %v230, 7
    %v232 = vsub.s32 3, %v231
    %v233 = vrot.slane %v216, %v232
    %v242 = vunpack.c.l.b16 %v84
    %v243 = vunpack.c.h.b16 %v84
    %v244 = vunpack.c.l.b16 %v85
    %v245 = vunpack.c.h.b16 %v85
    %v246 = vunpack.c.l.b16 %v86
    %v247 = vunpack.c.h.b16 %v86
    %v248 = vunpack.c.l.b16 %v87
    %v249 = vunpack.c.h.b16 %v87
    %v250 = vpack.c.b16 %v246, %v242
    %v251 = vpack.c.b16 %v247, %v243
    %v252 = vpack.c.b16 %v248, %v244
    %v253 = vpack.c.b16 %v249, %v245
    %v386 = vunpack.c.l.b16 %v88
    %v387 = vunpack.c.h.b16 %v88
    %v388 = vunpack.c.l.b16 %v89
    %v389 = vunpack.c.h.b16 %v89
    %v390 = vunpack.c.l.b16 %v90
    %v391 = vunpack.c.h.b16 %v90
    %v392 = vunpack.c.l.b16 %v91
    %v393 = vunpack.c.h.b16 %v91
    %v394 = vunpack.c.l.b16 %v92
    %v395 = vunpack.c.h.b16 %v92
    %v396 = vunpack.c.l.b16 %v93
    %v397 = vunpack.c.h.b16 %v93
    %v398 = vunpack.c.l.b16 %v94
    %v399 = vunpack.c.h.b16 %v94
    %v400 = vunpack.c.l.b16 %v95
    %v401 = vunpack.c.h.b16 %v95
    %v402 = vunpack.c.l.b16 %v96
    %v403 = vunpack.c.h.b16 %v96
    %v404 = vunpack.c.l.b16 %v97
    %v405 = vunpack.c.h.b16 %v97
    %v406 = vunpack.c.l.b16 %v98
    %v407 = vunpack.c.h.b16 %v98
    %v408 = vunpack.c.l.b16 %v99
    %v409 = vunpack.c.h.b16 %v99
    %v410 = vunpack.c.l.b16 %v100
    %v411 = vunpack.c.h.b16 %v100
    %v412 = vunpack.c.l.b16 %v101
    %v413 = vunpack.c.h.b16 %v101
    %v414 = vunpack.c.l.b16 %v102
    %v415 = vunpack.c.h.b16 %v102
    %v416 = vunpack.c.l.b16 %v103
    %v417 = vunpack.c.h.b16 %v103
    %v418 = vunpack.c.l.b16 %v104
    %v419 = vunpack.c.h.b16 %v104
    %v420 = vunpack.c.l.b16 %v105
    %v421 = vunpack.c.h.b16 %v105
    %v422 = vunpack.c.l.b16 %v106
    %v423 = vunpack.c.h.b16 %v106
    %v424 = vunpack.c.l.b16 %v107
    %v425 = vunpack.c.h.b16 %v107
    %v426 = vunpack.c.l.b16 %v108
    %v427 = vunpack.c.h.b16 %v108
    %v428 = vunpack.c.l.b16 %v109
    %v429 = vunpack.c.h.b16 %v109
    %v430 = vunpack.c.l.b16 %v110
    %v431 = vunpack.c.h.b16 %v110
    %v432 = vunpack.c.l.b16 %v111
    %v433 = vunpack.c.h.b16 %v111
    %v434 = vunpack.c.l.b16 %v112
    %v435 = vunpack.c.h.b16 %v112
    %v436 = vunpack.c.l.b16 %v113
    %v437 = vunpack.c.h.b16 %v113
    %v438 = vunpack.c.l.b16 %v114
    %v439 = vunpack.c.h.b16 %v114
    %v440 = vunpack.c.l.b16 %v115
    %v441 = vunpack.c.h.b16 %v115
    %v442 = vunpack.c.l.b16 %v116
    %v443 = vunpack.c.h.b16 %v116
    %v444 = vunpack.c.l.b16 %v117
    %v445 = vunpack.c.h.b16 %v117
    %v446 = vunpack.c.l.b16 %v118
    %v447 = vunpack.c.h.b16 %v118
    %v448 = vunpack.c.l.b16 %v119
    %v449 = vunpack.c.h.b16 %v119
    %v450 = vunpack.c.l.b16 %v120
    %v451 = vunpack.c.h.b16 %v120
    %v452 = vunpack.c.l.b16 %v121
    %v453 = vunpack.c.h.b16 %v121
    %v454 = vunpack.c.l.b16 %v122
    %v455 = vunpack.c.h.b16 %v122
    %v456 = vunpack.c.l.b16 %v123
    %v457 = vunpack.c.h.b16 %v123
    %v458 = vunpack.c.l.b16 %v124
    %v459 = vunpack.c.h.b16 %v124
    %v460 = vunpack.c.l.b16 %v125
    %v461 = vunpack.c.h.b16 %v125
    %v462 = vunpack.c.l.b16 %v126
    %v463 = vunpack.c.h.b16 %v126
    %v464 = vunpack.c.l.b16 %v127
    %v465 = vunpack.c.h.b16 %v127
    %v466 = vunpack.c.l.b16 %v128
    %v467 = vunpack.c.h.b16 %v128
    %v468 = vunpack.c.l.b16 %v129
    %v469 = vunpack.c.h.b16 %v129
    %v470 = vunpack.c.l.b16 %v130
    %v471 = vunpack.c.h.b16 %v130
    %v472 = vunpack.c.l.b16 %v131
    %v473 = vunpack.c.h.b16 %v131
    %v474 = vunpack.c.l.b16 %v132
    %v475 = vunpack.c.h.b16 %v132
    %v476 = vunpack.c.l.b16 %v133
    %v477 = vunpack.c.h.b16 %v133
    %v478 = vunpack.c.l.b16 %v134
    %v479 = vunpack.c.h.b16 %v134
    %v480 = vunpack.c.l.b16 %v135
    %v481 = vunpack.c.h.b16 %v135
    %v482 = vunpack.c.l.b16 %v136
    %v483 = vunpack.c.h.b16 %v136
    %v484 = vunpack.c.l.b16 %v137
    %v485 = vunpack.c.h.b16 %v137
    %v486 = vunpack.c.l.b16 %v138
    %v487 = vunpack.c.h.b16 %v138
    %v488 = vunpack.c.l.b16 %v139
    %v489 = vunpack.c.h.b16 %v139
    %v490 = vunpack.c.l.b16 %v140
    %v491 = vunpack.c.h.b16 %v140
    %v492 = vunpack.c.l.b16 %v141
    %v493 = vunpack.c.h.b16 %v141
    %v494 = vunpack.c.l.b16 %v142
    %v495 = vunpack.c.h.b16 %v142
    %v496 = vunpack.c.l.b16 %v143
    %v497 = vunpack.c.h.b16 %v143
    %v498 = vunpack.c.l.b16 %v144
    %v499 = vunpack.c.h.b16 %v144
    %v500 = vunpack.c.l.b16 %v145
    %v501 = vunpack.c.h.b16 %v145
    %v502 = vunpack.c.l.b16 %v146
    %v503 = vunpack.c.h.b16 %v146
    %v504 = vunpack.c.l.b16 %v147
    %v505 = vunpack.c.h.b16 %v147
    %v506 = vunpack.c.l.b16 %v148
    %v507 = vunpack.c.h.b16 %v148
    %v508 = vunpack.c.l.b16 %v149
    %v509 = vunpack.c.h.b16 %v149
    %v510 = vunpack.c.l.b16 %v150
    %v511 = vunpack.c.h.b16 %v150
    %v512 = vunpack.c.l.b16 %v151
    %v513 = vunpack.c.h.b16 %v151
    %v514 = vunpack.c.l.b16 %v152
    %v515 = vunpack.c.h.b16 %v152
    %v516 = vunpack.c.l.b16 %v153
    %v517 = vunpack.c.h.b16 %v153
    %v518 = vunpack.c.l.b16 %v154
    %v519 = vunpack.c.h.b16 %v154
    %v520 = vunpack.c.l.b16 %v155
    %v521 = vunpack.c.h.b16 %v155
    %v522 = vunpack.c.l.b16 %v156
    %v523 = vunpack.c.h.b16 %v156
    %v524 = vunpack.c.l.b16 %v157
    %v525 = vunpack.c.h.b16 %v157
    %v526 = vunpack.c.l.b16 %v158
    %v527 = vunpack.c.h.b16 %v158
    %v528 = vunpack.c.l.b16 %v159
    %v529 = vunpack.c.h.b16 %v159
    %v530 = vunpack.c.l.b16 %v160
    %v531 = vunpack.c.h.b16 %v160
    %v532 = vunpack.c.l.b16 %v161
    %v533 = vunpack.c.h.b16 %v161
    %v534 = vunpack.c.l.b16 %v162
    %v535 = vunpack.c.h.b16 %v162
    %v536 = vunpack.c.l.b16 %v163
    %v537 = vunpack.c.h.b16 %v163
    %v538 = vunpack.c.l.b16 %v164
    %v539 = vunpack.c.h.b16 %v164
    %v540 = vunpack.c.l.b16 %v165
    %v541 = vunpack.c.h.b16 %v165
    %v542 = vunpack.c.l.b16 %v166
    %v543 = vunpack.c.h.b16 %v166
    %v544 = vunpack.c.l.b16 %v167
    %v545 = vunpack.c.h.b16 %v167
    %v546 = vunpack.c.l.b16 %v168
    %v547 = vunpack.c.h.b16 %v168
    %v548 = vunpack.c.l.b16 %v169
    %v549 = vunpack.c.h.b16 %v169
    %v550 = vunpack.c.l.b16 %v170
    %v551 = vunpack.c.h.b16 %v170
    %v552 = vunpack.c.l.b16 %v171
    %v553 = vunpack.c.h.b16 %v171
    %v554 = vunpack.c.l.b16 %v172
    %v555 = vunpack.c.h.b16 %v172
    %v556 = vunpack.c.l.b16 %v173
    %v557 = vunpack.c.h.b16 %v173
    %v558 = vunpack.c.l.b16 %v174
    %v559 = vunpack.c.h.b16 %v174
    %v560 = vunpack.c.l.b16 %v175
    %v561 = vunpack.c.h.b16 %v175
    %v562 = vunpack.c.l.b16 %v176
    %v563 = vunpack.c.h.b16 %v176
    %v564 = vunpack.c.l.b16 %v177
    %v565 = vunpack.c.h.b16 %v177
    %v566 = vunpack.c.l.b16 %v178
    %v567 = vunpack.c.h.b16 %v178
    %v568 = vunpack.c.l.b16 %v179
    %v569 = vunpack.c.h.b16 %v179
    %v570 = vunpack.c.l.b16 %v180
    %v571 = vunpack.c.h.b16 %v180
    %v572 = vunpack.c.l.b16 %v181
    %v573 = vunpack.c.h.b16 %v181
    %v574 = vunpack.c.l.b16 %v182
    %v575 = vunpack.c.h.b16 %v182
    %v576 = vunpack.c.l.b16 %v183
    %v577 = vunpack.c.h.b16 %v183
    %v578 = vunpack.c.l.b16 %v184
    %v579 = vunpack.c.h.b16 %v184
    %v580 = vunpack.c.l.b16 %v185
    %v581 = vunpack.c.h.b16 %v185
    %v582 = vunpack.c.l.b16 %v186
    %v583 = vunpack.c.h.b16 %v186
    %v584 = vunpack.c.l.b16 %v187
    %v585 = vunpack.c.h.b16 %v187
    %v586 = vunpack.c.l.b16 %v188
    %v587 = vunpack.c.h.b16 %v188
    %v588 = vunpack.c.l.b16 %v189
    %v589 = vunpack.c.h.b16 %v189
    %v590 = vunpack.c.l.b16 %v190
    %v591 = vunpack.c.h.b16 %v190
    %v592 = vunpack.c.l.b16 %v191
    %v593 = vunpack.c.h.b16 %v191
    %v594 = vunpack.c.l.b16 %v192
    %v595 = vunpack.c.h.b16 %v192
    %v596 = vunpack.c.l.b16 %v193
    %v597 = vunpack.c.h.b16 %v193
    %v598 = vunpack.c.l.b16 %v194
    %v599 = vunpack.c.h.b16 %v194
    %v600 = vunpack.c.l.b16 %v195
    %v601 = vunpack.c.h.b16 %v195
    %v602 = vunpack.c.l.b16 %v196
    %v603 = vunpack.c.h.b16 %v196
    %v604 = vunpack.c.l.b16 %v197
    %v605 = vunpack.c.h.b16 %v197
    %v606 = vunpack.c.l.b16 %v198
    %v607 = vunpack.c.h.b16 %v198
    %v608 = vunpack.c.l.b16 %v199
    %v609 = vunpack.c.h.b16 %v199
    %v610 = vunpack.c.l.b16 %v200
    %v611 = vunpack.c.h.b16 %v200
    %v612 = vunpack.c.l.b16 %v201
    %v613 = vunpack.c.h.b16 %v201
    %v614 = vunpack.c.l.b16 %v202
    %v615 = vunpack.c.h.b16 %v202
    %v616 = vunpack.c.l.b16 %v203
    %v617 = vunpack.c.h.b16 %v203
    %v618 = vunpack.c.l.b16 %v204
    %v619 = vunpack.c.h.b16 %v204
    %v620 = vunpack.c.l.b16 %v205
    %v621 = vunpack.c.h.b16 %v205
    %v622 = vunpack.c.l.b16 %v206
    %v623 = vunpack.c.h.b16 %v206
    %v624 = vunpack.c.l.b16 %v207
    %v625 = vunpack.c.h.b16 %v207
    %v626 = vunpack.c.l.b16 %v208
    %v627 = vunpack.c.h.b16 %v208
    %v628 = vunpack.c.l.b16 %v209
    %v629 = vunpack.c.h.b16 %v209
    %v630 = vunpack.c.l.b16 %v210
    %v631 = vunpack.c.h.b16 %v210
    %v632 = vunpack.c.l.b16 %v211
    %v633 = vunpack.c.h.b16 %v211
    %v634 = vunpack.c.l.b16 %v212
    %v635 = vunpack.c.h.b16 %v212
    %v636 = vunpack.c.l.b16 %v213
    %v637 = vunpack.c.h.b16 %v213
    %v638 = vunpack.c.l.b16 %v214
    %v639 = vunpack.c.h.b16 %v214
    %v640 = vunpack.c.l.b16 %v215
    %v641 = vunpack.c.h.b16 %v215
    %v642 = vpack.c.b16 %v390, %v386
    %v643 = vpack.c.b16 %v391, %v387
    %v644 = vpack.c.b16 %v392, %v388
    %v645 = vpack.c.b16 %v393, %v389
    %v646 = vpack.c.b16 %v398, %v394
    %v647 = vpack.c.b16 %v399, %v395
    %v648 = vpack.c.b16 %v400, %v396
    %v649 = vpack.c.b16 %v401, %v397
    %v650 = vpack.c.b16 %v406, %v402
    %v651 = vpack.c.b16 %v407, %v403
    %v652 = vpack.c.b16 %v408, %v404
    %v653 = vpack.c.b16 %v409, %v405
    %v654 = vpack.c.b16 %v414, %v410
    %v655 = vpack.c.b16 %v415, %v411
    %v656 = vpack.c.b16 %v416, %v412
    %v657 = vpack.c.b16 %v417, %v413
    %v658 = vpack.c.b16 %v422, %v418
    %v659 = vpack.c.b16 %v423, %v419
    %v660 = vpack.c.b16 %v424, %v420
    %v661 = vpack.c.b16 %v425, %v421
    %v662 = vpack.c.b16 %v430, %v426
    %v663 = vpack.c.b16 %v431, %v427
    %v664 = vpack.c.b16 %v432, %v428
    %v665 = vpack.c.b16 %v433, %v429
    %v666 = vpack.c.b16 %v438, %v434
    %v667 = vpack.c.b16 %v439, %v435
    %v668 = vpack.c.b16 %v440, %v436
    %v669 = vpack.c.b16 %v441, %v437
    %v670 = vpack.c.b16 %v446, %v442
    %v671 = vpack.c.b16 %v447, %v443
    %v672 = vpack.c.b16 %v448, %v444
    %v673 = vpack.c.b16 %v449, %v445
    %v674 = vpack.c.b16 %v454, %v450
    %v675 = vpack.c.b16 %v455, %v451
    %v676 = vpack.c.b16 %v456, %v452
    %v677 = vpack.c.b16 %v457, %v453
    %v678 = vpack.c.b16 %v462, %v458
    %v679 = vpack.c.b16 %v463, %v459
    %v680 = vpack.c.b16 %v464, %v460
    %v681 = vpack.c.b16 %v465, %v461
    %v682 = vpack.c.b16 %v470, %v466
    %v683 = vpack.c.b16 %v471, %v467
    %v684 = vpack.c.b16 %v472, %v468
    %v685 = vpack.c.b16 %v473, %v469
    %v686 = vpack.c.b16 %v478, %v474
    %v687 = vpack.c.b16 %v479, %v475
    %v688 = vpack.c.b16 %v480, %v476
    %v689 = vpack.c.b16 %v481, %v477
    %v690 = vpack.c.b16 %v486, %v482
    %v691 = vpack.c.b16 %v487, %v483
    %v692 = vpack.c.b16 %v488, %v484
    %v693 = vpack.c.b16 %v489, %v485
    %v694 = vpack.c.b16 %v494, %v490
    %v695 = vpack.c.b16 %v495, %v491
    %v696 = vpack.c.b16 %v496, %v492
    %v697 = vpack.c.b16 %v497, %v493
    %v698 = vpack.c.b16 %v502, %v498
    %v699 = vpack.c.b16 %v503, %v499
    %v700 = vpack.c.b16 %v504, %v500
    %v701 = vpack.c.b16 %v505, %v501
    %v702 = vpack.c.b16 %v510, %v506
    %v703 = vpack.c.b16 %v511, %v507
    %v704 = vpack.c.b16 %v512, %v508
    %v705 = vpack.c.b16 %v513, %v509
    %v706 = vpack.c.b16 %v518, %v514
    %v707 = vpack.c.b16 %v519, %v515
    %v708 = vpack.c.b16 %v520, %v516
    %v709 = vpack.c.b16 %v521, %v517
    %v710 = vpack.c.b16 %v526, %v522
    %v711 = vpack.c.b16 %v527, %v523
    %v712 = vpack.c.b16 %v528, %v524
    %v713 = vpack.c.b16 %v529, %v525
    %v714 = vpack.c.b16 %v534, %v530
    %v715 = vpack.c.b16 %v535, %v531
    %v716 = vpack.c.b16 %v536, %v532
    %v717 = vpack.c.b16 %v537, %v533
    %v718 = vpack.c.b16 %v542, %v538
    %v719 = vpack.c.b16 %v543, %v539
    %v720 = vpack.c.b16 %v544, %v540
    %v721 = vpack.c.b16 %v545, %v541
    %v722 = vpack.c.b16 %v550, %v546
    %v723 = vpack.c.b16 %v551, %v547
    %v724 = vpack.c.b16 %v552, %v548
    %v725 = vpack.c.b16 %v553, %v549
    %v726 = vpack.c.b16 %v558, %v554
    %v727 = vpack.c.b16 %v559, %v555
    %v728 = vpack.c.b16 %v560, %v556
    %v729 = vpack.c.b16 %v561, %v557
    %v730 = vpack.c.b16 %v566, %v562
    %v731 = vpack.c.b16 %v567, %v563
    %v732 = vpack.c.b16 %v568, %v564
    %v733 = vpack.c.b16 %v569, %v565
    %v734 = vpack.c.b16 %v574, %v570
    %v735 = vpack.c.b16 %v575, %v571
    %v736 = vpack.c.b16 %v576, %v572
    %v737 = vpack.c.b16 %v577, %v573
    %v738 = vpack.c.b16 %v582, %v578
    %v739 = vpack.c.b16 %v583, %v579
    %v740 = vpack.c.b16 %v584, %v580
    %v741 = vpack.c.b16 %v585, %v581
    %v742 = vpack.c.b16 %v590, %v586
    %v743 = vpack.c.b16 %v591, %v587
    %v744 = vpack.c.b16 %v592, %v588
    %v745 = vpack.c.b16 %v593, %v589
    %v746 = vpack.c.b16 %v598, %v594
    %v747 = vpack.c.b16 %v599, %v595
    %v748 = vpack.c.b16 %v600, %v596
    %v749 = vpack.c.b16 %v601, %v597
    %v750 = vpack.c.b16 %v606, %v602
    %v751 = vpack.c.b16 %v607, %v603
    %v752 = vpack.c.b16 %v608, %v604
    %v753 = vpack.c.b16 %v609, %v605
    %v754 = vpack.c.b16 %v614, %v610
    %v755 = vpack.c.b16 %v615, %v611
    %v756 = vpack.c.b16 %v616, %v612
    %v757 = vpack.c.b16 %v617, %v613
    %v758 = vpack.c.b16 %v622, %v618
    %v759 = vpack.c.b16 %v623, %v619
    %v760 = vpack.c.b16 %v624, %v620
    %v761 = vpack.c.b16 %v625, %v621
    %v762 = vpack.c.b16 %v630, %v626
    %v763 = vpack.c.b16 %v631, %v627
    %v764 = vpack.c.b16 %v632, %v628
    %v765 = vpack.c.b16 %v633, %v629
    %v766 = vpack.c.b16 %v638, %v634
    %v767 = vpack.c.b16 %v639, %v635
    %v768 = vpack.c.b16 %v640, %v636
    %v769 = vpack.c.b16 %v641, %v637
    %898 = vmatprep.subr.bf16.mxu0 %v643
    %899 = vmatpush1.bf16.msra.mxu0 %v642
    %900 = vmatprep.subr.bf16.mxu0 %v647
    %901 = vmatpush1.bf16.msra.mxu0 %v646
    %902 = vmatprep.subr.bf16.mxu0 %v651
    %903 = vmatpush1.bf16.msra.mxu0 %v650
    %904 = vmatprep.subr.bf16.mxu0 %v655
    %905 = vmatpush1.bf16.msra.mxu0 %v654
    %906 = vmatprep.subr.bf16.mxu0 %v659
    %907 = vmatpush1.bf16.msra.mxu0 %v658
    %908 = vmatprep.subr.bf16.mxu0 %v663
    %909 = vmatpush1.bf16.msra.mxu0 %v662
    %910 = vmatprep.subr.bf16.mxu0 %v667
    %911 = vmatpush1.bf16.msra.mxu0 %v666
    %912 = vmatprep.subr.bf16.mxu0 %v671
    %913 = vmatpush1.bf16.msra.mxu0 %v670
    %914 = vmatprep.subr.bf16.mxu0 %v675
    %915 = vmatpush1.bf16.msra.mxu0 %v674
    %916 = vmatprep.subr.bf16.mxu0 %v679
    %917 = vmatpush1.bf16.msra.mxu0 %v678
    %918 = vmatprep.subr.bf16.mxu0 %v683
    %919 = vmatpush1.bf16.msra.mxu0 %v682
    %920 = vmatprep.subr.bf16.mxu0 %v687
    %921 = vmatpush1.bf16.msra.mxu0 %v686
    %922 = vmatprep.subr.bf16.mxu0 %v691
    %923 = vmatpush1.bf16.msra.mxu0 %v690
    %924 = vmatprep.subr.bf16.mxu0 %v695
    %925 = vmatpush1.bf16.msra.mxu0 %v694
    %926 = vmatprep.subr.bf16.mxu0 %v699
    %927 = vmatpush1.bf16.msra.mxu0 %v698
    %928 = vmatprep.subr.bf16.mxu0 %v703
    %929 = vmatpush1.bf16.msra.mxu0 %v702
    %930 = vmatprep.mubr.bf16.mxu0 %v251
    %931 = vmatmul.mubr.bf16.gmra.mrb[0].mxu0 %v250
    %v932 = vpop.f32.mrb[0].mxu0
    %v933 = vadd.f32 %v221, %v932
    %v934 = vpop.f32.mrb[0].mxu0
    %v935 = vadd.f32 %v225, %v934
    %v936 = vpop.f32.mrb[0].mxu0
    %v937 = vadd.f32 %v221, %v936
    %v938 = vpop.f32.mrb[0].mxu0
    %v939 = vadd.f32 %v225, %v938
    %940 = vdwg.mxu0
    %941 = vmatprep.subr.bf16.mxu0 %v707
    %942 = vmatpush1.bf16.msra.mxu0 %v706
    %943 = vmatprep.subr.bf16.mxu0 %v711
    %944 = vmatpush1.bf16.msra.mxu0 %v710
    %945 = vmatprep.subr.bf16.mxu0 %v715
    %946 = vmatpush1.bf16.msra.mxu0 %v714
    %947 = vmatprep.subr.bf16.mxu0 %v719
    %948 = vmatpush1.bf16.msra.mxu0 %v718
    %949 = vmatprep.subr.bf16.mxu0 %v723
    %950 = vmatpush1.bf16.msra.mxu0 %v722
    %951 = vmatprep.subr.bf16.mxu0 %v727
    %952 = vmatpush1.bf16.msra.mxu0 %v726
    %953 = vmatprep.subr.bf16.mxu0 %v731
    %954 = vmatpush1.bf16.msra.mxu0 %v730
    %955 = vmatprep.subr.bf16.mxu0 %v735
    %956 = vmatpush1.bf16.msra.mxu0 %v734
    %957 = vmatprep.subr.bf16.mxu0 %v739
    %958 = vmatpush1.bf16.msra.mxu0 %v738
    %959 = vmatprep.subr.bf16.mxu0 %v743
    %960 = vmatpush1.bf16.msra.mxu0 %v742
    %961 = vmatprep.subr.bf16.mxu0 %v747
    %962 = vmatpush1.bf16.msra.mxu0 %v746
    %963 = vmatprep.subr.bf16.mxu0 %v751
    %964 = vmatpush1.bf16.msra.mxu0 %v750
    %965 = vmatprep.subr.bf16.mxu0 %v755
    %966 = vmatpush1.bf16.msra.mxu0 %v754
    %967 = vmatprep.subr.bf16.mxu0 %v759
    %968 = vmatpush1.bf16.msra.mxu0 %v758
    %969 = vmatprep.subr.bf16.mxu0 %v763
    %970 = vmatpush1.bf16.msra.mxu0 %v762
    %971 = vmatprep.subr.bf16.mxu0 %v767
    %972 = vmatpush1.bf16.msra.mxu0 %v766
    %973 = vmatprep.mubr.bf16.mxu0 %v253
    %974 = vmatmul.mubr.bf16.gmra.mrb[0].mxu0 %v252
    %v975 = vpop.f32.mrb[0].mxu0
    %v976 = vadd.f32 %v933, %v975
    %v977 = vpop.f32.mrb[0].mxu0
    %v978 = vadd.f32 %v935, %v977
    %v979 = vpop.f32.mrb[0].mxu0
    %v980 = vadd.f32 %v937, %v979
    %v981 = vpop.f32.mrb[0].mxu0
    %v982 = vadd.f32 %v939, %v981
    %983 = vdwg.mxu0
    %984 = vmatprep.subr.bf16.mxu0 %v645
    %985 = vmatpush1.bf16.msra.mxu0 %v644
    %986 = vmatprep.subr.bf16.mxu0 %v649
    %987 = vmatpush1.bf16.msra.mxu0 %v648
    %988 = vmatprep.subr.bf16.mxu0 %v653
    %989 = vmatpush1.bf16.msra.mxu0 %v652
    %990 = vmatprep.subr.bf16.mxu0 %v657
    %991 = vmatpush1.bf16.msra.mxu0 %v656
    %992 = vmatprep.subr.bf16.mxu0 %v661
    %993 = vmatpush1.bf16.msra.mxu0 %v660
    %994 = vmatprep.subr.bf16.mxu0 %v665
    %995 = vmatpush1.bf16.msra.mxu0 %v664
    %996 = vmatprep.subr.bf16.mxu0 %v669
    %997 = vmatpush1.bf16.msra.mxu0 %v668
    %998 = vmatprep.subr.bf16.mxu0 %v673
    %999 = vmatpush1.bf16.msra.mxu0 %v672
    %1000 = vmatprep.subr.bf16.mxu0 %v677
    %1001 = vmatpush1.bf16.msra.mxu0 %v676
    %1002 = vmatprep.subr.bf16.mxu0 %v681
    %1003 = vmatpush1.bf16.msra.mxu0 %v680
    %1004 = vmatprep.subr.bf16.mxu0 %v685
    %1005 = vmatpush1.bf16.msra.mxu0 %v684
    %1006 = vmatprep.subr.bf16.mxu0 %v689
    %1007 = vmatpush1.bf16.msra.mxu0 %v688
    %1008 = vmatprep.subr.bf16.mxu0 %v693
    %1009 = vmatpush1.bf16.msra.mxu0 %v692
    %1010 = vmatprep.subr.bf16.mxu0 %v697
    %1011 = vmatpush1.bf16.msra.mxu0 %v696
    %1012 = vmatprep.subr.bf16.mxu0 %v701
    %1013 = vmatpush1.bf16.msra.mxu0 %v700
    %1014 = vmatprep.subr.bf16.mxu0 %v705
    %1015 = vmatpush1.bf16.msra.mxu0 %v704
    %1016 = vmatprep.mubr.bf16.mxu0 %v251
    %1017 = vmatmul.mubr.bf16.gmra.mrb[0].mxu0 %v250
    %v1018 = vpop.f32.mrb[0].mxu0
    %v1019 = vadd.f32 %v229, %v1018
    %v1020 = vpop.f32.mrb[0].mxu0
    %v1021 = vadd.f32 %v233, %v1020
    %v1022 = vpop.f32.mrb[0].mxu0
    %v1023 = vadd.f32 %v229, %v1022
    %v1024 = vpop.f32.mrb[0].mxu0
    %v1025 = vadd.f32 %v233, %v1024
    %1026 = vdwg.mxu0
    %1027 = vmatprep.subr.bf16.mxu0 %v709
    %1028 = vmatpush1.bf16.msra.mxu0 %v708
    %1029 = vmatprep.subr.bf16.mxu0 %v713
    %1030 = vmatpush1.bf16.msra.mxu0 %v712
    %1031 = vmatprep.subr.bf16.mxu0 %v717
    %1032 = vmatpush1.bf16.msra.mxu0 %v716
    %1033 = vmatprep.subr.bf16.mxu0 %v721
    %1034 = vmatpush1.bf16.msra.mxu0 %v720
    %1035 = vmatprep.subr.bf16.mxu0 %v725
    %1036 = vmatpush1.bf16.msra.mxu0 %v724
    %1037 = vmatprep.subr.bf16.mxu0 %v729
    %1038 = vmatpush1.bf16.msra.mxu0 %v728
    %1039 = vmatprep.subr.bf16.mxu0 %v733
    %1040 = vmatpush1.bf16.msra.mxu0 %v732
    %1041 = vmatprep.subr.bf16.mxu0 %v737
    %1042 = vmatpush1.bf16.msra.mxu0 %v736
    %1043 = vmatprep.subr.bf16.mxu0 %v741
    %1044 = vmatpush1.bf16.msra.mxu0 %v740
    %1045 = vmatprep.subr.bf16.mxu0 %v745
    %1046 = vmatpush1.bf16.msra.mxu0 %v744
    %1047 = vmatprep.subr.bf16.mxu0 %v749
    %1048 = vmatpush1.bf16.msra.mxu0 %v748
    %1049 = vmatprep.subr.bf16.mxu0 %v753
    %1050 = vmatpush1.bf16.msra.mxu0 %v752
    %1051 = vmatprep.subr.bf16.mxu0 %v757
    %1052 = vmatpush1.bf16.msra.mxu0 %v756
    %1053 = vmatprep.subr.bf16.mxu0 %v761
    %1054 = vmatpush1.bf16.msra.mxu0 %v760
    %1055 = vmatprep.subr.bf16.mxu0 %v765
    %1056 = vmatpush1.bf16.msra.mxu0 %v764
    %1057 = vmatprep.subr.bf16.mxu0 %v769
    %1058 = vmatpush1.bf16.msra.mxu0 %v768
    %1059 = vmatprep.mubr.bf16.mxu0 %v253
    %1060 = vmatmul.mubr.bf16.gmra.mrb[0].mxu0 %v252
    %v1061 = vpop.f32.mrb[0].mxu0
    %v1062 = vadd.f32 %v1019, %v1061
    %v1063 = vpop.f32.mrb[0].mxu0
    %v1064 = vadd.f32 %v1021, %v1063
    %v1065 = vpop.f32.mrb[0].mxu0
    %v1066 = vadd.f32 %v1023, %v1065
    %v1067 = vpop.f32.mrb[0].mxu0
    %v1068 = vadd.f32 %v1025, %v1067
    %1069 = vdwg.mxu0
    %v1070 = vmax.f32 %v976, 0.0
    %v1071 = vmax.f32 %v978, 0.0
    %v1072 = vmax.f32 %v1062, 0.0
    %v1073 = vmax.f32 %v1064, 0.0
    %v1074 = vmax.f32 %v980, 0.0
    %v1075 = vmax.f32 %v982, 0.0
    %v1076 = vmax.f32 %v1066, 0.0
    %v1077 = vmax.f32 %v1068, 0.0
    %v1078 = vpack.c.bf16 %v1074, %v1070
    %v1079 = vpack.c.bf16 %v1075, %v1071
    %v1080 = vpack.c.bf16 %v1076, %v1072
    %v1081 = vpack.c.bf16 %v1077, %v1073
    %v1082 = vld [vmem:[#allocation7] sm:$0xff]
    %v1083 = vld [vmem:[#allocation7 + $0x8] sm:$0xff]
    %v1084 = vld [vmem:[#allocation7 + $0x10] sm:$0xff]
    %v1085 = vld [vmem:[#allocation7 + $0x18] sm:$0xff]
    %v1086 = vld [vmem:[#allocation7 + $0x20] sm:$0xff]
    %v1087 = vld [vmem:[#allocation7 + $0x28] sm:$0xff]
    %v1088 = vld [vmem:[#allocation7 + $0x30] sm:$0xff]
    %v1089 = vld [vmem:[#allocation7 + $0x38] sm:$0xff]
    %v1090 = vld [vmem:[#allocation7 + $0x40] sm:$0xff]
    %v1091 = vld [vmem:[#allocation7 + $0x48] sm:$0xff]
    %v1092 = vld [vmem:[#allocation7 + $0x50] sm:$0xff]
    %v1093 = vld [vmem:[#allocation7 + $0x58] sm:$0xff]
    %v1094 = vld [vmem:[#allocation7 + $0x60] sm:$0xff]
    %v1095 = vld [vmem:[#allocation7 + $0x68] sm:$0xff]
    %v1096 = vld [vmem:[#allocation7 + $0x70] sm:$0xff]
    %v1097 = vld [vmem:[#allocation7 + $0x78] sm:$0xff]
    %v1098 = vld [vmem:[#allocation7 + $0x80] sm:$0xff]
    %v1099 = vld [vmem:[#allocation7 + $0x88] sm:$0xff]
    %v1100 = vld [vmem:[#allocation7 + $0x90] sm:$0xff]
    %v1101 = vld [vmem:[#allocation7 + $0x98] sm:$0xff]
    %v1102 = vld [vmem:[#allocation7 + $0xa0] sm:$0xff]
    %v1103 = vld [vmem:[#allocation7 + $0xa8] sm:$0xff]
    %v1104 = vld [vmem:[#allocation7 + $0xb0] sm:$0xff]
    %v1105 = vld [vmem:[#allocation7 + $0xb8] sm:$0xff]
    %v1106 = vld [vmem:[#allocation7 + $0xc0] sm:$0xff]
    %v1107 = vld [vmem:[#allocation7 + $0xc8] sm:$0xff]
    %v1108 = vld [vmem:[#allocation7 + $0xd0] sm:$0xff]
    %v1109 = vld [vmem:[#allocation7 + $0xd8] sm:$0xff]
    %v1110 = vld [vmem:[#allocation7 + $0xe0] sm:$0xff]
    %v1111 = vld [vmem:[#allocation7 + $0xe8] sm:$0xff]
    %v1112 = vld [vmem:[#allocation7 + $0xf0] sm:$0xff]
    %v1113 = vld [vmem:[#allocation7 + $0xf8] sm:$0xff]
    %v1114 = vld [vmem:[#allocation7 + $0x100] sm:$0xff]
    %v1115 = vld [vmem:[#allocation7 + $0x108] sm:$0xff]
    %v1116 = vld [vmem:[#allocation7 + $0x110] sm:$0xff]
    %v1117 = vld [vmem:[#allocation7 + $0x118] sm:$0xff]
    %v1118 = vld [vmem:[#allocation7 + $0x120] sm:$0xff]
    %v1119 = vld [vmem:[#allocation7 + $0x128] sm:$0xff]
    %v1120 = vld [vmem:[#allocation7 + $0x130] sm:$0xff]
    %v1121 = vld [vmem:[#allocation7 + $0x138] sm:$0xff]
    %v1122 = vld [vmem:[#allocation7 + $0x140] sm:$0xff]
    %v1123 = vld [vmem:[#allocation7 + $0x148] sm:$0xff]
    %v1124 = vld [vmem:[#allocation7 + $0x150] sm:$0xff]
    %v1125 = vld [vmem:[#allocation7 + $0x158] sm:$0xff]
    %v1126 = vld [vmem:[#allocation7 + $0x160] sm:$0xff]
    %v1127 = vld [vmem:[#allocation7 + $0x168] sm:$0xff]
    %v1128 = vld [vmem:[#allocation7 + $0x170] sm:$0xff]
    %v1129 = vld [vmem:[#allocation7 + $0x178] sm:$0xff]
    %v1130 = vld [vmem:[#allocation7 + $0x180] sm:$0xff]
    %v1131 = vld [vmem:[#allocation7 + $0x188] sm:$0xff]
    %v1132 = vld [vmem:[#allocation7 + $0x190] sm:$0xff]
    %v1133 = vld [vmem:[#allocation7 + $0x198] sm:$0xff]
    %v1134 = vld [vmem:[#allocation7 + $0x1a0] sm:$0xff]
    %v1135 = vld [vmem:[#allocation7 + $0x1a8] sm:$0xff]
    %v1136 = vld [vmem:[#allocation7 + $0x1b0] sm:$0xff]
    %v1137 = vld [vmem:[#allocation7 + $0x1b8] sm:$0xff]
    %v1138 = vld [vmem:[#allocation7 + $0x1c0] sm:$0xff]
    %v1139 = vld [vmem:[#allocation7 + $0x1c8] sm:$0xff]
    %v1140 = vld [vmem:[#allocation7 + $0x1d0] sm:$0xff]
    %v1141 = vld [vmem:[#allocation7 + $0x1d8] sm:$0xff]
    %v1142 = vld [vmem:[#allocation7 + $0x1e0] sm:$0xff]
    %v1143 = vld [vmem:[#allocation7 + $0x1e8] sm:$0xff]
    %v1144 = vld [vmem:[#allocation7 + $0x1f0] sm:$0xff]
    %v1145 = vld [vmem:[#allocation7 + $0x1f8] sm:$0xff]
    %v1146 = vld [vmem:[#allocation7 + $0x200] sm:$0xff]
    %v1147 = vld [vmem:[#allocation7 + $0x208] sm:$0xff]
    %v1148 = vld [vmem:[#allocation7 + $0x210] sm:$0xff]
    %v1149 = vld [vmem:[#allocation7 + $0x218] sm:$0xff]
    %v1150 = vld [vmem:[#allocation7 + $0x220] sm:$0xff]
    %v1151 = vld [vmem:[#allocation7 + $0x228] sm:$0xff]
    %v1152 = vld [vmem:[#allocation7 + $0x230] sm:$0xff]
    %v1153 = vld [vmem:[#allocation7 + $0x238] sm:$0xff]
    %v1154 = vld [vmem:[#allocation7 + $0x240] sm:$0xff]
    %v1155 = vld [vmem:[#allocation7 + $0x248] sm:$0xff]
    %v1156 = vld [vmem:[#allocation7 + $0x250] sm:$0xff]
    %v1157 = vld [vmem:[#allocation7 + $0x258] sm:$0xff]
    %v1158 = vld [vmem:[#allocation7 + $0x260] sm:$0xff]
    %v1159 = vld [vmem:[#allocation7 + $0x268] sm:$0xff]
    %v1160 = vld [vmem:[#allocation7 + $0x270] sm:$0xff]
    %v1161 = vld [vmem:[#allocation7 + $0x278] sm:$0xff]
    %v1162 = vld [vmem:[#allocation7 + $0x280] sm:$0xff]
    %v1163 = vld [vmem:[#allocation7 + $0x288] sm:$0xff]
    %v1164 = vld [vmem:[#allocation7 + $0x290] sm:$0xff]
    %v1165 = vld [vmem:[#allocation7 + $0x298] sm:$0xff]
    %v1166 = vld [vmem:[#allocation7 + $0x2a0] sm:$0xff]
    %v1167 = vld [vmem:[#allocation7 + $0x2a8] sm:$0xff]
    %v1168 = vld [vmem:[#allocation7 + $0x2b0] sm:$0xff]
    %v1169 = vld [vmem:[#allocation7 + $0x2b8] sm:$0xff]
    %v1170 = vld [vmem:[#allocation7 + $0x2c0] sm:$0xff]
    %v1171 = vld [vmem:[#allocation7 + $0x2c8] sm:$0xff]
    %v1172 = vld [vmem:[#allocation7 + $0x2d0] sm:$0xff]
    %v1173 = vld [vmem:[#allocation7 + $0x2d8] sm:$0xff]
    %v1174 = vld [vmem:[#allocation7 + $0x2e0] sm:$0xff]
    %v1175 = vld [vmem:[#allocation7 + $0x2e8] sm:$0xff]
    %v1176 = vld [vmem:[#allocation7 + $0x2f0] sm:$0xff]
    %v1177 = vld [vmem:[#allocation7 + $0x2f8] sm:$0xff]
    %v1178 = vld [vmem:[#allocation7 + $0x300] sm:$0xff]
    %v1179 = vld [vmem:[#allocation7 + $0x308] sm:$0xff]
    %v1180 = vld [vmem:[#allocation7 + $0x310] sm:$0xff]
    %v1181 = vld [vmem:[#allocation7 + $0x318] sm:$0xff]
    %v1182 = vld [vmem:[#allocation7 + $0x320] sm:$0xff]
    %v1183 = vld [vmem:[#allocation7 + $0x328] sm:$0xff]
    %v1184 = vld [vmem:[#allocation7 + $0x330] sm:$0xff]
    %v1185 = vld [vmem:[#allocation7 + $0x338] sm:$0xff]
    %v1186 = vld [vmem:[#allocation7 + $0x340] sm:$0xff]
    %v1187 = vld [vmem:[#allocation7 + $0x348] sm:$0xff]
    %v1188 = vld [vmem:[#allocation7 + $0x350] sm:$0xff]
    %v1189 = vld [vmem:[#allocation7 + $0x358] sm:$0xff]
    %v1190 = vld [vmem:[#allocation7 + $0x360] sm:$0xff]
    %v1191 = vld [vmem:[#allocation7 + $0x368] sm:$0xff]
    %v1192 = vld [vmem:[#allocation7 + $0x370] sm:$0xff]
    %v1193 = vld [vmem:[#allocation7 + $0x378] sm:$0xff]
    %v1194 = vld [vmem:[#allocation7 + $0x380] sm:$0xff]
    %v1195 = vld [vmem:[#allocation7 + $0x388] sm:$0xff]
    %v1196 = vld [vmem:[#allocation7 + $0x390] sm:$0xff]
    %v1197 = vld [vmem:[#allocation7 + $0x398] sm:$0xff]
    %v1198 = vld [vmem:[#allocation7 + $0x3a0] sm:$0xff]
    %v1199 = vld [vmem:[#allocation7 + $0x3a8] sm:$0xff]
    %v1200 = vld [vmem:[#allocation7 + $0x3b0] sm:$0xff]
    %v1201 = vld [vmem:[#allocation7 + $0x3b8] sm:$0xff]
    %v1202 = vld [vmem:[#allocation7 + $0x3c0] sm:$0xff]
    %v1203 = vld [vmem:[#allocation7 + $0x3c8] sm:$0xff]
    %v1204 = vld [vmem:[#allocation7 + $0x3d0] sm:$0xff]
    %v1205 = vld [vmem:[#allocation7 + $0x3d8] sm:$0xff]
    %v1206 = vld [vmem:[#allocation7 + $0x3e0] sm:$0xff]
    %v1207 = vld [vmem:[#allocation7 + $0x3e8] sm:$0xff]
    %v1208 = vld [vmem:[#allocation7 + $0x3f0] sm:$0xff]
    %v1209 = vld [vmem:[#allocation7 + $0x3f8] sm:$0xff]
    %v1210 = vld [vmem:[#allocation7 + $0x400] sm:$0xff]
    %v1211 = vld [vmem:[#allocation7 + $0x408] sm:$0xff]
    %v1212 = vld [vmem:[#allocation7 + $0x410] sm:$0xff]
    %v1213 = vld [vmem:[#allocation7 + $0x418] sm:$0xff]
    %v1214 = vld [vmem:[#allocation7 + $0x420] sm:$0xff]
    %v1215 = vld [vmem:[#allocation7 + $0x428] sm:$0xff]
    %v1216 = vld [vmem:[#allocation7 + $0x430] sm:$0xff]
    %v1217 = vld [vmem:[#allocation7 + $0x438] sm:$0xff]
    %v1218 = vld [vmem:[#allocation7 + $0x440] sm:$0xff]
    %v1219 = vld [vmem:[#allocation7 + $0x448] sm:$0xff]
    %v1220 = vld [vmem:[#allocation7 + $0x450] sm:$0xff]
    %v1221 = vld [vmem:[#allocation7 + $0x458] sm:$0xff]
    %v1222 = vld [vmem:[#allocation7 + $0x460] sm:$0xff]
    %v1223 = vld [vmem:[#allocation7 + $0x468] sm:$0xff]
    %v1224 = vld [vmem:[#allocation7 + $0x470] sm:$0xff]
    %v1225 = vld [vmem:[#allocation7 + $0x478] sm:$0xff]
    %v1226 = vld [vmem:[#allocation7 + $0x480] sm:$0xff]
    %v1227 = vld [vmem:[#allocation7 + $0x488] sm:$0xff]
    %v1228 = vld [vmem:[#allocation7 + $0x490] sm:$0xff]
    %v1229 = vld [vmem:[#allocation7 + $0x498] sm:$0xff]
    %v1230 = vld [vmem:[#allocation7 + $0x4a0] sm:$0xff]
    %v1231 = vld [vmem:[#allocation7 + $0x4a8] sm:$0xff]
    %v1232 = vld [vmem:[#allocation7 + $0x4b0] sm:$0xff]
    %v1233 = vld [vmem:[#allocation7 + $0x4b8] sm:$0xff]
    %v1234 = vld [vmem:[#allocation7 + $0x4c0] sm:$0xff]
    %v1235 = vld [vmem:[#allocation7 + $0x4c8] sm:$0xff]
    %v1236 = vld [vmem:[#allocation7 + $0x4d0] sm:$0xff]
    %v1237 = vld [vmem:[#allocation7 + $0x4d8] sm:$0xff]
    %v1238 = vld [vmem:[#allocation7 + $0x4e0] sm:$0xff]
    %v1239 = vld [vmem:[#allocation7 + $0x4e8] sm:$0xff]
    %v1240 = vld [vmem:[#allocation7 + $0x4f0] sm:$0xff]
    %v1241 = vld [vmem:[#allocation7 + $0x4f8] sm:$0xff]
    %v1242 = vld [vmem:[#allocation7 + $0x500] sm:$0xff]
    %v1243 = vld [vmem:[#allocation7 + $0x508] sm:$0xff]
    %v1244 = vld [vmem:[#allocation7 + $0x510] sm:$0xff]
    %v1245 = vld [vmem:[#allocation7 + $0x518] sm:$0xff]
    %v1246 = vld [vmem:[#allocation7 + $0x520] sm:$0xff]
    %v1247 = vld [vmem:[#allocation7 + $0x528] sm:$0xff]
    %v1248 = vld [vmem:[#allocation7 + $0x530] sm:$0xff]
    %v1249 = vld [vmem:[#allocation7 + $0x538] sm:$0xff]
    %v1250 = vld [vmem:[#allocation7 + $0x540] sm:$0xff]
    %v1251 = vld [vmem:[#allocation7 + $0x548] sm:$0xff]
    %v1252 = vld [vmem:[#allocation7 + $0x550] sm:$0xff]
    %v1253 = vld [vmem:[#allocation7 + $0x558] sm:$0xff]
    %v1254 = vld [vmem:[#allocation7 + $0x560] sm:$0xff]
    %v1255 = vld [vmem:[#allocation7 + $0x568] sm:$0xff]
    %v1256 = vld [vmem:[#allocation7 + $0x570] sm:$0xff]
    %v1257 = vld [vmem:[#allocation7 + $0x578] sm:$0xff]
    %v1258 = vld [vmem:[#allocation7 + $0x580] sm:$0xff]
    %v1259 = vld [vmem:[#allocation7 + $0x588] sm:$0xff]
    %v1260 = vld [vmem:[#allocation7 + $0x590] sm:$0xff]
    %v1261 = vld [vmem:[#allocation7 + $0x598] sm:$0xff]
    %v1262 = vld [vmem:[#allocation7 + $0x5a0] sm:$0xff]
    %v1263 = vld [vmem:[#allocation7 + $0x5a8] sm:$0xff]
    %v1264 = vld [vmem:[#allocation7 + $0x5b0] sm:$0xff]
    %v1265 = vld [vmem:[#allocation7 + $0x5b8] sm:$0xff]
    %v1266 = vld [vmem:[#allocation7 + $0x5c0] sm:$0xff]
    %v1267 = vld [vmem:[#allocation7 + $0x5c8] sm:$0xff]
    %v1268 = vld [vmem:[#allocation7 + $0x5d0] sm:$0xff]
    %v1269 = vld [vmem:[#allocation7 + $0x5d8] sm:$0xff]
    %v1270 = vld [vmem:[#allocation7 + $0x5e0] sm:$0xff]
    %v1271 = vld [vmem:[#allocation7 + $0x5e8] sm:$0xff]
    %v1272 = vld [vmem:[#allocation7 + $0x5f0] sm:$0xff]
    %v1273 = vld [vmem:[#allocation7 + $0x5f8] sm:$0xff]
    %v1466 = vunpack.c.l.b16 %v1082
    %v1467 = vunpack.c.h.b16 %v1082
    %v1468 = vunpack.c.l.b16 %v1083
    %v1469 = vunpack.c.h.b16 %v1083
    %v1470 = vunpack.c.l.b16 %v1084
    %v1471 = vunpack.c.h.b16 %v1084
    %v1472 = vunpack.c.l.b16 %v1085
    %v1473 = vunpack.c.h.b16 %v1085
    %v1474 = vunpack.c.l.b16 %v1086
    %v1475 = vunpack.c.h.b16 %v1086
    %v1476 = vunpack.c.l.b16 %v1087
    %v1477 = vunpack.c.h.b16 %v1087
    %v1478 = vunpack.c.l.b16 %v1088
    %v1479 = vunpack.c.h.b16 %v1088
    %v1480 = vunpack.c.l.b16 %v1089
    %v1481 = vunpack.c.h.b16 %v1089
    %v1482 = vunpack.c.l.b16 %v1090
    %v1483 = vunpack.c.h.b16 %v1090
    %v1484 = vunpack.c.l.b16 %v1091
    %v1485 = vunpack.c.h.b16 %v1091
    %v1486 = vunpack.c.l.b16 %v1092
    %v1487 = vunpack.c.h.b16 %v1092
    %v1488 = vunpack.c.l.b16 %v1093
    %v1489 = vunpack.c.h.b16 %v1093
    %v1490 = vunpack.c.l.b16 %v1094
    %v1491 = vunpack.c.h.b16 %v1094
    %v1492 = vunpack.c.l.b16 %v1095
    %v1493 = vunpack.c.h.b16 %v1095
    %v1494 = vunpack.c.l.b16 %v1096
    %v1495 = vunpack.c.h.b16 %v1096
    %v1496 = vunpack.c.l.b16 %v1097
    %v1497 = vunpack.c.h.b16 %v1097
    %v1498 = vunpack.c.l.b16 %v1098
    %v1499 = vunpack.c.h.b16 %v1098
    %v1500 = vunpack.c.l.b16 %v1099
    %v1501 = vunpack.c.h.b16 %v1099
    %v1502 = vunpack.c.l.b16 %v1100
    %v1503 = vunpack.c.h.b16 %v1100
    %v1504 = vunpack.c.l.b16 %v1101
    %v1505 = vunpack.c.h.b16 %v1101
    %v1506 = vunpack.c.l.b16 %v1102
    %v1507 = vunpack.c.h.b16 %v1102
    %v1508 = vunpack.c.l.b16 %v1103
    %v1509 = vunpack.c.h.b16 %v1103
    %v1510 = vunpack.c.l.b16 %v1104
    %v1511 = vunpack.c.h.b16 %v1104
    %v1512 = vunpack.c.l.b16 %v1105
    %v1513 = vunpack.c.h.b16 %v1105
    %v1514 = vunpack.c.l.b16 %v1106
    %v1515 = vunpack.c.h.b16 %v1106
    %v1516 = vunpack.c.l.b16 %v1107
    %v1517 = vunpack.c.h.b16 %v1107
    %v1518 = vunpack.c.l.b16 %v1108
    %v1519 = vunpack.c.h.b16 %v1108
    %v1520 = vunpack.c.l.b16 %v1109
    %v1521 = vunpack.c.h.b16 %v1109
    %v1522 = vunpack.c.l.b16 %v1110
    %v1523 = vunpack.c.h.b16 %v1110
    %v1524 = vunpack.c.l.b16 %v1111
    %v1525 = vunpack.c.h.b16 %v1111
    %v1526 = vunpack.c.l.b16 %v1112
    %v1527 = vunpack.c.h.b16 %v1112
    %v1528 = vunpack.c.l.b16 %v1113
    %v1529 = vunpack.c.h.b16 %v1113
    %v1530 = vunpack.c.l.b16 %v1114
    %v1531 = vunpack.c.h.b16 %v1114
    %v1532 = vunpack.c.l.b16 %v1115
    %v1533 = vunpack.c.h.b16 %v1115
    %v1534 = vunpack.c.l.b16 %v1116
    %v1535 = vunpack.c.h.b16 %v1116
    %v1536 = vunpack.c.l.b16 %v1117
    %v1537 = vunpack.c.h.b16 %v1117
    %v1538 = vunpack.c.l.b16 %v1118
    %v1539 = vunpack.c.h.b16 %v1118
    %v1540 = vunpack.c.l.b16 %v1119
    %v1541 = vunpack.c.h.b16 %v1119
    %v1542 = vunpack.c.l.b16 %v1120
    %v1543 = vunpack.c.h.b16 %v1120
    %v1544 = vunpack.c.l.b16 %v1121
    %v1545 = vunpack.c.h.b16 %v1121
    %v1546 = vunpack.c.l.b16 %v1122
    %v1547 = vunpack.c.h.b16 %v1122
    %v1548 = vunpack.c.l.b16 %v1123
    %v1549 = vunpack.c.h.b16 %v1123
    %v1550 = vunpack.c.l.b16 %v1124
    %v1551 = vunpack.c.h.b16 %v1124
    %v1552 = vunpack.c.l.b16 %v1125
    %v1553 = vunpack.c.h.b16 %v1125
    %v1554 = vunpack.c.l.b16 %v1126
    %v1555 = vunpack.c.h.b16 %v1126
    %v1556 = vunpack.c.l.b16 %v1127
    %v1557 = vunpack.c.h.b16 %v1127
    %v1558 = vunpack.c.l.b16 %v1128
    %v1559 = vunpack.c.h.b16 %v1128
    %v1560 = vunpack.c.l.b16 %v1129
    %v1561 = vunpack.c.h.b16 %v1129
    %v1562 = vunpack.c.l.b16 %v1130
    %v1563 = vunpack.c.h.b16 %v1130
    %v1564 = vunpack.c.l.b16 %v1131
    %v1565 = vunpack.c.h.b16 %v1131
    %v1566 = vunpack.c.l.b16 %v1132
    %v1567 = vunpack.c.h.b16 %v1132
    %v1568 = vunpack.c.l.b16 %v1133
    %v1569 = vunpack.c.h.b16 %v1133
    %v1570 = vunpack.c.l.b16 %v1134
    %v1571 = vunpack.c.h.b16 %v1134
    %v1572 = vunpack.c.l.b16 %v1135
    %v1573 = vunpack.c.h.b16 %v1135
    %v1574 = vunpack.c.l.b16 %v1136
    %v1575 = vunpack.c.h.b16 %v1136
    %v1576 = vunpack.c.l.b16 %v1137
    %v1577 = vunpack.c.h.b16 %v1137
    %v1578 = vunpack.c.l.b16 %v1138
    %v1579 = vunpack.c.h.b16 %v1138
    %v1580 = vunpack.c.l.b16 %v1139
    %v1581 = vunpack.c.h.b16 %v1139
    %v1582 = vunpack.c.l.b16 %v1140
    %v1583 = vunpack.c.h.b16 %v1140
    %v1584 = vunpack.c.l.b16 %v1141
    %v1585 = vunpack.c.h.b16 %v1141
    %v1586 = vunpack.c.l.b16 %v1142
    %v1587 = vunpack.c.h.b16 %v1142
    %v1588 = vunpack.c.l.b16 %v1143
    %v1589 = vunpack.c.h.b16 %v1143
    %v1590 = vunpack.c.l.b16 %v1144
    %v1591 = vunpack.c.h.b16 %v1144
    %v1592 = vunpack.c.l.b16 %v1145
    %v1593 = vunpack.c.h.b16 %v1145
    %v1594 = vunpack.c.l.b16 %v1146
    %v1595 = vunpack.c.h.b16 %v1146
    %v1596 = vunpack.c.l.b16 %v1147
    %v1597 = vunpack.c.h.b16 %v1147
    %v1598 = vunpack.c.l.b16 %v1148
    %v1599 = vunpack.c.h.b16 %v1148
    %v1600 = vunpack.c.l.b16 %v1149
    %v1601 = vunpack.c.h.b16 %v1149
    %v1602 = vunpack.c.l.b16 %v1150
    %v1603 = vunpack.c.h.b16 %v1150
    %v1604 = vunpack.c.l.b16 %v1151
    %v1605 = vunpack.c.h.b16 %v1151
    %v1606 = vunpack.c.l.b16 %v1152
    %v1607 = vunpack.c.h.b16 %v1152
    %v1608 = vunpack.c.l.b16 %v1153
    %v1609 = vunpack.c.h.b16 %v1153
    %v1610 = vunpack.c.l.b16 %v1154
    %v1611 = vunpack.c.h.b16 %v1154
    %v1612 = vunpack.c.l.b16 %v1155
    %v1613 = vunpack.c.h.b16 %v1155
    %v1614 = vunpack.c.l.b16 %v1156
    %v1615 = vunpack.c.h.b16 %v1156
    %v1616 = vunpack.c.l.b16 %v1157
    %v1617 = vunpack.c.h.b16 %v1157
    %v1618 = vunpack.c.l.b16 %v1158
    %v1619 = vunpack.c.h.b16 %v1158
    %v1620 = vunpack.c.l.b16 %v1159
    %v1621 = vunpack.c.h.b16 %v1159
    %v1622 = vunpack.c.l.b16 %v1160
    %v1623 = vunpack.c.h.b16 %v1160
    %v1624 = vunpack.c.l.b16 %v1161
    %v1625 = vunpack.c.h.b16 %v1161
    %v1626 = vunpack.c.l.b16 %v1162
    %v1627 = vunpack.c.h.b16 %v1162
    %v1628 = vunpack.c.l.b16 %v1163
    %v1629 = vunpack.c.h.b16 %v1163
    %v1630 = vunpack.c.l.b16 %v1164
    %v1631 = vunpack.c.h.b16 %v1164
    %v1632 = vunpack.c.l.b16 %v1165
    %v1633 = vunpack.c.h.b16 %v1165
    %v1634 = vunpack.c.l.b16 %v1166
    %v1635 = vunpack.c.h.b16 %v1166
    %v1636 = vunpack.c.l.b16 %v1167
    %v1637 = vunpack.c.h.b16 %v1167
    %v1638 = vunpack.c.l.b16 %v1168
    %v1639 = vunpack.c.h.b16 %v1168
    %v1640 = vunpack.c.l.b16 %v1169
    %v1641 = vunpack.c.h.b16 %v1169
    %v1642 = vunpack.c.l.b16 %v1170
    %v1643 = vunpack.c.h.b16 %v1170
    %v1644 = vunpack.c.l.b16 %v1171
    %v1645 = vunpack.c.h.b16 %v1171
    %v1646 = vunpack.c.l.b16 %v1172
    %v1647 = vunpack.c.h.b16 %v1172
    %v1648 = vunpack.c.l.b16 %v1173
    %v1649 = vunpack.c.h.b16 %v1173
    %v1650 = vunpack.c.l.b16 %v1174
    %v1651 = vunpack.c.h.b16 %v1174
    %v1652 = vunpack.c.l.b16 %v1175
    %v1653 = vunpack.c.h.b16 %v1175
    %v1654 = vunpack.c.l.b16 %v1176
    %v1655 = vunpack.c.h.b16 %v1176
    %v1656 = vunpack.c.l.b16 %v1177
    %v1657 = vunpack.c.h.b16 %v1177
    %v1658 = vunpack.c.l.b16 %v1178
    %v1659 = vunpack.c.h.b16 %v1178
    %v1660 = vunpack.c.l.b16 %v1179
    %v1661 = vunpack.c.h.b16 %v1179
    %v1662 = vunpack.c.l.b16 %v1180
    %v1663 = vunpack.c.h.b16 %v1180
    %v1664 = vunpack.c.l.b16 %v1181
    %v1665 = vunpack.c.h.b16 %v1181
    %v1666 = vunpack.c.l.b16 %v1182
    %v1667 = vunpack.c.h.b16 %v1182
    %v1668 = vunpack.c.l.b16 %v1183
    %v1669 = vunpack.c.h.b16 %v1183
    %v1670 = vunpack.c.l.b16 %v1184
    %v1671 = vunpack.c.h.b16 %v1184
    %v1672 = vunpack.c.l.b16 %v1185
    %v1673 = vunpack.c.h.b16 %v1185
    %v1674 = vunpack.c.l.b16 %v1186
    %v1675 = vunpack.c.h.b16 %v1186
    %v1676 = vunpack.c.l.b16 %v1187
    %v1677 = vunpack.c.h.b16 %v1187
    %v1678 = vunpack.c.l.b16 %v1188
    %v1679 = vunpack.c.h.b16 %v1188
    %v1680 = vunpack.c.l.b16 %v1189
    %v1681 = vunpack.c.h.b16 %v1189
    %v1682 = vunpack.c.l.b16 %v1190
    %v1683 = vunpack.c.h.b16 %v1190
    %v1684 = vunpack.c.l.b16 %v1191
    %v1685 = vunpack.c.h.b16 %v1191
    %v1686 = vunpack.c.l.b16 %v1192
    %v1687 = vunpack.c.h.b16 %v1192
    %v1688 = vunpack.c.l.b16 %v1193
    %v1689 = vunpack.c.h.b16 %v1193
    %v1690 = vunpack.c.l.b16 %v1194
    %v1691 = vunpack.c.h.b16 %v1194
    %v1692 = vunpack.c.l.b16 %v1195
    %v1693 = vunpack.c.h.b16 %v1195
    %v1694 = vunpack.c.l.b16 %v1196
    %v1695 = vunpack.c.h.b16 %v1196
    %v1696 = vunpack.c.l.b16 %v1197
    %v1697 = vunpack.c.h.b16 %v1197
    %v1698 = vunpack.c.l.b16 %v1198
    %v1699 = vunpack.c.h.b16 %v1198
    %v1700 = vunpack.c.l.b16 %v1199
    %v1701 = vunpack.c.h.b16 %v1199
    %v1702 = vunpack.c.l.b16 %v1200
    %v1703 = vunpack.c.h.b16 %v1200
    %v1704 = vunpack.c.l.b16 %v1201
    %v1705 = vunpack.c.h.b16 %v1201
    %v1706 = vunpack.c.l.b16 %v1202
    %v1707 = vunpack.c.h.b16 %v1202
    %v1708 = vunpack.c.l.b16 %v1203
    %v1709 = vunpack.c.h.b16 %v1203
    %v1710 = vunpack.c.l.b16 %v1204
    %v1711 = vunpack.c.h.b16 %v1204
    %v1712 = vunpack.c.l.b16 %v1205
    %v1713 = vunpack.c.h.b16 %v1205
    %v1714 = vunpack.c.l.b16 %v1206
    %v1715 = vunpack.c.h.b16 %v1206
    %v1716 = vunpack.c.l.b16 %v1207
    %v1717 = vunpack.c.h.b16 %v1207
    %v1718 = vunpack.c.l.b16 %v1208
    %v1719 = vunpack.c.h.b16 %v1208
    %v1720 = vunpack.c.l.b16 %v1209
    %v1721 = vunpack.c.h.b16 %v1209
    %v1722 = vunpack.c.l.b16 %v1210
    %v1723 = vunpack.c.h.b16 %v1210
    %v1724 = vunpack.c.l.b16 %v1211
    %v1725 = vunpack.c.h.b16 %v1211
    %v1726 = vunpack.c.l.b16 %v1212
    %v1727 = vunpack.c.h.b16 %v1212
    %v1728 = vunpack.c.l.b16 %v1213
    %v1729 = vunpack.c.h.b16 %v1213
    %v1730 = vunpack.c.l.b16 %v1214
    %v1731 = vunpack.c.h.b16 %v1214
    %v1732 = vunpack.c.l.b16 %v1215
    %v1733 = vunpack.c.h.b16 %v1215
    %v1734 = vunpack.c.l.b16 %v1216
    %v1735 = vunpack.c.h.b16 %v1216
    %v1736 = vunpack.c.l.b16 %v1217
    %v1737 = vunpack.c.h.b16 %v1217
    %v1738 = vunpack.c.l.b16 %v1218
    %v1739 = vunpack.c.h.b16 %v1218
    %v1740 = vunpack.c.l.b16 %v1219
    %v1741 = vunpack.c.h.b16 %v1219
    %v1742 = vunpack.c.l.b16 %v1220
    %v1743 = vunpack.c.h.b16 %v1220
    %v1744 = vunpack.c.l.b16 %v1221
    %v1745 = vunpack.c.h.b16 %v1221
    %v1746 = vunpack.c.l.b16 %v1222
    %v1747 = vunpack.c.h.b16 %v1222
    %v1748 = vunpack.c.l.b16 %v1223
    %v1749 = vunpack.c.h.b16 %v1223
    %v1750 = vunpack.c.l.b16 %v1224
    %v1751 = vunpack.c.h.b16 %v1224
    %v1752 = vunpack.c.l.b16 %v1225
    %v1753 = vunpack.c.h.b16 %v1225
    %v1754 = vunpack.c.l.b16 %v1226
    %v1755 = vunpack.c.h.b16 %v1226
    %v1756 = vunpack.c.l.b16 %v1227
    %v1757 = vunpack.c.h.b16 %v1227
    %v1758 = vunpack.c.l.b16 %v1228
    %v1759 = vunpack.c.h.b16 %v1228
    %v1760 = vunpack.c.l.b16 %v1229
    %v1761 = vunpack.c.h.b16 %v1229
    %v1762 = vunpack.c.l.b16 %v1230
    %v1763 = vunpack.c.h.b16 %v1230
    %v1764 = vunpack.c.l.b16 %v1231
    %v1765 = vunpack.c.h.b16 %v1231
    %v1766 = vunpack.c.l.b16 %v1232
    %v1767 = vunpack.c.h.b16 %v1232
    %v1768 = vunpack.c.l.b16 %v1233
    %v1769 = vunpack.c.h.b16 %v1233
    %v1770 = vunpack.c.l.b16 %v1234
    %v1771 = vunpack.c.h.b16 %v1234
    %v1772 = vunpack.c.l.b16 %v1235
    %v1773 = vunpack.c.h.b16 %v1235
    %v1774 = vunpack.c.l.b16 %v1236
    %v1775 = vunpack.c.h.b16 %v1236
    %v1776 = vunpack.c.l.b16 %v1237
    %v1777 = vunpack.c.h.b16 %v1237
    %v1778 = vunpack.c.l.b16 %v1238
    %v1779 = vunpack.c.h.b16 %v1238
    %v1780 = vunpack.c.l.b16 %v1239
    %v1781 = vunpack.c.h.b16 %v1239
    %v1782 = vunpack.c.l.b16 %v1240
    %v1783 = vunpack.c.h.b16 %v1240
    %v1784 = vunpack.c.l.b16 %v1241
    %v1785 = vunpack.c.h.b16 %v1241
    %v1786 = vunpack.c.l.b16 %v1242
    %v1787 = vunpack.c.h.b16 %v1242
    %v1788 = vunpack.c.l.b16 %v1243
    %v1789 = vunpack.c.h.b16 %v1243
    %v1790 = vunpack.c.l.b16 %v1244
    %v1791 = vunpack.c.h.b16 %v1244
    %v1792 = vunpack.c.l.b16 %v1245
    %v1793 = vunpack.c.h.b16 %v1245
    %v1794 = vunpack.c.l.b16 %v1246
    %v1795 = vunpack.c.h.b16 %v1246
    %v1796 = vunpack.c.l.b16 %v1247
    %v1797 = vunpack.c.h.b16 %v1247
    %v1798 = vunpack.c.l.b16 %v1248
    %v1799 = vunpack.c.h.b16 %v1248
    %v1800 = vunpack.c.l.b16 %v1249
    %v1801 = vunpack.c.h.b16 %v1249
    %v1802 = vunpack.c.l.b16 %v1250
    %v1803 = vunpack.c.h.b16 %v1250
    %v1804 = vunpack.c.l.b16 %v1251
    %v1805 = vunpack.c.h.b16 %v1251
    %v1806 = vunpack.c.l.b16 %v1252
    %v1807 = vunpack.c.h.b16 %v1252
    %v1808 = vunpack.c.l.b16 %v1253
    %v1809 = vunpack.c.h.b16 %v1253
    %v1810 = vunpack.c.l.b16 %v1254
    %v1811 = vunpack.c.h.b16 %v1254
    %v1812 = vunpack.c.l.b16 %v1255
    %v1813 = vunpack.c.h.b16 %v1255
    %v1814 = vunpack.c.l.b16 %v1256
    %v1815 = vunpack.c.h.b16 %v1256
    %v1816 = vunpack.c.l.b16 %v1257
    %v1817 = vunpack.c.h.b16 %v1257
    %v1818 = vunpack.c.l.b16 %v1258
    %v1819 = vunpack.c.h.b16 %v1258
    %v1820 = vunpack.c.l.b16 %v1259
    %v1821 = vunpack.c.h.b16 %v1259
    %v1822 = vunpack.c.l.b16 %v1260
    %v1823 = vunpack.c.h.b16 %v1260
    %v1824 = vunpack.c.l.b16 %v1261
    %v1825 = vunpack.c.h.b16 %v1261
    %v1826 = vunpack.c.l.b16 %v1262
    %v1827 = vunpack.c.h.b16 %v1262
    %v1828 = vunpack.c.l.b16 %v1263
    %v1829 = vunpack.c.h.b16 %v1263
    %v1830 = vunpack.c.l.b16 %v1264
    %v1831 = vunpack.c.h.b16 %v1264
    %v1832 = vunpack.c.l.b16 %v1265
    %v1833 = vunpack.c.h.b16 %v1265
    %v1834 = vunpack.c.l.b16 %v1266
    %v1835 = vunpack.c.h.b16 %v1266
    %v1836 = vunpack.c.l.b16 %v1267
    %v1837 = vunpack.c.h.b16 %v1267
    %v1838 = vunpack.c.l.b16 %v1268
    %v1839 = vunpack.c.h.b16 %v1268
    %v1840 = vunpack.c.l.b16 %v1269
    %v1841 = vunpack.c.h.b16 %v1269
    %v1842 = vunpack.c.l.b16 %v1270
    %v1843 = vunpack.c.h.b16 %v1270
    %v1844 = vunpack.c.l.b16 %v1271
    %v1845 = vunpack.c.h.b16 %v1271
    %v1846 = vunpack.c.l.b16 %v1272
    %v1847 = vunpack.c.h.b16 %v1272
    %v1848 = vunpack.c.l.b16 %v1273
    %v1849 = vunpack.c.h.b16 %v1273
    %v1850 = vpack.c.b16 %v1472, %v1466
    %v1851 = vpack.c.b16 %v1473, %v1467
    %v1852 = vpack.c.b16 %v1474, %v1468
    %v1853 = vpack.c.b16 %v1475, %v1469
    %v1854 = vpack.c.b16 %v1476, %v1470
    %v1855 = vpack.c.b16 %v1477, %v1471
    %v1856 = vpack.c.b16 %v1484, %v1478
    %v1857 = vpack.c.b16 %v1485, %v1479
    %v1858 = vpack.c.b16 %v1486, %v1480
    %v1859 = vpack.c.b16 %v1487, %v1481
    %v1860 = vpack.c.b16 %v1488, %v1482
    %v1861 = vpack.c.b16 %v1489, %v1483
    %v1862 = vpack.c.b16 %v1496, %v1490
    %v1863 = vpack.c.b16 %v1497, %v1491
    %v1864 = vpack.c.b16 %v1498, %v1492
    %v1865 = vpack.c.b16 %v1499, %v1493
    %v1866 = vpack.c.b16 %v1500, %v1494
    %v1867 = vpack.c.b16 %v1501, %v1495
    %v1868 = vpack.c.b16 %v1508, %v1502
    %v1869 = vpack.c.b16 %v1509, %v1503
    %v1870 = vpack.c.b16 %v1510, %v1504
    %v1871 = vpack.c.b16 %v1511, %v1505
    %v1872 = vpack.c.b16 %v1512, %v1506
    %v1873 = vpack.c.b16 %v1513, %v1507
    %v1874 = vpack.c.b16 %v1520, %v1514
    %v1875 = vpack.c.b16 %v1521, %v1515
    %v1876 = vpack.c.b16 %v1522, %v1516
    %v1877 = vpack.c.b16 %v1523, %v1517
    %v1878 = vpack.c.b16 %v1524, %v1518
    %v1879 = vpack.c.b16 %v1525, %v1519
    %v1880 = vpack.c.b16 %v1532, %v1526
    %v1881 = vpack.c.b16 %v1533, %v1527
    %v1882 = vpack.c.b16 %v1534, %v1528
    %v1883 = vpack.c.b16 %v1535, %v1529
    %v1884 = vpack.c.b16 %v1536, %v1530
    %v1885 = vpack.c.b16 %v1537, %v1531
    %v1886 = vpack.c.b16 %v1544, %v1538
    %v1887 = vpack.c.b16 %v1545, %v1539
    %v1888 = vpack.c.b16 %v1546, %v1540
    %v1889 = vpack.c.b16 %v1547, %v1541
    %v1890 = vpack.c.b16 %v1548, %v1542
    %v1891 = vpack.c.b16 %v1549, %v1543
    %v1892 = vpack.c.b16 %v1556, %v1550
    %v1893 = vpack.c.b16 %v1557, %v1551
    %v1894 = vpack.c.b16 %v1558, %v1552
    %v1895 = vpack.c.b16 %v1559, %v1553
    %v1896 = vpack.c.b16 %v1560, %v1554
    %v1897 = vpack.c.b16 %v1561, %v1555
    %v1898 = vpack.c.b16 %v1568, %v1562
    %v1899 = vpack.c.b16 %v1569, %v1563
    %v1900 = vpack.c.b16 %v1570, %v1564
    %v1901 = vpack.c.b16 %v1571, %v1565
    %v1902 = vpack.c.b16 %v1572, %v1566
    %v1903 = vpack.c.b16 %v1573, %v1567
    %v1904 = vpack.c.b16 %v1580, %v1574
    %v1905 = vpack.c.b16 %v1581, %v1575
    %v1906 = vpack.c.b16 %v1582, %v1576
    %v1907 = vpack.c.b16 %v1583, %v1577
    %v1908 = vpack.c.b16 %v1584, %v1578
    %v1909 = vpack.c.b16 %v1585, %v1579
    %v1910 = vpack.c.b16 %v1592, %v1586
    %v1911 = vpack.c.b16 %v1593, %v1587
    %v1912 = vpack.c.b16 %v1594, %v1588
    %v1913 = vpack.c.b16 %v1595, %v1589
    %v1914 = vpack.c.b16 %v1596, %v1590
    %v1915 = vpack.c.b16 %v1597, %v1591
    %v1916 = vpack.c.b16 %v1604, %v1598
    %v1917 = vpack.c.b16 %v1605, %v1599
    %v1918 = vpack.c.b16 %v1606, %v1600
    %v1919 = vpack.c.b16 %v1607, %v1601
    %v1920 = vpack.c.b16 %v1608, %v1602
    %v1921 = vpack.c.b16 %v1609, %v1603
    %v1922 = vpack.c.b16 %v1616, %v1610
    %v1923 = vpack.c.b16 %v1617, %v1611
    %v1924 = vpack.c.b16 %v1618, %v1612
    %v1925 = vpack.c.b16 %v1619, %v1613
    %v1926 = vpack.c.b16 %v1620, %v1614
    %v1927 = vpack.c.b16 %v1621, %v1615
    %v1928 = vpack.c.b16 %v1628, %v1622
    %v1929 = vpack.c.b16 %v1629, %v1623
    %v1930 = vpack.c.b16 %v1630, %v1624
    %v1931 = vpack.c.b16 %v1631, %v1625
    %v1932 = vpack.c.b16 %v1632, %v1626
    %v1933 = vpack.c.b16 %v1633, %v1627
    %v1934 = vpack.c.b16 %v1640, %v1634
    %v1935 = vpack.c.b16 %v1641, %v1635
    %v1936 = vpack.c.b16 %v1642, %v1636
    %v1937 = vpack.c.b16 %v1643, %v1637
    %v1938 = vpack.c.b16 %v1644, %v1638
    %v1939 = vpack.c.b16 %v1645, %v1639
    %v1940 = vpack.c.b16 %v1652, %v1646
    %v1941 = vpack.c.b16 %v1653, %v1647
    %v1942 = vpack.c.b16 %v1654, %v1648
    %v1943 = vpack.c.b16 %v1655, %v1649
    %v1944 = vpack.c.b16 %v1656, %v1650
    %v1945 = vpack.c.b16 %v1657, %v1651
    %v1946 = vpack.c.b16 %v1664, %v1658
    %v1947 = vpack.c.b16 %v1665, %v1659
    %v1948 = vpack.c.b16 %v1666, %v1660
    %v1949 = vpack.c.b16 %v1667, %v1661
    %v1950 = vpack.c.b16 %v1668, %v1662
    %v1951 = vpack.c.b16 %v1669, %v1663
    %v1952 = vpack.c.b16 %v1676, %v1670
    %v1953 = vpack.c.b16 %v1677, %v1671
    %v1954 = vpack.c.b16 %v1678, %v1672
    %v1955 = vpack.c.b16 %v1679, %v1673
    %v1956 = vpack.c.b16 %v1680, %v1674
    %v1957 = vpack.c.b16 %v1681, %v1675
    %v1958 = vpack.c.b16 %v1688, %v1682
    %v1959 = vpack.c.b16 %v1689, %v1683
    %v1960 = vpack.c.b16 %v1690, %v1684
    %v1961 = vpack.c.b16 %v1691, %v1685
    %v1962 = vpack.c.b16 %v1692, %v1686
    %v1963 = vpack.c.b16 %v1693, %v1687
    %v1964 = vpack.c.b16 %v1700, %v1694
    %v1965 = vpack.c.b16 %v1701, %v1695
    %v1966 = vpack.c.b16 %v1702, %v1696
    %v1967 = vpack.c.b16 %v1703, %v1697
    %v1968 = vpack.c.b16 %v1704, %v1698
    %v1969 = vpack.c.b16 %v1705, %v1699
    %v1970 = vpack.c.b16 %v1712, %v1706
    %v1971 = vpack.c.b16 %v1713, %v1707
    %v1972 = vpack.c.b16 %v1714, %v1708
    %v1973 = vpack.c.b16 %v1715, %v1709
    %v1974 = vpack.c.b16 %v1716, %v1710
    %v1975 = vpack.c.b16 %v1717, %v1711
    %v1976 = vpack.c.b16 %v1724, %v1718
    %v1977 = vpack.c.b16 %v1725, %v1719
    %v1978 = vpack.c.b16 %v1726, %v1720
    %v1979 = vpack.c.b16 %v1727, %v1721
    %v1980 = vpack.c.b16 %v1728, %v1722
    %v1981 = vpack.c.b16 %v1729, %v1723
    %v1982 = vpack.c.b16 %v1736, %v1730
    %v1983 = vpack.c.b16 %v1737, %v1731
    %v1984 = vpack.c.b16 %v1738, %v1732
    %v1985 = vpack.c.b16 %v1739, %v1733
    %v1986 = vpack.c.b16 %v1740, %v1734
    %v1987 = vpack.c.b16 %v1741, %v1735
    %v1988 = vpack.c.b16 %v1748, %v1742
    %v1989 = vpack.c.b16 %v1749, %v1743
    %v1990 = vpack.c.b16 %v1750, %v1744
    %v1991 = vpack.c.b16 %v1751, %v1745
    %v1992 = vpack.c.b16 %v1752, %v1746
    %v1993 = vpack.c.b16 %v1753, %v1747
    %v1994 = vpack.c.b16 %v1760, %v1754
    %v1995 = vpack.c.b16 %v1761, %v1755
    %v1996 = vpack.c.b16 %v1762, %v1756
    %v1997 = vpack.c.b16 %v1763, %v1757
    %v1998 = vpack.c.b16 %v1764, %v1758
    %v1999 = vpack.c.b16 %v1765, %v1759
    %v2000 = vpack.c.b16 %v1772, %v1766
    %v2001 = vpack.c.b16 %v1773, %v1767
    %v2002 = vpack.c.b16 %v1774, %v1768
    %v2003 = vpack.c.b16 %v1775, %v1769
    %v2004 = vpack.c.b16 %v1776, %v1770
    %v2005 = vpack.c.b16 %v1777, %v1771
    %v2006 = vpack.c.b16 %v1784, %v1778
    %v2007 = vpack.c.b16 %v1785, %v1779
    %v2008 = vpack.c.b16 %v1786, %v1780
    %v2009 = vpack.c.b16 %v1787, %v1781
    %v2010 = vpack.c.b16 %v1788, %v1782
    %v2011 = vpack.c.b16 %v1789, %v1783
    %v2012 = vpack.c.b16 %v1796, %v1790
    %v2013 = vpack.c.b16 %v1797, %v1791
    %v2014 = vpack.c.b16 %v1798, %v1792
    %v2015 = vpack.c.b16 %v1799, %v1793
    %v2016 = vpack.c.b16 %v1800, %v1794
    %v2017 = vpack.c.b16 %v1801, %v1795
    %v2018 = vpack.c.b16 %v1808, %v1802
    %v2019 = vpack.c.b16 %v1809, %v1803
    %v2020 = vpack.c.b16 %v1810, %v1804
    %v2021 = vpack.c.b16 %v1811, %v1805
    %v2022 = vpack.c.b16 %v1812, %v1806
    %v2023 = vpack.c.b16 %v1813, %v1807
    %v2024 = vpack.c.b16 %v1820, %v1814
    %v2025 = vpack.c.b16 %v1821, %v1815
    %v2026 = vpack.c.b16 %v1822, %v1816
    %v2027 = vpack.c.b16 %v1823, %v1817
    %v2028 = vpack.c.b16 %v1824, %v1818
    %v2029 = vpack.c.b16 %v1825, %v1819
    %v2030 = vpack.c.b16 %v1832, %v1826
    %v2031 = vpack.c.b16 %v1833, %v1827
    %v2032 = vpack.c.b16 %v1834, %v1828
    %v2033 = vpack.c.b16 %v1835, %v1829
    %v2034 = vpack.c.b16 %v1836, %v1830
    %v2035 = vpack.c.b16 %v1837, %v1831
    %v2036 = vpack.c.b16 %v1844, %v1838
    %v2037 = vpack.c.b16 %v1845, %v1839
    %v2038 = vpack.c.b16 %v1846, %v1840
    %v2039 = vpack.c.b16 %v1847, %v1841
    %v2040 = vpack.c.b16 %v1848, %v1842
    %v2041 = vpack.c.b16 %v1849, %v1843
    %2234 = vmatprep.subr.bf16.mxu0 %v1851
    %2235 = vmatpush1.bf16.msra.mxu0 %v1850
    %2236 = vmatprep.subr.bf16.mxu0 %v1857
    %2237 = vmatpush1.bf16.msra.mxu0 %v1856
    %2238 = vmatprep.subr.bf16.mxu0 %v1863
    %2239 = vmatpush1.bf16.msra.mxu0 %v1862
    %2240 = vmatprep.subr.bf16.mxu0 %v1869
    %2241 = vmatpush1.bf16.msra.mxu0 %v1868
    %2242 = vmatprep.subr.bf16.mxu0 %v1875
    %2243 = vmatpush1.bf16.msra.mxu0 %v1874
    %2244 = vmatprep.subr.bf16.mxu0 %v1881
    %2245 = vmatpush1.bf16.msra.mxu0 %v1880
    %2246 = vmatprep.subr.bf16.mxu0 %v1887
    %2247 = vmatpush1.bf16.msra.mxu0 %v1886
    %2248 = vmatprep.subr.bf16.mxu0 %v1893
    %2249 = vmatpush1.bf16.msra.mxu0 %v1892
    %2250 = vmatprep.subr.bf16.mxu0 %v1899
    %2251 = vmatpush1.bf16.msra.mxu0 %v1898
    %2252 = vmatprep.subr.bf16.mxu0 %v1905
    %2253 = vmatpush1.bf16.msra.mxu0 %v1904
    %2254 = vmatprep.subr.bf16.mxu0 %v1911
    %2255 = vmatpush1.bf16.msra.mxu0 %v1910
    %2256 = vmatprep.subr.bf16.mxu0 %v1917
    %2257 = vmatpush1.bf16.msra.mxu0 %v1916
    %2258 = vmatprep.subr.bf16.mxu0 %v1923
    %2259 = vmatpush1.bf16.msra.mxu0 %v1922
    %2260 = vmatprep.subr.bf16.mxu0 %v1929
    %2261 = vmatpush1.bf16.msra.mxu0 %v1928
    %2262 = vmatprep.subr.bf16.mxu0 %v1935
    %2263 = vmatpush1.bf16.msra.mxu0 %v1934
    %2264 = vmatprep.subr.bf16.mxu0 %v1941
    %2265 = vmatpush1.bf16.msra.mxu0 %v1940
    %2266 = vmatprep.mubr.bf16.mxu0 %v1079
    %2267 = vmatmul.mubr.bf16.gmra.mrb[0].mxu0 %v1078
    %v2268 = vpop.f32.mrb[0].mxu0
    %v2269 = vadd.f32 0.0, %v2268
    %v2270 = vpop.f32.mrb[0].mxu0
    %v2271 = vadd.f32 0.0, %v2270
    %v2272 = vpop.f32.mrb[0].mxu0
    %v2273 = vadd.f32 0.0, %v2272
    %v2274 = vpop.f32.mrb[0].mxu0
    %v2275 = vadd.f32 0.0, %v2274
    %2276 = vdwg.mxu0
    %2277 = vmatprep.subr.bf16.mxu0 %v1947
    %2278 = vmatpush1.bf16.msra.mxu0 %v1946
    %2279 = vmatprep.subr.bf16.mxu0 %v1953
    %2280 = vmatpush1.bf16.msra.mxu0 %v1952
    %2281 = vmatprep.subr.bf16.mxu0 %v1959
    %2282 = vmatpush1.bf16.msra.mxu0 %v1958
    %2283 = vmatprep.subr.bf16.mxu0 %v1965
    %2284 = vmatpush1.bf16.msra.mxu0 %v1964
    %2285 = vmatprep.subr.bf16.mxu0 %v1971
    %2286 = vmatpush1.bf16.msra.mxu0 %v1970
    %2287 = vmatprep.subr.bf16.mxu0 %v1977
    %2288 = vmatpush1.bf16.msra.mxu0 %v1976
    %2289 = vmatprep.subr.bf16.mxu0 %v1983
    %2290 = vmatpush1.bf16.msra.mxu0 %v1982
    %2291 = vmatprep.subr.bf16.mxu0 %v1989
    %2292 = vmatpush1.bf16.msra.mxu0 %v1988
    %2293 = vmatprep.subr.bf16.mxu0 %v1995
    %2294 = vmatpush1.bf16.msra.mxu0 %v1994
    %2295 = vmatprep.subr.bf16.mxu0 %v2001
    %2296 = vmatpush1.bf16.msra.mxu0 %v2000
    %2297 = vmatprep.subr.bf16.mxu0 %v2007
    %2298 = vmatpush1.bf16.msra.mxu0 %v2006
    %2299 = vmatprep.subr.bf16.mxu0 %v2013
    %2300 = vmatpush1.bf16.msra.mxu0 %v2012
    %2301 = vmatprep.subr.bf16.mxu0 %v2019
    %2302 = vmatpush1.bf16.msra.mxu0 %v2018
    %2303 = vmatprep.subr.bf16.mxu0 %v2025
    %2304 = vmatpush1.bf16.msra.mxu0 %v2024
    %2305 = vmatprep.subr.bf16.mxu0 %v2031
    %2306 = vmatpush1.bf16.msra.mxu0 %v2030
    %2307 = vmatprep.subr.bf16.mxu0 %v2037
    %2308 = vmatpush1.bf16.msra.mxu0 %v2036
    %2309 = vmatprep.mubr.bf16.mxu0 %v1081
    %2310 = vmatmul.mubr.bf16.gmra.mrb[0].mxu0 %v1080
    %v2311 = vpop.f32.mrb[0].mxu0
    %v2312 = vadd.f32 %v2269, %v2311
    %v2313 = vpop.f32.mrb[0].mxu0
    %v2314 = vadd.f32 %v2271, %v2313
    %v2315 = vpop.f32.mrb[0].mxu0
    %v2316 = vadd.f32 %v2273, %v2315
    %v2317 = vpop.f32.mrb[0].mxu0
    %v2318 = vadd.f32 %v2275, %v2317
    %2319 = vdwg.mxu0
    %2320 = vmatprep.subr.bf16.mxu0 %v1853
    %2321 = vmatpush1.bf16.msra.mxu0 %v1852
    %2322 = vmatprep.subr.bf16.mxu0 %v1859
    %2323 = vmatpush1.bf16.msra.mxu0 %v1858
    %2324 = vmatprep.subr.bf16.mxu0 %v1865
    %2325 = vmatpush1.bf16.msra.mxu0 %v1864
    %2326 = vmatprep.subr.bf16.mxu0 %v1871
    %2327 = vmatpush1.bf16.msra.mxu0 %v1870
    %2328 = vmatprep.subr.bf16.mxu0 %v1877
    %2329 = vmatpush1.bf16.msra.mxu0 %v1876
    %2330 = vmatprep.subr.bf16.mxu0 %v1883
    %2331 = vmatpush1.bf16.msra.mxu0 %v1882
    %2332 = vmatprep.subr.bf16.mxu0 %v1889
    %2333 = vmatpush1.bf16.msra.mxu0 %v1888
    %2334 = vmatprep.subr.bf16.mxu0 %v1895
    %2335 = vmatpush1.bf16.msra.mxu0 %v1894
    %2336 = vmatprep.subr.bf16.mxu0 %v1901
    %2337 = vmatpush1.bf16.msra.mxu0 %v1900
    %2338 = vmatprep.subr.bf16.mxu0 %v1907
    %2339 = vmatpush1.bf16.msra.mxu0 %v1906
    %2340 = vmatprep.subr.bf16.mxu0 %v1913
    %2341 = vmatpush1.bf16.msra.mxu0 %v1912
    %2342 = vmatprep.subr.bf16.mxu0 %v1919
    %2343 = vmatpush1.bf16.msra.mxu0 %v1918
    %2344 = vmatprep.subr.bf16.mxu0 %v1925
    %2345 = vmatpush1.bf16.msra.mxu0 %v1924
    %2346 = vmatprep.subr.bf16.mxu0 %v1931
    %2347 = vmatpush1.bf16.msra.mxu0 %v1930
    %2348 = vmatprep.subr.bf16.mxu0 %v1937
    %2349 = vmatpush1.bf16.msra.mxu0 %v1936
    %2350 = vmatprep.subr.bf16.mxu0 %v1943
    %2351 = vmatpush1.bf16.msra.mxu0 %v1942
    %2352 = vmatprep.mubr.bf16.mxu0 %v1079
    %2353 = vmatmul.mubr.bf16.gmra.mrb[0].mxu0 %v1078
    %v2354 = vpop.f32.mrb[0].mxu0
    %v2355 = vadd.f32 0.0, %v2354
    %v2356 = vpop.f32.mrb[0].mxu0
    %v2357 = vadd.f32 0.0, %v2356
    %v2358 = vpop.f32.mrb[0].mxu0
    %v2359 = vadd.f32 0.0, %v2358
    %v2360 = vpop.f32.mrb[0].mxu0
    %v2361 = vadd.f32 0.0, %v2360
    %2362 = vdwg.mxu0
    %2363 = vmatprep.subr.bf16.mxu0 %v1949
    %2364 = vmatpush1.bf16.msra.mxu0 %v1948
    %2365 = vmatprep.subr.bf16.mxu0 %v1955
    %2366 = vmatpush1.bf16.msra.mxu0 %v1954
    %2367 = vmatprep.subr.bf16.mxu0 %v1961
    %2368 = vmatpush1.bf16.msra.mxu0 %v1960
    %2369 = vmatprep.subr.bf16.mxu0 %v1967
    %2370 = vmatpush1.bf16.msra.mxu0 %v1966
    %2371 = vmatprep.subr.bf16.mxu0 %v1973
    %2372 = vmatpush1.bf16.msra.mxu0 %v1972
    %2373 = vmatprep.subr.bf16.mxu0 %v1979
    %2374 = vmatpush1.bf16.msra.mxu0 %v1978
    %2375 = vmatprep.subr.bf16.mxu0 %v1985
    %2376 = vmatpush1.bf16.msra.mxu0 %v1984
    %2377 = vmatprep.subr.bf16.mxu0 %v1991
    %2378 = vmatpush1.bf16.msra.mxu0 %v1990
    %2379 = vmatprep.subr.bf16.mxu0 %v1997
    %2380 = vmatpush1.bf16.msra.mxu0 %v1996
    %2381 = vmatprep.subr.bf16.mxu0 %v2003
    %2382 = vmatpush1.bf16.msra.mxu0 %v2002
    %2383 = vmatprep.subr.bf16.mxu0 %v2009
    %2384 = vmatpush1.bf16.msra.mxu0 %v2008
    %2385 = vmatprep.subr.bf16.mxu0 %v2015
    %2386 = vmatpush1.bf16.msra.mxu0 %v2014
    %2387 = vmatprep.subr.bf16.mxu0 %v2021
    %2388 = vmatpush1.bf16.msra.mxu0 %v2020
    %2389 = vmatprep.subr.bf16.mxu0 %v2027
    %2390 = vmatpush1.bf16.msra.mxu0 %v2026
    %2391 = vmatprep.subr.bf16.mxu0 %v2033
    %2392 = vmatpush1.bf16.msra.mxu0 %v2032
    %2393 = vmatprep.subr.bf16.mxu0 %v2039
    %2394 = vmatpush1.bf16.msra.mxu0 %v2038
    %2395 = vmatprep.mubr.bf16.mxu0 %v1081
    %2396 = vmatmul.mubr.bf16.gmra.mrb[0].mxu0 %v1080
    %v2397 = vpop.f32.mrb[0].mxu0
    %v2398 = vadd.f32 %v2355, %v2397
    %v2399 = vpop.f32.mrb[0].mxu0
    %v2400 = vadd.f32 %v2357, %v2399
    %v2401 = vpop.f32.mrb[0].mxu0
    %v2402 = vadd.f32 %v2359, %v2401
    %v2403 = vpop.f32.mrb[0].mxu0
    %v2404 = vadd.f32 %v2361, %v2403
    %2405 = vdwg.mxu0
    %2406 = vmatprep.subr.bf16.mxu0 %v1855
    %2407 = vmatpush1.bf16.msra.mxu0 %v1854
    %2408 = vmatprep.subr.bf16.mxu0 %v1861
    %2409 = vmatpush1.bf16.msra.mxu0 %v1860
    %2410 = vmatprep.subr.bf16.mxu0 %v1867
    %2411 = vmatpush1.bf16.msra.mxu0 %v1866
    %2412 = vmatprep.subr.bf16.mxu0 %v1873
    %2413 = vmatpush1.bf16.msra.mxu0 %v1872
    %2414 = vmatprep.subr.bf16.mxu0 %v1879
    %2415 = vmatpush1.bf16.msra.mxu0 %v1878
    %2416 = vmatprep.subr.bf16.mxu0 %v1885
    %2417 = vmatpush1.bf16.msra.mxu0 %v1884
    %2418 = vmatprep.subr.bf16.mxu0 %v1891
    %2419 = vmatpush1.bf16.msra.mxu0 %v1890
    %2420 = vmatprep.subr.bf16.mxu0 %v1897
    %2421 = vmatpush1.bf16.msra.mxu0 %v1896
    %2422 = vmatprep.subr.bf16.mxu0 %v1903
    %2423 = vmatpush1.bf16.msra.mxu0 %v1902
    %2424 = vmatprep.subr.bf16.mxu0 %v1909
    %2425 = vmatpush1.bf16.msra.mxu0 %v1908
    %2426 = vmatprep.subr.bf16.mxu0 %v1915
    %2427 = vmatpush1.bf16.msra.mxu0 %v1914
    %2428 = vmatprep.subr.bf16.mxu0 %v1921
    %2429 = vmatpush1.bf16.msra.mxu0 %v1920
    %2430 = vmatprep.subr.bf16.mxu0 %v1927
    %2431 = vmatpush1.bf16.msra.mxu0 %v1926
    %2432 = vmatprep.subr.bf16.mxu0 %v1933
    %2433 = vmatpush1.bf16.msra.mxu0 %v1932
    %2434 = vmatprep.subr.bf16.mxu0 %v1939
    %2435 = vmatpush1.bf16.msra.mxu0 %v1938
    %2436 = vmatprep.subr.bf16.mxu0 %v1945
    %2437 = vmatpush1.bf16.msra.mxu0 %v1944
    %2438 = vmatprep.mubr.bf16.mxu0 %v1079
    %2439 = vmatmul.mubr.bf16.gmra.mrb[0].mxu0 %v1078
    %v2440 = vpop.f32.mrb[0].mxu0
    %v2441 = vadd.f32 0.0, %v2440
    %v2442 = vpop.f32.mrb[0].mxu0
    %v2443 = vadd.f32 0.0, %v2442
    %v2444 = vpop.f32.mrb[0].mxu0
    %v2445 = vadd.f32 0.0, %v2444
    %v2446 = vpop.f32.mrb[0].mxu0
    %v2447 = vadd.f32 0.0, %v2446
    %2448 = vdwg.mxu0
    %2449 = vmatprep.subr.bf16.mxu0 %v1951
    %2450 = vmatpush1.bf16.msra.mxu0 %v1950
    %2451 = vmatprep.subr.bf16.mxu0 %v1957
    %2452 = vmatpush1.bf16.msra.mxu0 %v1956
    %2453 = vmatprep.subr.bf16.mxu0 %v1963
    %2454 = vmatpush1.bf16.msra.mxu0 %v1962
    %2455 = vmatprep.subr.bf16.mxu0 %v1969
    %2456 = vmatpush1.bf16.msra.mxu0 %v1968
    %2457 = vmatprep.subr.bf16.mxu0 %v1975
    %2458 = vmatpush1.bf16.msra.mxu0 %v1974
    %2459 = vmatprep.subr.bf16.mxu0 %v1981
    %2460 = vmatpush1.bf16.msra.mxu0 %v1980
    %2461 = vmatprep.subr.bf16.mxu0 %v1987
    %2462 = vmatpush1.bf16.msra.mxu0 %v1986
    %2463 = vmatprep.subr.bf16.mxu0 %v1993
    %2464 = vmatpush1.bf16.msra.mxu0 %v1992
    %2465 = vmatprep.subr.bf16.mxu0 %v1999
    %2466 = vmatpush1.bf16.msra.mxu0 %v1998
    %2467 = vmatprep.subr.bf16.mxu0 %v2005
    %2468 = vmatpush1.bf16.msra.mxu0 %v2004
    %2469 = vmatprep.subr.bf16.mxu0 %v2011
    %2470 = vmatpush1.bf16.msra.mxu0 %v2010
    %2471 = vmatprep.subr.bf16.mxu0 %v2017
    %2472 = vmatpush1.bf16.msra.mxu0 %v2016
    %2473 = vmatprep.subr.bf16.mxu0 %v2023
    %2474 = vmatpush1.bf16.msra.mxu0 %v2022
    %2475 = vmatprep.subr.bf16.mxu0 %v2029
    %2476 = vmatpush1.bf16.msra.mxu0 %v2028
    %2477 = vmatprep.subr.bf16.mxu0 %v2035
    %2478 = vmatpush1.bf16.msra.mxu0 %v2034
    %2479 = vmatprep.subr.bf16.mxu0 %v2041
    %2480 = vmatpush1.bf16.msra.mxu0 %v2040
    %2481 = vmatprep.mubr.bf16.mxu0 %v1081
    %2482 = vmatmul.mubr.bf16.gmra.mrb[0].mxu0 %v1080
    %v2483 = vpop.f32.mrb[0].mxu0
    %v2484 = vadd.f32 %v2441, %v2483
    %v2485 = vpop.f32.mrb[0].mxu0
    %v2486 = vadd.f32 %v2443, %v2485
    %v2487 = vpop.f32.mrb[0].mxu0
    %v2488 = vadd.f32 %v2445, %v2487
    %v2489 = vpop.f32.mrb[0].mxu0
    %v2490 = vadd.f32 %v2447, %v2489
    %2491 = vdwg.mxu0
    %v2492 = vmax.f32 %v2312, 0.0
    %v2493 = vmax.f32 %v2314, 0.0
    %v2494 = vmax.f32 %v2398, 0.0
    %v2495 = vmax.f32 %v2400, 0.0
    %v2496 = vmax.f32 %v2484, 0.0
    %v2497 = vmax.f32 %v2486, 0.0
    %v2498 = vmax.f32 %v2316, 0.0
    %v2499 = vmax.f32 %v2318, 0.0
    %v2500 = vmax.f32 %v2402, 0.0
    %v2501 = vmax.f32 %v2404, 0.0
    %v2502 = vmax.f32 %v2488, 0.0
    %v2503 = vmax.f32 %v2490, 0.0
    %v2504 = vpack.c.bf16 %v2498, %v2492
    %v2505 = vpack.c.bf16 %v2499, %v2493
    %v2506 = vpack.c.bf16 %v2500, %v2494
    %v2507 = vpack.c.bf16 %v2501, %v2495
    %v2508 = vpack.c.bf16 %v2502, %v2496
    %v2509 = vpack.c.bf16 %v2503, %v2497
    %v2510 = vld [vmem:[#allocation8] sm:$0xf]
    %v2511 = vld [vmem:[#allocation8 + $0x4] sm:$0xf]
    %v2512 = vld [vmem:[#allocation8 + $0x8] sm:$0xf]
    %v2513 = vld [vmem:[#allocation8 + $0xc] sm:$0xf]
    %v2514 = vld [vmem:[#allocation8 + $0x10] sm:$0xf]
    %v2515 = vld [vmem:[#allocation8 + $0x14] sm:$0xf]
    %v2516 = vld [vmem:[#allocation8 + $0x18] sm:$0xf]
    %v2517 = vld [vmem:[#allocation8 + $0x1c] sm:$0xf]
    %v2518 = vld [vmem:[#allocation8 + $0x20] sm:$0xf]
    %v2519 = vld [vmem:[#allocation8 + $0x24] sm:$0xf]
    %v2520 = vld [vmem:[#allocation8 + $0x28] sm:$0xf]
    %v2521 = vld [vmem:[#allocation8 + $0x2c] sm:$0xf]
    %v2522 = vld [vmem:[#allocation8 + $0x30] sm:$0xf]
    %v2523 = vld [vmem:[#allocation8 + $0x34] sm:$0xf]
    %v2524 = vld [vmem:[#allocation8 + $0x38] sm:$0xf]
    %v2525 = vld [vmem:[#allocation8 + $0x3c] sm:$0xf]
    %v2526 = vld [vmem:[#allocation8 + $0x40] sm:$0xf]
    %v2527 = vld [vmem:[#allocation8 + $0x44] sm:$0xf]
    %v2528 = vld [vmem:[#allocation8 + $0x48] sm:$0xf]
    %v2529 = vld [vmem:[#allocation8 + $0x4c] sm:$0xf]
    %v2530 = vld [vmem:[#allocation8 + $0x50] sm:$0xf]
    %v2531 = vld [vmem:[#allocation8 + $0x54] sm:$0xf]
    %v2532 = vld [vmem:[#allocation8 + $0x58] sm:$0xf]
    %v2533 = vld [vmem:[#allocation8 + $0x5c] sm:$0xf]
    %v2534 = vld [vmem:[#allocation8 + $0x60] sm:$0xf]
    %v2535 = vld [vmem:[#allocation8 + $0x64] sm:$0xf]
    %v2536 = vld [vmem:[#allocation8 + $0x68] sm:$0xf]
    %v2537 = vld [vmem:[#allocation8 + $0x6c] sm:$0xf]
    %v2538 = vld [vmem:[#allocation8 + $0x70] sm:$0xf]
    %v2539 = vld [vmem:[#allocation8 + $0x74] sm:$0xf]
    %v2540 = vld [vmem:[#allocation8 + $0x78] sm:$0xf]
    %v2541 = vld [vmem:[#allocation8 + $0x7c] sm:$0xf]
    %v2542 = vld [vmem:[#allocation8 + $0x80] sm:$0xf]
    %v2543 = vld [vmem:[#allocation8 + $0x84] sm:$0xf]
    %v2544 = vld [vmem:[#allocation8 + $0x88] sm:$0xf]
    %v2545 = vld [vmem:[#allocation8 + $0x8c] sm:$0xf]
    %v2546 = vld [vmem:[#allocation8 + $0x90] sm:$0xf]
    %v2547 = vld [vmem:[#allocation8 + $0x94] sm:$0xf]
    %v2548 = vld [vmem:[#allocation8 + $0x98] sm:$0xf]
    %v2549 = vld [vmem:[#allocation8 + $0x9c] sm:$0xf]
    %v2550 = vld [vmem:[#allocation8 + $0xa0] sm:$0xf]
    %v2551 = vld [vmem:[#allocation8 + $0xa4] sm:$0xf]
    %v2552 = vld [vmem:[#allocation8 + $0xa8] sm:$0xf]
    %v2553 = vld [vmem:[#allocation8 + $0xac] sm:$0xf]
    %v2554 = vld [vmem:[#allocation8 + $0xb0] sm:$0xf]
    %v2555 = vld [vmem:[#allocation8 + $0xb4] sm:$0xf]
    %v2556 = vld [vmem:[#allocation8 + $0xb8] sm:$0xf]
    %v2557 = vld [vmem:[#allocation8 + $0xbc] sm:$0xf]
    %v2558 = vld [vmem:[#allocation8 + $0xc0] sm:$0xf]
    %v2559 = vld [vmem:[#allocation8 + $0xc4] sm:$0xf]
    %v2560 = vld [vmem:[#allocation8 + $0xc8] sm:$0xf]
    %v2561 = vld [vmem:[#allocation8 + $0xcc] sm:$0xf]
    %v2562 = vld [vmem:[#allocation8 + $0xd0] sm:$0xf]
    %v2563 = vld [vmem:[#allocation8 + $0xd4] sm:$0xf]
    %v2564 = vld [vmem:[#allocation8 + $0xd8] sm:$0xf]
    %v2565 = vld [vmem:[#allocation8 + $0xdc] sm:$0xf]
    %v2566 = vld [vmem:[#allocation8 + $0xe0] sm:$0xf]
    %v2567 = vld [vmem:[#allocation8 + $0xe4] sm:$0xf]
    %v2568 = vld [vmem:[#allocation8 + $0xe8] sm:$0xf]
    %v2569 = vld [vmem:[#allocation8 + $0xec] sm:$0xf]
    %v2570 = vld [vmem:[#allocation8 + $0xf0] sm:$0xf]
    %v2571 = vld [vmem:[#allocation8 + $0xf4] sm:$0xf]
    %v2572 = vld [vmem:[#allocation8 + $0xf8] sm:$0xf]
    %v2573 = vld [vmem:[#allocation8 + $0xfc] sm:$0xf]
    %v2574 = vld [vmem:[#allocation8 + $0x100] sm:$0xf]
    %v2575 = vld [vmem:[#allocation8 + $0x104] sm:$0xf]
    %v2576 = vld [vmem:[#allocation8 + $0x108] sm:$0xf]
    %v2577 = vld [vmem:[#allocation8 + $0x10c] sm:$0xf]
    %v2578 = vld [vmem:[#allocation8 + $0x110] sm:$0xf]
    %v2579 = vld [vmem:[#allocation8 + $0x114] sm:$0xf]
    %v2580 = vld [vmem:[#allocation8 + $0x118] sm:$0xf]
    %v2581 = vld [vmem:[#allocation8 + $0x11c] sm:$0xf]
    %v2582 = vld [vmem:[#allocation8 + $0x120] sm:$0xf]
    %v2583 = vld [vmem:[#allocation8 + $0x124] sm:$0xf]
    %v2584 = vld [vmem:[#allocation8 + $0x128] sm:$0xf]
    %v2585 = vld [vmem:[#allocation8 + $0x12c] sm:$0xf]
    %v2586 = vld [vmem:[#allocation8 + $0x130] sm:$0xf]
    %v2587 = vld [vmem:[#allocation8 + $0x134] sm:$0xf]
    %v2588 = vld [vmem:[#allocation8 + $0x138] sm:$0xf]
    %v2589 = vld [vmem:[#allocation8 + $0x13c] sm:$0xf]
    %v2590 = vld [vmem:[#allocation8 + $0x140] sm:$0xf]
    %v2591 = vld [vmem:[#allocation8 + $0x144] sm:$0xf]
    %v2592 = vld [vmem:[#allocation8 + $0x148] sm:$0xf]
    %v2593 = vld [vmem:[#allocation8 + $0x14c] sm:$0xf]
    %v2594 = vld [vmem:[#allocation8 + $0x150] sm:$0xf]
    %v2595 = vld [vmem:[#allocation8 + $0x154] sm:$0xf]
    %v2596 = vld [vmem:[#allocation8 + $0x158] sm:$0xf]
    %v2597 = vld [vmem:[#allocation8 + $0x15c] sm:$0xf]
    %v2598 = vld [vmem:[#allocation8 + $0x160] sm:$0xf]
    %v2599 = vld [vmem:[#allocation8 + $0x164] sm:$0xf]
    %v2600 = vld [vmem:[#allocation8 + $0x168] sm:$0xf]
    %v2601 = vld [vmem:[#allocation8 + $0x16c] sm:$0xf]
    %v2602 = vld [vmem:[#allocation8 + $0x170] sm:$0xf]
    %v2603 = vld [vmem:[#allocation8 + $0x174] sm:$0xf]
    %v2604 = vld [vmem:[#allocation8 + $0x178] sm:$0xf]
    %v2605 = vld [vmem:[#allocation8 + $0x17c] sm:$0xf]
    %v2606 = vld [vmem:[%s5] sm:$0x1]
    %v2608 = vlaneseq
    %v2609 = vshrl.u32 %v2608, 7
    %v2610 = vsub.s32 0, %v2609
    %v2611 = vrot.slane %v2606, %v2610
    %v2709 = vunpack.c.l.b16 %v2510
    %v2710 = vunpack.c.l.b16 %v2511
    %v2711 = vunpack.c.l.b16 %v2512
    %v2712 = vunpack.c.l.b16 %v2513
    %v2713 = vunpack.c.l.b16 %v2514
    %v2714 = vunpack.c.l.b16 %v2515
    %v2715 = vunpack.c.l.b16 %v2516
    %v2716 = vunpack.c.l.b16 %v2517
    %v2717 = vunpack.c.l.b16 %v2518
    %v2718 = vunpack.c.l.b16 %v2519
    %v2719 = vunpack.c.l.b16 %v2520
    %v2720 = vunpack.c.l.b16 %v2521
    %v2721 = vunpack.c.l.b16 %v2522
    %v2722 = vunpack.c.l.b16 %v2523
    %v2723 = vunpack.c.l.b16 %v2524
    %v2724 = vunpack.c.l.b16 %v2525
    %v2725 = vunpack.c.l.b16 %v2526
    %v2726 = vunpack.c.l.b16 %v2527
    %v2727 = vunpack.c.l.b16 %v2528
    %v2728 = vunpack.c.l.b16 %v2529
    %v2729 = vunpack.c.l.b16 %v2530
    %v2730 = vunpack.c.l.b16 %v2531
    %v2731 = vunpack.c.l.b16 %v2532
    %v2732 = vunpack.c.l.b16 %v2533
    %v2733 = vunpack.c.l.b16 %v2534
    %v2734 = vunpack.c.l.b16 %v2535
    %v2735 = vunpack.c.l.b16 %v2536
    %v2736 = vunpack.c.l.b16 %v2537
    %v2737 = vunpack.c.l.b16 %v2538
    %v2738 = vunpack.c.l.b16 %v2539
    %v2739 = vunpack.c.l.b16 %v2540
    %v2740 = vunpack.c.l.b16 %v2541
    %v2741 = vunpack.c.l.b16 %v2542
    %v2742 = vunpack.c.l.b16 %v2543
    %v2743 = vunpack.c.l.b16 %v2544
    %v2744 = vunpack.c.l.b16 %v2545
    %v2745 = vunpack.c.l.b16 %v2546
    %v2746 = vunpack.c.l.b16 %v2547
    %v2747 = vunpack.c.l.b16 %v2548
    %v2748 = vunpack.c.l.b16 %v2549
    %v2749 = vunpack.c.l.b16 %v2550
    %v2750 = vunpack.c.l.b16 %v2551
    %v2751 = vunpack.c.l.b16 %v2552
    %v2752 = vunpack.c.l.b16 %v2553
    %v2753 = vunpack.c.l.b16 %v2554
    %v2754 = vunpack.c.l.b16 %v2555
    %v2755 = vunpack.c.l.b16 %v2556
    %v2756 = vunpack.c.l.b16 %v2557
    %v2757 = vunpack.c.l.b16 %v2558
    %v2758 = vunpack.c.l.b16 %v2559
    %v2759 = vunpack.c.l.b16 %v2560
    %v2760 = vunpack.c.l.b16 %v2561
    %v2761 = vunpack.c.l.b16 %v2562
    %v2762 = vunpack.c.l.b16 %v2563
    %v2763 = vunpack.c.l.b16 %v2564
    %v2764 = vunpack.c.l.b16 %v2565
    %v2765 = vunpack.c.l.b16 %v2566
    %v2766 = vunpack.c.l.b16 %v2567
    %v2767 = vunpack.c.l.b16 %v2568
    %v2768 = vunpack.c.l.b16 %v2569
    %v2769 = vunpack.c.l.b16 %v2570
    %v2770 = vunpack.c.l.b16 %v2571
    %v2771 = vunpack.c.l.b16 %v2572
    %v2772 = vunpack.c.l.b16 %v2573
    %v2773 = vunpack.c.l.b16 %v2574
    %v2774 = vunpack.c.l.b16 %v2575
    %v2775 = vunpack.c.l.b16 %v2576
    %v2776 = vunpack.c.l.b16 %v2577
    %v2777 = vunpack.c.l.b16 %v2578
    %v2778 = vunpack.c.l.b16 %v2579
    %v2779 = vunpack.c.l.b16 %v2580
    %v2780 = vunpack.c.l.b16 %v2581
    %v2781 = vunpack.c.l.b16 %v2582
    %v2782 = vunpack.c.l.b16 %v2583
    %v2783 = vunpack.c.l.b16 %v2584
    %v2784 = vunpack.c.l.b16 %v2585
    %v2785 = vunpack.c.l.b16 %v2586
    %v2786 = vunpack.c.l.b16 %v2587
    %v2787 = vunpack.c.l.b16 %v2588
    %v2788 = vunpack.c.l.b16 %v2589
    %v2789 = vunpack.c.l.b16 %v2590
    %v2790 = vunpack.c.l.b16 %v2591
    %v2791 = vunpack.c.l.b16 %v2592
    %v2792 = vunpack.c.l.b16 %v2593
    %v2793 = vunpack.c.l.b16 %v2594
    %v2794 = vunpack.c.l.b16 %v2595
    %v2795 = vunpack.c.l.b16 %v2596
    %v2796 = vunpack.c.l.b16 %v2597
    %v2797 = vunpack.c.l.b16 %v2598
    %v2798 = vunpack.c.l.b16 %v2599
    %v2799 = vunpack.c.l.b16 %v2600
    %v2800 = vunpack.c.l.b16 %v2601
    %v2801 = vunpack.c.l.b16 %v2602
    %v2802 = vunpack.c.l.b16 %v2603
    %v2803 = vunpack.c.l.b16 %v2604
    %v2804 = vunpack.c.l.b16 %v2605
    %v2805 = vpack.c.b16 %v2710, %v2709
    %v2806 = vpack.c.b16 %v2712, %v2711
    %v2807 = vpack.c.b16 %v2714, %v2713
    %v2808 = vpack.c.b16 %v2716, %v2715
    %v2809 = vpack.c.b16 %v2718, %v2717
    %v2810 = vpack.c.b16 %v2720, %v2719
    %v2811 = vpack.c.b16 %v2722, %v2721
    %v2812 = vpack.c.b16 %v2724, %v2723
    %v2813 = vpack.c.b16 %v2726, %v2725
    %v2814 = vpack.c.b16 %v2728, %v2727
    %v2815 = vpack.c.b16 %v2730, %v2729
    %v2816 = vpack.c.b16 %v2732, %v2731
    %v2817 = vpack.c.b16 %v2734, %v2733
    %v2818 = vpack.c.b16 %v2736, %v2735
    %v2819 = vpack.c.b16 %v2738, %v2737
    %v2820 = vpack.c.b16 %v2740, %v2739
    %v2821 = vpack.c.b16 %v2742, %v2741
    %v2822 = vpack.c.b16 %v2744, %v2743
    %v2823 = vpack.c.b16 %v2746, %v2745
    %v2824 = vpack.c.b16 %v2748, %v2747
    %v2825 = vpack.c.b16 %v2750, %v2749
    %v2826 = vpack.c.b16 %v2752, %v2751
    %v2827 = vpack.c.b16 %v2754, %v2753
    %v2828 = vpack.c.b16 %v2756, %v2755
    %v2829 = vpack.c.b16 %v2758, %v2757
    %v2830 = vpack.c.b16 %v2760, %v2759
    %v2831 = vpack.c.b16 %v2762, %v2761
    %v2832 = vpack.c.b16 %v2764, %v2763
    %v2833 = vpack.c.b16 %v2766, %v2765
    %v2834 = vpack.c.b16 %v2768, %v2767
    %v2835 = vpack.c.b16 %v2770, %v2769
    %v2836 = vpack.c.b16 %v2772, %v2771
    %v2837 = vpack.c.b16 %v2774, %v2773
    %v2838 = vpack.c.b16 %v2776, %v2775
    %v2839 = vpack.c.b16 %v2778, %v2777
    %v2840 = vpack.c.b16 %v2780, %v2779
    %v2841 = vpack.c.b16 %v2782, %v2781
    %v2842 = vpack.c.b16 %v2784, %v2783
    %v2843 = vpack.c.b16 %v2786, %v2785
    %v2844 = vpack.c.b16 %v2788, %v2787
    %v2845 = vpack.c.b16 %v2790, %v2789
    %v2846 = vpack.c.b16 %v2792, %v2791
    %v2847 = vpack.c.b16 %v2794, %v2793
    %v2848 = vpack.c.b16 %v2796, %v2795
    %v2849 = vpack.c.b16 %v2798, %v2797
    %v2850 = vpack.c.b16 %v2800, %v2799
    %v2851 = vpack.c.b16 %v2802, %v2801
    %v2852 = vpack.c.b16 %v2804, %v2803
    %2901 = vmatprep.subr.bf16.mxu0 0
    %2902 = vmatpush1.bf16.msra.mxu0 %v2805
    %2903 = vmatprep.subr.bf16.mxu0 0
    %2904 = vmatpush1.bf16.msra.mxu0 %v2806
    %2905 = vmatprep.subr.bf16.mxu0 0
    %2906 = vmatpush1.bf16.msra.mxu0 %v2807
    %2907 = vmatprep.subr.bf16.mxu0 0
    %2908 = vmatpush1.bf16.msra.mxu0 %v2808
    %2909 = vmatprep.subr.bf16.mxu0 0
    %2910 = vmatpush1.bf16.msra.mxu0 %v2809
    %2911 = vmatprep.subr.bf16.mxu0 0
    %2912 = vmatpush1.bf16.msra.mxu0 %v2810
    %2913 = vmatprep.subr.bf16.mxu0 0
    %2914 = vmatpush1.bf16.msra.mxu0 %v2811
    %2915 = vmatprep.subr.bf16.mxu0 0
    %2916 = vmatpush1.bf16.msra.mxu0 %v2812
    %2917 = vmatprep.subr.bf16.mxu0 0
    %2918 = vmatpush1.bf16.msra.mxu0 %v2813
    %2919 = vmatprep.subr.bf16.mxu0 0
    %2920 = vmatpush1.bf16.msra.mxu0 %v2814
    %2921 = vmatprep.subr.bf16.mxu0 0
    %2922 = vmatpush1.bf16.msra.mxu0 %v2815
    %2923 = vmatprep.subr.bf16.mxu0 0
    %2924 = vmatpush1.bf16.msra.mxu0 %v2816
    %2925 = vmatprep.subr.bf16.mxu0 0
    %2926 = vmatpush1.bf16.msra.mxu0 %v2817
    %2927 = vmatprep.subr.bf16.mxu0 0
    %2928 = vmatpush1.bf16.msra.mxu0 %v2818
    %2929 = vmatprep.subr.bf16.mxu0 0
    %2930 = vmatpush1.bf16.msra.mxu0 %v2819
    %2931 = vmatprep.subr.bf16.mxu0 0
    %2932 = vmatpush1.bf16.msra.mxu0 %v2820
    %2933 = vmatprep.mubr.bf16.mxu0 %v2505
    %2934 = vmatmul.mubr.bf16.gmra.mrb[0].mxu0 %v2504
    %v2935 = vpop.f32.mrb[0].mxu0
    %v2936 = vadd.f32 %v2611, %v2935
    %v2937 = vpop.f32.mrb[0].mxu0
    %v2938 = vpop.f32.mrb[0].mxu0
    %v2939 = vadd.f32 %v2611, %v2938
    %v2940 = vpop.f32.mrb[0].mxu0
    %2941 = vdwg.mxu0
    %2942 = vmatprep.subr.bf16.mxu0 0
    %2943 = vmatpush1.bf16.msra.mxu0 %v2821
    %2944 = vmatprep.subr.bf16.mxu0 0
    %2945 = vmatpush1.bf16.msra.mxu0 %v2822
    %2946 = vmatprep.subr.bf16.mxu0 0
    %2947 = vmatpush1.bf16.msra.mxu0 %v2823
    %2948 = vmatprep.subr.bf16.mxu0 0
    %2949 = vmatpush1.bf16.msra.mxu0 %v2824
    %2950 = vmatprep.subr.bf16.mxu0 0
    %2951 = vmatpush1.bf16.msra.mxu0 %v2825
    %2952 = vmatprep.subr.bf16.mxu0 0
    %2953 = vmatpush1.bf16.msra.mxu0 %v2826
    %2954 = vmatprep.subr.bf16.mxu0 0
    %2955 = vmatpush1.bf16.msra.mxu0 %v2827
    %2956 = vmatprep.subr.bf16.mxu0 0
    %2957 = vmatpush1.bf16.msra.mxu0 %v2828
    %2958 = vmatprep.subr.bf16.mxu0 0
    %2959 = vmatpush1.bf16.msra.mxu0 %v2829
    %2960 = vmatprep.subr.bf16.mxu0 0
    %2961 = vmatpush1.bf16.msra.mxu0 %v2830
    %2962 = vmatprep.subr.bf16.mxu0 0
    %2963 = vmatpush1.bf16.msra.mxu0 %v2831
    %2964 = vmatprep.subr.bf16.mxu0 0
    %2965 = vmatpush1.bf16.msra.mxu0 %v2832
    %2966 = vmatprep.subr.bf16.mxu0 0
    %2967 = vmatpush1.bf16.msra.mxu0 %v2833
    %2968 = vmatprep.subr.bf16.mxu0 0
    %2969 = vmatpush1.bf16.msra.mxu0 %v2834
    %2970 = vmatprep.subr.bf16.mxu0 0
    %2971 = vmatpush1.bf16.msra.mxu0 %v2835
    %2972 = vmatprep.subr.bf16.mxu0 0
    %2973 = vmatpush1.bf16.msra.mxu0 %v2836
    %2974 = vmatprep.mubr.bf16.mxu0 %v2507
    %2975 = vmatmul.mubr.bf16.gmra.mrb[0].mxu0 %v2506
    %v2976 = vpop.f32.mrb[0].mxu0
    %v2977 = vadd.f32 %v2936, %v2976
    %v2978 = vpop.f32.mrb[0].mxu0
    %v2979 = vpop.f32.mrb[0].mxu0
    %v2980 = vadd.f32 %v2939, %v2979
    %v2981 = vpop.f32.mrb[0].mxu0
    %2982 = vdwg.mxu0
    %2983 = vmatprep.subr.bf16.mxu0 0
    %2984 = vmatpush1.bf16.msra.mxu0 %v2837
    %2985 = vmatprep.subr.bf16.mxu0 0
    %2986 = vmatpush1.bf16.msra.mxu0 %v2838
    %2987 = vmatprep.subr.bf16.mxu0 0
    %2988 = vmatpush1.bf16.msra.mxu0 %v2839
    %2989 = vmatprep.subr.bf16.mxu0 0
    %2990 = vmatpush1.bf16.msra.mxu0 %v2840
    %2991 = vmatprep.subr.bf16.mxu0 0
    %2992 = vmatpush1.bf16.msra.mxu0 %v2841
    %2993 = vmatprep.subr.bf16.mxu0 0
    %2994 = vmatpush1.bf16.msra.mxu0 %v2842
    %2995 = vmatprep.subr.bf16.mxu0 0
    %2996 = vmatpush1.bf16.msra.mxu0 %v2843
    %2997 = vmatprep.subr.bf16.mxu0 0
    %2998 = vmatpush1.bf16.msra.mxu0 %v2844
    %2999 = vmatprep.subr.bf16.mxu0 0
    %3000 = vmatpush1.bf16.msra.mxu0 %v2845
    %3001 = vmatprep.subr.bf16.mxu0 0
    %3002 = vmatpush1.bf16.msra.mxu0 %v2846
    %3003 = vmatprep.subr.bf16.mxu0 0
    %3004 = vmatpush1.bf16.msra.mxu0 %v2847
    %3005 = vmatprep.subr.bf16.mxu0 0
    %3006 = vmatpush1.bf16.msra.mxu0 %v2848
    %3007 = vmatprep.subr.bf16.mxu0 0
    %3008 = vmatpush1.bf16.msra.mxu0 %v2849
    %3009 = vmatprep.subr.bf16.mxu0 0
    %3010 = vmatpush1.bf16.msra.mxu0 %v2850
    %3011 = vmatprep.subr.bf16.mxu0 0
    %3012 = vmatpush1.bf16.msra.mxu0 %v2851
    %3013 = vmatprep.subr.bf16.mxu0 0
    %3014 = vmatpush1.bf16.msra.mxu0 %v2852
    %3015 = vmatprep.mubr.bf16.mxu0 %v2509
    %3016 = vmatmul.mubr.bf16.gmra.mrb[0].mxu0 %v2508
    %v3017 = vpop.f32.mrb[0].mxu0
    %v3018 = vadd.f32 %v2977, %v3017
    %v3019 = vpop.f32.mrb[0].mxu0
    %v3020 = vpop.f32.mrb[0].mxu0
    %v3021 = vadd.f32 %v2980, %v3020
    %v3022 = vpop.f32.mrb[0].mxu0
    %3023 = vdwg.mxu0
    %3024 = vst [vmem:[#allocation10] sm:$0xff] %v3018
    %3025 = vst [vmem:[#allocation10 + $0x8] sm:$0xff] %v3021
    // Predicated region
    $region42: #{tpu_custom_call.1} parent=1 // pred_check
      _
    $region43: #{tpu_custom_call.1} parent=1 // pred_check_branch
      %3027 = sbr.rel (0) target = $region45
    $region44: #{tpu_custom_call.1} parent=1 // pred_region
      %s3029 = ssub.s32 256, 256
      %3030 = vsyncadd [#allocation4], %s3029
      %s3031 = sshll.u32 [#allocation10], 4
      %s3032 = int_to_ptr.vmem [resolvable:$true] %s3031
      %3037 = dma.vmem_to_hbm [thread:$0]  %s3032, 256, %s6, [#allocation4], 128, 128, 8
    $region45: #{tpu_custom_call.1} parent=1 // pred_fallthru
      _
    // Predicated region
    $region46: #{tpu_custom_call.1} parent=1 // pred_check
      _
    $region47: #{tpu_custom_call.1} parent=1 // pred_check_branch
      %3039 = sbr.rel (0) target = $region49
    $region48: #{tpu_custom_call.1} parent=1 // pred_region
      %3040 = dma.done [#allocation4], 256
    $region49: #{tpu_custom_call.1} parent=1 // pred_fallthru
      _
    %3041 = vsyncpa [#allocation3], 1
    %3042 = vsyncpa [#allocation6], 1
    %3043 = vsyncpa [#allocation9], 1
    %3044 = vsyncpa [#allocation4], 1

// kernel: tpu_custom_call.1
$region0: #{tpu_custom_call.1}
  #allocation0 [shape = 'u32[]', space=smem, size = 0x4, offset = 0x4, fixed_abs, tag = 'smem constant byte address 0x4 - core index']
  #allocation1 [shape = 'u32[144,128]{1,0:T(1,128)}', space=vmem, size = 0x12000, scoped, tag = 'internal scratch']
  %s0 = inlined_call_operand.hbm [shape: bf16[16,512], index: 0, kind: input, shape index: {}]
  %s1 = inlined_call_operand.hbm [shape: bf16[512,512], index: 1, kind: input, shape index: {}]
  %s2 = inlined_call_operand.vmem [shape: f32[1,512], index: 2, kind: input, shape index: {}]
  %s3 = inlined_call_operand.hbm [shape: bf16[512,768], index: 3, kind: input, shape index: {}]
  %s4 = inlined_call_operand.hbm [shape: bf16[768,128], index: 4, kind: input, shape index: {}]
  %s5 = inlined_call_operand.vmem [shape: f32[1,128], index: 5, kind: input, shape index: {}]
  %s6 = inlined_call_operand.hbm [shape: f32[16,128], index: 6, kind: output, shape index: {}]
  %s7 = sld [smem:[#allocation0]]
  $region50: #{tpu_custom_call.1} parent=0
    _
  %s9 = ssub.s32 1, %s7
  %s10 = scalar_select 0, %s9, %s7
  $region1: #{tpu_custom_call.1} parent=0
    #allocation2 [shape = 'u8[16384]{0}', space=vmem, size = 0x4000, scoped, tag = 'input window, operand 0, single buffered']
    #allocation3 [shape = 's32[1]{0}', space=sflag, size = 0x4, scoped, tag = 'scoped memory for tpu_custom_call.1']
    #allocation4 [shape = 's32[1]{0}', space=sflag, size = 0x4, scoped, tag = 'scoped memory for tpu_custom_call.1']
    #allocation5 [shape = 'u8[524288]{0}', space=vmem, size = 0x80000, scoped, tag = 'input window, operand 1, single buffered']
    #allocation6 [shape = 's32[1]{0}', space=sflag, size = 0x4, scoped, tag = 'scoped memory for tpu_custom_call.1']
    #allocation7 [shape = 'u8[786432]{0}', space=vmem, size = 0xc0000, scoped, tag = 'input window, operand 3, single buffered']
    #allocation8 [shape = 'u8[196608]{0}', space=vmem, size = 0x30000, scoped, tag = 'input window, operand 4, single buffered']
    #allocation9 [shape = 's32[1]{0}', space=sflag, size = 0x4, scoped, tag = 'scoped memory for tpu_custom_call.1']
    #allocation10 [shape = 'u8[8192]{0}', space=vmem, size = 0x2000, scoped, tag = 'output window, operand 0, single buffered']
    %11 = vsyncpa [#allocation3], 0
    %12 = vsyncpa [#allocation6], 0
    %13 = vsyncpa [#allocation9], 0
    %14 = vsyncpa [#allocation4], 0
    // Predicated region
    $region2: #{tpu_custom_call.1} parent=1 // pred_check
      _
    $region3: #{tpu_custom_call.1} parent=1 // pred_check_branch
      %16 = sbr.rel (0) target = $region5
    $region4: #{tpu_custom_call.1} parent=1 // pred_region
      %s18 = ssub.s32 512, 512
      %19 = vsyncadd [#allocation3], %s18
      %s20 = sshll.u32 [#allocation2], 4
      %s21 = int_to_ptr.vmem [resolvable:$true] %s20
      %26 = dma.hbm_to_vmem [thread:$0]  %s0, 512, %s21, [#allocation3], 256, 256, 16
    $region5: #{tpu_custom_call.1} parent=1 // pred_fallthru
      _
    // Predicated region
    $region6: #{tpu_custom_call.1} parent=1 // pred_check
      _
    $region7: #{tpu_custom_call.1} parent=1 // pred_check_branch
      %28 = sbr.rel (0) target = $region9
    $region8: #{tpu_custom_call.1} parent=1 // pred_region
      %s30 = ssub.s32 16384, 16384
      %31 = vsyncadd [#allocation6], %s30
      %s32 = sshll.u32 [#allocation5], 4
      %s33 = int_to_ptr.vmem [resolvable:$true] %s32
      %38 = dma.hbm_to_vmem [thread:$0]  %s1, 16384, %s33, [#allocation6], 256, 256, 16
    $region9: #{tpu_custom_call.1} parent=1 // pred_fallthru
      _
    // Predicated region
    $region10: #{tpu_custom_call.1} parent=1 // pred_check
      _
    $region11: #{tpu_custom_call.1} parent=1 // pred_check_branch
      %40 = sbr.rel (0) target = $region13
    $region12: #{tpu_custom_call.1} parent=1 // pred_region
      _
    $region13: #{tpu_custom_call.1} parent=1 // pred_fallthru
      _
    // Predicated region
    $region14: #{tpu_custom_call.1} parent=1 // pred_check
      _
    $region15: #{tpu_custom_call.1} parent=1 // pred_check_branch
      %42 = sbr.rel (0) target = $region17
    $region16: #{tpu_custom_call.1} parent=1 // pred_region
      %s44 = ssub.s32 24576, 24576
      %45 = vsyncadd [#allocation6], %s44
      %s46 = sshll.u32 [#allocation7], 4
      %s47 = int_to_ptr.vmem [resolvable:$true] %s46
      %52 = dma.hbm_to_vmem [thread:$0]  %s3, 24576, %s47, [#allocation6], 384, 384, 24
    $region17: #{tpu_custom_call.1} parent=1 // pred_fallthru
      _
    // Predicated region
    $region18: #{tpu_custom_call.1} parent=1 // pred_check
      _
    $region19: #{tpu_custom_call.1} parent=1 // pred_check_branch
      %54 = sbr.rel (0) target = $region21
    $region20: #{tpu_custom_call.1} parent=1 // pred_region
      %s56 = ssub.s32 6144, 6144
      %57 = vsyncadd [#allocation9], %s56
      %s58 = sshll.u32 [#allocation8], 4
      %s59 = int_to_ptr.vmem [resolvable:$true] %s58
      %64 = dma.hbm_to_vmem [thread:$0]  %s4, 6144, %s59, [#allocation9], 64, 64, 4
    $region21: #{tpu_custom_call.1} parent=1 // pred_fallthru
      _
    // Predicated region
    $region22: #{tpu_custom_call.1} parent=1 // pred_check
      _
    $region23: #{tpu_custom_call.1} parent=1 // pred_check_branch
      %66 = sbr.rel (0) target = $region25
    $region24: #{tpu_custom_call.1} parent=1 // pred_region
      _
    $region25: #{tpu_custom_call.1} parent=1 // pred_fallthru
      _
    // Predicated region
    $region26: #{tpu_custom_call.1} parent=1 // pred_check
      _
    $region27: #{tpu_custom_call.1} parent=1 // pred_check_branch
      %68 = sbr.rel (0) target = $region29
    $region28: #{tpu_custom_call.1} parent=1 // pred_region
      %69 = dma.done [#allocation3], 512
    $region29: #{tpu_custom_call.1} parent=1 // pred_fallthru
      _
    // Predicated region
    $region30: #{tpu_custom_call.1} parent=1 // pred_check
      _
    $region31: #{tpu_custom_call.1} parent=1 // pred_check_branch
      %71 = sbr.rel (0) target = $region33
    $region32: #{tpu_custom_call.1} parent=1 // pred_region
      %72 = dma.done [#allocation6], 16384
    $region33: #{tpu_custom_call.1} parent=1 // pred_fallthru
      _
    // Predicated region
    $region34: #{tpu_custom_call.1} parent=1 // pred_check
      _
    $region35: #{tpu_custom_call.1} parent=1 // pred_check_branch
      %74 = sbr.rel (0) target = $region37
    $region36: #{tpu_custom_call.1} parent=1 // pred_region
      %75 = dma.done [#allocation6], 24576
    $region37: #{tpu_custom_call.1} parent=1 // pred_fallthru
      _
    // Predicated region
    $region38: #{tpu_custom_call.1} parent=1 // pred_check
      _
    $region39: #{tpu_custom_call.1} parent=1 // pred_check_branch
      %77 = sbr.rel (0) target = $region41
    $region40: #{tpu_custom_call.1} parent=1 // pred_region
      %78 = dma.done [#allocation9], 6144
    $region41: #{tpu_custom_call.1} parent=1 // pred_fallthru
      _
    %v80 = vld [vmem:[#allocation2] sm:$0xff]
    %v81 = vld [vmem:[#allocation2 + $0x8] sm:$0xff]
    %v82 = vld [vmem:[#allocation2 + $0x10] sm:$0xff]
    %v83 = vld [vmem:[#allocation2 + $0x18] sm:$0xff]
    %v84 = vmax.bf16 %v80, 0
    %v85 = vmax.bf16 %v81, 0
    %v86 = vmax.bf16 %v82, 0
    %v87 = vmax.bf16 %v83, 0
    %v88 = vld [vmem:[#allocation5] sm:$0xff]
    %v89 = vld [vmem:[#allocation5 + $0x8] sm:$0xff]
    %v90 = vld [vmem:[#allocation5 + $0x10] sm:$0xff]
    %v91 = vld [vmem:[#allocation5 + $0x18] sm:$0xff]
    %v92 = vld [vmem:[#allocation5 + $0x20] sm:$0xff]
    %v93 = vld [vmem:[#allocation5 + $0x28] sm:$0xff]
    %v94 = vld [vmem:[#allocation5 + $0x30] sm:$0xff]
    %v95 = vld [vmem:[#allocation5 + $0x38] sm:$0xff]
    %v96 = vld [vmem:[#allocation5 + $0x40] sm:$0xff]
    %v97 = vld [vmem:[#allocation5 + $0x48] sm:$0xff]
    %v98 = vld [vmem:[#allocation5 + $0x50] sm:$0xff]
    %v99 = vld [vmem:[#allocation5 + $0x58] sm:$0xff]
    %v100 = vld [vmem:[#allocation5 + $0x60] sm:$0xff]
    %v101 = vld [vmem:[#allocation5 + $0x68] sm:$0xff]
    %v102 = vld [vmem:[#allocation5 + $0x70] sm:$0xff]
    %v103 = vld [vmem:[#allocation5 + $0x78] sm:$0xff]
    %v104 = vld [vmem:[#allocation5 + $0x80] sm:$0xff]
    %v105 = vld [vmem:[#allocation5 + $0x88] sm:$0xff]
    %v106 = vld [vmem:[#allocation5 + $0x90] sm:$0xff]
    %v107 = vld [vmem:[#allocation5 + $0x98] sm:$0xff]
    %v108 = vld [vmem:[#allocation5 + $0xa0] sm:$0xff]
    %v109 = vld [vmem:[#allocation5 + $0xa8] sm:$0xff]
    %v110 = vld [vmem:[#allocation5 + $0xb0] sm:$0xff]
    %v111 = vld [vmem:[#allocation5 + $0xb8] sm:$0xff]
    %v112 = vld [vmem:[#allocation5 + $0xc0] sm:$0xff]
    %v113 = vld [vmem:[#allocation5 + $0xc8] sm:$0xff]
    %v114 = vld [vmem:[#allocation5 + $0xd0] sm:$0xff]
    %v115 = vld [vmem:[#allocation5 + $0xd8] sm:$0xff]
    %v116 = vld [vmem:[#allocation5 + $0xe0] sm:$0xff]
    %v117 = vld [vmem:[#allocation5 + $0xe8] sm:$0xff]
    %v118 = vld [vmem:[#allocation5 + $0xf0] sm:$0xff]
    %v119 = vld [vmem:[#allocation5 + $0xf8] sm:$0xff]
    %v120 = vld [vmem:[#allocation5 + $0x100] sm:$0xff]
    %v121 = vld [vmem:[#allocation5 + $0x108] sm:$0xff]
    %v122 = vld [vmem:[#allocation5 + $0x110] sm:$0xff]
    %v123 = vld [vmem:[#allocation5 + $0x118] sm:$0xff]
    %v124 = vld [vmem:[#allocation5 + $0x120] sm:$0xff]
    %v125 = vld [vmem:[#allocation5 + $0x128] sm:$0xff]
    %v126 = vld [vmem:[#allocation5 + $0x130] sm:$0xff]
    %v127 = vld [vmem:[#allocation5 + $0x138] sm:$0xff]
    %v128 = vld [vmem:[#allocation5 + $0x140] sm:$0xff]
    %v129 = vld [vmem:[#allocation5 + $0x148] sm:$0xff]
    %v130 = vld [vmem:[#allocation5 + $0x150] sm:$0xff]
    %v131 = vld [vmem:[#allocation5 + $0x158] sm:$0xff]
    %v132 = vld [vmem:[#allocation5 + $0x160] sm:$0xff]
    %v133 = vld [vmem:[#allocation5 + $0x168] sm:$0xff]
    %v134 = vld [vmem:[#allocation5 + $0x170] sm:$0xff]
    %v135 = vld [vmem:[#allocation5 + $0x178] sm:$0xff]
    %v136 = vld [vmem:[#allocation5 + $0x180] sm:$0xff]
    %v137 = vld [vmem:[#allocation5 + $0x188] sm:$0xff]
    %v138 = vld [vmem:[#allocation5 + $0x190] sm:$0xff]
    %v139 = vld [vmem:[#allocation5 + $0x198] sm:$0xff]
    %v140 = vld [vmem:[#allocation5 + $0x1a0] sm:$0xff]
    %v141 = vld [vmem:[#allocation5 + $0x1a8] sm:$0xff]
    %v142 = vld [vmem:[#allocation5 + $0x1b0] sm:$0xff]
    %v143 = vld [vmem:[#allocation5 + $0x1b8] sm:$0xff]
    %v144 = vld [vmem:[#allocation5 + $0x1c0] sm:$0xff]
    %v145 = vld [vmem:[#allocation5 + $0x1c8] sm:$0xff]
    %v146 = vld [vmem:[#allocation5 + $0x1d0] sm:$0xff]
    %v147 = vld [vmem:[#allocation5 + $0x1d8] sm:$0xff]
    %v148 = vld [vmem:[#allocation5 + $0x1e0] sm:$0xff]
    %v149 = vld [vmem:[#allocation5 + $0x1e8] sm:$0xff]
    %v150 = vld [vmem:[#allocation5 + $0x1f0] sm:$0xff]
    %v151 = vld [vmem:[#allocation5 + $0x1f8] sm:$0xff]
    %v152 = vld [vmem:[#allocation5 + $0x200] sm:$0xff]
    %v153 = vld [vmem:[#allocation5 + $0x208] sm:$0xff]
    %v154 = vld [vmem:[#allocation5 + $0x210] sm:$0xff]
    %v155 = vld [vmem:[#allocation5 + $0x218] sm:$0xff]
    %v156 = vld [vmem:[#allocation5 + $0x220] sm:$0xff]
    %v157 = vld [vmem:[#allocation5 + $0x228] sm:$0xff]
    %v158 = vld [vmem:[#allocation5 + $0x230] sm:$0xff]
    %v159 = vld [vmem:[#allocation5 + $0x238] sm:$0xff]
    %v160 = vld [vmem:[#allocation5 + $0x240] sm:$0xff]
    %v161 = vld [vmem:[#allocation5 + $0x248] sm:$0xff]
    %v162 = vld [vmem:[#allocation5 + $0x250] sm:$0xff]
    %v163 = vld [vmem:[#allocation5 + $0x258] sm:$0xff]
    %v164 = vld [vmem:[#allocation5 + $0x260] sm:$0xff]
    %v165 = vld [vmem:[#allocation5 + $0x268] sm:$0xff]
    %v166 = vld [vmem:[#allocation5 + $0x270] sm:$0xff]
    %v167 = vld [vmem:[#allocation5 + $0x278] sm:$0xff]
    %v168 = vld [vmem:[#allocation5 + $0x280] sm:$0xff]
    %v169 = vld [vmem:[#allocation5 + $0x288] sm:$0xff]
    %v170 = vld [vmem:[#allocation5 + $0x290] sm:$0xff]
    %v171 = vld [vmem:[#allocation5 + $0x298] sm:$0xff]
    %v172 = vld [vmem:[#allocation5 + $0x2a0] sm:$0xff]
    %v173 = vld [vmem:[#allocation5 + $0x2a8] sm:$0xff]
    %v174 = vld [vmem:[#allocation5 + $0x2b0] sm:$0xff]
    %v175 = vld [vmem:[#allocation5 + $0x2b8] sm:$0xff]
    %v176 = vld [vmem:[#allocation5 + $0x2c0] sm:$0xff]
    %v177 = vld [vmem:[#allocation5 + $0x2c8] sm:$0xff]
    %v178 = vld [vmem:[#allocation5 + $0x2d0] sm:$0xff]
    %v179 = vld [vmem:[#allocation5 + $0x2d8] sm:$0xff]
    %v180 = vld [vmem:[#allocation5 + $0x2e0] sm:$0xff]
    %v181 = vld [vmem:[#allocation5 + $0x2e8] sm:$0xff]
    %v182 = vld [vmem:[#allocation5 + $0x2f0] sm:$0xff]
    %v183 = vld [vmem:[#allocation5 + $0x2f8] sm:$0xff]
    %v184 = vld [vmem:[#allocation5 + $0x300] sm:$0xff]
    %v185 = vld [vmem:[#allocation5 + $0x308] sm:$0xff]
    %v186 = vld [vmem:[#allocation5 + $0x310] sm:$0xff]
    %v187 = vld [vmem:[#allocation5 + $0x318] sm:$0xff]
    %v188 = vld [vmem:[#allocation5 + $0x320] sm:$0xff]
    %v189 = vld [vmem:[#allocation5 + $0x328] sm:$0xff]
    %v190 = vld [vmem:[#allocation5 + $0x330] sm:$0xff]
    %v191 = vld [vmem:[#allocation5 + $0x338] sm:$0xff]
    %v192 = vld [vmem:[#allocation5 + $0x340] sm:$0xff]
    %v193 = vld [vmem:[#allocation5 + $0x348] sm:$0xff]
    %v194 = vld [vmem:[#allocation5 + $0x350] sm:$0xff]
    %v195 = vld [vmem:[#allocation5 + $0x358] sm:$0xff]
    %v196 = vld [vmem:[#allocation5 + $0x360] sm:$0xff]
    %v197 = vld [vmem:[#allocation5 + $0x368] sm:$0xff]
    %v198 = vld [vmem:[#allocation5 + $0x370] sm:$0xff]
    %v199 = vld [vmem:[#allocation5 + $0x378] sm:$0xff]
    %v200 = vld [vmem:[#allocation5 + $0x380] sm:$0xff]
    %v201 = vld [vmem:[#allocation5 + $0x388] sm:$0xff]
    %v202 = vld [vmem:[#allocation5 + $0x390] sm:$0xff]
    %v203 = vld [vmem:[#allocation5 + $0x398] sm:$0xff]
    %v204 = vld [vmem:[#allocation5 + $0x3a0] sm:$0xff]
    %v205 = vld [vmem:[#allocation5 + $0x3a8] sm:$0xff]
    %v206 = vld [vmem:[#allocation5 + $0x3b0] sm:$0xff]
    %v207 = vld [vmem:[#allocation5 + $0x3b8] sm:$0xff]
    %v208 = vld [vmem:[#allocation5 + $0x3c0] sm:$0xff]
    %v209 = vld [vmem:[#allocation5 + $0x3c8] sm:$0xff]
    %v210 = vld [vmem:[#allocation5 + $0x3d0] sm:$0xff]
    %v211 = vld [vmem:[#allocation5 + $0x3d8] sm:$0xff]
    %v212 = vld [vmem:[#allocation5 + $0x3e0] sm:$0xff]
    %v213 = vld [vmem:[#allocation5 + $0x3e8] sm:$0xff]
    %v214 = vld [vmem:[#allocation5 + $0x3f0] sm:$0xff]
    %v215 = vld [vmem:[#allocation5 + $0x3f8] sm:$0xff]
    %v216 = vld [vmem:[%s2] sm:$0xf]
    %v218 = vlaneseq
    %v219 = vshrl.u32 %v218, 7
    %v220 = vsub.s32 0, %v219
    %v221 = vrot.slane %v216, %v220
    %v222 = vlaneseq
    %v223 = vshrl.u32 %v222, 7
    %v224 = vsub.s32 1, %v223
    %v225 = vrot.slane %v216, %v224
    %v226 = vlaneseq
    %v227 = vshrl.u32 %v226, 7
    %v228 = vsub.s32 2, %v227
    %v229 = vrot.slane %v216, %v228
    %v230 = vlaneseq
    %v231 = vshrl.u32 %v230, 7
    %v232 = vsub.s32 3, %v231
    %v233 = vrot.slane %v216, %v232
    %v242 = vunpack.c.l.b16 %v84
    %v243 = vunpack.c.h.b16 %v84
    %v244 = vunpack.c.l.b16 %v85
    %v245 = vunpack.c.h.b16 %v85
    %v246 = vunpack.c.l.b16 %v86
    %v247 = vunpack.c.h.b16 %v86
    %v248 = vunpack.c.l.b16 %v87
    %v249 = vunpack.c.h.b16 %v87
    %v250 = vpack.c.b16 %v246, %v242
    %v251 = vpack.c.b16 %v247, %v243
    %v252 = vpack.c.b16 %v248, %v244
    %v253 = vpack.c.b16 %v249, %v245
    %v386 = vunpack.c.l.b16 %v88
    %v387 = vunpack.c.h.b16 %v88
    %v388 = vunpack.c.l.b16 %v89
    %v389 = vunpack.c.h.b16 %v89
    %v390 = vunpack.c.l.b16 %v90
    %v391 = vunpack.c.h.b16 %v90
    %v392 = vunpack.c.l.b16 %v91
    %v393 = vunpack.c.h.b16 %v91
    %v394 = vunpack.c.l.b16 %v92
    %v395 = vunpack.c.h.b16 %v92
    %v396 = vunpack.c.l.b16 %v93
    %v397 = vunpack.c.h.b16 %v93
    %v398 = vunpack.c.l.b16 %v94
    %v399 = vunpack.c.h.b16 %v94
    %v400 = vunpack.c.l.b16 %v95
    %v401 = vunpack.c.h.b16 %v95
    %v402 = vunpack.c.l.b16 %v96
    %v403 = vunpack.c.h.b16 %v96
    %v404 = vunpack.c.l.b16 %v97
    %v405 = vunpack.c.h.b16 %v97
    %v406 = vunpack.c.l.b16 %v98
    %v407 = vunpack.c.h.b16 %v98
    %v408 = vunpack.c.l.b16 %v99
    %v409 = vunpack.c.h.b16 %v99
    %v410 = vunpack.c.l.b16 %v100
    %v411 = vunpack.c.h.b16 %v100
    %v412 = vunpack.c.l.b16 %v101
    %v413 = vunpack.c.h.b16 %v101
    %v414 = vunpack.c.l.b16 %v102
    %v415 = vunpack.c.h.b16 %v102
    %v416 = vunpack.c.l.b16 %v103
    %v417 = vunpack.c.h.b16 %v103
    %v418 = vunpack.c.l.b16 %v104
    %v419 = vunpack.c.h.b16 %v104
    %v420 = vunpack.c.l.b16 %v105
    %v421 = vunpack.c.h.b16 %v105
    %v422 = vunpack.c.l.b16 %v106
    %v423 = vunpack.c.h.b16 %v106
    %v424 = vunpack.c.l.b16 %v107
    %v425 = vunpack.c.h.b16 %v107
    %v426 = vunpack.c.l.b16 %v108
    %v427 = vunpack.c.h.b16 %v108
    %v428 = vunpack.c.l.b16 %v109
    %v429 = vunpack.c.h.b16 %v109
    %v430 = vunpack.c.l.b16 %v110
    %v431 = vunpack.c.h.b16 %v110
    %v432 = vunpack.c.l.b16 %v111
    %v433 = vunpack.c.h.b16 %v111
    %v434 = vunpack.c.l.b16 %v112
    %v435 = vunpack.c.h.b16 %v112
    %v436 = vunpack.c.l.b16 %v113
    %v437 = vunpack.c.h.b16 %v113
    %v438 = vunpack.c.l.b16 %v114
    %v439 = vunpack.c.h.b16 %v114
    %v440 = vunpack.c.l.b16 %v115
    %v441 = vunpack.c.h.b16 %v115
    %v442 = vunpack.c.l.b16 %v116
    %v443 = vunpack.c.h.b16 %v116
    %v444 = vunpack.c.l.b16 %v117
    %v445 = vunpack.c.h.b16 %v117
    %v446 = vunpack.c.l.b16 %v118
    %v447 = vunpack.c.h.b16 %v118
    %v448 = vunpack.c.l.b16 %v119
    %v449 = vunpack.c.h.b16 %v119
    %v450 = vunpack.c.l.b16 %v120
    %v451 = vunpack.c.h.b16 %v120
    %v452 = vunpack.c.l.b16 %v121
    %v453 = vunpack.c.h.b16 %v121
    %v454 = vunpack.c.l.b16 %v122
    %v455 = vunpack.c.h.b16 %v122
    %v456 = vunpack.c.l.b16 %v123
    %v457 = vunpack.c.h.b16 %v123
    %v458 = vunpack.c.l.b16 %v124
    %v459 = vunpack.c.h.b16 %v124
    %v460 = vunpack.c.l.b16 %v125
    %v461 = vunpack.c.h.b16 %v125
    %v462 = vunpack.c.l.b16 %v126
    %v463 = vunpack.c.h.b16 %v126
    %v464 = vunpack.c.l.b16 %v127
    %v465 = vunpack.c.h.b16 %v127
    %v466 = vunpack.c.l.b16 %v128
    %v467 = vunpack.c.h.b16 %v128
    %v468 = vunpack.c.l.b16 %v129
    %v469 = vunpack.c.h.b16 %v129
    %v470 = vunpack.c.l.b16 %v130
    %v471 = vunpack.c.h.b16 %v130
    %v472 = vunpack.c.l.b16 %v131
    %v473 = vunpack.c.h.b16 %v131
    %v474 = vunpack.c.l.b16 %v132
    %v475 = vunpack.c.h.b16 %v132
    %v476 = vunpack.c.l.b16 %v133
    %v477 = vunpack.c.h.b16 %v133
    %v478 = vunpack.c.l.b16 %v134
    %v479 = vunpack.c.h.b16 %v134
    %v480 = vunpack.c.l.b16 %v135
    %v481 = vunpack.c.h.b16 %v135
    %v482 = vunpack.c.l.b16 %v136
    %v483 = vunpack.c.h.b16 %v136
    %v484 = vunpack.c.l.b16 %v137
    %v485 = vunpack.c.h.b16 %v137
    %v486 = vunpack.c.l.b16 %v138
    %v487 = vunpack.c.h.b16 %v138
    %v488 = vunpack.c.l.b16 %v139
    %v489 = vunpack.c.h.b16 %v139
    %v490 = vunpack.c.l.b16 %v140
    %v491 = vunpack.c.h.b16 %v140
    %v492 = vunpack.c.l.b16 %v141
    %v493 = vunpack.c.h.b16 %v141
    %v494 = vunpack.c.l.b16 %v142
    %v495 = vunpack.c.h.b16 %v142
    %v496 = vunpack.c.l.b16 %v143
    %v497 = vunpack.c.h.b16 %v143
    %v498 = vunpack.c.l.b16 %v144
    %v499 = vunpack.c.h.b16 %v144
    %v500 = vunpack.c.l.b16 %v145
    %v501 = vunpack.c.h.b16 %v145
    %v502 = vunpack.c.l.b16 %v146
    %v503 = vunpack.c.h.b16 %v146
    %v504 = vunpack.c.l.b16 %v147
    %v505 = vunpack.c.h.b16 %v147
    %v506 = vunpack.c.l.b16 %v148
    %v507 = vunpack.c.h.b16 %v148
    %v508 = vunpack.c.l.b16 %v149
    %v509 = vunpack.c.h.b16 %v149
    %v510 = vunpack.c.l.b16 %v150
    %v511 = vunpack.c.h.b16 %v150
    %v512 = vunpack.c.l.b16 %v151
    %v513 = vunpack.c.h.b16 %v151
    %v514 = vunpack.c.l.b16 %v152
    %v515 = vunpack.c.h.b16 %v152
    %v516 = vunpack.c.l.b16 %v153
    %v517 = vunpack.c.h.b16 %v153
    %v518 = vunpack.c.l.b16 %v154
    %v519 = vunpack.c.h.b16 %v154
    %v520 = vunpack.c.l.b16 %v155
    %v521 = vunpack.c.h.b16 %v155
    %v522 = vunpack.c.l.b16 %v156
    %v523 = vunpack.c.h.b16 %v156
    %v524 = vunpack.c.l.b16 %v157
    %v525 = vunpack.c.h.b16 %v157
    %v526 = vunpack.c.l.b16 %v158
    %v527 = vunpack.c.h.b16 %v158
    %v528 = vunpack.c.l.b16 %v159
    %v529 = vunpack.c.h.b16 %v159
    %v530 = vunpack.c.l.b16 %v160
    %v531 = vunpack.c.h.b16 %v160
    %v532 = vunpack.c.l.b16 %v161
    %v533 = vunpack.c.h.b16 %v161
    %v534 = vunpack.c.l.b16 %v162
    %v535 = vunpack.c.h.b16 %v162
    %v536 = vunpack.c.l.b16 %v163
    %v537 = vunpack.c.h.b16 %v163
    %v538 = vunpack.c.l.b16 %v164
    %v539 = vunpack.c.h.b16 %v164
    %v540 = vunpack.c.l.b16 %v165
    %v541 = vunpack.c.h.b16 %v165
    %v542 = vunpack.c.l.b16 %v166
    %v543 = vunpack.c.h.b16 %v166
    %v544 = vunpack.c.l.b16 %v167
    %v545 = vunpack.c.h.b16 %v167
    %v546 = vunpack.c.l.b16 %v168
    %v547 = vunpack.c.h.b16 %v168
    %v548 = vunpack.c.l.b16 %v169
    %v549 = vunpack.c.h.b16 %v169
    %v550 = vunpack.c.l.b16 %v170
    %v551 = vunpack.c.h.b16 %v170
    %v552 = vunpack.c.l.b16 %v171
    %v553 = vunpack.c.h.b16 %v171
    %v554 = vunpack.c.l.b16 %v172
    %v555 = vunpack.c.h.b16 %v172
    %v556 = vunpack.c.l.b16 %v173
    %v557 = vunpack.c.h.b16 %v173
    %v558 = vunpack.c.l.b16 %v174
    %v559 = vunpack.c.h.b16 %v174
    %v560 = vunpack.c.l.b16 %v175
    %v561 = vunpack.c.h.b16 %v175
    %v562 = vunpack.c.l.b16 %v176
    %v563 = vunpack.c.h.b16 %v176
    %v564 = vunpack.c.l.b16 %v177
    %v565 = vunpack.c.h.b16 %v177
    %v566 = vunpack.c.l.b16 %v178
    %v567 = vunpack.c.h.b16 %v178
    %v568 = vunpack.c.l.b16 %v179
    %v569 = vunpack.c.h.b16 %v179
    %v570 = vunpack.c.l.b16 %v180
    %v571 = vunpack.c.h.b16 %v180
    %v572 = vunpack.c.l.b16 %v181
    %v573 = vunpack.c.h.b16 %v181
    %v574 = vunpack.c.l.b16 %v182
    %v575 = vunpack.c.h.b16 %v182
    %v576 = vunpack.c.l.b16 %v183
    %v577 = vunpack.c.h.b16 %v183
    %v578 = vunpack.c.l.b16 %v184
    %v579 = vunpack.c.h.b16 %v184
    %v580 = vunpack.c.l.b16 %v185
    %v581 = vunpack.c.h.b16 %v185
    %v582 = vunpack.c.l.b16 %v186
    %v583 = vunpack.c.h.b16 %v186
    %v584 = vunpack.c.l.b16 %v187
    %v585 = vunpack.c.h.b16 %v187
    %v586 = vunpack.c.l.b16 %v188
    %v587 = vunpack.c.h.b16 %v188
    %v588 = vunpack.c.l.b16 %v189
    %v589 = vunpack.c.h.b16 %v189
    %v590 = vunpack.c.l.b16 %v190
    %v591 = vunpack.c.h.b16 %v190
    %v592 = vunpack.c.l.b16 %v191
    %v593 = vunpack.c.h.b16 %v191
    %v594 = vunpack.c.l.b16 %v192
    %v595 = vunpack.c.h.b16 %v192
    %v596 = vunpack.c.l.b16 %v193
    %v597 = vunpack.c.h.b16 %v193
    %v598 = vunpack.c.l.b16 %v194
    %v599 = vunpack.c.h.b16 %v194
    %v600 = vunpack.c.l.b16 %v195
    %v601 = vunpack.c.h.b16 %v195
    %v602 = vunpack.c.l.b16 %v196
    %v603 = vunpack.c.h.b16 %v196
    %v604 = vunpack.c.l.b16 %v197
    %v605 = vunpack.c.h.b16 %v197
    %v606 = vunpack.c.l.b16 %v198
    %v607 = vunpack.c.h.b16 %v198
    %v608 = vunpack.c.l.b16 %v199
    %v609 = vunpack.c.h.b16 %v199
    %v610 = vunpack.c.l.b16 %v200
    %v611 = vunpack.c.h.b16 %v200
    %v612 = vunpack.c.l.b16 %v201
    %v613 = vunpack.c.h.b16 %v201
    %v614 = vunpack.c.l.b16 %v202
    %v615 = vunpack.c.h.b16 %v202
    %v616 = vunpack.c.l.b16 %v203
    %v617 = vunpack.c.h.b16 %v203
    %v618 = vunpack.c.l.b16 %v204
    %v619 = vunpack.c.h.b16 %v204
    %v620 = vunpack.c.l.b16 %v205
    %v621 = vunpack.c.h.b16 %v205
    %v622 = vunpack.c.l.b16 %v206
    %v623 = vunpack.c.h.b16 %v206
    %v624 = vunpack.c.l.b16 %v207
    %v625 = vunpack.c.h.b16 %v207
    %v626 = vunpack.c.l.b16 %v208
    %v627 = vunpack.c.h.b16 %v208
    %v628 = vunpack.c.l.b16 %v209
    %v629 = vunpack.c.h.b16 %v209
    %v630 = vunpack.c.l.b16 %v210
    %v631 = vunpack.c.h.b16 %v210
    %v632 = vunpack.c.l.b16 %v211
    %v633 = vunpack.c.h.b16 %v211
    %v634 = vunpack.c.l.b16 %v212
    %v635 = vunpack.c.h.b16 %v212
    %v636 = vunpack.c.l.b16 %v213
    %v637 = vunpack.c.h.b16 %v213
    %v638 = vunpack.c.l.b16 %v214
    %v639 = vunpack.c.h.b16 %v214
    %v640 = vunpack.c.l.b16 %v215
    %v641 = vunpack.c.h.b16 %v215
    %v642 = vpack.c.b16 %v390, %v386
    %v643 = vpack.c.b16 %v391, %v387
    %v644 = vpack.c.b16 %v392, %v388
    %v645 = vpack.c.b16 %v393, %v389
    %v646 = vpack.c.b16 %v398, %v394
    %v647 = vpack.c.b16 %v399, %v395
    %v648 = vpack.c.b16 %v400, %v396
    %v649 = vpack.c.b16 %v401, %v397
    %v650 = vpack.c.b16 %v406, %v402
    %v651 = vpack.c.b16 %v407, %v403
    %v652 = vpack.c.b16 %v408, %v404
    %v653 = vpack.c.b16 %v409, %v405
    %v654 = vpack.c.b16 %v414, %v410
    %v655 = vpack.c.b16 %v415, %v411
    %v656 = vpack.c.b16 %v416, %v412
    %v657 = vpack.c.b16 %v417, %v413
    %v658 = vpack.c.b16 %v422, %v418
    %v659 = vpack.c.b16 %v423, %v419
    %v660 = vpack.c.b16 %v424, %v420
    %v661 = vpack.c.b16 %v425, %v421
    %v662 = vpack.c.b16 %v430, %v426
    %v663 = vpack.c.b16 %v431, %v427
    %v664 = vpack.c.b16 %v432, %v428
    %v665 = vpack.c.b16 %v433, %v429
    %v666 = vpack.c.b16 %v438, %v434
    %v667 = vpack.c.b16 %v439, %v435
    %v668 = vpack.c.b16 %v440, %v436
    %v669 = vpack.c.b16 %v441, %v437
    %v670 = vpack.c.b16 %v446, %v442
    %v671 = vpack.c.b16 %v447, %v443
    %v672 = vpack.c.b16 %v448, %v444
    %v673 = vpack.c.b16 %v449, %v445
    %v674 = vpack.c.b16 %v454, %v450
    %v675 = vpack.c.b16 %v455, %v451
    %v676 = vpack.c.b16 %v456, %v452
    %v677 = vpack.c.b16 %v457, %v453
    %v678 = vpack.c.b16 %v462, %v458
    %v679 = vpack.c.b16 %v463, %v459
    %v680 = vpack.c.b16 %v464, %v460
    %v681 = vpack.c.b16 %v465, %v461
    %v682 = vpack.c.b16 %v470, %v466
    %v683 = vpack.c.b16 %v471, %v467
    %v684 = vpack.c.b16 %v472, %v468
    %v685 = vpack.c.b16 %v473, %v469
    %v686 = vpack.c.b16 %v478, %v474
    %v687 = vpack.c.b16 %v479, %v475
    %v688 = vpack.c.b16 %v480, %v476
    %v689 = vpack.c.b16 %v481, %v477
    %v690 = vpack.c.b16 %v486, %v482
    %v691 = vpack.c.b16 %v487, %v483
    %v692 = vpack.c.b16 %v488, %v484
    %v693 = vpack.c.b16 %v489, %v485
    %v694 = vpack.c.b16 %v494, %v490
    %v695 = vpack.c.b16 %v495, %v491
    %v696 = vpack.c.b16 %v496, %v492
    %v697 = vpack.c.b16 %v497, %v493
    %v698 = vpack.c.b16 %v502, %v498
    %v699 = vpack.c.b16 %v503, %v499
    %v700 = vpack.c.b16 %v504, %v500
    %v701 = vpack.c.b16 %v505, %v501
    %v702 = vpack.c.b16 %v510, %v506
    %v703 = vpack.c.b16 %v511, %v507
    %v704 = vpack.c.b16 %v512, %v508
    %v705 = vpack.c.b16 %v513, %v509
    %v706 = vpack.c.b16 %v518, %v514
    %v707 = vpack.c.b16 %v519, %v515
    %v708 = vpack.c.b16 %v520, %v516
    %v709 = vpack.c.b16 %v521, %v517
    %v710 = vpack.c.b16 %v526, %v522
    %v711 = vpack.c.b16 %v527, %v523
    %v712 = vpack.c.b16 %v528, %v524
    %v713 = vpack.c.b16 %v529, %v525
    %v714 = vpack.c.b16 %v534, %v530
    %v715 = vpack.c.b16 %v535, %v531
    %v716 = vpack.c.b16 %v536, %v532
    %v717 = vpack.c.b16 %v537, %v533
    %v718 = vpack.c.b16 %v542, %v538
    %v719 = vpack.c.b16 %v543, %v539
    %v720 = vpack.c.b16 %v544, %v540
    %v721 = vpack.c.b16 %v545, %v541
    %v722 = vpack.c.b16 %v550, %v546
    %v723 = vpack.c.b16 %v551, %v547
    %v724 = vpack.c.b16 %v552, %v548
    %v725 = vpack.c.b16 %v553, %v549
    %v726 = vpack.c.b16 %v558, %v554
    %v727 = vpack.c.b16 %v559, %v555
    %v728 = vpack.c.b16 %v560, %v556
    %v729 = vpack.c.b16 %v561, %v557
    %v730 = vpack.c.b16 %v566, %v562
    %v731 = vpack.c.b16 %v567, %v563
    %v732 = vpack.c.b16 %v568, %v564
    %v733 = vpack.c.b16 %v569, %v565
    %v734 = vpack.c.b16 %v574, %v570
    %v735 = vpack.c.b16 %v575, %v571
    %v736 = vpack.c.b16 %v576, %v572
    %v737 = vpack.c.b16 %v577, %v573
    %v738 = vpack.c.b16 %v582, %v578
    %v739 = vpack.c.b16 %v583, %v579
    %v740 = vpack.c.b16 %v584, %v580
    %v741 = vpack.c.b16 %v585, %v581
    %v742 = vpack.c.b16 %v590, %v586
    %v743 = vpack.c.b16 %v591, %v587
    %v744 = vpack.c.b16 %v592, %v588
    %v745 = vpack.c.b16 %v593, %v589
    %v746 = vpack.c.b16 %v598, %v594
    %v747 = vpack.c.b16 %v599, %v595
    %v748 = vpack.c.b16 %v600, %v596
    %v749 = vpack.c.b16 %v601, %v597
    %v750 = vpack.c.b16 %v606, %v602
    %v751 = vpack.c.b16 %v607, %v603
    %v752 = vpack.c.b16 %v608, %v604
    %v753 = vpack.c.b16 %v609, %v605
    %v754 = vpack.c.b16 %v614, %v610
    %v755 = vpack.c.b16 %v615, %v611
    %v756 = vpack.c.b16 %v616, %v612
    %v757 = vpack.c.b16 %v617, %v613
    %v758 = vpack.c.b16 %v622, %v618
    %v759 = vpack.c.b16 %v623, %v619
    %v760 = vpack.c.b16 %v624, %v620
    %v761 = vpack.c.b16 %v625, %v621
    %v762 = vpack.c.b16 %v630, %v626
    %v763 = vpack.c.b16 %v631, %v627
    %v764 = vpack.c.b16 %v632, %v628
    %v765 = vpack.c.b16 %v633, %v629
    %v766 = vpack.c.b16 %v638, %v634
    %v767 = vpack.c.b16 %v639, %v635
    %v768 = vpack.c.b16 %v640, %v636
    %v769 = vpack.c.b16 %v641, %v637
    %898 = vmatprep.subr.bf16.mxu0 %v643
    %899 = vmatpush1.bf16.msra.mxu0 %v642
    %900 = vmatprep.subr.bf16.mxu0 %v647
    %901 = vmatpush1.bf16.msra.mxu0 %v646
    %902 = vmatprep.subr.bf16.mxu0 %v651
    %903 = vmatpush1.bf16.msra.mxu0 %v650
    %904 = vmatprep.subr.bf16.mxu0 %v655
    %905 = vmatpush1.bf16.msra.mxu0 %v654
    %906 = vmatprep.subr.bf16.mxu0 %v659
    %907 = vmatpush1.bf16.msra.mxu0 %v658
    %908 = vmatprep.subr.bf16.mxu0 %v663
    %909 = vmatpush1.bf16.msra.mxu0 %v662
    %910 = vmatprep.subr.bf16.mxu0 %v667
    %911 = vmatpush1.bf16.msra.mxu0 %v666
    %912 = vmatprep.subr.bf16.mxu0 %v671
    %913 = vmatpush1.bf16.msra.mxu0 %v670
    %914 = vmatprep.subr.bf16.mxu0 %v675
    %915 = vmatpush1.bf16.msra.mxu0 %v674
    %916 = vmatprep.subr.bf16.mxu0 %v679
    %917 = vmatpush1.bf16.msra.mxu0 %v678
    %918 = vmatprep.subr.bf16.mxu0 %v683
    %919 = vmatpush1.bf16.msra.mxu0 %v682
    %920 = vmatprep.subr.bf16.mxu0 %v687
    %921 = vmatpush1.bf16.msra.mxu0 %v686
    %922 = vmatprep.subr.bf16.mxu0 %v691
    %923 = vmatpush1.bf16.msra.mxu0 %v690
    %924 = vmatprep.subr.bf16.mxu0 %v695
    %925 = vmatpush1.bf16.msra.mxu0 %v694
    %926 = vmatprep.subr.bf16.mxu0 %v699
    %927 = vmatpush1.bf16.msra.mxu0 %v698
    %928 = vmatprep.subr.bf16.mxu0 %v703
    %929 = vmatpush1.bf16.msra.mxu0 %v702
    %930 = vmatprep.mubr.bf16.mxu0 %v251
    %931 = vmatmul.mubr.bf16.gmra.mrb[0].mxu0 %v250
    %v932 = vpop.f32.mrb[0].mxu0
    %v933 = vadd.f32 %v221, %v932
    %v934 = vpop.f32.mrb[0].mxu0
    %v935 = vadd.f32 %v225, %v934
    %v936 = vpop.f32.mrb[0].mxu0
    %v937 = vadd.f32 %v221, %v936
    %v938 = vpop.f32.mrb[0].mxu0
    %v939 = vadd.f32 %v225, %v938
    %940 = vdwg.mxu0
    %941 = vmatprep.subr.bf16.mxu0 %v707
    %942 = vmatpush1.bf16.msra.mxu0 %v706
    %943 = vmatprep.subr.bf16.mxu0 %v711
    %944 = vmatpush1.bf16.msra.mxu0 %v710
    %945 = vmatprep.subr.bf16.mxu0 %v715
    %946 = vmatpush1.bf16.msra.mxu0 %v714
    %947 = vmatprep.subr.bf16.mxu0 %v719
    %948 = vmatpush1.bf16.msra.mxu0 %v718
    %949 = vmatprep.subr.bf16.mxu0 %v723
    %950 = vmatpush1.bf16.msra.mxu0 %v722
    %951 = vmatprep.subr.bf16.mxu0 %v727
    %952 = vmatpush1.bf16.msra.mxu0 %v726
    %953 = vmatprep.subr.bf16.mxu0 %v731
    %954 = vmatpush1.bf16.msra.mxu0 %v730
    %955 = vmatprep.subr.bf16.mxu0 %v735
    %956 = vmatpush1.bf16.msra.mxu0 %v734
    %957 = vmatprep.subr.bf16.mxu0 %v739
    %958 = vmatpush1.bf16.msra.mxu0 %v738
    %959 = vmatprep.subr.bf16.mxu0 %v743
    %960 = vmatpush1.bf16.msra.mxu0 %v742
    %961 = vmatprep.subr.bf16.mxu0 %v747
    %962 = vmatpush1.bf16.msra.mxu0 %v746
    %963 = vmatprep.subr.bf16.mxu0 %v751
    %964 = vmatpush1.bf16.msra.mxu0 %v750
    %965 = vmatprep.subr.bf16.mxu0 %v755
    %966 = vmatpush1.bf16.msra.mxu0 %v754
    %967 = vmatprep.subr.bf16.mxu0 %v759
    %968 = vmatpush1.bf16.msra.mxu0 %v758
    %969 = vmatprep.subr.bf16.mxu0 %v763
    %970 = vmatpush1.bf16.msra.mxu0 %v762
    %971 = vmatprep.subr.bf16.mxu0 %v767
    %972 = vmatpush1.bf16.msra.mxu0 %v766
    %973 = vmatprep.mubr.bf16.mxu0 %v253
    %974 = vmatmul.mubr.bf16.gmra.mrb[0].mxu0 %v252
    %v975 = vpop.f32.mrb[0].mxu0
    %v976 = vadd.f32 %v933, %v975
    %v977 = vpop.f32.mrb[0].mxu0
    %v978 = vadd.f32 %v935, %v977
    %v979 = vpop.f32.mrb[0].mxu0
    %v980 = vadd.f32 %v937, %v979
    %v981 = vpop.f32.mrb[0].mxu0
    %v982 = vadd.f32 %v939, %v981
    %983 = vdwg.mxu0
    %984 = vmatprep.subr.bf16.mxu0 %v645
    %985 = vmatpush1.bf16.msra.mxu0 %v644
    %986 = vmatprep.subr.bf16.mxu0 %v649
    %987 = vmatpush1.bf16.msra.mxu0 %v648
    %988 = vmatprep.subr.bf16.mxu0 %v653
    %989 = vmatpush1.bf16.msra.mxu0 %v652
    %990 = vmatprep.subr.bf16.mxu0 %v657
    %991 = vmatpush1.bf16.msra.mxu0 %v656
    %992 = vmatprep.subr.bf16.mxu0 %v661
    %993 = vmatpush1.bf16.msra.mxu0 %v660
    %994 = vmatprep.subr.bf16.mxu0 %v665
    %995 = vmatpush1.bf16.msra.mxu0 %v664
    %996 = vmatprep.subr.bf16.mxu0 %v669
    %997 = vmatpush1.bf16.msra.mxu0 %v668
    %998 = vmatprep.subr.bf16.mxu0 %v673
    %999 = vmatpush1.bf16.msra.mxu0 %v672
    %1000 = vmatprep.subr.bf16.mxu0 %v677
    %1001 = vmatpush1.bf16.msra.mxu0 %v676
    %1002 = vmatprep.subr.bf16.mxu0 %v681
    %1003 = vmatpush1.bf16.msra.mxu0 %v680
    %1004 = vmatprep.subr.bf16.mxu0 %v685
    %1005 = vmatpush1.bf16.msra.mxu0 %v684
    %1006 = vmatprep.subr.bf16.mxu0 %v689
    %1007 = vmatpush1.bf16.msra.mxu0 %v688
    %1008 = vmatprep.subr.bf16.mxu0 %v693
    %1009 = vmatpush1.bf16.msra.mxu0 %v692
    %1010 = vmatprep.subr.bf16.mxu0 %v697
    %1011 = vmatpush1.bf16.msra.mxu0 %v696
    %1012 = vmatprep.subr.bf16.mxu0 %v701
    %1013 = vmatpush1.bf16.msra.mxu0 %v700
    %1014 = vmatprep.subr.bf16.mxu0 %v705
    %1015 = vmatpush1.bf16.msra.mxu0 %v704
    %1016 = vmatprep.mubr.bf16.mxu0 %v251
    %1017 = vmatmul.mubr.bf16.gmra.mrb[0].mxu0 %v250
    %v1018 = vpop.f32.mrb[0].mxu0
    %v1019 = vadd.f32 %v229, %v1018
    %v1020 = vpop.f32.mrb[0].mxu0
    %v1021 = vadd.f32 %v233, %v1020
    %v1022 = vpop.f32.mrb[0].mxu0
    %v1023 = vadd.f32 %v229, %v1022
    %v1024 = vpop.f32.mrb[0].mxu0
    %v1025 = vadd.f32 %v233, %v1024
    %1026 = vdwg.mxu0
    %1027 = vmatprep.subr.bf16.mxu0 %v709
    %1028 = vmatpush1.bf16.msra.mxu0 %v708
    %1029 = vmatprep.subr.bf16.mxu0 %v713
    %1030 = vmatpush1.bf16.msra.mxu0 %v712
    %1031 = vmatprep.subr.bf16.mxu0 %v717
    %1032 = vmatpush1.bf16.msra.mxu0 %v716
    %1033 = vmatprep.subr.bf16.mxu0 %v721
    %1034 = vmatpush1.bf16.msra.mxu0 %v720
    %1035 = vmatprep.subr.bf16.mxu0 %v725
    %1036 = vmatpush1.bf16.msra.mxu0 %v724
    %1037 = vmatprep.subr.bf16.mxu0 %v729
    %1038 = vmatpush1.bf16.msra.mxu0 %v728
    %1039 = vmatprep.subr.bf16.mxu0 %v733
    %1040 = vmatpush1.bf16.msra.mxu0 %v732
    %1041 = vmatprep.subr.bf16.mxu0 %v737
    %1042 = vmatpush1.bf16.msra.mxu0 %v736
    %1043 = vmatprep.subr.bf16.mxu0 %v741
    %1044 = vmatpush1.bf16.msra.mxu0 %v740
    %1045 = vmatprep.subr.bf16.mxu0 %v745
    %1046 = vmatpush1.bf16.msra.mxu0 %v744
    %1047 = vmatprep.subr.bf16.mxu0 %v749
    %1048 = vmatpush1.bf16.msra.mxu0 %v748
    %1049 = vmatprep.subr.bf16.mxu0 %v753
    %1050 = vmatpush1.bf16.msra.mxu0 %v752
    %1051 = vmatprep.subr.bf16.mxu0 %v757
    %1052 = vmatpush1.bf16.msra.mxu0 %v756
    %1053 = vmatprep.subr.bf16.mxu0 %v761
    %1054 = vmatpush1.bf16.msra.mxu0 %v760
    %1055 = vmatprep.subr.bf16.mxu0 %v765
    %1056 = vmatpush1.bf16.msra.mxu0 %v764
    %1057 = vmatprep.subr.bf16.mxu0 %v769
    %1058 = vmatpush1.bf16.msra.mxu0 %v768
    %1059 = vmatprep.mubr.bf16.mxu0 %v253
    %1060 = vmatmul.mubr.bf16.gmra.mrb[0].mxu0 %v252
    %v1061 = vpop.f32.mrb[0].mxu0
    %v1062 = vadd.f32 %v1019, %v1061
    %v1063 = vpop.f32.mrb[0].mxu0
    %v1064 = vadd.f32 %v1021, %v1063
    %v1065 = vpop.f32.mrb[0].mxu0
    %v1066 = vadd.f32 %v1023, %v1065
    %v1067 = vpop.f32.mrb[0].mxu0
    %v1068 = vadd.f32 %v1025, %v1067
    %1069 = vdwg.mxu0
    %v1070 = vmax.f32 %v976, 0.0
    %v1071 = vmax.f32 %v978, 0.0
    %v1072 = vmax.f32 %v1062, 0.0
    %v1073 = vmax.f32 %v1064, 0.0
    %v1074 = vmax.f32 %v980, 0.0
    %v1075 = vmax.f32 %v982, 0.0
    %v1076 = vmax.f32 %v1066, 0.0
    %v1077 = vmax.f32 %v1068, 0.0
    %v1078 = vpack.c.bf16 %v1074, %v1070
    %v1079 = vpack.c.bf16 %v1075, %v1071
    %v1080 = vpack.c.bf16 %v1076, %v1072
    %v1081 = vpack.c.bf16 %v1077, %v1073
    %v1082 = vld [vmem:[#allocation7] sm:$0xff]
    %v1083 = vld [vmem:[#allocation7 + $0x8] sm:$0xff]
    %v1084 = vld [vmem:[#allocation7 + $0x10] sm:$0xff]
    %v1085 = vld [vmem:[#allocation7 + $0x18] sm:$0xff]
    %v1086 = vld [vmem:[#allocation7 + $0x20] sm:$0xff]
    %v1087 = vld [vmem:[#allocation7 + $0x28] sm:$0xff]
    %v1088 = vld [vmem:[#allocation7 + $0x30] sm:$0xff]
    %v1089 = vld [vmem:[#allocation7 + $0x38] sm:$0xff]
    %v1090 = vld [vmem:[#allocation7 + $0x40] sm:$0xff]
    %v1091 = vld [vmem:[#allocation7 + $0x48] sm:$0xff]
    %v1092 = vld [vmem:[#allocation7 + $0x50] sm:$0xff]
    %v1093 = vld [vmem:[#allocation7 + $0x58] sm:$0xff]
    %v1094 = vld [vmem:[#allocation7 + $0x60] sm:$0xff]
    %v1095 = vld [vmem:[#allocation7 + $0x68] sm:$0xff]
    %v1096 = vld [vmem:[#allocation7 + $0x70] sm:$0xff]
    %v1097 = vld [vmem:[#allocation7 + $0x78] sm:$0xff]
    %v1098 = vld [vmem:[#allocation7 + $0x80] sm:$0xff]
    %v1099 = vld [vmem:[#allocation7 + $0x88] sm:$0xff]
    %v1100 = vld [vmem:[#allocation7 + $0x90] sm:$0xff]
    %v1101 = vld [vmem:[#allocation7 + $0x98] sm:$0xff]
    %v1102 = vld [vmem:[#allocation7 + $0xa0] sm:$0xff]
    %v1103 = vld [vmem:[#allocation7 + $0xa8] sm:$0xff]
    %v1104 = vld [vmem:[#allocation7 + $0xb0] sm:$0xff]
    %v1105 = vld [vmem:[#allocation7 + $0xb8] sm:$0xff]
    %v1106 = vld [vmem:[#allocation7 + $0xc0] sm:$0xff]
    %v1107 = vld [vmem:[#allocation7 + $0xc8] sm:$0xff]
    %v1108 = vld [vmem:[#allocation7 + $0xd0] sm:$0xff]
    %v1109 = vld [vmem:[#allocation7 + $0xd8] sm:$0xff]
    %v1110 = vld [vmem:[#allocation7 + $0xe0] sm:$0xff]
    %v1111 = vld [vmem:[#allocation7 + $0xe8] sm:$0xff]
    %v1112 = vld [vmem:[#allocation7 + $0xf0] sm:$0xff]
    %v1113 = vld [vmem:[#allocation7 + $0xf8] sm:$0xff]
    %v1114 = vld [vmem:[#allocation7 + $0x100] sm:$0xff]
    %v1115 = vld [vmem:[#allocation7 + $0x108] sm:$0xff]
    %v1116 = vld [vmem:[#allocation7 + $0x110] sm:$0xff]
    %v1117 = vld [vmem:[#allocation7 + $0x118] sm:$0xff]
    %v1118 = vld [vmem:[#allocation7 + $0x120] sm:$0xff]
    %v1119 = vld [vmem:[#allocation7 + $0x128] sm:$0xff]
    %v1120 = vld [vmem:[#allocation7 + $0x130] sm:$0xff]
    %v1121 = vld [vmem:[#allocation7 + $0x138] sm:$0xff]
    %v1122 = vld [vmem:[#allocation7 + $0x140] sm:$0xff]
    %v1123 = vld [vmem:[#allocation7 + $0x148] sm:$0xff]
    %v1124 = vld [vmem:[#allocation7 + $0x150] sm:$0xff]
    %v1125 = vld [vmem:[#allocation7 + $0x158] sm:$0xff]
    %v1126 = vld [vmem:[#allocation7 + $0x160] sm:$0xff]
    %v1127 = vld [vmem:[#allocation7 + $0x168] sm:$0xff]
    %v1128 = vld [vmem:[#allocation7 + $0x170] sm:$0xff]
    %v1129 = vld [vmem:[#allocation7 + $0x178] sm:$0xff]
    %v1130 = vld [vmem:[#allocation7 + $0x180] sm:$0xff]
    %v1131 = vld [vmem:[#allocation7 + $0x188] sm:$0xff]
    %v1132 = vld [vmem:[#allocation7 + $0x190] sm:$0xff]
    %v1133 = vld [vmem:[#allocation7 + $0x198] sm:$0xff]
    %v1134 = vld [vmem:[#allocation7 + $0x1a0] sm:$0xff]
    %v1135 = vld [vmem:[#allocation7 + $0x1a8] sm:$0xff]
    %v1136 = vld [vmem:[#allocation7 + $0x1b0] sm:$0xff]
    %v1137 = vld [vmem:[#allocation7 + $0x1b8] sm:$0xff]
    %v1138 = vld [vmem:[#allocation7 + $0x1c0] sm:$0xff]
    %v1139 = vld [vmem:[#allocation7 + $0x1c8] sm:$0xff]
    %v1140 = vld [vmem:[#allocation7 + $0x1d0] sm:$0xff]
    %v1141 = vld [vmem:[#allocation7 + $0x1d8] sm:$0xff]
    %v1142 = vld [vmem:[#allocation7 + $0x1e0] sm:$0xff]
    %v1143 = vld [vmem:[#allocation7 + $0x1e8] sm:$0xff]
    %v1144 = vld [vmem:[#allocation7 + $0x1f0] sm:$0xff]
    %v1145 = vld [vmem:[#allocation7 + $0x1f8] sm:$0xff]
    %v1146 = vld [vmem:[#allocation7 + $0x200] sm:$0xff]
    %v1147 = vld [vmem:[#allocation7 + $0x208] sm:$0xff]
    %v1148 = vld [vmem:[#allocation7 + $0x210] sm:$0xff]
    %v1149 = vld [vmem:[#allocation7 + $0x218] sm:$0xff]
    %v1150 = vld [vmem:[#allocation7 + $0x220] sm:$0xff]
    %v1151 = vld [vmem:[#allocation7 + $0x228] sm:$0xff]
    %v1152 = vld [vmem:[#allocation7 + $0x230] sm:$0xff]
    %v1153 = vld [vmem:[#allocation7 + $0x238] sm:$0xff]
    %v1154 = vld [vmem:[#allocation7 + $0x240] sm:$0xff]
    %v1155 = vld [vmem:[#allocation7 + $0x248] sm:$0xff]
    %v1156 = vld [vmem:[#allocation7 + $0x250] sm:$0xff]
    %v1157 = vld [vmem:[#allocation7 + $0x258] sm:$0xff]
    %v1158 = vld [vmem:[#allocation7 + $0x260] sm:$0xff]
    %v1159 = vld [vmem:[#allocation7 + $0x268] sm:$0xff]
    %v1160 = vld [vmem:[#allocation7 + $0x270] sm:$0xff]
    %v1161 = vld [vmem:[#allocation7 + $0x278] sm:$0xff]
    %v1162 = vld [vmem:[#allocation7 + $0x280] sm:$0xff]
    %v1163 = vld [vmem:[#allocation7 + $0x288] sm:$0xff]
    %v1164 = vld [vmem:[#allocation7 + $0x290] sm:$0xff]
    %v1165 = vld [vmem:[#allocation7 + $0x298] sm:$0xff]
    %v1166 = vld [vmem:[#allocation7 + $0x2a0] sm:$0xff]
    %v1167 = vld [vmem:[#allocation7 + $0x2a8] sm:$0xff]
    %v1168 = vld [vmem:[#allocation7 + $0x2b0] sm:$0xff]
    %v1169 = vld [vmem:[#allocation7 + $0x2b8] sm:$0xff]
    %v1170 = vld [vmem:[#allocation7 + $0x2c0] sm:$0xff]
    %v1171 = vld [vmem:[#allocation7 + $0x2c8] sm:$0xff]
    %v1172 = vld [vmem:[#allocation7 + $0x2d0] sm:$0xff]
    %v1173 = vld [vmem:[#allocation7 + $0x2d8] sm:$0xff]
    %v1174 = vld [vmem:[#allocation7 + $0x2e0] sm:$0xff]
    %v1175 = vld [vmem:[#allocation7 + $0x2e8] sm:$0xff]
    %v1176 = vld [vmem:[#allocation7 + $0x2f0] sm:$0xff]
    %v1177 = vld [vmem:[#allocation7 + $0x2f8] sm:$0xff]
    %v1178 = vld [vmem:[#allocation7 + $0x300] sm:$0xff]
    %v1179 = vld [vmem:[#allocation7 + $0x308] sm:$0xff]
    %v1180 = vld [vmem:[#allocation7 + $0x310] sm:$0xff]
    %v1181 = vld [vmem:[#allocation7 + $0x318] sm:$0xff]
    %v1182 = vld [vmem:[#allocation7 + $0x320] sm:$0xff]
    %v1183 = vld [vmem:[#allocation7 + $0x328] sm:$0xff]
    %v1184 = vld [vmem:[#allocation7 + $0x330] sm:$0xff]
    %v1185 = vld [vmem:[#allocation7 + $0x338] sm:$0xff]
    %v1186 = vld [vmem:[#allocation7 + $0x340] sm:$0xff]
    %v1187 = vld [vmem:[#allocation7 + $0x348] sm:$0xff]
    %v1188 = vld [vmem:[#allocation7 + $0x350] sm:$0xff]
    %v1189 = vld [vmem:[#allocation7 + $0x358] sm:$0xff]
    %v1190 = vld [vmem:[#allocation7 + $0x360] sm:$0xff]
    %v1191 = vld [vmem:[#allocation7 + $0x368] sm:$0xff]
    %v1192 = vld [vmem:[#allocation7 + $0x370] sm:$0xff]
    %v1193 = vld [vmem:[#allocation7 + $0x378] sm:$0xff]
    %v1194 = vld [vmem:[#allocation7 + $0x380] sm:$0xff]
    %v1195 = vld [vmem:[#allocation7 + $0x388] sm:$0xff]
    %v1196 = vld [vmem:[#allocation7 + $0x390] sm:$0xff]
    %v1197 = vld [vmem:[#allocation7 + $0x398] sm:$0xff]
    %v1198 = vld [vmem:[#allocation7 + $0x3a0] sm:$0xff]
    %v1199 = vld [vmem:[#allocation7 + $0x3a8] sm:$0xff]
    %v1200 = vld [vmem:[#allocation7 + $0x3b0] sm:$0xff]
    %v1201 = vld [vmem:[#allocation7 + $0x3b8] sm:$0xff]
    %v1202 = vld [vmem:[#allocation7 + $0x3c0] sm:$0xff]
    %v1203 = vld [vmem:[#allocation7 + $0x3c8] sm:$0xff]
    %v1204 = vld [vmem:[#allocation7 + $0x3d0] sm:$0xff]
    %v1205 = vld [vmem:[#allocation7 + $0x3d8] sm:$0xff]
    %v1206 = vld [vmem:[#allocation7 + $0x3e0] sm:$0xff]
    %v1207 = vld [vmem:[#allocation7 + $0x3e8] sm:$0xff]
    %v1208 = vld [vmem:[#allocation7 + $0x3f0] sm:$0xff]
    %v1209 = vld [vmem:[#allocation7 + $0x3f8] sm:$0xff]
    %v1210 = vld [vmem:[#allocation7 + $0x400] sm:$0xff]
    %v1211 = vld [vmem:[#allocation7 + $0x408] sm:$0xff]
    %v1212 = vld [vmem:[#allocation7 + $0x410] sm:$0xff]
    %v1213 = vld [vmem:[#allocation7 + $0x418] sm:$0xff]
    %v1214 = vld [vmem:[#allocation7 + $0x420] sm:$0xff]
    %v1215 = vld [vmem:[#allocation7 + $0x428] sm:$0xff]
    %v1216 = vld [vmem:[#allocation7 + $0x430] sm:$0xff]
    %v1217 = vld [vmem:[#allocation7 + $0x438] sm:$0xff]
    %v1218 = vld [vmem:[#allocation7 + $0x440] sm:$0xff]
    %v1219 = vld [vmem:[#allocation7 + $0x448] sm:$0xff]
    %v1220 = vld [vmem:[#allocation7 + $0x450] sm:$0xff]
    %v1221 = vld [vmem:[#allocation7 + $0x458] sm:$0xff]
    %v1222 = vld [vmem:[#allocation7 + $0x460] sm:$0xff]
    %v1223 = vld [vmem:[#allocation7 + $0x468] sm:$0xff]
    %v1224 = vld [vmem:[#allocation7 + $0x470] sm:$0xff]
    %v1225 = vld [vmem:[#allocation7 + $0x478] sm:$0xff]
    %v1226 = vld [vmem:[#allocation7 + $0x480] sm:$0xff]
    %v1227 = vld [vmem:[#allocation7 + $0x488] sm:$0xff]
    %v1228 = vld [vmem:[#allocation7 + $0x490] sm:$0xff]
    %v1229 = vld [vmem:[#allocation7 + $0x498] sm:$0xff]
    %v1230 = vld [vmem:[#allocation7 + $0x4a0] sm:$0xff]
    %v1231 = vld [vmem:[#allocation7 + $0x4a8] sm:$0xff]
    %v1232 = vld [vmem:[#allocation7 + $0x4b0] sm:$0xff]
    %v1233 = vld [vmem:[#allocation7 + $0x4b8] sm:$0xff]
    %v1234 = vld [vmem:[#allocation7 + $0x4c0] sm:$0xff]
    %v1235 = vld [vmem:[#allocation7 + $0x4c8] sm:$0xff]
    %v1236 = vld [vmem:[#allocation7 + $0x4d0] sm:$0xff]
    %v1237 = vld [vmem:[#allocation7 + $0x4d8] sm:$0xff]
    %v1238 = vld [vmem:[#allocation7 + $0x4e0] sm:$0xff]
    %v1239 = vld [vmem:[#allocation7 + $0x4e8] sm:$0xff]
    %v1240 = vld [vmem:[#allocation7 + $0x4f0] sm:$0xff]
    %v1241 = vld [vmem:[#allocation7 + $0x4f8] sm:$0xff]
    %v1242 = vld [vmem:[#allocation7 + $0x500] sm:$0xff]
    %v1243 = vld [vmem:[#allocation7 + $0x508] sm:$0xff]
    %v1244 = vld [vmem:[#allocation7 + $0x510] sm:$0xff]
    %v1245 = vld [vmem:[#allocation7 + $0x518] sm:$0xff]
    %v1246 = vld [vmem:[#allocation7 + $0x520] sm:$0xff]
    %v1247 = vld [vmem:[#allocation7 + $0x528] sm:$0xff]
    %v1248 = vld [vmem:[#allocation7 + $0x530] sm:$0xff]
    %v1249 = vld [vmem:[#allocation7 + $0x538] sm:$0xff]
    %v1250 = vld [vmem:[#allocation7 + $0x540] sm:$0xff]
    %v1251 = vld [vmem:[#allocation7 + $0x548] sm:$0xff]
    %v1252 = vld [vmem:[#allocation7 + $0x550] sm:$0xff]
    %v1253 = vld [vmem:[#allocation7 + $0x558] sm:$0xff]
    %v1254 = vld [vmem:[#allocation7 + $0x560] sm:$0xff]
    %v1255 = vld [vmem:[#allocation7 + $0x568] sm:$0xff]
    %v1256 = vld [vmem:[#allocation7 + $0x570] sm:$0xff]
    %v1257 = vld [vmem:[#allocation7 + $0x578] sm:$0xff]
    %v1258 = vld [vmem:[#allocation7 + $0x580] sm:$0xff]
    %v1259 = vld [vmem:[#allocation7 + $0x588] sm:$0xff]
    %v1260 = vld [vmem:[#allocation7 + $0x590] sm:$0xff]
    %v1261 = vld [vmem:[#allocation7 + $0x598] sm:$0xff]
    %v1262 = vld [vmem:[#allocation7 + $0x5a0] sm:$0xff]
    %v1263 = vld [vmem:[#allocation7 + $0x5a8] sm:$0xff]
    %v1264 = vld [vmem:[#allocation7 + $0x5b0] sm:$0xff]
    %v1265 = vld [vmem:[#allocation7 + $0x5b8] sm:$0xff]
    %v1266 = vld [vmem:[#allocation7 + $0x5c0] sm:$0xff]
    %v1267 = vld [vmem:[#allocation7 + $0x5c8] sm:$0xff]
    %v1268 = vld [vmem:[#allocation7 + $0x5d0] sm:$0xff]
    %v1269 = vld [vmem:[#allocation7 + $0x5d8] sm:$0xff]
    %v1270 = vld [vmem:[#allocation7 + $0x5e0] sm:$0xff]
    %v1271 = vld [vmem:[#allocation7 + $0x5e8] sm:$0xff]
    %v1272 = vld [vmem:[#allocation7 + $0x5f0] sm:$0xff]
    %v1273 = vld [vmem:[#allocation7 + $0x5f8] sm:$0xff]
    %v1466 = vunpack.c.l.b16 %v1082
    %v1467 = vunpack.c.h.b16 %v1082
    %v1468 = vunpack.c.l.b16 %v1083
    %v1469 = vunpack.c.h.b16 %v1083
    %v1470 = vunpack.c.l.b16 %v1084
    %v1471 = vunpack.c.h.b16 %v1084
    %v1472 = vunpack.c.l.b16 %v1085
    %v1473 = vunpack.c.h.b16 %v1085
    %v1474 = vunpack.c.l.b16 %v1086
    %v1475 = vunpack.c.h.b16 %v1086
    %v1476 = vunpack.c.l.b16 %v1087
    %v1477 = vunpack.c.h.b16 %v1087
    %v1478 = vunpack.c.l.b16 %v1088
    %v1479 = vunpack.c.h.b16 %v1088
    %v1480 = vunpack.c.l.b16 %v1089
    %v1481 = vunpack.c.h.b16 %v1089
    %v1482 = vunpack.c.l.b16 %v1090
    %v1483 = vunpack.c.h.b16 %v1090
    %v1484 = vunpack.c.l.b16 %v1091
    %v1485 = vunpack.c.h.b16 %v1091
    %v1486 = vunpack.c.l.b16 %v1092
    %v1487 = vunpack.c.h.b16 %v1092
    %v1488 = vunpack.c.l.b16 %v1093
    %v1489 = vunpack.c.h.b16 %v1093
    %v1490 = vunpack.c.l.b16 %v1094
    %v1491 = vunpack.c.h.b16 %v1094
    %v1492 = vunpack.c.l.b16 %v1095
    %v1493 = vunpack.c.h.b16 %v1095
    %v1494 = vunpack.c.l.b16 %v1096
    %v1495 = vunpack.c.h.b16 %v1096
    %v1496 = vunpack.c.l.b16 %v1097
    %v1497 = vunpack.c.h.b16 %v1097
    %v1498 = vunpack.c.l.b16 %v1098
    %v1499 = vunpack.c.h.b16 %v1098
    %v1500 = vunpack.c.l.b16 %v1099
    %v1501 = vunpack.c.h.b16 %v1099
    %v1502 = vunpack.c.l.b16 %v1100
    %v1503 = vunpack.c.h.b16 %v1100
    %v1504 = vunpack.c.l.b16 %v1101
    %v1505 = vunpack.c.h.b16 %v1101
    %v1506 = vunpack.c.l.b16 %v1102
    %v1507 = vunpack.c.h.b16 %v1102
    %v1508 = vunpack.c.l.b16 %v1103
    %v1509 = vunpack.c.h.b16 %v1103
    %v1510 = vunpack.c.l.b16 %v1104
    %v1511 = vunpack.c.h.b16 %v1104
    %v1512 = vunpack.c.l.b16 %v1105
    %v1513 = vunpack.c.h.b16 %v1105
    %v1514 = vunpack.c.l.b16 %v1106
    %v1515 = vunpack.c.h.b16 %v1106
    %v1516 = vunpack.c.l.b16 %v1107
    %v1517 = vunpack.c.h.b16 %v1107
    %v1518 = vunpack.c.l.b16 %v1108
    %v1519 = vunpack.c.h.b16 %v1108
    %v1520 = vunpack.c.l.b16 %v1109
    %v1521 = vunpack.c.h.b16 %v1109
    %v1522 = vunpack.c.l.b16 %v1110
    %v1523 = vunpack.c.h.b16 %v1110
    %v1524 = vunpack.c.l.b16 %v1111
    %v1525 = vunpack.c.h.b16 %v1111
    %v1526 = vunpack.c.l.b16 %v1112
    %v1527 = vunpack.c.h.b16 %v1112
    %v1528 = vunpack.c.l.b16 %v1113
    %v1529 = vunpack.c.h.b16 %v1113
    %v1530 = vunpack.c.l.b16 %v1114
    %v1531 = vunpack.c.h.b16 %v1114
    %v1532 = vunpack.c.l.b16 %v1115
    %v1533 = vunpack.c.h.b16 %v1115
    %v1534 = vunpack.c.l.b16 %v1116
    %v1535 = vunpack.c.h.b16 %v1116
    %v1536 = vunpack.c.l.b16 %v1117
    %v1537 = vunpack.c.h.b16 %v1117
    %v1538 = vunpack.c.l.b16 %v1118
    %v1539 = vunpack.c.h.b16 %v1118
    %v1540 = vunpack.c.l.b16 %v1119
    %v1541 = vunpack.c.h.b16 %v1119
    %v1542 = vunpack.c.l.b16 %v1120
    %v1543 = vunpack.c.h.b16 %v1120
    %v1544 = vunpack.c.l.b16 %v1121
    %v1545 = vunpack.c.h.b16 %v1121
    %v1546 = vunpack.c.l.b16 %v1122
    %v1547 = vunpack.c.h.b16 %v1122
    %v1548 = vunpack.c.l.b16 %v1123
    %v1549 = vunpack.c.h.b16 %v1123
    %v1550 = vunpack.c.l.b16 %v1124
    %v1551 = vunpack.c.h.b16 %v1124
    %v1552 = vunpack.c.l.b16 %v1125
    %v1553 = vunpack.c.h.b16 %v1125
    %v1554 = vunpack.c.l.b16 %v1126
    %v1555 = vunpack.c.h.b16 %v1126
    %v1556 = vunpack.c.l.b16 %v1127
    %v1557 = vunpack.c.h.b16 %v1127
    %v1558 = vunpack.c.l.b16 %v1128
    %v1559 = vunpack.c.h.b16 %v1128
    %v1560 = vunpack.c.l.b16 %v1129
    %v1561 = vunpack.c.h.b16 %v1129
    %v1562 = vunpack.c.l.b16 %v1130
    %v1563 = vunpack.c.h.b16 %v1130
    %v1564 = vunpack.c.l.b16 %v1131
    %v1565 = vunpack.c.h.b16 %v1131
    %v1566 = vunpack.c.l.b16 %v1132
    %v1567 = vunpack.c.h.b16 %v1132
    %v1568 = vunpack.c.l.b16 %v1133
    %v1569 = vunpack.c.h.b16 %v1133
    %v1570 = vunpack.c.l.b16 %v1134
    %v1571 = vunpack.c.h.b16 %v1134
    %v1572 = vunpack.c.l.b16 %v1135
    %v1573 = vunpack.c.h.b16 %v1135
    %v1574 = vunpack.c.l.b16 %v1136
    %v1575 = vunpack.c.h.b16 %v1136
    %v1576 = vunpack.c.l.b16 %v1137
    %v1577 = vunpack.c.h.b16 %v1137
    %v1578 = vunpack.c.l.b16 %v1138
    %v1579 = vunpack.c.h.b16 %v1138
    %v1580 = vunpack.c.l.b16 %v1139
    %v1581 = vunpack.c.h.b16 %v1139
    %v1582 = vunpack.c.l.b16 %v1140
    %v1583 = vunpack.c.h.b16 %v1140
    %v1584 = vunpack.c.l.b16 %v1141
    %v1585 = vunpack.c.h.b16 %v1141
    %v1586 = vunpack.c.l.b16 %v1142
    %v1587 = vunpack.c.h.b16 %v1142
    %v1588 = vunpack.c.l.b16 %v1143
    %v1589 = vunpack.c.h.b16 %v1143
    %v1590 = vunpack.c.l.b16 %v1144
    %v1591 = vunpack.c.h.b16 %v1144
    %v1592 = vunpack.c.l.b16 %v1145
    %v1593 = vunpack.c.h.b16 %v1145
    %v1594 = vunpack.c.l.b16 %v1146
    %v1595 = vunpack.c.h.b16 %v1146
    %v1596 = vunpack.c.l.b16 %v1147
    %v1597 = vunpack.c.h.b16 %v1147
    %v1598 = vunpack.c.l.b16 %v1148
    %v1599 = vunpack.c.h.b16 %v1148
    %v1600 = vunpack.c.l.b16 %v1149
    %v1601 = vunpack.c.h.b16 %v1149
    %v1602 = vunpack.c.l.b16 %v1150
    %v1603 = vunpack.c.h.b16 %v1150
    %v1604 = vunpack.c.l.b16 %v1151
    %v1605 = vunpack.c.h.b16 %v1151
    %v1606 = vunpack.c.l.b16 %v1152
    %v1607 = vunpack.c.h.b16 %v1152
    %v1608 = vunpack.c.l.b16 %v1153
    %v1609 = vunpack.c.h.b16 %v1153
    %v1610 = vunpack.c.l.b16 %v1154
    %v1611 = vunpack.c.h.b16 %v1154
    %v1612 = vunpack.c.l.b16 %v1155
    %v1613 = vunpack.c.h.b16 %v1155
    %v1614 = vunpack.c.l.b16 %v1156
    %v1615 = vunpack.c.h.b16 %v1156
    %v1616 = vunpack.c.l.b16 %v1157
    %v1617 = vunpack.c.h.b16 %v1157
    %v1618 = vunpack.c.l.b16 %v1158
    %v1619 = vunpack.c.h.b16 %v1158
    %v1620 = vunpack.c.l.b16 %v1159
    %v1621 = vunpack.c.h.b16 %v1159
    %v1622 = vunpack.c.l.b16 %v1160
    %v1623 = vunpack.c.h.b16 %v1160
    %v1624 = vunpack.c.l.b16 %v1161
    %v1625 = vunpack.c.h.b16 %v1161
    %v1626 = vunpack.c.l.b16 %v1162
    %v1627 = vunpack.c.h.b16 %v1162
    %v1628 = vunpack.c.l.b16 %v1163
    %v1629 = vunpack.c.h.b16 %v1163
    %v1630 = vunpack.c.l.b16 %v1164
    %v1631 = vunpack.c.h.b16 %v1164
    %v1632 = vunpack.c.l.b16 %v1165
    %v1633 = vunpack.c.h.b16 %v1165
    %v1634 = vunpack.c.l.b16 %v1166
    %v1635 = vunpack.c.h.b16 %v1166
    %v1636 = vunpack.c.l.b16 %v1167
    %v1637 = vunpack.c.h.b16 %v1167
    %v1638 = vunpack.c.l.b16 %v1168
    %v1639 = vunpack.c.h.b16 %v1168
    %v1640 = vunpack.c.l.b16 %v1169
    %v1641 = vunpack.c.h.b16 %v1169
    %v1642 = vunpack.c.l.b16 %v1170
    %v1643 = vunpack.c.h.b16 %v1170
    %v1644 = vunpack.c.l.b16 %v1171
    %v1645 = vunpack.c.h.b16 %v1171
    %v1646 = vunpack.c.l.b16 %v1172
    %v1647 = vunpack.c.h.b16 %v1172
    %v1648 = vunpack.c.l.b16 %v1173
    %v1649 = vunpack.c.h.b16 %v1173
    %v1650 = vunpack.c.l.b16 %v1174
    %v1651 = vunpack.c.h.b16 %v1174
    %v1652 = vunpack.c.l.b16 %v1175
    %v1653 = vunpack.c.h.b16 %v1175
    %v1654 = vunpack.c.l.b16 %v1176
    %v1655 = vunpack.c.h.b16 %v1176
    %v1656 = vunpack.c.l.b16 %v1177
    %v1657 = vunpack.c.h.b16 %v1177
    %v1658 = vunpack.c.l.b16 %v1178
    %v1659 = vunpack.c.h.b16 %v1178
    %v1660 = vunpack.c.l.b16 %v1179
    %v1661 = vunpack.c.h.b16 %v1179
    %v1662 = vunpack.c.l.b16 %v1180
    %v1663 = vunpack.c.h.b16 %v1180
    %v1664 = vunpack.c.l.b16 %v1181
    %v1665 = vunpack.c.h.b16 %v1181
    %v1666 = vunpack.c.l.b16 %v1182
    %v1667 = vunpack.c.h.b16 %v1182
    %v1668 = vunpack.c.l.b16 %v1183
    %v1669 = vunpack.c.h.b16 %v1183
    %v1670 = vunpack.c.l.b16 %v1184
    %v1671 = vunpack.c.h.b16 %v1184
    %v1672 = vunpack.c.l.b16 %v1185
    %v1673 = vunpack.c.h.b16 %v1185
    %v1674 = vunpack.c.l.b16 %v1186
    %v1675 = vunpack.c.h.b16 %v1186
    %v1676 = vunpack.c.l.b16 %v1187
    %v1677 = vunpack.c.h.b16 %v1187
    %v1678 = vunpack.c.l.b16 %v1188
    %v1679 = vunpack.c.h.b16 %v1188
    %v1680 = vunpack.c.l.b16 %v1189
    %v1681 = vunpack.c.h.b16 %v1189
    %v1682 = vunpack.c.l.b16 %v1190
    %v1683 = vunpack.c.h.b16 %v1190
    %v1684 = vunpack.c.l.b16 %v1191
    %v1685 = vunpack.c.h.b16 %v1191
    %v1686 = vunpack.c.l.b16 %v1192
    %v1687 = vunpack.c.h.b16 %v1192
    %v1688 = vunpack.c.l.b16 %v1193
    %v1689 = vunpack.c.h.b16 %v1193
    %v1690 = vunpack.c.l.b16 %v1194
    %v1691 = vunpack.c.h.b16 %v1194
    %v1692 = vunpack.c.l.b16 %v1195
    %v1693 = vunpack.c.h.b16 %v1195
    %v1694 = vunpack.c.l.b16 %v1196
    %v1695 = vunpack.c.h.b16 %v1196
    %v1696 = vunpack.c.l.b16 %v1197
    %v1697 = vunpack.c.h.b16 %v1197
    %v1698 = vunpack.c.l.b16 %v1198
    %v1699 = vunpack.c.h.b16 %v1198
    %v1700 = vunpack.c.l.b16 %v1199
    %v1701 = vunpack.c.h.b16 %v1199
    %v1702 = vunpack.c.l.b16 %v1200
    %v1703 = vunpack.c.h.b16 %v1200
    %v1704 = vunpack.c.l.b16 %v1201
    %v1705 = vunpack.c.h.b16 %v1201
    %v1706 = vunpack.c.l.b16 %v1202
    %v1707 = vunpack.c.h.b16 %v1202
    %v1708 = vunpack.c.l.b16 %v1203
    %v1709 = vunpack.c.h.b16 %v1203
    %v1710 = vunpack.c.l.b16 %v1204
    %v1711 = vunpack.c.h.b16 %v1204
    %v1712 = vunpack.c.l.b16 %v1205
    %v1713 = vunpack.c.h.b16 %v1205
    %v1714 = vunpack.c.l.b16 %v1206
    %v1715 = vunpack.c.h.b16 %v1206
    %v1716 = vunpack.c.l.b16 %v1207
    %v1717 = vunpack.c.h.b16 %v1207
    %v1718 = vunpack.c.l.b16 %v1208
    %v1719 = vunpack.c.h.b16 %v1208
    %v1720 = vunpack.c.l.b16 %v1209
    %v1721 = vunpack.c.h.b16 %v1209
    %v1722 = vunpack.c.l.b16 %v1210
    %v1723 = vunpack.c.h.b16 %v1210
    %v1724 = vunpack.c.l.b16 %v1211
    %v1725 = vunpack.c.h.b16 %v1211
    %v1726 = vunpack.c.l.b16 %v1212
    %v1727 = vunpack.c.h.b16 %v1212
    %v1728 = vunpack.c.l.b16 %v1213
    %v1729 = vunpack.c.h.b16 %v1213
    %v1730 = vunpack.c.l.b16 %v1214
    %v1731 = vunpack.c.h.b16 %v1214
    %v1732 = vunpack.c.l.b16 %v1215
    %v1733 = vunpack.c.h.b16 %v1215
    %v1734 = vunpack.c.l.b16 %v1216
    %v1735 = vunpack.c.h.b16 %v1216
    %v1736 = vunpack.c.l.b16 %v1217
    %v1737 = vunpack.c.h.b16 %v1217
    %v1738 = vunpack.c.l.b16 %v1218
    %v1739 = vunpack.c.h.b16 %v1218
    %v1740 = vunpack.c.l.b16 %v1219
    %v1741 = vunpack.c.h.b16 %v1219
    %v1742 = vunpack.c.l.b16 %v1220
    %v1743 = vunpack.c.h.b16 %v1220
    %v1744 = vunpack.c.l.b16 %v1221
    %v1745 = vunpack.c.h.b16 %v1221
    %v1746 = vunpack.c.l.b16 %v1222
    %v1747 = vunpack.c.h.b16 %v1222
    %v1748 = vunpack.c.l.b16 %v1223
    %v1749 = vunpack.c.h.b16 %v1223
    %v1750 = vunpack.c.l.b16 %v1224
    %v1751 = vunpack.c.h.b16 %v1224
    %v1752 = vunpack.c.l.b16 %v1225
    %v1753 = vunpack.c.h.b16 %v1225
    %v1754 = vunpack.c.l.b16 %v1226
    %v1755 = vunpack.c.h.b16 %v1226
    %v1756 = vunpack.c.l.b16 %v1227
    %v1757 = vunpack.c.h.b16 %v1227
    %v1758 = vunpack.c.l.b16 %v1228
    %v1759 = vunpack.c.h.b16 %v1228
    %v1760 = vunpack.c.l.b16 %v1229
    %v1761 = vunpack.c.h.b16 %v1229
    %v1762 = vunpack.c.l.b16 %v1230
    %v1763 = vunpack.c.h.b16 %v1230
    %v1764 = vunpack.c.l.b16 %v1231
    %v1765 = vunpack.c.h.b16 %v1231
    %v1766 = vunpack.c.l.b16 %v1232
    %v1767 = vunpack.c.h.b16 %v1232
    %v1768 = vunpack.c.l.b16 %v1233
    %v1769 = vunpack.c.h.b16 %v1233
    %v1770 = vunpack.c.l.b16 %v1234
    %v1771 = vunpack.c.h.b16 %v1234
    %v1772 = vunpack.c.l.b16 %v1235
    %v1773 = vunpack.c.h.b16 %v1235
    %v1774 = vunpack.c.l.b16 %v1236
    %v1775 = vunpack.c.h.b16 %v1236
    %v1776 = vunpack.c.l.b16 %v1237
    %v1777 = vunpack.c.h.b16 %v1237
    %v1778 = vunpack.c.l.b16 %v1238
    %v1779 = vunpack.c.h.b16 %v1238
    %v1780 = vunpack.c.l.b16 %v1239
    %v1781 = vunpack.c.h.b16 %v1239
    %v1782 = vunpack.c.l.b16 %v1240
    %v1783 = vunpack.c.h.b16 %v1240
    %v1784 = vunpack.c.l.b16 %v1241
    %v1785 = vunpack.c.h.b16 %v1241
    %v1786 = vunpack.c.l.b16 %v1242
    %v1787 = vunpack.c.h.b16 %v1242
    %v1788 = vunpack.c.l.b16 %v1243
    %v1789 = vunpack.c.h.b16 %v1243
    %v1790 = vunpack.c.l.b16 %v1244
    %v1791 = vunpack.c.h.b16 %v1244
    %v1792 = vunpack.c.l.b16 %v1245
    %v1793 = vunpack.c.h.b16 %v1245
    %v1794 = vunpack.c.l.b16 %v1246
    %v1795 = vunpack.c.h.b16 %v1246
    %v1796 = vunpack.c.l.b16 %v1247
    %v1797 = vunpack.c.h.b16 %v1247
    %v1798 = vunpack.c.l.b16 %v1248
    %v1799 = vunpack.c.h.b16 %v1248
    %v1800 = vunpack.c.l.b16 %v1249
    %v1801 = vunpack.c.h.b16 %v1249
    %v1802 = vunpack.c.l.b16 %v1250
    %v1803 = vunpack.c.h.b16 %v1250
    %v1804 = vunpack.c.l.b16 %v1251
    %v1805 = vunpack.c.h.b16 %v1251
    %v1806 = vunpack.c.l.b16 %v1252
    %v1807 = vunpack.c.h.b16 %v1252
    %v1808 = vunpack.c.l.b16 %v1253
    %v1809 = vunpack.c.h.b16 %v1253
    %v1810 = vunpack.c.l.b16 %v1254
    %v1811 = vunpack.c.h.b16 %v1254
    %v1812 = vunpack.c.l.b16 %v1255
    %v1813 = vunpack.c.h.b16 %v1255
    %v1814 = vunpack.c.l.b16 %v1256
    %v1815 = vunpack.c.h.b16 %v1256
    %v1816 = vunpack.c.l.b16 %v1257
    %v1817 = vunpack.c.h.b16 %v1257
    %v1818 = vunpack.c.l.b16 %v1258
    %v1819 = vunpack.c.h.b16 %v1258
    %v1820 = vunpack.c.l.b16 %v1259
    %v1821 = vunpack.c.h.b16 %v1259
    %v1822 = vunpack.c.l.b16 %v1260
    %v1823 = vunpack.c.h.b16 %v1260
    %v1824 = vunpack.c.l.b16 %v1261
    %v1825 = vunpack.c.h.b16 %v1261
    %v1826 = vunpack.c.l.b16 %v1262
    %v1827 = vunpack.c.h.b16 %v1262
    %v1828 = vunpack.c.l.b16 %v1263
    %v1829 = vunpack.c.h.b16 %v1263
    %v1830 = vunpack.c.l.b16 %v1264
    %v1831 = vunpack.c.h.b16 %v1264
    %v1832 = vunpack.c.l.b16 %v1265
    %v1833 = vunpack.c.h.b16 %v1265
    %v1834 = vunpack.c.l.b16 %v1266
    %v1835 = vunpack.c.h.b16 %v1266
    %v1836 = vunpack.c.l.b16 %v1267
    %v1837 = vunpack.c.h.b16 %v1267
    %v1838 = vunpack.c.l.b16 %v1268
    %v1839 = vunpack.c.h.b16 %v1268
    %v1840 = vunpack.c.l.b16 %v1269
    %v1841 = vunpack.c.h.b16 %v1269
    %v1842 = vunpack.c.l.b16 %v1270
    %v1843 = vunpack.c.h.b16 %v1270
    %v1844 = vunpack.c.l.b16 %v1271
    %v1845 = vunpack.c.h.b16 %v1271
    %v1846 = vunpack.c.l.b16 %v1272
    %v1847 = vunpack.c.h.b16 %v1272
    %v1848 = vunpack.c.l.b16 %v1273
    %v1849 = vunpack.c.h.b16 %v1273
    %v1850 = vpack.c.b16 %v1472, %v1466
    %v1851 = vpack.c.b16 %v1473, %v1467
    %v1852 = vpack.c.b16 %v1474, %v1468
    %v1853 = vpack.c.b16 %v1475, %v1469
    %v1854 = vpack.c.b16 %v1476, %v1470
    %v1855 = vpack.c.b16 %v1477, %v1471
    %v1856 = vpack.c.b16 %v1484, %v1478
    %v1857 = vpack.c.b16 %v1485, %v1479
    %v1858 = vpack.c.b16 %v1486, %v1480
    %v1859 = vpack.c.b16 %v1487, %v1481
    %v1860 = vpack.c.b16 %v1488, %v1482
    %v1861 = vpack.c.b16 %v1489, %v1483
    %v1862 = vpack.c.b16 %v1496, %v1490
    %v1863 = vpack.c.b16 %v1497, %v1491
    %v1864 = vpack.c.b16 %v1498, %v1492
    %v1865 = vpack.c.b16 %v1499, %v1493
    %v1866 = vpack.c.b16 %v1500, %v1494
    %v1867 = vpack.c.b16 %v1501, %v1495
    %v1868 = vpack.c.b16 %v1508, %v1502
    %v1869 = vpack.c.b16 %v1509, %v1503
    %v1870 = vpack.c.b16 %v1510, %v1504
    %v1871 = vpack.c.b16 %v1511, %v1505
    %v1872 = vpack.c.b16 %v1512, %v1506
    %v1873 = vpack.c.b16 %v1513, %v1507
    %v1874 = vpack.c.b16 %v1520, %v1514
    %v1875 = vpack.c.b16 %v1521, %v1515
    %v1876 = vpack.c.b16 %v1522, %v1516
    %v1877 = vpack.c.b16 %v1523, %v1517
    %v1878 = vpack.c.b16 %v1524, %v1518
    %v1879 = vpack.c.b16 %v1525, %v1519
    %v1880 = vpack.c.b16 %v1532, %v1526
    %v1881 = vpack.c.b16 %v1533, %v1527
    %v1882 = vpack.c.b16 %v1534, %v1528
    %v1883 = vpack.c.b16 %v1535, %v1529
    %v1884 = vpack.c.b16 %v1536, %v1530
    %v1885 = vpack.c.b16 %v1537, %v1531
    %v1886 = vpack.c.b16 %v1544, %v1538
    %v1887 = vpack.c.b16 %v1545, %v1539
    %v1888 = vpack.c.b16 %v1546, %v1540
    %v1889 = vpack.c.b16 %v1547, %v1541
    %v1890 = vpack.c.b16 %v1548, %v1542
    %v1891 = vpack.c.b16 %v1549, %v1543
    %v1892 = vpack.c.b16 %v1556, %v1550
    %v1893 = vpack.c.b16 %v1557, %v1551
    %v1894 = vpack.c.b16 %v1558, %v1552
    %v1895 = vpack.c.b16 %v1559, %v1553
    %v1896 = vpack.c.b16 %v1560, %v1554
    %v1897 = vpack.c.b16 %v1561, %v1555
    %v1898 = vpack.c.b16 %v1568, %v1562
    %v1899 = vpack.c.b16 %v1569, %v1563
    %v1900 = vpack.c.b16 %v1570, %v1564
    %v1901 = vpack.c.b16 %v1571, %v1565
    %v1902 = vpack.c.b16 %v1572, %v1566
    %v1903 = vpack.c.b16 %v1573, %v1567
    %v1904 = vpack.c.b16 %v1580, %v1574
    %v1905 = vpack.c.b16 %v1581, %v1575
    %v1906 = vpack.c.b16 %v1582, %v1576
    %v1907 = vpack.c.b16 %v1583, %v1577
    %v1908 = vpack.c.b16 %v1584, %v1578
    %v1909 = vpack.c.b16 %v1585, %v1579
    %v1910 = vpack.c.b16 %v1592, %v1586
    %v1911 = vpack.c.b16 %v1593, %v1587
    %v1912 = vpack.c.b16 %v1594, %v1588
    %v1913 = vpack.c.b16 %v1595, %v1589
    %v1914 = vpack.c.b16 %v1596, %v1590
    %v1915 = vpack.c.b16 %v1597, %v1591
    %v1916 = vpack.c.b16 %v1604, %v1598
    %v1917 = vpack.c.b16 %v1605, %v1599
    %v1918 = vpack.c.b16 %v1606, %v1600
    %v1919 = vpack.c.b16 %v1607, %v1601
    %v1920 = vpack.c.b16 %v1608, %v1602
    %v1921 = vpack.c.b16 %v1609, %v1603
    %v1922 = vpack.c.b16 %v1616, %v1610
    %v1923 = vpack.c.b16 %v1617, %v1611
    %v1924 = vpack.c.b16 %v1618, %v1612
    %v1925 = vpack.c.b16 %v1619, %v1613
    %v1926 = vpack.c.b16 %v1620, %v1614
    %v1927 = vpack.c.b16 %v1621, %v1615
    %v1928 = vpack.c.b16 %v1628, %v1622
    %v1929 = vpack.c.b16 %v1629, %v1623
    %v1930 = vpack.c.b16 %v1630, %v1624
    %v1931 = vpack.c.b16 %v1631, %v1625
    %v1932 = vpack.c.b16 %v1632, %v1626
    %v1933 = vpack.c.b16 %v1633, %v1627
    %v1934 = vpack.c.b16 %v1640, %v1634
    %v1935 = vpack.c.b16 %v1641, %v1635
    %v1936 = vpack.c.b16 %v1642, %v1636
    %v1937 = vpack.c.b16 %v1643, %v1637
    %v1938 = vpack.c.b16 %v1644, %v1638
    %v1939 = vpack.c.b16 %v1645, %v1639
    %v1940 = vpack.c.b16 %v1652, %v1646
    %v1941 = vpack.c.b16 %v1653, %v1647
    %v1942 = vpack.c.b16 %v1654, %v1648
    %v1943 = vpack.c.b16 %v1655, %v1649
    %v1944 = vpack.c.b16 %v1656, %v1650
    %v1945 = vpack.c.b16 %v1657, %v1651
    %v1946 = vpack.c.b16 %v1664, %v1658
    %v1947 = vpack.c.b16 %v1665, %v1659
    %v1948 = vpack.c.b16 %v1666, %v1660
    %v1949 = vpack.c.b16 %v1667, %v1661
    %v1950 = vpack.c.b16 %v1668, %v1662
    %v1951 = vpack.c.b16 %v1669, %v1663
    %v1952 = vpack.c.b16 %v1676, %v1670
    %v1953 = vpack.c.b16 %v1677, %v1671
    %v1954 = vpack.c.b16 %v1678, %v1672
    %v1955 = vpack.c.b16 %v1679, %v1673
    %v1956 = vpack.c.b16 %v1680, %v1674
    %v1957 = vpack.c.b16 %v1681, %v1675
    %v1958 = vpack.c.b16 %v1688, %v1682
    %v1959 = vpack.c.b16 %v1689, %v1683
    %v1960 = vpack.c.b16 %v1690, %v1684
    %v1961 = vpack.c.b16 %v1691, %v1685
    %v1962 = vpack.c.b16 %v1692, %v1686
    %v1963 = vpack.c.b16 %v1693, %v1687
    %v1964 = vpack.c.b16 %v1700, %v1694
    %v1965 = vpack.c.b16 %v1701, %v1695
    %v1966 = vpack.c.b16 %v1702, %v1696
    %v1967 = vpack.c.b16 %v1703, %v1697
    %v1968 = vpack.c.b16 %v1704, %v1698
    %v1969 = vpack.c.b16 %v1705, %v1699
    %v1970 = vpack.c.b16 %v1712, %v1706
    %v1971 = vpack.c.b16 %v1713, %v1707
    %v1972 = vpack.c.b16 %v1714, %v1708
    %v1973 = vpack.c.b16 %v1715, %v1709
    %v1974 = vpack.c.b16 %v1716, %v1710
    %v1975 = vpack.c.b16 %v1717, %v1711
    %v1976 = vpack.c.b16 %v1724, %v1718
    %v1977 = vpack.c.b16 %v1725, %v1719
    %v1978 = vpack.c.b16 %v1726, %v1720
    %v1979 = vpack.c.b16 %v1727, %v1721
    %v1980 = vpack.c.b16 %v1728, %v1722
    %v1981 = vpack.c.b16 %v1729, %v1723
    %v1982 = vpack.c.b16 %v1736, %v1730
    %v1983 = vpack.c.b16 %v1737, %v1731
    %v1984 = vpack.c.b16 %v1738, %v1732
    %v1985 = vpack.c.b16 %v1739, %v1733
    %v1986 = vpack.c.b16 %v1740, %v1734
    %v1987 = vpack.c.b16 %v1741, %v1735
    %v1988 = vpack.c.b16 %v1748, %v1742
    %v1989 = vpack.c.b16 %v1749, %v1743
    %v1990 = vpack.c.b16 %v1750, %v1744
    %v1991 = vpack.c.b16 %v1751, %v1745
    %v1992 = vpack.c.b16 %v1752, %v1746
    %v1993 = vpack.c.b16 %v1753, %v1747
    %v1994 = vpack.c.b16 %v1760, %v1754
    %v1995 = vpack.c.b16 %v1761, %v1755
    %v1996 = vpack.c.b16 %v1762, %v1756
    %v1997 = vpack.c.b16 %v1763, %v1757
    %v1998 = vpack.c.b16 %v1764, %v1758
    %v1999 = vpack.c.b16 %v1765, %v1759
    %v2000 = vpack.c.b16 %v1772, %v1766
    %v2001 = vpack.c.b16 %v1773, %v1767
    %v2002 = vpack.c.b16 %v1774, %v1768
    %v2003 = vpack.c.b16 %v1775, %v1769
    %v2004 = vpack.c.b16 %v1776, %v1770
    %v2005 = vpack.c.b16 %v1777, %v1771
    %v2006 = vpack.c.b16 %v1784, %v1778
    %v2007 = vpack.c.b16 %v1785, %v1779
    %v2008 = vpack.c.b16 %v1786, %v1780
    %v2009 = vpack.c.b16 %v1787, %v1781
    %v2010 = vpack.c.b16 %v1788, %v1782
    %v2011 = vpack.c.b16 %v1789, %v1783
    %v2012 = vpack.c.b16 %v1796, %v1790
    %v2013 = vpack.c.b16 %v1797, %v1791
    %v2014 = vpack.c.b16 %v1798, %v1792
    %v2015 = vpack.c.b16 %v1799, %v1793
    %v2016 = vpack.c.b16 %v1800, %v1794
    %v2017 = vpack.c.b16 %v1801, %v1795
    %v2018 = vpack.c.b16 %v1808, %v1802
    %v2019 = vpack.c.b16 %v1809, %v1803
    %v2020 = vpack.c.b16 %v1810, %v1804
    %v2021 = vpack.c.b16 %v1811, %v1805
    %v2022 = vpack.c.b16 %v1812, %v1806
    %v2023 = vpack.c.b16 %v1813, %v1807
    %v2024 = vpack.c.b16 %v1820, %v1814
    %v2025 = vpack.c.b16 %v1821, %v1815
    %v2026 = vpack.c.b16 %v1822, %v1816
    %v2027 = vpack.c.b16 %v1823, %v1817
    %v2028 = vpack.c.b16 %v1824, %v1818
    %v2029 = vpack.c.b16 %v1825, %v1819
    %v2030 = vpack.c.b16 %v1832, %v1826
    %v2031 = vpack.c.b16 %v1833, %v1827
    %v2032 = vpack.c.b16 %v1834, %v1828
    %v2033 = vpack.c.b16 %v1835, %v1829
    %v2034 = vpack.c.b16 %v1836, %v1830
    %v2035 = vpack.c.b16 %v1837, %v1831
    %v2036 = vpack.c.b16 %v1844, %v1838
    %v2037 = vpack.c.b16 %v1845, %v1839
    %v2038 = vpack.c.b16 %v1846, %v1840
    %v2039 = vpack.c.b16 %v1847, %v1841
    %v2040 = vpack.c.b16 %v1848, %v1842
    %v2041 = vpack.c.b16 %v1849, %v1843
    %2234 = vmatprep.subr.bf16.mxu0 %v1851
    %2235 = vmatpush1.bf16.msra.mxu0 %v1850
    %2236 = vmatprep.subr.bf16.mxu0 %v1857
    %2237 = vmatpush1.bf16.msra.mxu0 %v1856
    %2238 = vmatprep.subr.bf16.mxu0 %v1863
    %2239 = vmatpush1.bf16.msra.mxu0 %v1862
    %2240 = vmatprep.subr.bf16.mxu0 %v1869
    %2241 = vmatpush1.bf16.msra.mxu0 %v1868
    %2242 = vmatprep.subr.bf16.mxu0 %v1875
    %2243 = vmatpush1.bf16.msra.mxu0 %v1874
    %2244 = vmatprep.subr.bf16.mxu0 %v1881
    %2245 = vmatpush1.bf16.msra.mxu0 %v1880
    %2246 = vmatprep.subr.bf16.mxu0 %v1887
    %2247 = vmatpush1.bf16.msra.mxu0 %v1886
    %2248 = vmatprep.subr.bf16.mxu0 %v1893
    %2249 = vmatpush1.bf16.msra.mxu0 %v1892
    %2250 = vmatprep.subr.bf16.mxu0 %v1899
    %2251 = vmatpush1.bf16.msra.mxu0 %v1898
    %2252 = vmatprep.subr.bf16.mxu0 %v1905
    %2253 = vmatpush1.bf16.msra.mxu0 %v1904
    %2254 = vmatprep.subr.bf16.mxu0 %v1911
    %2255 = vmatpush1.bf16.msra.mxu0 %v1910
    %2256 = vmatprep.subr.bf16.mxu0 %v1917
    %2257 = vmatpush1.bf16.msra.mxu0 %v1916
    %2258 = vmatprep.subr.bf16.mxu0 %v1923
    %2259 = vmatpush1.bf16.msra.mxu0 %v1922
    %2260 = vmatprep.subr.bf16.mxu0 %v1929
    %2261 = vmatpush1.bf16.msra.mxu0 %v1928
    %2262 = vmatprep.subr.bf16.mxu0 %v1935
    %2263 = vmatpush1.bf16.msra.mxu0 %v1934
    %2264 = vmatprep.subr.bf16.mxu0 %v1941
    %2265 = vmatpush1.bf16.msra.mxu0 %v1940
    %2266 = vmatprep.mubr.bf16.mxu0 %v1079
    %2267 = vmatmul.mubr.bf16.gmra.mrb[0].mxu0 %v1078
    %v2268 = vpop.f32.mrb[0].mxu0
    %v2269 = vadd.f32 0.0, %v2268
    %v2270 = vpop.f32.mrb[0].mxu0
    %v2271 = vadd.f32 0.0, %v2270
    %v2272 = vpop.f32.mrb[0].mxu0
    %v2273 = vadd.f32 0.0, %v2272
    %v2274 = vpop.f32.mrb[0].mxu0
    %v2275 = vadd.f32 0.0, %v2274
    %2276 = vdwg.mxu0
    %2277 = vmatprep.subr.bf16.mxu0 %v1947
    %2278 = vmatpush1.bf16.msra.mxu0 %v1946
    %2279 = vmatprep.subr.bf16.mxu0 %v1953
    %2280 = vmatpush1.bf16.msra.mxu0 %v1952
    %2281 = vmatprep.subr.bf16.mxu0 %v1959
    %2282 = vmatpush1.bf16.msra.mxu0 %v1958
    %2283 = vmatprep.subr.bf16.mxu0 %v1965
    %2284 = vmatpush1.bf16.msra.mxu0 %v1964
    %2285 = vmatprep.subr.bf16.mxu0 %v1971
    %2286 = vmatpush1.bf16.msra.mxu0 %v1970
    %2287 = vmatprep.subr.bf16.mxu0 %v1977
    %2288 = vmatpush1.bf16.msra.mxu0 %v1976
    %2289 = vmatprep.subr.bf16.mxu0 %v1983
    %2290 = vmatpush1.bf16.msra.mxu0 %v1982
    %2291 = vmatprep.subr.bf16.mxu0 %v1989
    %2292 = vmatpush1.bf16.msra.mxu0 %v1988
    %2293 = vmatprep.subr.bf16.mxu0 %v1995
    %2294 = vmatpush1.bf16.msra.mxu0 %v1994
    %2295 = vmatprep.subr.bf16.mxu0 %v2001
    %2296 = vmatpush1.bf16.msra.mxu0 %v2000
    %2297 = vmatprep.subr.bf16.mxu0 %v2007
    %2298 = vmatpush1.bf16.msra.mxu0 %v2006
    %2299 = vmatprep.subr.bf16.mxu0 %v2013
    %2300 = vmatpush1.bf16.msra.mxu0 %v2012
    %2301 = vmatprep.subr.bf16.mxu0 %v2019
    %2302 = vmatpush1.bf16.msra.mxu0 %v2018
    %2303 = vmatprep.subr.bf16.mxu0 %v2025
    %2304 = vmatpush1.bf16.msra.mxu0 %v2024
    %2305 = vmatprep.subr.bf16.mxu0 %v2031
    %2306 = vmatpush1.bf16.msra.mxu0 %v2030
    %2307 = vmatprep.subr.bf16.mxu0 %v2037
    %2308 = vmatpush1.bf16.msra.mxu0 %v2036
    %2309 = vmatprep.mubr.bf16.mxu0 %v1081
    %2310 = vmatmul.mubr.bf16.gmra.mrb[0].mxu0 %v1080
    %v2311 = vpop.f32.mrb[0].mxu0
    %v2312 = vadd.f32 %v2269, %v2311
    %v2313 = vpop.f32.mrb[0].mxu0
    %v2314 = vadd.f32 %v2271, %v2313
    %v2315 = vpop.f32.mrb[0].mxu0
    %v2316 = vadd.f32 %v2273, %v2315
    %v2317 = vpop.f32.mrb[0].mxu0
    %v2318 = vadd.f32 %v2275, %v2317
    %2319 = vdwg.mxu0
    %2320 = vmatprep.subr.bf16.mxu0 %v1853
    %2321 = vmatpush1.bf16.msra.mxu0 %v1852
    %2322 = vmatprep.subr.bf16.mxu0 %v1859
    %2323 = vmatpush1.bf16.msra.mxu0 %v1858
    %2324 = vmatprep.subr.bf16.mxu0 %v1865
    %2325 = vmatpush1.bf16.msra.mxu0 %v1864
    %2326 = vmatprep.subr.bf16.mxu0 %v1871
    %2327 = vmatpush1.bf16.msra.mxu0 %v1870
    %2328 = vmatprep.subr.bf16.mxu0 %v1877
    %2329 = vmatpush1.bf16.msra.mxu0 %v1876
    %2330 = vmatprep.subr.bf16.mxu0 %v1883
    %2331 = vmatpush1.bf16.msra.mxu0 %v1882
    %2332 = vmatprep.subr.bf16.mxu0 %v1889
    %2333 = vmatpush1.bf16.msra.mxu0 %v1888
    %2334 = vmatprep.subr.bf16.mxu0 %v1895
    %2335 = vmatpush1.bf16.msra.mxu0 %v1894
    %2336 = vmatprep.subr.bf16.mxu0 %v1901
    %2337 = vmatpush1.bf16.msra.mxu0 %v1900
    %2338 = vmatprep.subr.bf16.mxu0 %v1907
    %2339 = vmatpush1.bf16.msra.mxu0 %v1906
    %2340 = vmatprep.subr.bf16.mxu0 %v1913
    %2341 = vmatpush1.bf16.msra.mxu0 %v1912
    %2342 = vmatprep.subr.bf16.mxu0 %v1919
    %2343 = vmatpush1.bf16.msra.mxu0 %v1918
    %2344 = vmatprep.subr.bf16.mxu0 %v1925
    %2345 = vmatpush1.bf16.msra.mxu0 %v1924
    %2346 = vmatprep.subr.bf16.mxu0 %v1931
    %2347 = vmatpush1.bf16.msra.mxu0 %v1930
    %2348 = vmatprep.subr.bf16.mxu0 %v1937
    %2349 = vmatpush1.bf16.msra.mxu0 %v1936
    %2350 = vmatprep.subr.bf16.mxu0 %v1943
    %2351 = vmatpush1.bf16.msra.mxu0 %v1942
    %2352 = vmatprep.mubr.bf16.mxu0 %v1079
    %2353 = vmatmul.mubr.bf16.gmra.mrb[0].mxu0 %v1078
    %v2354 = vpop.f32.mrb[0].mxu0
    %v2355 = vadd.f32 0.0, %v2354
    %v2356 = vpop.f32.mrb[0].mxu0
    %v2357 = vadd.f32 0.0, %v2356
    %v2358 = vpop.f32.mrb[0].mxu0
    %v2359 = vadd.f32 0.0, %v2358
    %v2360 = vpop.f32.mrb[0].mxu0
    %v2361 = vadd.f32 0.0, %v2360
    %2362 = vdwg.mxu0
    %2363 = vmatprep.subr.bf16.mxu0 %v1949
    %2364 = vmatpush1.bf16.msra.mxu0 %v1948
    %2365 = vmatprep.subr.bf16.mxu0 %v1955
    %2366 = vmatpush1.bf16.msra.mxu0 %v1954
    %2367 = vmatprep.subr.bf16.mxu0 %v1961
    %2368 = vmatpush1.bf16.msra.mxu0 %v1960
    %2369 = vmatprep.subr.bf16.mxu0 %v1967
    %2370 = vmatpush1.bf16.msra.mxu0 %v1966
    %2371 = vmatprep.subr.bf16.mxu0 %v1973
    %2372 = vmatpush1.bf16.msra.mxu0 %v1972
    %2373 = vmatprep.subr.bf16.mxu0 %v1979
    %2374 = vmatpush1.bf16.msra.mxu0 %v1978
    %2375 = vmatprep.subr.bf16.mxu0 %v1985
    %2376 = vmatpush1.bf16.msra.mxu0 %v1984
    %2377 = vmatprep.subr.bf16.mxu0 %v1991
    %2378 = vmatpush1.bf16.msra.mxu0 %v1990
    %2379 = vmatprep.subr.bf16.mxu0 %v1997
    %2380 = vmatpush1.bf16.msra.mxu0 %v1996
    %2381 = vmatprep.subr.bf16.mxu0 %v2003
    %2382 = vmatpush1.bf16.msra.mxu0 %v2002
    %2383 = vmatprep.subr.bf16.mxu0 %v2009
    %2384 = vmatpush1.bf16.msra.mxu0 %v2008
    %2385 = vmatprep.subr.bf16.mxu0 %v2015
    %2386 = vmatpush1.bf16.msra.mxu0 %v2014
    %2387 = vmatprep.subr.bf16.mxu0 %v2021
    %2388 = vmatpush1.bf16.msra.mxu0 %v2020
    %2389 = vmatprep.subr.bf16.mxu0 %v2027
    %2390 = vmatpush1.bf16.msra.mxu0 %v2026
    %2391 = vmatprep.subr.bf16.mxu0 %v2033
    %2392 = vmatpush1.bf16.msra.mxu0 %v2032
    %2393 = vmatprep.subr.bf16.mxu0 %v2039
    %2394 = vmatpush1.bf16.msra.mxu0 %v2038
    %2395 = vmatprep.mubr.bf16.mxu0 %v1081
    %2396 = vmatmul.mubr.bf16.gmra.mrb[0].mxu0 %v1080
    %v2397 = vpop.f32.mrb[0].mxu0
    %v2398 = vadd.f32 %v2355, %v2397
    %v2399 = vpop.f32.mrb[0].mxu0
    %v2400 = vadd.f32 %v2357, %v2399
    %v2401 = vpop.f32.mrb[0].mxu0
    %v2402 = vadd.f32 %v2359, %v2401
    %v2403 = vpop.f32.mrb[0].mxu0
    %v2404 = vadd.f32 %v2361, %v2403
    %2405 = vdwg.mxu0
    %2406 = vmatprep.subr.bf16.mxu0 %v1855
    %2407 = vmatpush1.bf16.msra.mxu0 %v1854
    %2408 = vmatprep.subr.bf16.mxu0 %v1861
    %2409 = vmatpush1.bf16.msra.mxu0 %v1860
    %2410 = vmatprep.subr.bf16.mxu0 %v1867
    %2411 = vmatpush1.bf16.msra.mxu0 %v1866
    %2412 = vmatprep.subr.bf16.mxu0 %v1873
    %2413 = vmatpush1.bf16.msra.mxu0 %v1872
    %2414 = vmatprep.subr.bf16.mxu0 %v1879
    %2415 = vmatpush1.bf16.msra.mxu0 %v1878
    %2416 = vmatprep.subr.bf16.mxu0 %v1885
    %2417 = vmatpush1.bf16.msra.mxu0 %v1884
    %2418 = vmatprep.subr.bf16.mxu0 %v1891
    %2419 = vmatpush1.bf16.msra.mxu0 %v1890
    %2420 = vmatprep.subr.bf16.mxu0 %v1897
    %2421 = vmatpush1.bf16.msra.mxu0 %v1896
    %2422 = vmatprep.subr.bf16.mxu0 %v1903
    %2423 = vmatpush1.bf16.msra.mxu0 %v1902
    %2424 = vmatprep.subr.bf16.mxu0 %v1909
    %2425 = vmatpush1.bf16.msra.mxu0 %v1908
    %2426 = vmatprep.subr.bf16.mxu0 %v1915
    %2427 = vmatpush1.bf16.msra.mxu0 %v1914
    %2428 = vmatprep.subr.bf16.mxu0 %v1921
    %2429 = vmatpush1.bf16.msra.mxu0 %v1920
    %2430 = vmatprep.subr.bf16.mxu0 %v1927
    %2431 = vmatpush1.bf16.msra.mxu0 %v1926
    %2432 = vmatprep.subr.bf16.mxu0 %v1933
    %2433 = vmatpush1.bf16.msra.mxu0 %v1932
    %2434 = vmatprep.subr.bf16.mxu0 %v1939
    %2435 = vmatpush1.bf16.msra.mxu0 %v1938
    %2436 = vmatprep.subr.bf16.mxu0 %v1945
    %2437 = vmatpush1.bf16.msra.mxu0 %v1944
    %2438 = vmatprep.mubr.bf16.mxu0 %v1079
    %2439 = vmatmul.mubr.bf16.gmra.mrb[0].mxu0 %v1078
    %v2440 = vpop.f32.mrb[0].mxu0
    %v2441 = vadd.f32 0.0, %v2440
    %v2442 = vpop.f32.mrb[0].mxu0
    %v2443 = vadd.f32 0.0, %v2442
    %v2444 = vpop.f32.mrb[0].mxu0
    %v2445 = vadd.f32 0.0, %v2444
    %v2446 = vpop.f32.mrb[0].mxu0
    %v2447 = vadd.f32 0.0, %v2446
    %2448 = vdwg.mxu0
    %2449 = vmatprep.subr.bf16.mxu0 %v1951
    %2450 = vmatpush1.bf16.msra.mxu0 %v1950
    %2451 = vmatprep.subr.bf16.mxu0 %v1957
    %2452 = vmatpush1.bf16.msra.mxu0 %v1956
    %2453 = vmatprep.subr.bf16.mxu0 %v1963
    %2454 = vmatpush1.bf16.msra.mxu0 %v1962
    %2455 = vmatprep.subr.bf16.mxu0 %v1969
    %2456 = vmatpush1.bf16.msra.mxu0 %v1968
    %2457 = vmatprep.subr.bf16.mxu0 %v1975
    %2458 = vmatpush1.bf16.msra.mxu0 %v1974
    %2459 = vmatprep.subr.bf16.mxu0 %v1981
    %2460 = vmatpush1.bf16.msra.mxu0 %v1980
    %2461 = vmatprep.subr.bf16.mxu0 %v1987
    %2462 = vmatpush1.bf16.msra.mxu0 %v1986
    %2463 = vmatprep.subr.bf16.mxu0 %v1993
    %2464 = vmatpush1.bf16.msra.mxu0 %v1992
    %2465 = vmatprep.subr.bf16.mxu0 %v1999
    %2466 = vmatpush1.bf16.msra.mxu0 %v1998
    %2467 = vmatprep.subr.bf16.mxu0 %v2005
    %2468 = vmatpush1.bf16.msra.mxu0 %v2004
    %2469 = vmatprep.subr.bf16.mxu0 %v2011
    %2470 = vmatpush1.bf16.msra.mxu0 %v2010
    %2471 = vmatprep.subr.bf16.mxu0 %v2017
    %2472 = vmatpush1.bf16.msra.mxu0 %v2016
    %2473 = vmatprep.subr.bf16.mxu0 %v2023
    %2474 = vmatpush1.bf16.msra.mxu0 %v2022
    %2475 = vmatprep.subr.bf16.mxu0 %v2029
    %2476 = vmatpush1.bf16.msra.mxu0 %v2028
    %2477 = vmatprep.subr.bf16.mxu0 %v2035
    %2478 = vmatpush1.bf16.msra.mxu0 %v2034
    %2479 = vmatprep.subr.bf16.mxu0 %v2041
    %2480 = vmatpush1.bf16.msra.mxu0 %v2040
    %2481 = vmatprep.mubr.bf16.mxu0 %v1081
    %2482 = vmatmul.mubr.bf16.gmra.mrb[0].mxu0 %v1080
    %v2483 = vpop.f32.mrb[0].mxu0
    %v2484 = vadd.f32 %v2441, %v2483
    %v2485 = vpop.f32.mrb[0].mxu0
    %v2486 = vadd.f32 %v2443, %v2485
    %v2487 = vpop.f32.mrb[0].mxu0
    %v2488 = vadd.f32 %v2445, %v2487
    %v2489 = vpop.f32.mrb[0].mxu0
    %v2490 = vadd.f32 %v2447, %v2489
    %2491 = vdwg.mxu0
    %v2492 = vmax.f32 %v2312, 0.0
    %v2493 = vmax.f32 %v2314, 0.0
    %v2494 = vmax.f32 %v2398, 0.0
    %v2495 = vmax.f32 %v2400, 0.0
    %v2496 = vmax.f32 %v2484, 0.0
    %v2497 = vmax.f32 %v2486, 0.0
    %v2498 = vmax.f32 %v2316, 0.0
    %v2499 = vmax.f32 %v2318, 0.0
    %v2500 = vmax.f32 %v2402, 0.0
    %v2501 = vmax.f32 %v2404, 0.0
    %v2502 = vmax.f32 %v2488, 0.0
    %v2503 = vmax.f32 %v2490, 0.0
    %v2504 = vpack.c.bf16 %v2498, %v2492
    %v2505 = vpack.c.bf16 %v2499, %v2493
    %v2506 = vpack.c.bf16 %v2500, %v2494
    %v2507 = vpack.c.bf16 %v2501, %v2495
    %v2508 = vpack.c.bf16 %v2502, %v2496
    %v2509 = vpack.c.bf16 %v2503, %v2497
    %v2510 = vld [vmem:[#allocation8] sm:$0xf]
    %v2511 = vld [vmem:[#allocation8 + $0x4] sm:$0xf]
    %v2512 = vld [vmem:[#allocation8 + $0x8] sm:$0xf]
    %v2513 = vld [vmem:[#allocation8 + $0xc] sm:$0xf]
    %v2514 = vld [vmem:[#allocation8 + $0x10] sm:$0xf]
    %v2515 = vld [vmem:[#allocation8 + $0x14] sm:$0xf]
    %v2516 = vld [vmem:[#allocation8 + $0x18] sm:$0xf]
    %v2517 = vld [vmem:[#allocation8 + $0x1c] sm:$0xf]
    %v2518 = vld [vmem:[#allocation8 + $0x20] sm:$0xf]
    %v2519 = vld [vmem:[#allocation8 + $0x24] sm:$0xf]
    %v2520 = vld [vmem:[#allocation8 + $0x28] sm:$0xf]
    %v2521 = vld [vmem:[#allocation8 + $0x2c] sm:$0xf]
    %v2522 = vld [vmem:[#allocation8 + $0x30] sm:$0xf]
    %v2523 = vld [vmem:[#allocation8 + $0x34] sm:$0xf]
    %v2524 = vld [vmem:[#allocation8 + $0x38] sm:$0xf]
    %v2525 = vld [vmem:[#allocation8 + $0x3c] sm:$0xf]
    %v2526 = vld [vmem:[#allocation8 + $0x40] sm:$0xf]
    %v2527 = vld [vmem:[#allocation8 + $0x44] sm:$0xf]
    %v2528 = vld [vmem:[#allocation8 + $0x48] sm:$0xf]
    %v2529 = vld [vmem:[#allocation8 + $0x4c] sm:$0xf]
    %v2530 = vld [vmem:[#allocation8 + $0x50] sm:$0xf]
    %v2531 = vld [vmem:[#allocation8 + $0x54] sm:$0xf]
    %v2532 = vld [vmem:[#allocation8 + $0x58] sm:$0xf]
    %v2533 = vld [vmem:[#allocation8 + $0x5c] sm:$0xf]
    %v2534 = vld [vmem:[#allocation8 + $0x60] sm:$0xf]
    %v2535 = vld [vmem:[#allocation8 + $0x64] sm:$0xf]
    %v2536 = vld [vmem:[#allocation8 + $0x68] sm:$0xf]
    %v2537 = vld [vmem:[#allocation8 + $0x6c] sm:$0xf]
    %v2538 = vld [vmem:[#allocation8 + $0x70] sm:$0xf]
    %v2539 = vld [vmem:[#allocation8 + $0x74] sm:$0xf]
    %v2540 = vld [vmem:[#allocation8 + $0x78] sm:$0xf]
    %v2541 = vld [vmem:[#allocation8 + $0x7c] sm:$0xf]
    %v2542 = vld [vmem:[#allocation8 + $0x80] sm:$0xf]
    %v2543 = vld [vmem:[#allocation8 + $0x84] sm:$0xf]
    %v2544 = vld [vmem:[#allocation8 + $0x88] sm:$0xf]
    %v2545 = vld [vmem:[#allocation8 + $0x8c] sm:$0xf]
    %v2546 = vld [vmem:[#allocation8 + $0x90] sm:$0xf]
    %v2547 = vld [vmem:[#allocation8 + $0x94] sm:$0xf]
    %v2548 = vld [vmem:[#allocation8 + $0x98] sm:$0xf]
    %v2549 = vld [vmem:[#allocation8 + $0x9c] sm:$0xf]
    %v2550 = vld [vmem:[#allocation8 + $0xa0] sm:$0xf]
    %v2551 = vld [vmem:[#allocation8 + $0xa4] sm:$0xf]
    %v2552 = vld [vmem:[#allocation8 + $0xa8] sm:$0xf]
    %v2553 = vld [vmem:[#allocation8 + $0xac] sm:$0xf]
    %v2554 = vld [vmem:[#allocation8 + $0xb0] sm:$0xf]
    %v2555 = vld [vmem:[#allocation8 + $0xb4] sm:$0xf]
    %v2556 = vld [vmem:[#allocation8 + $0xb8] sm:$0xf]
    %v2557 = vld [vmem:[#allocation8 + $0xbc] sm:$0xf]
    %v2558 = vld [vmem:[#allocation8 + $0xc0] sm:$0xf]
    %v2559 = vld [vmem:[#allocation8 + $0xc4] sm:$0xf]
    %v2560 = vld [vmem:[#allocation8 + $0xc8] sm:$0xf]
    %v2561 = vld [vmem:[#allocation8 + $0xcc] sm:$0xf]
    %v2562 = vld [vmem:[#allocation8 + $0xd0] sm:$0xf]
    %v2563 = vld [vmem:[#allocation8 + $0xd4] sm:$0xf]
    %v2564 = vld [vmem:[#allocation8 + $0xd8] sm:$0xf]
    %v2565 = vld [vmem:[#allocation8 + $0xdc] sm:$0xf]
    %v2566 = vld [vmem:[#allocation8 + $0xe0] sm:$0xf]
    %v2567 = vld [vmem:[#allocation8 + $0xe4] sm:$0xf]
    %v2568 = vld [vmem:[#allocation8 + $0xe8] sm:$0xf]
    %v2569 = vld [vmem:[#allocation8 + $0xec] sm:$0xf]
    %v2570 = vld [vmem:[#allocation8 + $0xf0] sm:$0xf]
    %v2571 = vld [vmem:[#allocation8 + $0xf4] sm:$0xf]
    %v2572 = vld [vmem:[#allocation8 + $0xf8] sm:$0xf]
    %v2573 = vld [vmem:[#allocation8 + $0xfc] sm:$0xf]
    %v2574 = vld [vmem:[#allocation8 + $0x100] sm:$0xf]
    %v2575 = vld [vmem:[#allocation8 + $0x104] sm:$0xf]
    %v2576 = vld [vmem:[#allocation8 + $0x108] sm:$0xf]
    %v2577 = vld [vmem:[#allocation8 + $0x10c] sm:$0xf]
    %v2578 = vld [vmem:[#allocation8 + $0x110] sm:$0xf]
    %v2579 = vld [vmem:[#allocation8 + $0x114] sm:$0xf]
    %v2580 = vld [vmem:[#allocation8 + $0x118] sm:$0xf]
    %v2581 = vld [vmem:[#allocation8 + $0x11c] sm:$0xf]
    %v2582 = vld [vmem:[#allocation8 + $0x120] sm:$0xf]
    %v2583 = vld [vmem:[#allocation8 + $0x124] sm:$0xf]
    %v2584 = vld [vmem:[#allocation8 + $0x128] sm:$0xf]
    %v2585 = vld [vmem:[#allocation8 + $0x12c] sm:$0xf]
    %v2586 = vld [vmem:[#allocation8 + $0x130] sm:$0xf]
    %v2587 = vld [vmem:[#allocation8 + $0x134] sm:$0xf]
    %v2588 = vld [vmem:[#allocation8 + $0x138] sm:$0xf]
    %v2589 = vld [vmem:[#allocation8 + $0x13c] sm:$0xf]
    %v2590 = vld [vmem:[#allocation8 + $0x140] sm:$0xf]
    %v2591 = vld [vmem:[#allocation8 + $0x144] sm:$0xf]
    %v2592 = vld [vmem:[#allocation8 + $0x148] sm:$0xf]
    %v2593 = vld [vmem:[#allocation8 + $0x14c] sm:$0xf]
    %v2594 = vld [vmem:[#allocation8 + $0x150] sm:$0xf]
    %v2595 = vld [vmem:[#allocation8 + $0x154] sm:$0xf]
    %v2596 = vld [vmem:[#allocation8 + $0x158] sm:$0xf]
    %v2597 = vld [vmem:[#allocation8 + $0x15c] sm:$0xf]
    %v2598 = vld [vmem:[#allocation8 + $0x160] sm:$0xf]
    %v2599 = vld [vmem:[#allocation8 + $0x164] sm:$0xf]
    %v2600 = vld [vmem:[#allocation8 + $0x168] sm:$0xf]
    %v2601 = vld [vmem:[#allocation8 + $0x16c] sm:$0xf]
    %v2602 = vld [vmem:[#allocation8 + $0x170] sm:$0xf]
    %v2603 = vld [vmem:[#allocation8 + $0x174] sm:$0xf]
    %v2604 = vld [vmem:[#allocation8 + $0x178] sm:$0xf]
    %v2605 = vld [vmem:[#allocation8 + $0x17c] sm:$0xf]
    %v2606 = vld [vmem:[%s5] sm:$0x1]
    %v2608 = vlaneseq
    %v2609 = vshrl.u32 %v2608, 7
    %v2610 = vsub.s32 0, %v2609
    %v2611 = vrot.slane %v2606, %v2610
    %v2709 = vunpack.c.l.b16 %v2510
    %v2710 = vunpack.c.l.b16 %v2511
    %v2711 = vunpack.c.l.b16 %v2512
    %v2712 = vunpack.c.l.b16 %v2513
    %v2713 = vunpack.c.l.b16 %v2514
    %v2714 = vunpack.c.l.b16 %v2515
    %v2715 = vunpack.c.l.b16 %v2516
    %v2716 = vunpack.c.l.b16 %v2517
    %v2717 = vunpack.c.l.b16 %v2518
    %v2718 = vunpack.c.l.b16 %v2519
    %v2719 = vunpack.c.l.b16 %v2520
    %v2720 = vunpack.c.l.b16 %v2521
    %v2721 = vunpack.c.l.b16 %v2522
    %v2722 = vunpack.c.l.b16 %v2523
    %v2723 = vunpack.c.l.b16 %v2524
    %v2724 = vunpack.c.l.b16 %v2525
    %v2725 = vunpack.c.l.b16 %v2526
    %v2726 = vunpack.c.l.b16 %v2527
    %v2727 = vunpack.c.l.b16 %v2528
    %v2728 = vunpack.c.l.b16 %v2529
    %v2729 = vunpack.c.l.b16 %v2530
    %v2730 = vunpack.c.l.b16 %v2531
    %v2731 = vunpack.c.l.b16 %v2532
    %v2732 = vunpack.c.l.b16 %v2533
    %v2733 = vunpack.c.l.b16 %v2534
    %v2734 = vunpack.c.l.b16 %v2535
    %v2735 = vunpack.c.l.b16 %v2536
    %v2736 = vunpack.c.l.b16 %v2537
    %v2737 = vunpack.c.l.b16 %v2538
    %v2738 = vunpack.c.l.b16 %v2539
    %v2739 = vunpack.c.l.b16 %v2540
    %v2740 = vunpack.c.l.b16 %v2541
    %v2741 = vunpack.c.l.b16 %v2542
    %v2742 = vunpack.c.l.b16 %v2543
    %v2743 = vunpack.c.l.b16 %v2544
    %v2744 = vunpack.c.l.b16 %v2545
    %v2745 = vunpack.c.l.b16 %v2546
    %v2746 = vunpack.c.l.b16 %v2547
    %v2747 = vunpack.c.l.b16 %v2548
    %v2748 = vunpack.c.l.b16 %v2549
    %v2749 = vunpack.c.l.b16 %v2550
    %v2750 = vunpack.c.l.b16 %v2551
    %v2751 = vunpack.c.l.b16 %v2552
    %v2752 = vunpack.c.l.b16 %v2553
    %v2753 = vunpack.c.l.b16 %v2554
    %v2754 = vunpack.c.l.b16 %v2555
    %v2755 = vunpack.c.l.b16 %v2556
    %v2756 = vunpack.c.l.b16 %v2557
    %v2757 = vunpack.c.l.b16 %v2558
    %v2758 = vunpack.c.l.b16 %v2559
    %v2759 = vunpack.c.l.b16 %v2560
    %v2760 = vunpack.c.l.b16 %v2561
    %v2761 = vunpack.c.l.b16 %v2562
    %v2762 = vunpack.c.l.b16 %v2563
    %v2763 = vunpack.c.l.b16 %v2564
    %v2764 = vunpack.c.l.b16 %v2565
    %v2765 = vunpack.c.l.b16 %v2566
    %v2766 = vunpack.c.l.b16 %v2567
    %v2767 = vunpack.c.l.b16 %v2568
    %v2768 = vunpack.c.l.b16 %v2569
    %v2769 = vunpack.c.l.b16 %v2570
    %v2770 = vunpack.c.l.b16 %v2571
    %v2771 = vunpack.c.l.b16 %v2572
    %v2772 = vunpack.c.l.b16 %v2573
    %v2773 = vunpack.c.l.b16 %v2574
    %v2774 = vunpack.c.l.b16 %v2575
    %v2775 = vunpack.c.l.b16 %v2576
    %v2776 = vunpack.c.l.b16 %v2577
    %v2777 = vunpack.c.l.b16 %v2578
    %v2778 = vunpack.c.l.b16 %v2579
    %v2779 = vunpack.c.l.b16 %v2580
    %v2780 = vunpack.c.l.b16 %v2581
    %v2781 = vunpack.c.l.b16 %v2582
    %v2782 = vunpack.c.l.b16 %v2583
    %v2783 = vunpack.c.l.b16 %v2584
    %v2784 = vunpack.c.l.b16 %v2585
    %v2785 = vunpack.c.l.b16 %v2586
    %v2786 = vunpack.c.l.b16 %v2587
    %v2787 = vunpack.c.l.b16 %v2588
    %v2788 = vunpack.c.l.b16 %v2589
    %v2789 = vunpack.c.l.b16 %v2590
    %v2790 = vunpack.c.l.b16 %v2591
    %v2791 = vunpack.c.l.b16 %v2592
    %v2792 = vunpack.c.l.b16 %v2593
    %v2793 = vunpack.c.l.b16 %v2594
    %v2794 = vunpack.c.l.b16 %v2595
    %v2795 = vunpack.c.l.b16 %v2596
    %v2796 = vunpack.c.l.b16 %v2597
    %v2797 = vunpack.c.l.b16 %v2598
    %v2798 = vunpack.c.l.b16 %v2599
    %v2799 = vunpack.c.l.b16 %v2600
    %v2800 = vunpack.c.l.b16 %v2601
    %v2801 = vunpack.c.l.b16 %v2602
    %v2802 = vunpack.c.l.b16 %v2603
    %v2803 = vunpack.c.l.b16 %v2604
    %v2804 = vunpack.c.l.b16 %v2605
    %v2805 = vpack.c.b16 %v2710, %v2709
    %v2806 = vpack.c.b16 %v2712, %v2711
    %v2807 = vpack.c.b16 %v2714, %v2713
    %v2808 = vpack.c.b16 %v2716, %v2715
    %v2809 = vpack.c.b16 %v2718, %v2717
    %v2810 = vpack.c.b16 %v2720, %v2719
    %v2811 = vpack.c.b16 %v2722, %v2721
    %v2812 = vpack.c.b16 %v2724, %v2723
    %v2813 = vpack.c.b16 %v2726, %v2725
    %v2814 = vpack.c.b16 %v2728, %v2727
    %v2815 = vpack.c.b16 %v2730, %v2729
    %v2816 = vpack.c.b16 %v2732, %v2731
    %v2817 = vpack.c.b16 %v2734, %v2733
    %v2818 = vpack.c.b16 %v2736, %v2735
    %v2819 = vpack.c.b16 %v2738, %v2737
    %v2820 = vpack.c.b16 %v2740, %v2739
    %v2821 = vpack.c.b16 %v2742, %v2741
    %v2822 = vpack.c.b16 %v2744, %v2743
    %v2823 = vpack.c.b16 %v2746, %v2745
    %v2824 = vpack.c.b16 %v2748, %v2747
    %v2825 = vpack.c.b16 %v2750, %v2749
    %v2826 = vpack.c.b16 %v2752, %v2751
    %v2827 = vpack.c.b16 %v2754, %v2753
    %v2828 = vpack.c.b16 %v2756, %v2755
    %v2829 = vpack.c.b16 %v2758, %v2757
    %v2830 = vpack.c.b16 %v2760, %v2759
    %v2831 = vpack.c.b16 %v2762, %v2761
    %v2832 = vpack.c.b16 %v2764, %v2763
    %v2833 = vpack.c.b16 %v2766, %v2765
    %v2834 = vpack.c.b16 %v2768, %v2767
    %v2835 = vpack.c.b16 %v2770, %v2769
    %v2836 = vpack.c.b16 %v2772, %v2771
    %v2837 = vpack.c.b16 %v2774, %v2773
    %v2838 = vpack.c.b16 %v2776, %v2775
    %v2839 = vpack.c.b16 %v2778, %v2777
    %v2840 = vpack.c.b16 %v2780, %v2779
    %v2841 = vpack.c.b16 %v2782, %v2781
    %v2842 = vpack.c.b16 %v2784, %v2783
    %v2843 = vpack.c.b16 %v2786, %v2785
    %v2844 = vpack.c.b16 %v2788, %v2787
    %v2845 = vpack.c.b16 %v2790, %v2789
    %v2846 = vpack.c.b16 %v2792, %v2791
    %v2847 = vpack.c.b16 %v2794, %v2793
    %v2848 = vpack.c.b16 %v2796, %v2795
    %v2849 = vpack.c.b16 %v2798, %v2797
    %v2850 = vpack.c.b16 %v2800, %v2799
    %v2851 = vpack.c.b16 %v2802, %v2801
    %v2852 = vpack.c.b16 %v2804, %v2803
    %2901 = vmatprep.subr.bf16.mxu0 0
    %2902 = vmatpush1.bf16.msra.mxu0 %v2805
    %2903 = vmatprep.subr.bf16.mxu0 0
    %2904 = vmatpush1.bf16.msra.mxu0 %v2806
    %2905 = vmatprep.subr.bf16.mxu0 0
    %2906 = vmatpush1.bf16.msra.mxu0 %v2807
    %2907 = vmatprep.subr.bf16.mxu0 0
    %2908 = vmatpush1.bf16.msra.mxu0 %v2808
    %2909 = vmatprep.subr.bf16.mxu0 0
    %2910 = vmatpush1.bf16.msra.mxu0 %v2809
    %2911 = vmatprep.subr.bf16.mxu0 0
    %2912 = vmatpush1.bf16.msra.mxu0 %v2810
    %2913 = vmatprep.subr.bf16.mxu0 0
    %2914 = vmatpush1.bf16.msra.mxu0 %v2811
    %2915 = vmatprep.subr.bf16.mxu0 0
    %2916 = vmatpush1.bf16.msra.mxu0 %v2812
    %2917 = vmatprep.subr.bf16.mxu0 0
    %2918 = vmatpush1.bf16.msra.mxu0 %v2813
    %2919 = vmatprep.subr.bf16.mxu0 0
    %2920 = vmatpush1.bf16.msra.mxu0 %v2814
    %2921 = vmatprep.subr.bf16.mxu0 0
    %2922 = vmatpush1.bf16.msra.mxu0 %v2815
    %2923 = vmatprep.subr.bf16.mxu0 0
    %2924 = vmatpush1.bf16.msra.mxu0 %v2816
    %2925 = vmatprep.subr.bf16.mxu0 0
    %2926 = vmatpush1.bf16.msra.mxu0 %v2817
    %2927 = vmatprep.subr.bf16.mxu0 0
    %2928 = vmatpush1.bf16.msra.mxu0 %v2818
    %2929 = vmatprep.subr.bf16.mxu0 0
    %2930 = vmatpush1.bf16.msra.mxu0 %v2819
    %2931 = vmatprep.subr.bf16.mxu0 0
    %2932 = vmatpush1.bf16.msra.mxu0 %v2820
    %2933 = vmatprep.mubr.bf16.mxu0 %v2505
    %2934 = vmatmul.mubr.bf16.gmra.mrb[0].mxu0 %v2504
    %v2935 = vpop.f32.mrb[0].mxu0
    %v2936 = vadd.f32 %v2611, %v2935
    %v2937 = vpop.f32.mrb[0].mxu0
    %v2938 = vpop.f32.mrb[0].mxu0
    %v2939 = vadd.f32 %v2611, %v2938
    %v2940 = vpop.f32.mrb[0].mxu0
    %2941 = vdwg.mxu0
    %2942 = vmatprep.subr.bf16.mxu0 0
    %2943 = vmatpush1.bf16.msra.mxu0 %v2821
    %2944 = vmatprep.subr.bf16.mxu0 0
    %2945 = vmatpush1.bf16.msra.mxu0 %v2822
    %2946 = vmatprep.subr.bf16.mxu0 0
    %2947 = vmatpush1.bf16.msra.mxu0 %v2823
    %2948 = vmatprep.subr.bf16.mxu0 0
    %2949 = vmatpush1.bf16.msra.mxu0 %v2824
    %2950 = vmatprep.subr.bf16.mxu0 0
    %2951 = vmatpush1.bf16.msra.mxu0 %v2825
    %2952 = vmatprep.subr.bf16.mxu0 0
    %2953 = vmatpush1.bf16.msra.mxu0 %v2826
    %2954 = vmatprep.subr.bf16.mxu0 0
    %2955 = vmatpush1.bf16.msra.mxu0 %v2827
    %2956 = vmatprep.subr.bf16.mxu0 0
    %2957 = vmatpush1.bf16.msra.mxu0 %v2828
    %2958 = vmatprep.subr.bf16.mxu0 0
    %2959 = vmatpush1.bf16.msra.mxu0 %v2829
    %2960 = vmatprep.subr.bf16.mxu0 0
    %2961 = vmatpush1.bf16.msra.mxu0 %v2830
    %2962 = vmatprep.subr.bf16.mxu0 0
    %2963 = vmatpush1.bf16.msra.mxu0 %v2831
    %2964 = vmatprep.subr.bf16.mxu0 0
    %2965 = vmatpush1.bf16.msra.mxu0 %v2832
    %2966 = vmatprep.subr.bf16.mxu0 0
    %2967 = vmatpush1.bf16.msra.mxu0 %v2833
    %2968 = vmatprep.subr.bf16.mxu0 0
    %2969 = vmatpush1.bf16.msra.mxu0 %v2834
    %2970 = vmatprep.subr.bf16.mxu0 0
    %2971 = vmatpush1.bf16.msra.mxu0 %v2835
    %2972 = vmatprep.subr.bf16.mxu0 0
    %2973 = vmatpush1.bf16.msra.mxu0 %v2836
    %2974 = vmatprep.mubr.bf16.mxu0 %v2507
    %2975 = vmatmul.mubr.bf16.gmra.mrb[0].mxu0 %v2506
    %v2976 = vpop.f32.mrb[0].mxu0
    %v2977 = vadd.f32 %v2936, %v2976
    %v2978 = vpop.f32.mrb[0].mxu0
    %v2979 = vpop.f32.mrb[0].mxu0
    %v2980 = vadd.f32 %v2939, %v2979
    %v2981 = vpop.f32.mrb[0].mxu0
    %2982 = vdwg.mxu0
    %2983 = vmatprep.subr.bf16.mxu0 0
    %2984 = vmatpush1.bf16.msra.mxu0 %v2837
    %2985 = vmatprep.subr.bf16.mxu0 0
    %2986 = vmatpush1.bf16.msra.mxu0 %v2838
    %2987 = vmatprep.subr.bf16.mxu0 0
    %2988 = vmatpush1.bf16.msra.mxu0 %v2839
    %2989 = vmatprep.subr.bf16.mxu0 0
    %2990 = vmatpush1.bf16.msra.mxu0 %v2840
    %2991 = vmatprep.subr.bf16.mxu0 0
    %2992 = vmatpush1.bf16.msra.mxu0 %v2841
    %2993 = vmatprep.subr.bf16.mxu0 0
    %2994 = vmatpush1.bf16.msra.mxu0 %v2842
    %2995 = vmatprep.subr.bf16.mxu0 0
    %2996 = vmatpush1.bf16.msra.mxu0 %v2843
    %2997 = vmatprep.subr.bf16.mxu0 0
    %2998 = vmatpush1.bf16.msra.mxu0 %v2844
    %2999 = vmatprep.subr.bf16.mxu0 0
    %3000 = vmatpush1.bf16.msra.mxu0 %v2845
    %3001 = vmatprep.subr.bf16.mxu0 0
    %3002 = vmatpush1.bf16.msra.mxu0 %v2846
    %3003 = vmatprep.subr.bf16.mxu0 0
    %3004 = vmatpush1.bf16.msra.mxu0 %v2847
    %3005 = vmatprep.subr.bf16.mxu0 0
    %3006 = vmatpush1.bf16.msra.mxu0 %v2848
    %3007 = vmatprep.subr.bf16.mxu0 0
    %3008 = vmatpush1.bf16.msra.mxu0 %v2849
    %3009 = vmatprep.subr.bf16.mxu0 0
    %3010 = vmatpush1.bf16.msra.mxu0 %v2850
    %3011 = vmatprep.subr.bf16.mxu0 0
    %3012 = vmatpush1.bf16.msra.mxu0 %v2851
    %3013 = vmatprep.subr.bf16.mxu0 0
    %3014 = vmatpush1.bf16.msra.mxu0 %v2852
    %3015 = vmatprep.mubr.bf16.mxu0 %v2509
    %3016 = vmatmul.mubr.bf16.gmra.mrb[0].mxu0 %v2508
    %v3017 = vpop.f32.mrb[0].mxu0
    %v3018 = vadd.f32 %v2977, %v3017
    %v3019 = vpop.f32.mrb[0].mxu0
    %v3020 = vpop.f32.mrb[0].mxu0
    %v3021 = vadd.f32 %v2980, %v3020
    %v3022 = vpop.f32.mrb[0].mxu0
    %3023 = vdwg.mxu0
    %3024 = vst [vmem:[#allocation10] sm:$0xff] %v3018
    %3025 = vst [vmem:[#allocation10 + $0x8] sm:$0xff] %v3021
    // Predicated region
    $region42: #{tpu_custom_call.1} parent=1 // pred_check
      _
    $region43: #{tpu_custom_call.1} parent=1 // pred_check_branch
      %3027 = sbr.rel (0) target = $region45
    $region44: #{tpu_custom_call.1} parent=1 // pred_region
      %s3029 = ssub.s32 256, 256
      %3030 = vsyncadd [#allocation4], %s3029
      %s3031 = sshll.u32 [#allocation10], 4
      %s3032 = int_to_ptr.vmem [resolvable:$true] %s3031
      %3037 = dma.vmem_to_hbm [thread:$0]  %s3032, 256, %s6, [#allocation4], 128, 128, 8
    $region45: #{tpu_custom_call.1} parent=1 // pred_fallthru
      _
    // Predicated region
    $region46: #{tpu_custom_call.1} parent=1 // pred_check
      _
    $region47: #{tpu_custom_call.1} parent=1 // pred_check_branch
      %3039 = sbr.rel (0) target = $region49
    $region48: #{tpu_custom_call.1} parent=1 // pred_region
      %3040 = dma.done [#allocation4], 256
    $region49: #{tpu_custom_call.1} parent=1 // pred_fallthru
      _
    %3041 = vsyncpa [#allocation3], 1
    %3042 = vsyncpa [#allocation6], 1
    %3043 = vsyncpa [#allocation9], 1
    %3044 = vsyncpa [#allocation4], 1

// kernel: tpu_custom_call.1
$region0: #{tpu_custom_call.1}
  #allocation0 [shape = 'u32[]', space=smem, size = 0x4, offset = 0x4, fixed_abs, tag = 'smem constant byte address 0x4 - core index']
  #allocation1 [shape = 'u32[144,128]{1,0:T(1,128)}', space=vmem, size = 0x12000, scoped, tag = 'internal scratch']
  %s0 = inlined_call_operand.hbm [shape: bf16[16,512], index: 0, kind: input, shape index: {}]
  %s1 = inlined_call_operand.hbm [shape: bf16[512,512], index: 1, kind: input, shape index: {}]
  %s2 = inlined_call_operand.vmem [shape: f32[1,512], index: 2, kind: input, shape index: {}]
  %s3 = inlined_call_operand.hbm [shape: bf16[512,768], index: 3, kind: input, shape index: {}]
  %s4 = inlined_call_operand.hbm [shape: bf16[768,128], index: 4, kind: input, shape index: {}]
  %s5 = inlined_call_operand.vmem [shape: f32[1,128], index: 5, kind: input, shape index: {}]
  %s6 = inlined_call_operand.hbm [shape: f32[16,128], index: 6, kind: output, shape index: {}]
  %s7 = sld [smem:[#allocation0]]
  $region50: #{tpu_custom_call.1} parent=0
    _
  %s9 = ssub.s32 1, %s7
  %s10 = scalar_select 0, %s9, %s7
  $region1: #{tpu_custom_call.1} parent=0
    #allocation2 [shape = 'u8[16384]{0}', space=vmem, size = 0x4000, scoped, tag = 'input window, operand 0, single buffered']
    #allocation3 [shape = 's32[1]{0}', space=sflag, size = 0x4, scoped, tag = 'scoped memory for tpu_custom_call.1']
    #allocation4 [shape = 's32[1]{0}', space=sflag, size = 0x4, scoped, tag = 'scoped memory for tpu_custom_call.1']
    #allocation5 [shape = 'u8[524288]{0}', space=vmem, size = 0x80000, scoped, tag = 'input window, operand 1, single buffered']
    #allocation6 [shape = 's32[1]{0}', space=sflag, size = 0x4, scoped, tag = 'scoped memory for tpu_custom_call.1']
    #allocation7 [shape = 'u8[786432]{0}', space=vmem, size = 0xc0000, scoped, tag = 'input window, operand 3, single buffered']
    #allocation8 [shape = 'u8[196608]{0}', space=vmem, size = 0x30000, scoped, tag = 'input window, operand 4, single buffered']
    #allocation9 [shape = 's32[1]{0}', space=sflag, size = 0x4, scoped, tag = 'scoped memory for tpu_custom_call.1']
    #allocation10 [shape = 'u8[8192]{0}', space=vmem, size = 0x2000, scoped, tag = 'output window, operand 0, single buffered']
    %11 = vsyncpa [#allocation3], 0
    %12 = vsyncpa [#allocation6], 0
    %13 = vsyncpa [#allocation9], 0
    %14 = vsyncpa [#allocation4], 0
    // Predicated region
    $region2: #{tpu_custom_call.1} parent=1 // pred_check
      _
    $region3: #{tpu_custom_call.1} parent=1 // pred_check_branch
      %16 = sbr.rel (0) target = $region5
    $region4: #{tpu_custom_call.1} parent=1 // pred_region
      %s18 = ssub.s32 512, 512
      %19 = vsyncadd [#allocation3], %s18
      %s20 = sshll.u32 [#allocation2], 4
      %s21 = int_to_ptr.vmem [resolvable:$true] %s20
      %26 = dma.hbm_to_vmem [thread:$0]  %s0, 512, %s21, [#allocation3], 256, 256, 16
    $region5: #{tpu_custom_call.1} parent=1 // pred_fallthru
      _
    // Predicated region
    $region6: #{tpu_custom_call.1} parent=1 // pred_check
      _
    $region7: #{tpu_custom_call.1} parent=1 // pred_check_branch
      %28 = sbr.rel (0) target = $region9
    $region8: #{tpu_custom_call.1} parent=1 // pred_region
      %s30 = ssub.s32 16384, 16384
      %31 = vsyncadd [#allocation6], %s30
      %s32 = sshll.u32 [#allocation5], 4
      %s33 = int_to_ptr.vmem [resolvable:$true] %s32
      %38 = dma.hbm_to_vmem [thread:$0]  %s1, 16384, %s33, [#allocation6], 256, 256, 16
    $region9: #{tpu_custom_call.1} parent=1 // pred_fallthru
      _
    // Predicated region
    $region10: #{tpu_custom_call.1} parent=1 // pred_check
      _
    $region11: #{tpu_custom_call.1} parent=1 // pred_check_branch
      %40 = sbr.rel (0) target = $region13
    $region12: #{tpu_custom_call.1} parent=1 // pred_region
      _
    $region13: #{tpu_custom_call.1} parent=1 // pred_fallthru
      _
    // Predicated region
    $region14: #{tpu_custom_call.1} parent=1 // pred_check
      _
    $region15: #{tpu_custom_call.1} parent=1 // pred_check_branch
      %42 = sbr.rel (0) target = $region17
    $region16: #{tpu_custom_call.1} parent=1 // pred_region
      %s44 = ssub.s32 24576, 24576
      %45 = vsyncadd [#allocation6], %s44
      %s46 = sshll.u32 [#allocation7], 4
      %s47 = int_to_ptr.vmem [resolvable:$true] %s46
      %52 = dma.hbm_to_vmem [thread:$0]  %s3, 24576, %s47, [#allocation6], 384, 384, 24
    $region17: #{tpu_custom_call.1} parent=1 // pred_fallthru
      _
    // Predicated region
    $region18: #{tpu_custom_call.1} parent=1 // pred_check
      _
    $region19: #{tpu_custom_call.1} parent=1 // pred_check_branch
      %54 = sbr.rel (0) target = $region21
    $region20: #{tpu_custom_call.1} parent=1 // pred_region
      %s56 = ssub.s32 6144, 6144
      %57 = vsyncadd [#allocation9], %s56
      %s58 = sshll.u32 [#allocation8], 4
      %s59 = int_to_ptr.vmem [resolvable:$true] %s58
      %64 = dma.hbm_to_vmem [thread:$0]  %s4, 6144, %s59, [#allocation9], 64, 64, 4
    $region21: #{tpu_custom_call.1} parent=1 // pred_fallthru
      _
    // Predicated region
    $region22: #{tpu_custom_call.1} parent=1 // pred_check
      _
    $region23: #{tpu_custom_call.1} parent=1 // pred_check_branch
      %66 = sbr.rel (0) target = $region25
    $region24: #{tpu_custom_call.1} parent=1 // pred_region
      _
    $region25: #{tpu_custom_call.1} parent=1 // pred_fallthru
      _
    // Predicated region
    $region26: #{tpu_custom_call.1} parent=1 // pred_check
      _
    $region27: #{tpu_custom_call.1} parent=1 // pred_check_branch
      %68 = sbr.rel (0) target = $region29
    $region28: #{tpu_custom_call.1} parent=1 // pred_region
      %69 = dma.done [#allocation3], 512
    $region29: #{tpu_custom_call.1} parent=1 // pred_fallthru
      _
    // Predicated region
    $region30: #{tpu_custom_call.1} parent=1 // pred_check
      _
    $region31: #{tpu_custom_call.1} parent=1 // pred_check_branch
      %71 = sbr.rel (0) target = $region33
    $region32: #{tpu_custom_call.1} parent=1 // pred_region
      %72 = dma.done [#allocation6], 16384
    $region33: #{tpu_custom_call.1} parent=1 // pred_fallthru
      _
    // Predicated region
    $region34: #{tpu_custom_call.1} parent=1 // pred_check
      _
    $region35: #{tpu_custom_call.1} parent=1 // pred_check_branch
      %74 = sbr.rel (0) target = $region37
    $region36: #{tpu_custom_call.1} parent=1 // pred_region
      %75 = dma.done [#allocation6], 24576
    $region37: #{tpu_custom_call.1} parent=1 // pred_fallthru
      _
    // Predicated region
    $region38: #{tpu_custom_call.1} parent=1 // pred_check
      _
    $region39: #{tpu_custom_call.1} parent=1 // pred_check_branch
      %77 = sbr.rel (0) target = $region41
    $region40: #{tpu_custom_call.1} parent=1 // pred_region
      %78 = dma.done [#allocation9], 6144
    $region41: #{tpu_custom_call.1} parent=1 // pred_fallthru
      _
    %v80 = vld [vmem:[#allocation2] sm:$0xff]
    %v81 = vld [vmem:[#allocation2 + $0x8] sm:$0xff]
    %v82 = vld [vmem:[#allocation2 + $0x10] sm:$0xff]
    %v83 = vld [vmem:[#allocation2 + $0x18] sm:$0xff]
    %v84 = vmax.bf16 %v80, 0
    %v85 = vmax.bf16 %v81, 0
    %v86 = vmax.bf16 %v82, 0
    %v87 = vmax.bf16 %v83, 0
    %v88 = vld [vmem:[#allocation5] sm:$0xff]
    %v89 = vld [vmem:[#allocation5 + $0x8] sm:$0xff]
    %v90 = vld [vmem:[#allocation5 + $0x10] sm:$0xff]
    %v91 = vld [vmem:[#allocation5 + $0x18] sm:$0xff]
    %v92 = vld [vmem:[#allocation5 + $0x20] sm:$0xff]
    %v93 = vld [vmem:[#allocation5 + $0x28] sm:$0xff]
    %v94 = vld [vmem:[#allocation5 + $0x30] sm:$0xff]
    %v95 = vld [vmem:[#allocation5 + $0x38] sm:$0xff]
    %v96 = vld [vmem:[#allocation5 + $0x40] sm:$0xff]
    %v97 = vld [vmem:[#allocation5 + $0x48] sm:$0xff]
    %v98 = vld [vmem:[#allocation5 + $0x50] sm:$0xff]
    %v99 = vld [vmem:[#allocation5 + $0x58] sm:$0xff]
    %v100 = vld [vmem:[#allocation5 + $0x60] sm:$0xff]
    %v101 = vld [vmem:[#allocation5 + $0x68] sm:$0xff]
    %v102 = vld [vmem:[#allocation5 + $0x70] sm:$0xff]
    %v103 = vld [vmem:[#allocation5 + $0x78] sm:$0xff]
    %v104 = vld [vmem:[#allocation5 + $0x80] sm:$0xff]
    %v105 = vld [vmem:[#allocation5 + $0x88] sm:$0xff]
    %v106 = vld [vmem:[#allocation5 + $0x90] sm:$0xff]
    %v107 = vld [vmem:[#allocation5 + $0x98] sm:$0xff]
    %v108 = vld [vmem:[#allocation5 + $0xa0] sm:$0xff]
    %v109 = vld [vmem:[#allocation5 + $0xa8] sm:$0xff]
    %v110 = vld [vmem:[#allocation5 + $0xb0] sm:$0xff]
    %v111 = vld [vmem:[#allocation5 + $0xb8] sm:$0xff]
    %v112 = vld [vmem:[#allocation5 + $0xc0] sm:$0xff]
    %v113 = vld [vmem:[#allocation5 + $0xc8] sm:$0xff]
    %v114 = vld [vmem:[#allocation5 + $0xd0] sm:$0xff]
    %v115 = vld [vmem:[#allocation5 + $0xd8] sm:$0xff]
    %v116 = vld [vmem:[#allocation5 + $0xe0] sm:$0xff]
    %v117 = vld [vmem:[#allocation5 + $0xe8] sm:$0xff]
    %v118 = vld [vmem:[#allocation5 + $0xf0] sm:$0xff]
    %v119 = vld [vmem:[#allocation5 + $0xf8] sm:$0xff]
    %v120 = vld [vmem:[#allocation5 + $0x100] sm:$0xff]
    %v121 = vld [vmem:[#allocation5 + $0x108] sm:$0xff]
    %v122 = vld [vmem:[#allocation5 + $0x110] sm:$0xff]
    %v123 = vld [vmem:[#allocation5 + $0x118] sm:$0xff]
    %v124 = vld [vmem:[#allocation5 + $0x120] sm:$0xff]
    %v125 = vld [vmem:[#allocation5 + $0x128] sm:$0xff]
    %v126 = vld [vmem:[#allocation5 + $0x130] sm:$0xff]
    %v127 = vld [vmem:[#allocation5 + $0x138] sm:$0xff]
    %v128 = vld [vmem:[#allocation5 + $0x140] sm:$0xff]
    %v129 = vld [vmem:[#allocation5 + $0x148] sm:$0xff]
    %v130 = vld [vmem:[#allocation5 + $0x150] sm:$0xff]
    %v131 = vld [vmem:[#allocation5 + $0x158] sm:$0xff]
    %v132 = vld [vmem:[#allocation5 + $0x160] sm:$0xff]
    %v133 = vld [vmem:[#allocation5 + $0x168] sm:$0xff]
    %v134 = vld [vmem:[#allocation5 + $0x170] sm:$0xff]
    %v135 = vld [vmem:[#allocation5 + $0x178] sm:$0xff]
    %v136 = vld [vmem:[#allocation5 + $0x180] sm:$0xff]
    %v137 = vld [vmem:[#allocation5 + $0x188] sm:$0xff]
    %v138 = vld [vmem:[#allocation5 + $0x190] sm:$0xff]
    %v139 = vld [vmem:[#allocation5 + $0x198] sm:$0xff]
    %v140 = vld [vmem:[#allocation5 + $0x1a0] sm:$0xff]
    %v141 = vld [vmem:[#allocation5 + $0x1a8] sm:$0xff]
    %v142 = vld [vmem:[#allocation5 + $0x1b0] sm:$0xff]
    %v143 = vld [vmem:[#allocation5 + $0x1b8] sm:$0xff]
    %v144 = vld [vmem:[#allocation5 + $0x1c0] sm:$0xff]
    %v145 = vld [vmem:[#allocation5 + $0x1c8] sm:$0xff]
    %v146 = vld [vmem:[#allocation5 + $0x1d0] sm:$0xff]
    %v147 = vld [vmem:[#allocation5 + $0x1d8] sm:$0xff]
    %v148 = vld [vmem:[#allocation5 + $0x1e0] sm:$0xff]
    %v149 = vld [vmem:[#allocation5 + $0x1e8] sm:$0xff]
    %v150 = vld [vmem:[#allocation5 + $0x1f0] sm:$0xff]
    %v151 = vld [vmem:[#allocation5 + $0x1f8] sm:$0xff]
    %v152 = vld [vmem:[#allocation5 + $0x200] sm:$0xff]
    %v153 = vld [vmem:[#allocation5 + $0x208] sm:$0xff]
    %v154 = vld [vmem:[#allocation5 + $0x210] sm:$0xff]
    %v155 = vld [vmem:[#allocation5 + $0x218] sm:$0xff]
    %v156 = vld [vmem:[#allocation5 + $0x220] sm:$0xff]
    %v157 = vld [vmem:[#allocation5 + $0x228] sm:$0xff]
    %v158 = vld [vmem:[#allocation5 + $0x230] sm:$0xff]
    %v159 = vld [vmem:[#allocation5 + $0x238] sm:$0xff]
    %v160 = vld [vmem:[#allocation5 + $0x240] sm:$0xff]
    %v161 = vld [vmem:[#allocation5 + $0x248] sm:$0xff]
    %v162 = vld [vmem:[#allocation5 + $0x250] sm:$0xff]
    %v163 = vld [vmem:[#allocation5 + $0x258] sm:$0xff]
    %v164 = vld [vmem:[#allocation5 + $0x260] sm:$0xff]
    %v165 = vld [vmem:[#allocation5 + $0x268] sm:$0xff]
    %v166 = vld [vmem:[#allocation5 + $0x270] sm:$0xff]
    %v167 = vld [vmem:[#allocation5 + $0x278] sm:$0xff]
    %v168 = vld [vmem:[#allocation5 + $0x280] sm:$0xff]
    %v169 = vld [vmem:[#allocation5 + $0x288] sm:$0xff]
    %v170 = vld [vmem:[#allocation5 + $0x290] sm:$0xff]
    %v171 = vld [vmem:[#allocation5 + $0x298] sm:$0xff]
    %v172 = vld [vmem:[#allocation5 + $0x2a0] sm:$0xff]
    %v173 = vld [vmem:[#allocation5 + $0x2a8] sm:$0xff]
    %v174 = vld [vmem:[#allocation5 + $0x2b0] sm:$0xff]
    %v175 = vld [vmem:[#allocation5 + $0x2b8] sm:$0xff]
    %v176 = vld [vmem:[#allocation5 + $0x2c0] sm:$0xff]
    %v177 = vld [vmem:[#allocation5 + $0x2c8] sm:$0xff]
    %v178 = vld [vmem:[#allocation5 + $0x2d0] sm:$0xff]
    %v179 = vld [vmem:[#allocation5 + $0x2d8] sm:$0xff]
    %v180 = vld [vmem:[#allocation5 + $0x2e0] sm:$0xff]
    %v181 = vld [vmem:[#allocation5 + $0x2e8] sm:$0xff]
    %v182 = vld [vmem:[#allocation5 + $0x2f0] sm:$0xff]
    %v183 = vld [vmem:[#allocation5 + $0x2f8] sm:$0xff]
    %v184 = vld [vmem:[#allocation5 + $0x300] sm:$0xff]
    %v185 = vld [vmem:[#allocation5 + $0x308] sm:$0xff]
    %v186 = vld [vmem:[#allocation5 + $0x310] sm:$0xff]
    %v187 = vld [vmem:[#allocation5 + $0x318] sm:$0xff]
    %v188 = vld [vmem:[#allocation5 + $0x320] sm:$0xff]
    %v189 = vld [vmem:[#allocation5 + $0x328] sm:$0xff]
    %v190 = vld [vmem:[#allocation5 + $0x330] sm:$0xff]
    %v191 = vld [vmem:[#allocation5 + $0x338] sm:$0xff]
    %v192 = vld [vmem:[#allocation5 + $0x340] sm:$0xff]
    %v193 = vld [vmem:[#allocation5 + $0x348] sm:$0xff]
    %v194 = vld [vmem:[#allocation5 + $0x350] sm:$0xff]
    %v195 = vld [vmem:[#allocation5 + $0x358] sm:$0xff]
    %v196 = vld [vmem:[#allocation5 + $0x360] sm:$0xff]
    %v197 = vld [vmem:[#allocation5 + $0x368] sm:$0xff]
    %v198 = vld [vmem:[#allocation5 + $0x370] sm:$0xff]
    %v199 = vld [vmem:[#allocation5 + $0x378] sm:$0xff]
    %v200 = vld [vmem:[#allocation5 + $0x380] sm:$0xff]
    %v201 = vld [vmem:[#allocation5 + $0x388] sm:$0xff]
    %v202 = vld [vmem:[#allocation5 + $0x390] sm:$0xff]
    %v203 = vld [vmem:[#allocation5 + $0x398] sm:$0xff]
    %v204 = vld [vmem:[#allocation5 + $0x3a0] sm:$0xff]
    %v205 = vld [vmem:[#allocation5 + $0x3a8] sm:$0xff]
    %v206 = vld [vmem:[#allocation5 + $0x3b0] sm:$0xff]
    %v207 = vld [vmem:[#allocation5 + $0x3b8] sm:$0xff]
    %v208 = vld [vmem:[#allocation5 + $0x3c0] sm:$0xff]
    %v209 = vld [vmem:[#allocation5 + $0x3c8] sm:$0xff]
    %v210 = vld [vmem:[#allocation5 + $0x3d0] sm:$0xff]
    %v211 = vld [vmem:[#allocation5 + $0x3d8] sm:$0xff]
    %v212 = vld [vmem:[#allocation5 + $0x3e0] sm:$0xff]
    %v213 = vld [vmem:[#allocation5 + $0x3e8] sm:$0xff]
    %v214 = vld [vmem:[#allocation5 + $0x3f0] sm:$0xff]
    %v215 = vld [vmem:[#allocation5 + $0x3f8] sm:$0xff]
    %v216 = vld [vmem:[%s2] sm:$0xf]
    %v218 = vlaneseq
    %v219 = vshrl.u32 %v218, 7
    %v220 = vsub.s32 0, %v219
    %v221 = vrot.slane %v216, %v220
    %v222 = vlaneseq
    %v223 = vshrl.u32 %v222, 7
    %v224 = vsub.s32 1, %v223
    %v225 = vrot.slane %v216, %v224
    %v226 = vlaneseq
    %v227 = vshrl.u32 %v226, 7
    %v228 = vsub.s32 2, %v227
    %v229 = vrot.slane %v216, %v228
    %v230 = vlaneseq
    %v231 = vshrl.u32 %v230, 7
    %v232 = vsub.s32 3, %v231
    %v233 = vrot.slane %v216, %v232
    %v242 = vunpack.c.l.b16 %v84
    %v243 = vunpack.c.h.b16 %v84
    %v244 = vunpack.c.l.b16 %v85
    %v245 = vunpack.c.h.b16 %v85
    %v246 = vunpack.c.l.b16 %v86
    %v247 = vunpack.c.h.b16 %v86
    %v248 = vunpack.c.l.b16 %v87
    %v249 = vunpack.c.h.b16 %v87
    %v250 = vpack.c.b16 %v246, %v242
    %v251 = vpack.c.b16 %v247, %v243
    %v252 = vpack.c.b16 %v248, %v244
    %v253 = vpack.c.b16 %v249, %v245
    %v386 = vunpack.c.l.b16 %v88
    %v387 = vunpack.c.h.b16 %v88
    %v388 = vunpack.c.l.b16 %v89
    %v389 = vunpack.c.h.b16 %v89
    %v390 = vunpack.c.l.b16 %v90
    %v391 = vunpack.c.h.b16 %v90
    %v392 = vunpack.c.l.b16 %v91
    %v393 = vunpack.c.h.b16 %v91
    %v394 = vunpack.c.l.b16 %v92
    %v395 = vunpack.c.h.b16 %v92
    %v396 = vunpack.c.l.b16 %v93
    %v397 = vunpack.c.h.b16 %v93
    %v398 = vunpack.c.l.b16 %v94
    %v399 = vunpack.c.h.b16 %v94
    %v400 = vunpack.c.l.b16 %v95
    %v401 = vunpack.c.h.b16 %v95
    %v402 = vunpack.c.l.b16 %v96
    %v403 = vunpack.c.h.b16 %v96
    %v404 = vunpack.c.l.b16 %v97
    %v405 = vunpack.c.h.b16 %v97
    %v406 = vunpack.c.l.b16 %v98
    %v407 = vunpack.c.h.b16 %v98
    %v408 = vunpack.c.l.b16 %v99
    %v409 = vunpack.c.h.b16 %v99
    %v410 = vunpack.c.l.b16 %v100
    %v411 = vunpack.c.h.b16 %v100
    %v412 = vunpack.c.l.b16 %v101
    %v413 = vunpack.c.h.b16 %v101
    %v414 = vunpack.c.l.b16 %v102
    %v415 = vunpack.c.h.b16 %v102
    %v416 = vunpack.c.l.b16 %v103
    %v417 = vunpack.c.h.b16 %v103
    %v418 = vunpack.c.l.b16 %v104
    %v419 = vunpack.c.h.b16 %v104
    %v420 = vunpack.c.l.b16 %v105
    %v421 = vunpack.c.h.b16 %v105
    %v422 = vunpack.c.l.b16 %v106
    %v423 = vunpack.c.h.b16 %v106
    %v424 = vunpack.c.l.b16 %v107
    %v425 = vunpack.c.h.b16 %v107
    %v426 = vunpack.c.l.b16 %v108
    %v427 = vunpack.c.h.b16 %v108
    %v428 = vunpack.c.l.b16 %v109
    %v429 = vunpack.c.h.b16 %v109
    %v430 = vunpack.c.l.b16 %v110
    %v431 = vunpack.c.h.b16 %v110
    %v432 = vunpack.c.l.b16 %v111
    %v433 = vunpack.c.h.b16 %v111
    %v434 = vunpack.c.l.b16 %v112
    %v435 = vunpack.c.h.b16 %v112
    %v436 = vunpack.c.l.b16 %v113
    %v437 = vunpack.c.h.b16 %v113
    %v438 = vunpack.c.l.b16 %v114
    %v439 = vunpack.c.h.b16 %v114
    %v440 = vunpack.c.l.b16 %v115
    %v441 = vunpack.c.h.b16 %v115
    %v442 = vunpack.c.l.b16 %v116
    %v443 = vunpack.c.h.b16 %v116
    %v444 = vunpack.c.l.b16 %v117
    %v445 = vunpack.c.h.b16 %v117
    %v446 = vunpack.c.l.b16 %v118
    %v447 = vunpack.c.h.b16 %v118
    %v448 = vunpack.c.l.b16 %v119
    %v449 = vunpack.c.h.b16 %v119
    %v450 = vunpack.c.l.b16 %v120
    %v451 = vunpack.c.h.b16 %v120
    %v452 = vunpack.c.l.b16 %v121
    %v453 = vunpack.c.h.b16 %v121
    %v454 = vunpack.c.l.b16 %v122
    %v455 = vunpack.c.h.b16 %v122
    %v456 = vunpack.c.l.b16 %v123
    %v457 = vunpack.c.h.b16 %v123
    %v458 = vunpack.c.l.b16 %v124
    %v459 = vunpack.c.h.b16 %v124
    %v460 = vunpack.c.l.b16 %v125
    %v461 = vunpack.c.h.b16 %v125
    %v462 = vunpack.c.l.b16 %v126
    %v463 = vunpack.c.h.b16 %v126
    %v464 = vunpack.c.l.b16 %v127
    %v465 = vunpack.c.h.b16 %v127
    %v466 = vunpack.c.l.b16 %v128
    %v467 = vunpack.c.h.b16 %v128
    %v468 = vunpack.c.l.b16 %v129
    %v469 = vunpack.c.h.b16 %v129
    %v470 = vunpack.c.l.b16 %v130
    %v471 = vunpack.c.h.b16 %v130
    %v472 = vunpack.c.l.b16 %v131
    %v473 = vunpack.c.h.b16 %v131
    %v474 = vunpack.c.l.b16 %v132
    %v475 = vunpack.c.h.b16 %v132
    %v476 = vunpack.c.l.b16 %v133
    %v477 = vunpack.c.h.b16 %v133
    %v478 = vunpack.c.l.b16 %v134
    %v479 = vunpack.c.h.b16 %v134
    %v480 = vunpack.c.l.b16 %v135
    %v481 = vunpack.c.h.b16 %v135
    %v482 = vunpack.c.l.b16 %v136
    %v483 = vunpack.c.h.b16 %v136
    %v484 = vunpack.c.l.b16 %v137
    %v485 = vunpack.c.h.b16 %v137
    %v486 = vunpack.c.l.b16 %v138
    %v487 = vunpack.c.h.b16 %v138
    %v488 = vunpack.c.l.b16 %v139
    %v489 = vunpack.c.h.b16 %v139
    %v490 = vunpack.c.l.b16 %v140
    %v491 = vunpack.c.h.b16 %v140
    %v492 = vunpack.c.l.b16 %v141
    %v493 = vunpack.c.h.b16 %v141
    %v494 = vunpack.c.l.b16 %v142
    %v495 = vunpack.c.h.b16 %v142
    %v496 = vunpack.c.l.b16 %v143
    %v497 = vunpack.c.h.b16 %v143
    %v498 = vunpack.c.l.b16 %v144
    %v499 = vunpack.c.h.b16 %v144
    %v500 = vunpack.c.l.b16 %v145
    %v501 = vunpack.c.h.b16 %v145
    %v502 = vunpack.c.l.b16 %v146
    %v503 = vunpack.c.h.b16 %v146
    %v504 = vunpack.c.l.b16 %v147
    %v505 = vunpack.c.h.b16 %v147
    %v506 = vunpack.c.l.b16 %v148
    %v507 = vunpack.c.h.b16 %v148
    %v508 = vunpack.c.l.b16 %v149
    %v509 = vunpack.c.h.b16 %v149
    %v510 = vunpack.c.l.b16 %v150
    %v511 = vunpack.c.h.b16 %v150
    %v512 = vunpack.c.l.b16 %v151
    %v513 = vunpack.c.h.b16 %v151
    %v514 = vunpack.c.l.b16 %v152
    %v515 = vunpack.c.h.b16 %v152
    %v516 = vunpack.c.l.b16 %v153
    %v517 = vunpack.c.h.b16 %v153
    %v518 = vunpack.c.l.b16 %v154
    %v519 = vunpack.c.h.b16 %v154
    %v520 = vunpack.c.l.b16 %v155
    %v521 = vunpack.c.h.b16 %v155
    %v522 = vunpack.c.l.b16 %v156
    %v523 = vunpack.c.h.b16 %v156
    %v524 = vunpack.c.l.b16 %v157
    %v525 = vunpack.c.h.b16 %v157
    %v526 = vunpack.c.l.b16 %v158
    %v527 = vunpack.c.h.b16 %v158
    %v528 = vunpack.c.l.b16 %v159
    %v529 = vunpack.c.h.b16 %v159
    %v530 = vunpack.c.l.b16 %v160
    %v531 = vunpack.c.h.b16 %v160
    %v532 = vunpack.c.l.b16 %v161
    %v533 = vunpack.c.h.b16 %v161
    %v534 = vunpack.c.l.b16 %v162
    %v535 = vunpack.c.h.b16 %v162
    %v536 = vunpack.c.l.b16 %v163
    %v537 = vunpack.c.h.b16 %v163
    %v538 = vunpack.c.l.b16 %v164
    %v539 = vunpack.c.h.b16 %v164
    %v540 = vunpack.c.l.b16 %v165
    %v541 = vunpack.c.h.b16 %v165
    %v542 = vunpack.c.l.b16 %v166
    %v543 = vunpack.c.h.b16 %v166
    %v544 = vunpack.c.l.b16 %v167
    %v545 = vunpack.c.h.b16 %v167
    %v546 = vunpack.c.l.b16 %v168
    %v547 = vunpack.c.h.b16 %v168
    %v548 = vunpack.c.l.b16 %v169
    %v549 = vunpack.c.h.b16 %v169
    %v550 = vunpack.c.l.b16 %v170
    %v551 = vunpack.c.h.b16 %v170
    %v552 = vunpack.c.l.b16 %v171
    %v553 = vunpack.c.h.b16 %v171
    %v554 = vunpack.c.l.b16 %v172
    %v555 = vunpack.c.h.b16 %v172
    %v556 = vunpack.c.l.b16 %v173
    %v557 = vunpack.c.h.b16 %v173
    %v558 = vunpack.c.l.b16 %v174
    %v559 = vunpack.c.h.b16 %v174
    %v560 = vunpack.c.l.b16 %v175
    %v561 = vunpack.c.h.b16 %v175
    %v562 = vunpack.c.l.b16 %v176
    %v563 = vunpack.c.h.b16 %v176
    %v564 = vunpack.c.l.b16 %v177
    %v565 = vunpack.c.h.b16 %v177
    %v566 = vunpack.c.l.b16 %v178
    %v567 = vunpack.c.h.b16 %v178
    %v568 = vunpack.c.l.b16 %v179
    %v569 = vunpack.c.h.b16 %v179
    %v570 = vunpack.c.l.b16 %v180
    %v571 = vunpack.c.h.b16 %v180
    %v572 = vunpack.c.l.b16 %v181
    %v573 = vunpack.c.h.b16 %v181
    %v574 = vunpack.c.l.b16 %v182
    %v575 = vunpack.c.h.b16 %v182
    %v576 = vunpack.c.l.b16 %v183
    %v577 = vunpack.c.h.b16 %v183
    %v578 = vunpack.c.l.b16 %v184
    %v579 = vunpack.c.h.b16 %v184
    %v580 = vunpack.c.l.b16 %v185
    %v581 = vunpack.c.h.b16 %v185
    %v582 = vunpack.c.l.b16 %v186
    %v583 = vunpack.c.h.b16 %v186
    %v584 = vunpack.c.l.b16 %v187
    %v585 = vunpack.c.h.b16 %v187
    %v586 = vunpack.c.l.b16 %v188
    %v587 = vunpack.c.h.b16 %v188
    %v588 = vunpack.c.l.b16 %v189
    %v589 = vunpack.c.h.b16 %v189
    %v590 = vunpack.c.l.b16 %v190
    %v591 = vunpack.c.h.b16 %v190
    %v592 = vunpack.c.l.b16 %v191
    %v593 = vunpack.c.h.b16 %v191
    %v594 = vunpack.c.l.b16 %v192
    %v595 = vunpack.c.h.b16 %v192
    %v596 = vunpack.c.l.b16 %v193
    %v597 = vunpack.c.h.b16 %v193
    %v598 = vunpack.c.l.b16 %v194
    %v599 = vunpack.c.h.b16 %v194
    %v600 = vunpack.c.l.b16 %v195
    %v601 = vunpack.c.h.b16 %v195
    %v602 = vunpack.c.l.b16 %v196
    %v603 = vunpack.c.h.b16 %v196
    %v604 = vunpack.c.l.b16 %v197
    %v605 = vunpack.c.h.b16 %v197
    %v606 = vunpack.c.l.b16 %v198
    %v607 = vunpack.c.h.b16 %v198
    %v608 = vunpack.c.l.b16 %v199
    %v609 = vunpack.c.h.b16 %v199
    %v610 = vunpack.c.l.b16 %v200
    %v611 = vunpack.c.h.b16 %v200
    %v612 = vunpack.c.l.b16 %v201
    %v613 = vunpack.c.h.b16 %v201
    %v614 = vunpack.c.l.b16 %v202
    %v615 = vunpack.c.h.b16 %v202
    %v616 = vunpack.c.l.b16 %v203
    %v617 = vunpack.c.h.b16 %v203
    %v618 = vunpack.c.l.b16 %v204
    %v619 = vunpack.c.h.b16 %v204
    %v620 = vunpack.c.l.b16 %v205
    %v621 = vunpack.c.h.b16 %v205
    %v622 = vunpack.c.l.b16 %v206
    %v623 = vunpack.c.h.b16 %v206
    %v624 = vunpack.c.l.b16 %v207
    %v625 = vunpack.c.h.b16 %v207
    %v626 = vunpack.c.l.b16 %v208
    %v627 = vunpack.c.h.b16 %v208
    %v628 = vunpack.c.l.b16 %v209
    %v629 = vunpack.c.h.b16 %v209
    %v630 = vunpack.c.l.b16 %v210
    %v631 = vunpack.c.h.b16 %v210
    %v632 = vunpack.c.l.b16 %v211
    %v633 = vunpack.c.h.b16 %v211
    %v634 = vunpack.c.l.b16 %v212
    %v635 = vunpack.c.h.b16 %v212
    %v636 = vunpack.c.l.b16 %v213
    %v637 = vunpack.c.h.b16 %v213
    %v638 = vunpack.c.l.b16 %v214
    %v639 = vunpack.c.h.b16 %v214
    %v640 = vunpack.c.l.b16 %v215
    %v641 = vunpack.c.h.b16 %v215
    %v642 = vpack.c.b16 %v390, %v386
    %v643 = vpack.c.b16 %v391, %v387
    %v644 = vpack.c.b16 %v392, %v388
    %v645 = vpack.c.b16 %v393, %v389
    %v646 = vpack.c.b16 %v398, %v394
    %v647 = vpack.c.b16 %v399, %v395
    %v648 = vpack.c.b16 %v400, %v396
    %v649 = vpack.c.b16 %v401, %v397
    %v650 = vpack.c.b16 %v406, %v402
    %v651 = vpack.c.b16 %v407, %v403
    %v652 = vpack.c.b16 %v408, %v404
    %v653 = vpack.c.b16 %v409, %v405
    %v654 = vpack.c.b16 %v414, %v410
    %v655 = vpack.c.b16 %v415, %v411
    %v656 = vpack.c.b16 %v416, %v412
    %v657 = vpack.c.b16 %v417, %v413
    %v658 = vpack.c.b16 %v422, %v418
    %v659 = vpack.c.b16 %v423, %v419
    %v660 = vpack.c.b16 %v424, %v420
    %v661 = vpack.c.b16 %v425, %v421
    %v662 = vpack.c.b16 %v430, %v426
    %v663 = vpack.c.b16 %v431, %v427
    %v664 = vpack.c.b16 %v432, %v428
    %v665 = vpack.c.b16 %v433, %v429
    %v666 = vpack.c.b16 %v438, %v434
    %v667 = vpack.c.b16 %v439, %v435
    %v668 = vpack.c.b16 %v440, %v436
    %v669 = vpack.c.b16 %v441, %v437
    %v670 = vpack.c.b16 %v446, %v442
    %v671 = vpack.c.b16 %v447, %v443
    %v672 = vpack.c.b16 %v448, %v444
    %v673 = vpack.c.b16 %v449, %v445
    %v674 = vpack.c.b16 %v454, %v450
    %v675 = vpack.c.b16 %v455, %v451
    %v676 = vpack.c.b16 %v456, %v452
    %v677 = vpack.c.b16 %v457, %v453
    %v678 = vpack.c.b16 %v462, %v458
    %v679 = vpack.c.b16 %v463, %v459
    %v680 = vpack.c.b16 %v464, %v460
    %v681 = vpack.c.b16 %v465, %v461
    %v682 = vpack.c.b16 %v470, %v466
    %v683 = vpack.c.b16 %v471, %v467
    %v684 = vpack.c.b16 %v472, %v468
    %v685 = vpack.c.b16 %v473, %v469
    %v686 = vpack.c.b16 %v478, %v474
    %v687 = vpack.c.b16 %v479, %v475
    %v688 = vpack.c.b16 %v480, %v476
    %v689 = vpack.c.b16 %v481, %v477
    %v690 = vpack.c.b16 %v486, %v482
    %v691 = vpack.c.b16 %v487, %v483
    %v692 = vpack.c.b16 %v488, %v484
    %v693 = vpack.c.b16 %v489, %v485
    %v694 = vpack.c.b16 %v494, %v490
    %v695 = vpack.c.b16 %v495, %v491
    %v696 = vpack.c.b16 %v496, %v492
    %v697 = vpack.c.b16 %v497, %v493
    %v698 = vpack.c.b16 %v502, %v498
    %v699 = vpack.c.b16 %v503, %v499
    %v700 = vpack.c.b16 %v504, %v500
    %v701 = vpack.c.b16 %v505, %v501
    %v702 = vpack.c.b16 %v510, %v506
    %v703 = vpack.c.b16 %v511, %v507
    %v704 = vpack.c.b16 %v512, %v508
    %v705 = vpack.c.b16 %v513, %v509
    %v706 = vpack.c.b16 %v518, %v514
    %v707 = vpack.c.b16 %v519, %v515
    %v708 = vpack.c.b16 %v520, %v516
    %v709 = vpack.c.b16 %v521, %v517
    %v710 = vpack.c.b16 %v526, %v522
    %v711 = vpack.c.b16 %v527, %v523
    %v712 = vpack.c.b16 %v528, %v524
    %v713 = vpack.c.b16 %v529, %v525
    %v714 = vpack.c.b16 %v534, %v530
    %v715 = vpack.c.b16 %v535, %v531
    %v716 = vpack.c.b16 %v536, %v532
    %v717 = vpack.c.b16 %v537, %v533
    %v718 = vpack.c.b16 %v542, %v538
    %v719 = vpack.c.b16 %v543, %v539
    %v720 = vpack.c.b16 %v544, %v540
    %v721 = vpack.c.b16 %v545, %v541
    %v722 = vpack.c.b16 %v550, %v546
    %v723 = vpack.c.b16 %v551, %v547
    %v724 = vpack.c.b16 %v552, %v548
    %v725 = vpack.c.b16 %v553, %v549
    %v726 = vpack.c.b16 %v558, %v554
    %v727 = vpack.c.b16 %v559, %v555
    %v728 = vpack.c.b16 %v560, %v556
    %v729 = vpack.c.b16 %v561, %v557
    %v730 = vpack.c.b16 %v566, %v562
    %v731 = vpack.c.b16 %v567, %v563
    %v732 = vpack.c.b16 %v568, %v564
    %v733 = vpack.c.b16 %v569, %v565
    %v734 = vpack.c.b16 %v574, %v570
    %v735 = vpack.c.b16 %v575, %v571
    %v736 = vpack.c.b16 %v576, %v572
    %v737 = vpack.c.b16 %v577, %v573
    %v738 = vpack.c.b16 %v582, %v578
    %v739 = vpack.c.b16 %v583, %v579
    %v740 = vpack.c.b16 %v584, %v580
    %v741 = vpack.c.b16 %v585, %v581
    %v742 = vpack.c.b16 %v590, %v586
    %v743 = vpack.c.b16 %v591, %v587
    %v744 = vpack.c.b16 %v592, %v588
    %v745 = vpack.c.b16 %v593, %v589
    %v746 = vpack.c.b16 %v598, %v594
    %v747 = vpack.c.b16 %v599, %v595
    %v748 = vpack.c.b16 %v600, %v596
    %v749 = vpack.c.b16 %v601, %v597
    %v750 = vpack.c.b16 %v606, %v602
    %v751 = vpack.c.b16 %v607, %v603
    %v752 = vpack.c.b16 %v608, %v604
    %v753 = vpack.c.b16 %v609, %v605
    %v754 = vpack.c.b16 %v614, %v610
    %v755 = vpack.c.b16 %v615, %v611
    %v756 = vpack.c.b16 %v616, %v612
    %v757 = vpack.c.b16 %v617, %v613
    %v758 = vpack.c.b16 %v622, %v618
    %v759 = vpack.c.b16 %v623, %v619
    %v760 = vpack.c.b16 %v624, %v620
    %v761 = vpack.c.b16 %v625, %v621
    %v762 = vpack.c.b16 %v630, %v626
    %v763 = vpack.c.b16 %v631, %v627
    %v764 = vpack.c.b16 %v632, %v628
    %v765 = vpack.c.b16 %v633, %v629
    %v766 = vpack.c.b16 %v638, %v634
    %v767 = vpack.c.b16 %v639, %v635
    %v768 = vpack.c.b16 %v640, %v636
    %v769 = vpack.c.b16 %v641, %v637
    %898 = vmatprep.subr.bf16.mxu0 %v643
    %899 = vmatpush1.bf16.msra.mxu0 %v642
    %900 = vmatprep.subr.bf16.mxu0 %v647
    %901 = vmatpush1.bf16.msra.mxu0 %v646
    %902 = vmatprep.subr.bf16.mxu0 %v651
    %903 = vmatpush1.bf16.msra.mxu0 %v650
    %904 = vmatprep.subr.bf16.mxu0 %v655
    %905 = vmatpush1.bf16.msra.mxu0 %v654
    %906 = vmatprep.subr.bf16.mxu0 %v659
    %907 = vmatpush1.bf16.msra.mxu0 %v658
    %908 = vmatprep.subr.bf16.mxu0 %v663
    %909 = vmatpush1.bf16.msra.mxu0 %v662
    %910 = vmatprep.subr.bf16.mxu0 %v667
    %911 = vmatpush1.bf16.msra.mxu0 %v666
    %912 = vmatprep.subr.bf16.mxu0 %v671
    %913 = vmatpush1.bf16.msra.mxu0 %v670
    %914 = vmatprep.subr.bf16.mxu0 %v675
    %915 = vmatpush1.bf16.msra.mxu0 %v674
    %916 = vmatprep.subr.bf16.mxu0 %v679
    %917 = vmatpush1.bf16.msra.mxu0 %v678
    %918 = vmatprep.subr.bf16.mxu0 %v683
    %919 = vmatpush1.bf16.msra.mxu0 %v682
    %920 = vmatprep.subr.bf16.mxu0 %v687
    %921 = vmatpush1.bf16.msra.mxu0 %v686
    %922 = vmatprep.subr.bf16.mxu0 %v691
    %923 = vmatpush1.bf16.msra.mxu0 %v690
    %924 = vmatprep.subr.bf16.mxu0 %v695
    %925 = vmatpush1.bf16.msra.mxu0 %v694
    %926 = vmatprep.subr.bf16.mxu0 %v699
    %927 = vmatpush1.bf16.msra.mxu0 %v698
    %928 = vmatprep.subr.bf16.mxu0 %v703
    %929 = vmatpush1.bf16.msra.mxu0 %v702
    %930 = vmatprep.mubr.bf16.mxu0 %v251
    %931 = vmatmul.mubr.bf16.gmra.mrb[0].mxu0 %v250
    %v932 = vpop.f32.mrb[0].mxu0
    %v933 = vadd.f32 %v221, %v932
    %v934 = vpop.f32.mrb[0].mxu0
    %v935 = vadd.f32 %v225, %v934
    %v936 = vpop.f32.mrb[0].mxu0
    %v937 = vadd.f32 %v221, %v936
    %v938 = vpop.f32.mrb[0].mxu0
    %v939 = vadd.f32 %v225, %v938
    %940 = vdwg.mxu0
    %941 = vmatprep.subr.bf16.mxu0 %v707
    %942 = vmatpush1.bf16.msra.mxu0 %v706
    %943 = vmatprep.subr.bf16.mxu0 %v711
    %944 = vmatpush1.bf16.msra.mxu0 %v710
    %945 = vmatprep.subr.bf16.mxu0 %v715
    %946 = vmatpush1.bf16.msra.mxu0 %v714
    %947 = vmatprep.subr.bf16.mxu0 %v719
    %948 = vmatpush1.bf16.msra.mxu0 %v718
    %949 = vmatprep.subr.bf16.mxu0 %v723
    %950 = vmatpush1.bf16.msra.mxu0 %v722
    %951 = vmatprep.subr.bf16.mxu0 %v727
    %952 = vmatpush1.bf16.msra.mxu0 %v726
    %953 = vmatprep.subr.bf16.mxu0 %v731
    %954 = vmatpush1.bf16.msra.mxu0 %v730
    %955 = vmatprep.subr.bf16.mxu0 %v735
    %956 = vmatpush1.bf16.msra.mxu0 %v734
    %957 = vmatprep.subr.bf16.mxu0 %v739
    %958 = vmatpush1.bf16.msra.mxu0 %v738
    %959 = vmatprep.subr.bf16.mxu0 %v743
    %960 = vmatpush1.bf16.msra.mxu0 %v742
    %961 = vmatprep.subr.bf16.mxu0 %v747
    %962 = vmatpush1.bf16.msra.mxu0 %v746
    %963 = vmatprep.subr.bf16.mxu0 %v751
    %964 = vmatpush1.bf16.msra.mxu0 %v750
    %965 = vmatprep.subr.bf16.mxu0 %v755
    %966 = vmatpush1.bf16.msra.mxu0 %v754
    %967 = vmatprep.subr.bf16.mxu0 %v759
    %968 = vmatpush1.bf16.msra.mxu0 %v758
    %969 = vmatprep.subr.bf16.mxu0 %v763
    %970 = vmatpush1.bf16.msra.mxu0 %v762
    %971 = vmatprep.subr.bf16.mxu0 %v767
    %972 = vmatpush1.bf16.msra.mxu0 %v766
    %973 = vmatprep.mubr.bf16.mxu0 %v253
    %974 = vmatmul.mubr.bf16.gmra.mrb[0].mxu0 %v252
    %v975 = vpop.f32.mrb[0].mxu0
    %v976 = vadd.f32 %v933, %v975
    %v977 = vpop.f32.mrb[0].mxu0
    %v978 = vadd.f32 %v935, %v977
    %v979 = vpop.f32.mrb[0].mxu0
    %v980 = vadd.f32 %v937, %v979
    %v981 = vpop.f32.mrb[0].mxu0
    %v982 = vadd.f32 %v939, %v981
    %983 = vdwg.mxu0
    %984 = vmatprep.subr.bf16.mxu0 %v645
    %985 = vmatpush1.bf16.msra.mxu0 %v644
    %986 = vmatprep.subr.bf16.mxu0 %v649
    %987 = vmatpush1.bf16.msra.mxu0 %v648
    %988 = vmatprep.subr.bf16.mxu0 %v653
    %989 = vmatpush1.bf16.msra.mxu0 %v652
    %990 = vmatprep.subr.bf16.mxu0 %v657
    %991 = vmatpush1.bf16.msra.mxu0 %v656
    %992 = vmatprep.subr.bf16.mxu0 %v661
    %993 = vmatpush1.bf16.msra.mxu0 %v660
    %994 = vmatprep.subr.bf16.mxu0 %v665
    %995 = vmatpush1.bf16.msra.mxu0 %v664
    %996 = vmatprep.subr.bf16.mxu0 %v669
    %997 = vmatpush1.bf16.msra.mxu0 %v668
    %998 = vmatprep.subr.bf16.mxu0 %v673
    %999 = vmatpush1.bf16.msra.mxu0 %v672
    %1000 = vmatprep.subr.bf16.mxu0 %v677
    %1001 = vmatpush1.bf16.msra.mxu0 %v676
    %1002 = vmatprep.subr.bf16.mxu0 %v681
    %1003 = vmatpush1.bf16.msra.mxu0 %v680
    %1004 = vmatprep.subr.bf16.mxu0 %v685
    %1005 = vmatpush1.bf16.msra.mxu0 %v684
    %1006 = vmatprep.subr.bf16.mxu0 %v689
    %1007 = vmatpush1.bf16.msra.mxu0 %v688
    %1008 = vmatprep.subr.bf16.mxu0 %v693
    %1009 = vmatpush1.bf16.msra.mxu0 %v692
    %1010 = vmatprep.subr.bf16.mxu0 %v697
    %1011 = vmatpush1.bf16.msra.mxu0 %v696
    %1012 = vmatprep.subr.bf16.mxu0 %v701
    %1013 = vmatpush1.bf16.msra.mxu0 %v700
    %1014 = vmatprep.subr.bf16.mxu0 %v705
    %1015 = vmatpush1.bf16.msra.mxu0 %v704
    %1016 = vmatprep.mubr.bf16.mxu0 %v251
    %1017 = vmatmul.mubr.bf16.gmra.mrb[0].mxu0 %v250
    %v1018 = vpop.f32.mrb[0].mxu0
    %v1019 = vadd.f32 %v229, %v1018
    %v1020 = vpop.f32.mrb[0].mxu0
    %v1021 = vadd.f32 %v233, %v1020
    %v1022 = vpop.f32.mrb[0].mxu0
    %v1023 = vadd.f32 %v229, %v1022
    %v1024 = vpop.f32.mrb[0].mxu0
    %v1025 = vadd.f32 %v233, %v1024
    %1026 = vdwg.mxu0
    %1027 = vmatprep.subr.bf16.mxu0 %v709
    %1028 = vmatpush1.bf16.msra.mxu0 %v708
    %1029 = vmatprep.subr.bf16.mxu0 %v713
    %1030 = vmatpush1.bf16.msra.mxu0 %v712
    %1031 = vmatprep.subr.bf16.mxu0 %v717
    %1032 = vmatpush1.bf16.msra.mxu0 %v716
    %1033 = vmatprep.subr.bf16.mxu0 %v721
    %1034 = vmatpush1.bf16.msra.mxu0 %v720
    %1035 = vmatprep.subr.bf16.mxu0 %v725
    %1036 = vmatpush1.bf16.msra.mxu0 %v724
    %1037 = vmatprep.subr.bf16.mxu0 %v729
    %1038 = vmatpush1.bf16.msra.mxu0 %v728
    %1039 = vmatprep.subr.bf16.mxu0 %v733
    %1040 = vmatpush1.bf16.msra.mxu0 %v732
    %1041 = vmatprep.subr.bf16.mxu0 %v737
    %1042 = vmatpush1.bf16.msra.mxu0 %v736
    %1043 = vmatprep.subr.bf16.mxu0 %v741
    %1044 = vmatpush1.bf16.msra.mxu0 %v740
    %1045 = vmatprep.subr.bf16.mxu0 %v745
    %1046 = vmatpush1.bf16.msra.mxu0 %v744
    %1047 = vmatprep.subr.bf16.mxu0 %v749
    %1048 = vmatpush1.bf16.msra.mxu0 %v748
    %1049 = vmatprep.subr.bf16.mxu0 %v753
    %1050 = vmatpush1.bf16.msra.mxu0 %v752
    %1051 = vmatprep.subr.bf16.mxu0 %v757
    %1052 = vmatpush1.bf16.msra.mxu0 %v756
    %1053 = vmatprep.subr.bf16.mxu0 %v761
    %1054 = vmatpush1.bf16.msra.mxu0 %v760
    %1055 = vmatprep.subr.bf16.mxu0 %v765
    %1056 = vmatpush1.bf16.msra.mxu0 %v764
    %1057 = vmatprep.subr.bf16.mxu0 %v769
    %1058 = vmatpush1.bf16.msra.mxu0 %v768
    %1059 = vmatprep.mubr.bf16.mxu0 %v253
    %1060 = vmatmul.mubr.bf16.gmra.mrb[0].mxu0 %v252
    %v1061 = vpop.f32.mrb[0].mxu0
    %v1062 = vadd.f32 %v1019, %v1061
    %v1063 = vpop.f32.mrb[0].mxu0
    %v1064 = vadd.f32 %v1021, %v1063
    %v1065 = vpop.f32.mrb[0].mxu0
    %v1066 = vadd.f32 %v1023, %v1065
    %v1067 = vpop.f32.mrb[0].mxu0
    %v1068 = vadd.f32 %v1025, %v1067
    %1069 = vdwg.mxu0
    %v1070 = vmax.f32 %v976, 0.0
    %v1071 = vmax.f32 %v978, 0.0
    %v1072 = vmax.f32 %v1062, 0.0
    %v1073 = vmax.f32 %v1064, 0.0
    %v1074 = vmax.f32 %v980, 0.0
    %v1075 = vmax.f32 %v982, 0.0
    %v1076 = vmax.f32 %v1066, 0.0
    %v1077 = vmax.f32 %v1068, 0.0
    %v1078 = vpack.c.bf16 %v1074, %v1070
    %v1079 = vpack.c.bf16 %v1075, %v1071
    %v1080 = vpack.c.bf16 %v1076, %v1072
    %v1081 = vpack.c.bf16 %v1077, %v1073
    %v1082 = vld [vmem:[#allocation7] sm:$0xff]
    %v1083 = vld [vmem:[#allocation7 + $0x8] sm:$0xff]
    %v1084 = vld [vmem:[#allocation7 + $0x10] sm:$0xff]
    %v1085 = vld [vmem:[#allocation7 + $0x18] sm:$0xff]
    %v1086 = vld [vmem:[#allocation7 + $0x20] sm:$0xff]
    %v1087 = vld [vmem:[#allocation7 + $0x28] sm:$0xff]
    %v1088 = vld [vmem:[#allocation7 + $0x30] sm:$0xff]
    %v1089 = vld [vmem:[#allocation7 + $0x38] sm:$0xff]
    %v1090 = vld [vmem:[#allocation7 + $0x40] sm:$0xff]
    %v1091 = vld [vmem:[#allocation7 + $0x48] sm:$0xff]
    %v1092 = vld [vmem:[#allocation7 + $0x50] sm:$0xff]
    %v1093 = vld [vmem:[#allocation7 + $0x58] sm:$0xff]
    %v1094 = vld [vmem:[#allocation7 + $0x60] sm:$0xff]
    %v1095 = vld [vmem:[#allocation7 + $0x68] sm:$0xff]
    %v1096 = vld [vmem:[#allocation7 + $0x70] sm:$0xff]
    %v1097 = vld [vmem:[#allocation7 + $0x78] sm:$0xff]
    %v1098 = vld [vmem:[#allocation7 + $0x80] sm:$0xff]
    %v1099 = vld [vmem:[#allocation7 + $0x88] sm:$0xff]
    %v1100 = vld [vmem:[#allocation7 + $0x90] sm:$0xff]
    %v1101 = vld [vmem:[#allocation7 + $0x98] sm:$0xff]
    %v1102 = vld [vmem:[#allocation7 + $0xa0] sm:$0xff]
    %v1103 = vld [vmem:[#allocation7 + $0xa8] sm:$0xff]
    %v1104 = vld [vmem:[#allocation7 + $0xb0] sm:$0xff]
    %v1105 = vld [vmem:[#allocation7 + $0xb8] sm:$0xff]
    %v1106 = vld [vmem:[#allocation7 + $0xc0] sm:$0xff]
    %v1107 = vld [vmem:[#allocation7 + $0xc8] sm:$0xff]
    %v1108 = vld [vmem:[#allocation7 + $0xd0] sm:$0xff]
    %v1109 = vld [vmem:[#allocation7 + $0xd8] sm:$0xff]
    %v1110 = vld [vmem:[#allocation7 + $0xe0] sm:$0xff]
    %v1111 = vld [vmem:[#allocation7 + $0xe8] sm:$0xff]
    %v1112 = vld [vmem:[#allocation7 + $0xf0] sm:$0xff]
    %v1113 = vld [vmem:[#allocation7 + $0xf8] sm:$0xff]
    %v1114 = vld [vmem:[#allocation7 + $0x100] sm:$0xff]
    %v1115 = vld [vmem:[#allocation7 + $0x108] sm:$0xff]
    %v1116 = vld [vmem:[#allocation7 + $0x110] sm:$0xff]
    %v1117 = vld [vmem:[#allocation7 + $0x118] sm:$0xff]
    %v1118 = vld [vmem:[#allocation7 + $0x120] sm:$0xff]
    %v1119 = vld [vmem:[#allocation7 + $0x128] sm:$0xff]
    %v1120 = vld [vmem:[#allocation7 + $0x130] sm:$0xff]
    %v1121 = vld [vmem:[#allocation7 + $0x138] sm:$0xff]
    %v1122 = vld [vmem:[#allocation7 + $0x140] sm:$0xff]
    %v1123 = vld [vmem:[#allocation7 + $0x148] sm:$0xff]
    %v1124 = vld [vmem:[#allocation7 + $0x150] sm:$0xff]
    %v1125 = vld [vmem:[#allocation7 + $0x158] sm:$0xff]
    %v1126 = vld [vmem:[#allocation7 + $0x160] sm:$0xff]
    %v1127 = vld [vmem:[#allocation7 + $0x168] sm:$0xff]
    %v1128 = vld [vmem:[#allocation7 + $0x170] sm:$0xff]
    %v1129 = vld [vmem:[#allocation7 + $0x178] sm:$0xff]
    %v1130 = vld [vmem:[#allocation7 + $0x180] sm:$0xff]
    %v1131 = vld [vmem:[#allocation7 + $0x188] sm:$0xff]
    %v1132 = vld [vmem:[#allocation7 + $0x190] sm:$0xff]
    %v1133 = vld [vmem:[#allocation7 + $0x198] sm:$0xff]
    %v1134 = vld [vmem:[#allocation7 + $0x1a0] sm:$0xff]
    %v1135 = vld [vmem:[#allocation7 + $0x1a8] sm:$0xff]
    %v1136 = vld [vmem:[#allocation7 + $0x1b0] sm:$0xff]
    %v1137 = vld [vmem:[#allocation7 + $0x1b8] sm:$0xff]
    %v1138 = vld [vmem:[#allocation7 + $0x1c0] sm:$0xff]
    %v1139 = vld [vmem:[#allocation7 + $0x1c8] sm:$0xff]
    %v1140 = vld [vmem:[#allocation7 + $0x1d0] sm:$0xff]
    %v1141 = vld [vmem:[#allocation7 + $0x1d8] sm:$0xff]
    %v1142 = vld [vmem:[#allocation7 + $0x1e0] sm:$0xff]
    %v1143 = vld [vmem:[#allocation7 + $0x1e8] sm:$0xff]
    %v1144 = vld [vmem:[#allocation7 + $0x1f0] sm:$0xff]
    %v1145 = vld [vmem:[#allocation7 + $0x1f8] sm:$0xff]
    %v1146 = vld [vmem:[#allocation7 + $0x200] sm:$0xff]
    %v1147 = vld [vmem:[#allocation7 + $0x208] sm:$0xff]
    %v1148 = vld [vmem:[#allocation7 + $0x210] sm:$0xff]
    %v1149 = vld [vmem:[#allocation7 + $0x218] sm:$0xff]
    %v1150 = vld [vmem:[#allocation7 + $0x220] sm:$0xff]
    %v1151 = vld [vmem:[#allocation7 + $0x228] sm:$0xff]
    %v1152 = vld [vmem:[#allocation7 + $0x230] sm:$0xff]
    %v1153 = vld [vmem:[#allocation7 + $0x238] sm:$0xff]
    %v1154 = vld [vmem:[#allocation7 + $0x240] sm:$0xff]
    %v1155 = vld [vmem:[#allocation7 + $0x248] sm:$0xff]
    %v1156 = vld [vmem:[#allocation7 + $0x250] sm:$0xff]
    %v1157 = vld [vmem:[#allocation7 + $0x258] sm:$0xff]
    %v1158 = vld [vmem:[#allocation7 + $0x260] sm:$0xff]
    %v1159 = vld [vmem:[#allocation7 + $0x268] sm:$0xff]
    %v1160 = vld [vmem:[#allocation7 + $0x270] sm:$0xff]
    %v1161 = vld [vmem:[#allocation7 + $0x278] sm:$0xff]
    %v1162 = vld [vmem:[#allocation7 + $0x280] sm:$0xff]
    %v1163 = vld [vmem:[#allocation7 + $0x288] sm:$0xff]
    %v1164 = vld [vmem:[#allocation7 + $0x290] sm:$0xff]
    %v1165 = vld [vmem:[#allocation7 + $0x298] sm:$0xff]
    %v1166 = vld [vmem:[#allocation7 + $0x2a0] sm:$0xff]
    %v1167 = vld [vmem:[#allocation7 + $0x2a8] sm:$0xff]
    %v1168 = vld [vmem:[#allocation7 + $0x2b0] sm:$0xff]
    %v1169 = vld [vmem:[#allocation7 + $0x2b8] sm:$0xff]
    %v1170 = vld [vmem:[#allocation7 + $0x2c0] sm:$0xff]
    %v1171 = vld [vmem:[#allocation7 + $0x2c8] sm:$0xff]
    %v1172 = vld [vmem:[#allocation7 + $0x2d0] sm:$0xff]
    %v1173 = vld [vmem:[#allocation7 + $0x2d8] sm:$0xff]
    %v1174 = vld [vmem:[#allocation7 + $0x2e0] sm:$0xff]
    %v1175 = vld [vmem:[#allocation7 + $0x2e8] sm:$0xff]
    %v1176 = vld [vmem:[#allocation7 + $0x2f0] sm:$0xff]
    %v1177 = vld [vmem:[#allocation7 + $0x2f8] sm:$0xff]
    %v1178 = vld [vmem:[#allocation7 + $0x300] sm:$0xff]
    %v1179 = vld [vmem:[#allocation7 + $0x308] sm:$0xff]
    %v1180 = vld [vmem:[#allocation7 + $0x310] sm:$0xff]
    %v1181 = vld [vmem:[#allocation7 + $0x318] sm:$0xff]
    %v1182 = vld [vmem:[#allocation7 + $0x320] sm:$0xff]
    %v1183 = vld [vmem:[#allocation7 + $0x328] sm:$0xff]
    %v1184 = vld [vmem:[#allocation7 + $0x330] sm:$0xff]
    %v1185 = vld [vmem:[#allocation7 + $0x338] sm:$0xff]
    %v1186 = vld [vmem:[#allocation7 + $0x340] sm:$0xff]
    %v1187 = vld [vmem:[#allocation7 + $0x348] sm:$0xff]
    %v1188 = vld [vmem:[#allocation7 + $0x350] sm:$0xff]
    %v1189 = vld [vmem:[#allocation7 + $0x358] sm:$0xff]
    %v1190 = vld [vmem:[#allocation7 + $0x360] sm:$0xff]
    %v1191 = vld [vmem:[#allocation7 + $0x368] sm:$0xff]
    %v1192 = vld [vmem:[#allocation7 + $0x370] sm:$0xff]
    %v1193 = vld [vmem:[#allocation7 + $0x378] sm:$0xff]
    %v1194 = vld [vmem:[#allocation7 + $0x380] sm:$0xff]
    %v1195 = vld [vmem:[#allocation7 + $0x388] sm:$0xff]
    %v1196 = vld [vmem:[#allocation7 + $0x390] sm:$0xff]
    %v1197 = vld [vmem:[#allocation7 + $0x398] sm:$0xff]
    %v1198 = vld [vmem:[#allocation7 + $0x3a0] sm:$0xff]
    %v1199 = vld [vmem:[#allocation7 + $0x3a8] sm:$0xff]
    %v1200 = vld [vmem:[#allocation7 + $0x3b0] sm:$0xff]
    %v1201 = vld [vmem:[#allocation7 + $0x3b8] sm:$0xff]
    %v1202 = vld [vmem:[#allocation7 + $0x3c0] sm:$0xff]
    %v1203 = vld [vmem:[#allocation7 + $0x3c8] sm:$0xff]
    %v1204 = vld [vmem:[#allocation7 + $0x3d0] sm:$0xff]
    %v1205 = vld [vmem:[#allocation7 + $0x3d8] sm:$0xff]
    %v1206 = vld [vmem:[#allocation7 + $0x3e0] sm:$0xff]
    %v1207 = vld [vmem:[#allocation7 + $0x3e8] sm:$0xff]
    %v1208 = vld [vmem:[#allocation7 + $0x3f0] sm:$0xff]
    %v1209 = vld [vmem:[#allocation7 + $0x3f8] sm:$0xff]
    %v1210 = vld [vmem:[#allocation7 + $0x400] sm:$0xff]
    %v1211 = vld [vmem:[#allocation7 + $0x408] sm:$0xff]
    %v1212 = vld [vmem:[#allocation7 + $0x410] sm:$0xff]
    %v1213 = vld [vmem:[#allocation7 + $0x418] sm:$0xff]
    %v1214 = vld [vmem:[#allocation7 + $0x420] sm:$0xff]
    %v1215 = vld [vmem:[#allocation7 + $0x428] sm:$0xff]
    %v1216 = vld [vmem:[#allocation7 + $0x430] sm:$0xff]
    %v1217 = vld [vmem:[#allocation7 + $0x438] sm:$0xff]
    %v1218 = vld [vmem:[#allocation7 + $0x440] sm:$0xff]
    %v1219 = vld [vmem:[#allocation7 + $0x448] sm:$0xff]
    %v1220 = vld [vmem:[#allocation7 + $0x450] sm:$0xff]
    %v1221 = vld [vmem:[#allocation7 + $0x458] sm:$0xff]
    %v1222 = vld [vmem:[#allocation7 + $0x460] sm:$0xff]
    %v1223 = vld [vmem:[#allocation7 + $0x468] sm:$0xff]
    %v1224 = vld [vmem:[#allocation7 + $0x470] sm:$0xff]
    %v1225 = vld [vmem:[#allocation7 + $0x478] sm:$0xff]
    %v1226 = vld [vmem:[#allocation7 + $0x480] sm:$0xff]
    %v1227 = vld [vmem:[#allocation7 + $0x488] sm:$0xff]
    %v1228 = vld [vmem:[#allocation7 + $0x490] sm:$0xff]
    %v1229 = vld [vmem:[#allocation7 + $0x498] sm:$0xff]
    %v1230 = vld [vmem:[#allocation7 + $0x4a0] sm:$0xff]
    %v1231 = vld [vmem:[#allocation7 + $0x4a8] sm:$0xff]
    %v1232 = vld [vmem:[#allocation7 + $0x4b0] sm:$0xff]
    %v1233 = vld [vmem:[#allocation7 + $0x4b8] sm:$0xff]
    %v1234 = vld [vmem:[#allocation7 + $0x4c0] sm:$0xff]
    %v1235 = vld [vmem:[#allocation7 + $0x4c8] sm:$0xff]
    %v1236 = vld [vmem:[#allocation7 + $0x4d0] sm:$0xff]
    %v1237 = vld [vmem:[#allocation7 + $0x4d8] sm:$0xff]
    %v1238 = vld [vmem:[#allocation7 + $0x4e0] sm:$0xff]
    %v1239 = vld [vmem:[#allocation7 + $0x4e8] sm:$0xff]
    %v1240 = vld [vmem:[#allocation7 + $0x4f0] sm:$0xff]
    %v1241 = vld [vmem:[#allocation7 + $0x4f8] sm:$0xff]
    %v1242 = vld [vmem:[#allocation7 + $0x500] sm:$0xff]
    %v1243 = vld [vmem:[#allocation7 + $0x508] sm:$0xff]
    %v1244 = vld [vmem:[#allocation7 + $0x510] sm:$0xff]
    %v1245 = vld [vmem:[#allocation7 + $0x518] sm:$0xff]
    %v1246 = vld [vmem:[#allocation7 + $0x520] sm:$0xff]
    %v1247 = vld [vmem:[#allocation7 + $0x528] sm:$0xff]
    %v1248 = vld [vmem:[#allocation7 + $0x530] sm:$0xff]
    %v1249 = vld [vmem:[#allocation7 + $0x538] sm:$0xff]
    %v1250 = vld [vmem:[#allocation7 + $0x540] sm:$0xff]
    %v1251 = vld [vmem:[#allocation7 + $0x548] sm:$0xff]
    %v1252 = vld [vmem:[#allocation7 + $0x550] sm:$0xff]
    %v1253 = vld [vmem:[#allocation7 + $0x558] sm:$0xff]
    %v1254 = vld [vmem:[#allocation7 + $0x560] sm:$0xff]
    %v1255 = vld [vmem:[#allocation7 + $0x568] sm:$0xff]
    %v1256 = vld [vmem:[#allocation7 + $0x570] sm:$0xff]
    %v1257 = vld [vmem:[#allocation7 + $0x578] sm:$0xff]
    %v1258 = vld [vmem:[#allocation7 + $0x580] sm:$0xff]
    %v1259 = vld [vmem:[#allocation7 + $0x588] sm:$0xff]
    %v1260 = vld [vmem:[#allocation7 + $0x590] sm:$0xff]
    %v1261 = vld [vmem:[#allocation7 + $0x598] sm:$0xff]
    %v1262 = vld [vmem:[#allocation7 + $0x5a0] sm:$0xff]
    %v1263 = vld [vmem:[#allocation7 + $0x5a8] sm:$0xff]
    %v1264 = vld [vmem:[#allocation7 + $0x5b0] sm:$0xff]
    %v1265 = vld [vmem:[#allocation7 + $0x5b8] sm:$0xff]
    %v1266 = vld [vmem:[#allocation7 + $0x5c0] sm:$0xff]
    %v1267 = vld [vmem:[#allocation7 + $0x5c8] sm:$0xff]
    %v1268 = vld [vmem:[#allocation7 + $0x5d0] sm:$0xff]
    %v1269 = vld [vmem:[#allocation7 + $0x5d8] sm:$0xff]
    %v1270 = vld [vmem:[#allocation7 + $0x5e0] sm:$0xff]
    %v1271 = vld [vmem:[#allocation7 + $0x5e8] sm:$0xff]
    %v1272 = vld [vmem:[#allocation7 + $0x5f0] sm:$0xff]
    %v1273 = vld [vmem:[#allocation7 + $0x5f8] sm:$0xff]
    %v1466 = vunpack.c.l.b16 %v1082
    %v1467 = vunpack.c.h.b16 %v1082
    %v1468 = vunpack.c.l.b16 %v1083
    %v1469 = vunpack.c.h.b16 %v1083
    %v1470 = vunpack.c.l.b16 %v1084
    %v1471 = vunpack.c.h.b16 %v1084
    %v1472 = vunpack.c.l.b16 %v1085
    %v1473 = vunpack.c.h.b16 %v1085
    %v1474 = vunpack.c.l.b16 %v1086
    %v1475 = vunpack.c.h.b16 %v1086
    %v1476 = vunpack.c.l.b16 %v1087
    %v1477 = vunpack.c.h.b16 %v1087
    %v1478 = vunpack.c.l.b16 %v1088
    %v1479 = vunpack.c.h.b16 %v1088
    %v1480 = vunpack.c.l.b16 %v1089
    %v1481 = vunpack.c.h.b16 %v1089
    %v1482 = vunpack.c.l.b16 %v1090
    %v1483 = vunpack.c.h.b16 %v1090
    %v1484 = vunpack.c.l.b16 %v1091
    %v1485 = vunpack.c.h.b16 %v1091
    %v1486 = vunpack.c.l.b16 %v1092
    %v1487 = vunpack.c.h.b16 %v1092
    %v1488 = vunpack.c.l.b16 %v1093
    %v1489 = vunpack.c.h.b16 %v1093
    %v1490 = vunpack.c.l.b16 %v1094
    %v1491 = vunpack.c.h.b16 %v1094
    %v1492 = vunpack.c.l.b16 %v1095
    %v1493 = vunpack.c.h.b16 %v1095
    %v1494 = vunpack.c.l.b16 %v1096
    %v1495 = vunpack.c.h.b16 %v1096
    %v1496 = vunpack.c.l.b16 %v1097
    %v1497 = vunpack.c.h.b16 %v1097
    %v1498 = vunpack.c.l.b16 %v1098
    %v1499 = vunpack.c.h.b16 %v1098
    %v1500 = vunpack.c.l.b16 %v1099
    %v1501 = vunpack.c.h.b16 %v1099
    %v1502 = vunpack.c.l.b16 %v1100
    %v1503 = vunpack.c.h.b16 %v1100
    %v1504 = vunpack.c.l.b16 %v1101
    %v1505 = vunpack.c.h.b16 %v1101
    %v1506 = vunpack.c.l.b16 %v1102
    %v1507 = vunpack.c.h.b16 %v1102
    %v1508 = vunpack.c.l.b16 %v1103
    %v1509 = vunpack.c.h.b16 %v1103
    %v1510 = vunpack.c.l.b16 %v1104
    %v1511 = vunpack.c.h.b16 %v1104
    %v1512 = vunpack.c.l.b16 %v1105
    %v1513 = vunpack.c.h.b16 %v1105
    %v1514 = vunpack.c.l.b16 %v1106
    %v1515 = vunpack.c.h.b16 %v1106
    %v1516 = vunpack.c.l.b16 %v1107
    %v1517 = vunpack.c.h.b16 %v1107
    %v1518 = vunpack.c.l.b16 %v1108
    %v1519 = vunpack.c.h.b16 %v1108
    %v1520 = vunpack.c.l.b16 %v1109
    %v1521 = vunpack.c.h.b16 %v1109
    %v1522 = vunpack.c.l.b16 %v1110
    %v1523 = vunpack.c.h.b16 %v1110
    %v1524 = vunpack.c.l.b16 %v1111
    %v1525 = vunpack.c.h.b16 %v1111
    %v1526 = vunpack.c.l.b16 %v1112
    %v1527 = vunpack.c.h.b16 %v1112
    %v1528 = vunpack.c.l.b16 %v1113
    %v1529 = vunpack.c.h.b16 %v1113
    %v1530 = vunpack.c.l.b16 %v1114
    %v1531 = vunpack.c.h.b16 %v1114
    %v1532 = vunpack.c.l.b16 %v1115
    %v1533 = vunpack.c.h.b16 %v1115
    %v1534 = vunpack.c.l.b16 %v1116
    %v1535 = vunpack.c.h.b16 %v1116
    %v1536 = vunpack.c.l.b16 %v1117
    %v1537 = vunpack.c.h.b16 %v1117
    %v1538 = vunpack.c.l.b16 %v1118
    %v1539 = vunpack.c.h.b16 %v1118
    %v1540 = vunpack.c.l.b16 %v1119
    %v1541 = vunpack.c.h.b16 %v1119
    %v1542 = vunpack.c.l.b16 %v1120
    %v1543 = vunpack.c.h.b16 %v1120
    %v1544 = vunpack.c.l.b16 %v1121
    %v1545 = vunpack.c.h.b16 %v1121
    %v1546 = vunpack.c.l.b16 %v1122
    %v1547 = vunpack.c.h.b16 %v1122
    %v1548 = vunpack.c.l.b16 %v1123
    %v1549 = vunpack.c.h.b16 %v1123
    %v1550 = vunpack.c.l.b16 %v1124
    %v1551 = vunpack.c.h.b16 %v1124
    %v1552 = vunpack.c.l.b16 %v1125
    %v1553 = vunpack.c.h.b16 %v1125
    %v1554 = vunpack.c.l.b16 %v1126
    %v1555 = vunpack.c.h.b16 %v1126
    %v1556 = vunpack.c.l.b16 %v1127
    %v1557 = vunpack.c.h.b16 %v1127
    %v1558 = vunpack.c.l.b16 %v1128
    %v1559 = vunpack.c.h.b16 %v1128
    %v1560 = vunpack.c.l.b16 %v1129
    %v1561 = vunpack.c.h.b16 %v1129
    %v1562 = vunpack.c.l.b16 %v1130
    %v1563 = vunpack.c.h.b16 %v1130
    %v1564 = vunpack.c.l.b16 %v1131
    %v1565 = vunpack.c.h.b16 %v1131
    %v1566 = vunpack.c.l.b16 %v1132
    %v1567 = vunpack.c.h.b16 %v1132
    %v1568 = vunpack.c.l.b16 %v1133
    %v1569 = vunpack.c.h.b16 %v1133
    %v1570 = vunpack.c.l.b16 %v1134
    %v1571 = vunpack.c.h.b16 %v1134
    %v1572 = vunpack.c.l.b16 %v1135
    %v1573 = vunpack.c.h.b16 %v1135
    %v1574 = vunpack.c.l.b16 %v1136
    %v1575 = vunpack.c.h.b16 %v1136
    %v1576 = vunpack.c.l.b16 %v1137
    %v1577 = vunpack.c.h.b16 %v1137
    %v1578 = vunpack.c.l.b16 %v1138
    %v1579 = vunpack.c.h.b16 %v1138
    %v1580 = vunpack.c.l.b16 %v1139
    %v1581 = vunpack.c.h.b16 %v1139
    %v1582 = vunpack.c.l.b16 %v1140
    %v1583 = vunpack.c.h.b16 %v1140
    %v1584 = vunpack.c.l.b16 %v1141
    %v1585 = vunpack.c.h.b16 %v1141
    %v1586 = vunpack.c.l.b16 %v1142
    %v1587 = vunpack.c.h.b16 %v1142
    %v1588 = vunpack.c.l.b16 %v1143
    %v1589 = vunpack.c.h.b16 %v1143
    %v1590 = vunpack.c.l.b16 %v1144
    %v1591 = vunpack.c.h.b16 %v1144
    %v1592 = vunpack.c.l.b16 %v1145
    %v1593 = vunpack.c.h.b16 %v1145
    %v1594 = vunpack.c.l.b16 %v1146
    %v1595 = vunpack.c.h.b16 %v1146
    %v1596 = vunpack.c.l.b16 %v1147
    %v1597 = vunpack.c.h.b16 %v1147
    %v1598 = vunpack.c.l.b16 %v1148
    %v1599 = vunpack.c.h.b16 %v1148
    %v1600 = vunpack.c.l.b16 %v1149
    %v1601 = vunpack.c.h.b16 %v1149
    %v1602 = vunpack.c.l.b16 %v1150
    %v1603 = vunpack.c.h.b16 %v1150
    %v1604 = vunpack.c.l.b16 %v1151
    %v1605 = vunpack.c.h.b16 %v1151
    %v1606 = vunpack.c.l.b16 %v1152
    %v1607 = vunpack.c.h.b16 %v1152
    %v1608 = vunpack.c.l.b16 %v1153
    %v1609 = vunpack.c.h.b16 %v1153
    %v1610 = vunpack.c.l.b16 %v1154
    %v1611 = vunpack.c.h.b16 %v1154
    %v1612 = vunpack.c.l.b16 %v1155
    %v1613 = vunpack.c.h.b16 %v1155
    %v1614 = vunpack.c.l.b16 %v1156
    %v1615 = vunpack.c.h.b16 %v1156
    %v1616 = vunpack.c.l.b16 %v1157
    %v1617 = vunpack.c.h.b16 %v1157
    %v1618 = vunpack.c.l.b16 %v1158
    %v1619 = vunpack.c.h.b16 %v1158
    %v1620 = vunpack.c.l.b16 %v1159
    %v1621 = vunpack.c.h.b16 %v1159
    %v1622 = vunpack.c.l.b16 %v1160
    %v1623 = vunpack.c.h.b16 %v1160
    %v1624 = vunpack.c.l.b16 %v1161
    %v1625 = vunpack.c.h.b16 %v1161
    %v1626 = vunpack.c.l.b16 %v1162
    %v1627 = vunpack.c.h.b16 %v1162
    %v1628 = vunpack.c.l.b16 %v1163
    %v1629 = vunpack.c.h.b16 %v1163
    %v1630 = vunpack.c.l.b16 %v1164
    %v1631 = vunpack.c.h.b16 %v1164
    %v1632 = vunpack.c.l.b16 %v1165
    %v1633 = vunpack.c.h.b16 %v1165
    %v1634 = vunpack.c.l.b16 %v1166
    %v1635 = vunpack.c.h.b16 %v1166
    %v1636 = vunpack.c.l.b16 %v1167
    %v1637 = vunpack.c.h.b16 %v1167
    %v1638 = vunpack.c.l.b16 %v1168
    %v1639 = vunpack.c.h.b16 %v1168
    %v1640 = vunpack.c.l.b16 %v1169
    %v1641 = vunpack.c.h.b16 %v1169
    %v1642 = vunpack.c.l.b16 %v1170
    %v1643 = vunpack.c.h.b16 %v1170
    %v1644 = vunpack.c.l.b16 %v1171
    %v1645 = vunpack.c.h.b16 %v1171
    %v1646 = vunpack.c.l.b16 %v1172
    %v1647 = vunpack.c.h.b16 %v1172
    %v1648 = vunpack.c.l.b16 %v1173
    %v1649 = vunpack.c.h.b16 %v1173
    %v1650 = vunpack.c.l.b16 %v1174
    %v1651 = vunpack.c.h.b16 %v1174
    %v1652 = vunpack.c.l.b16 %v1175
    %v1653 = vunpack.c.h.b16 %v1175
    %v1654 = vunpack.c.l.b16 %v1176
    %v1655 = vunpack.c.h.b16 %v1176
    %v1656 = vunpack.c.l.b16 %v1177
    %v1657 = vunpack.c.h.b16 %v1177
    %v1658 = vunpack.c.l.b16 %v1178
    %v1659 = vunpack.c.h.b16 %v1178
    %v1660 = vunpack.c.l.b16 %v1179
    %v1661 = vunpack.c.h.b16 %v1179
    %v1662 = vunpack.c.l.b16 %v1180
    %v1663 = vunpack.c.h.b16 %v1180
    %v1664 = vunpack.c.l.b16 %v1181
    %v1665 = vunpack.c.h.b16 %v1181
    %v1666 = vunpack.c.l.b16 %v1182
    %v1667 = vunpack.c.h.b16 %v1182
    %v1668 = vunpack.c.l.b16 %v1183
    %v1669 = vunpack.c.h.b16 %v1183
    %v1670 = vunpack.c.l.b16 %v1184
    %v1671 = vunpack.c.h.b16 %v1184
    %v1672 = vunpack.c.l.b16 %v1185
    %v1673 = vunpack.c.h.b16 %v1185
    %v1674 = vunpack.c.l.b16 %v1186
    %v1675 = vunpack.c.h.b16 %v1186
    %v1676 = vunpack.c.l.b16 %v1187
    %v1677 = vunpack.c.h.b16 %v1187
    %v1678 = vunpack.c.l.b16 %v1188
    %v1679 = vunpack.c.h.b16 %v1188
    %v1680 = vunpack.c.l.b16 %v1189
    %v1681 = vunpack.c.h.b16 %v1189
    %v1682 = vunpack.c.l.b16 %v1190
    %v1683 = vunpack.c.h.b16 %v1190
    %v1684 = vunpack.c.l.b16 %v1191
    %v1685 = vunpack.c.h.b16 %v1191
    %v1686 = vunpack.c.l.b16 %v1192
    %v1687 = vunpack.c.h.b16 %v1192
    %v1688 = vunpack.c.l.b16 %v1193
    %v1689 = vunpack.c.h.b16 %v1193
    %v1690 = vunpack.c.l.b16 %v1194
    %v1691 = vunpack.c.h.b16 %v1194
    %v1692 = vunpack.c.l.b16 %v1195
    %v1693 = vunpack.c.h.b16 %v1195
    %v1694 = vunpack.c.l.b16 %v1196
    %v1695 = vunpack.c.h.b16 %v1196
    %v1696 = vunpack.c.l.b16 %v1197
    %v1697 = vunpack.c.h.b16 %v1197
    %v1698 = vunpack.c.l.b16 %v1198
    %v1699 = vunpack.c.h.b16 %v1198
    %v1700 = vunpack.c.l.b16 %v1199
    %v1701 = vunpack.c.h.b16 %v1199
    %v1702 = vunpack.c.l.b16 %v1200
    %v1703 = vunpack.c.h.b16 %v1200
    %v1704 = vunpack.c.l.b16 %v1201
    %v1705 = vunpack.c.h.b16 %v1201
    %v1706 = vunpack.c.l.b16 %v1202
    %v1707 = vunpack.c.h.b16 %v1202
    %v1708 = vunpack.c.l.b16 %v1203
    %v1709 = vunpack.c.h.b16 %v1203
    %v1710 = vunpack.c.l.b16 %v1204
    %v1711 = vunpack.c.h.b16 %v1204
    %v1712 = vunpack.c.l.b16 %v1205
    %v1713 = vunpack.c.h.b16 %v1205
    %v1714 = vunpack.c.l.b16 %v1206
    %v1715 = vunpack.c.h.b16 %v1206
    %v1716 = vunpack.c.l.b16 %v1207
    %v1717 = vunpack.c.h.b16 %v1207
    %v1718 = vunpack.c.l.b16 %v1208
    %v1719 = vunpack.c.h.b16 %v1208
    %v1720 = vunpack.c.l.b16 %v1209
    %v1721 = vunpack.c.h.b16 %v1209
    %v1722 = vunpack.c.l.b16 %v1210
    %v1723 = vunpack.c.h.b16 %v1210
    %v1724 = vunpack.c.l.b16 %v1211
    %v1725 = vunpack.c.h.b16 %v1211
    %v1726 = vunpack.c.l.b16 %v1212
    %v1727 = vunpack.c.h.b16 %v1212
    %v1728 = vunpack.c.l.b16 %v1213
    %v1729 = vunpack.c.h.b16 %v1213
    %v1730 = vunpack.c.l.b16 %v1214
    %v1731 = vunpack.c.h.b16 %v1214
    %v1732 = vunpack.c.l.b16 %v1215
    %v1733 = vunpack.c.h.b16 %v1215
    %v1734 = vunpack.c.l.b16 %v1216
    %v1735 = vunpack.c.h.b16 %v1216
    %v1736 = vunpack.c.l.b16 %v1217
    %v1737 = vunpack.c.h.b16 %v1217
    %v1738 = vunpack.c.l.b16 %v1218
    %v1739 = vunpack.c.h.b16 %v1218
    %v1740 = vunpack.c.l.b16 %v1219
    %v1741 = vunpack.c.h.b16 %v1219
    %v1742 = vunpack.c.l.b16 %v1220
    %v1743 = vunpack.c.h.b16 %v1220
    %v1744 = vunpack.c.l.b16 %v1221
    %v1745 = vunpack.c.h.b16 %v1221
    %v1746 = vunpack.c.l.b16 %v1222
    %v1747 = vunpack.c.h.b16 %v1222
    %v1748 = vunpack.c.l.b16 %v1223
    %v1749 = vunpack.c.h.b16 %v1223
    %v1750 = vunpack.c.l.b16 %v1224
    %v1751 = vunpack.c.h.b16 %v1224
    %v1752 = vunpack.c.l.b16 %v1225
    %v1753 = vunpack.c.h.b16 %v1225
    %v1754 = vunpack.c.l.b16 %v1226
    %v1755 = vunpack.c.h.b16 %v1226
    %v1756 = vunpack.c.l.b16 %v1227
    %v1757 = vunpack.c.h.b16 %v1227
    %v1758 = vunpack.c.l.b16 %v1228
    %v1759 = vunpack.c.h.b16 %v1228
    %v1760 = vunpack.c.l.b16 %v1229
    %v1761 = vunpack.c.h.b16 %v1229
    %v1762 = vunpack.c.l.b16 %v1230
    %v1763 = vunpack.c.h.b16 %v1230
    %v1764 = vunpack.c.l.b16 %v1231
    %v1765 = vunpack.c.h.b16 %v1231
    %v1766 = vunpack.c.l.b16 %v1232
    %v1767 = vunpack.c.h.b16 %v1232
    %v1768 = vunpack.c.l.b16 %v1233
    %v1769 = vunpack.c.h.b16 %v1233
    %v1770 = vunpack.c.l.b16 %v1234
    %v1771 = vunpack.c.h.b16 %v1234
    %v1772 = vunpack.c.l.b16 %v1235
    %v1773 = vunpack.c.h.b16 %v1235
    %v1774 = vunpack.c.l.b16 %v1236
    %v1775 = vunpack.c.h.b16 %v1236
    %v1776 = vunpack.c.l.b16 %v1237
    %v1777 = vunpack.c.h.b16 %v1237
    %v1778 = vunpack.c.l.b16 %v1238
    %v1779 = vunpack.c.h.b16 %v1238
    %v1780 = vunpack.c.l.b16 %v1239
    %v1781 = vunpack.c.h.b16 %v1239
    %v1782 = vunpack.c.l.b16 %v1240
    %v1783 = vunpack.c.h.b16 %v1240
    %v1784 = vunpack.c.l.b16 %v1241
    %v1785 = vunpack.c.h.b16 %v1241
    %v1786 = vunpack.c.l.b16 %v1242
    %v1787 = vunpack.c.h.b16 %v1242
    %v1788 = vunpack.c.l.b16 %v1243
    %v1789 = vunpack.c.h.b16 %v1243
    %v1790 = vunpack.c.l.b16 %v1244
    %v1791 = vunpack.c.h.b16 %v1244
    %v1792 = vunpack.c.l.b16 %v1245
    %v1793 = vunpack.c.h.b16 %v1245
    %v1794 = vunpack.c.l.b16 %v1246
    %v1795 = vunpack.c.h.b16 %v1246
    %v1796 = vunpack.c.l.b16 %v1247
    %v1797 = vunpack.c.h.b16 %v1247
    %v1798 = vunpack.c.l.b16 %v1248
    %v1799 = vunpack.c.h.b16 %v1248
    %v1800 = vunpack.c.l.b16 %v1249
    %v1801 = vunpack.c.h.b16 %v1249
    %v1802 = vunpack.c.l.b16 %v1250
    %v1803 = vunpack.c.h.b16 %v1250
    %v1804 = vunpack.c.l.b16 %v1251
    %v1805 = vunpack.c.h.b16 %v1251
    %v1806 = vunpack.c.l.b16 %v1252
    %v1807 = vunpack.c.h.b16 %v1252
    %v1808 = vunpack.c.l.b16 %v1253
    %v1809 = vunpack.c.h.b16 %v1253
    %v1810 = vunpack.c.l.b16 %v1254
    %v1811 = vunpack.c.h.b16 %v1254
    %v1812 = vunpack.c.l.b16 %v1255
    %v1813 = vunpack.c.h.b16 %v1255
    %v1814 = vunpack.c.l.b16 %v1256
    %v1815 = vunpack.c.h.b16 %v1256
    %v1816 = vunpack.c.l.b16 %v1257
    %v1817 = vunpack.c.h.b16 %v1257
    %v1818 = vunpack.c.l.b16 %v1258
    %v1819 = vunpack.c.h.b16 %v1258
    %v1820 = vunpack.c.l.b16 %v1259
    %v1821 = vunpack.c.h.b16 %v1259
    %v1822 = vunpack.c.l.b16 %v1260
    %v1823 = vunpack.c.h.b16 %v1260
    %v1824 = vunpack.c.l.b16 %v1261
    %v1825 = vunpack.c.h.b16 %v1261
    %v1826 = vunpack.c.l.b16 %v1262
    %v1827 = vunpack.c.h.b16 %v1262
    %v1828 = vunpack.c.l.b16 %v1263
    %v1829 = vunpack.c.h.b16 %v1263
    %v1830 = vunpack.c.l.b16 %v1264
    %v1831 = vunpack.c.h.b16 %v1264
    %v1832 = vunpack.c.l.b16 %v1265
    %v1833 = vunpack.c.h.b16 %v1265
    %v1834 = vunpack.c.l.b16 %v1266
    %v1835 = vunpack.c.h.b16 %v1266
    %v1836 = vunpack.c.l.b16 %v1267
    %v1837 = vunpack.c.h.b16 %v1267
    %v1838 = vunpack.c.l.b16 %v1268
    %v1839 = vunpack.c.h.b16 %v1268
    %v1840 = vunpack.c.l.b16 %v1269
    %v1841 = vunpack.c.h.b16 %v1269
    %v1842 = vunpack.c.l.b16 %v1270
    %v1843 = vunpack.c.h.b16 %v1270
    %v1844 = vunpack.c.l.b16 %v1271
    %v1845 = vunpack.c.h.b16 %v1271
    %v1846 = vunpack.c.l.b16 %v1272
    %v1847 = vunpack.c.h.b16 %v1272
    %v1848 = vunpack.c.l.b16 %v1273
    %v1849 = vunpack.c.h.b16 %v1273
    %v1850 = vpack.c.b16 %v1472, %v1466
    %v1851 = vpack.c.b16 %v1473, %v1467
    %v1852 = vpack.c.b16 %v1474, %v1468
    %v1853 = vpack.c.b16 %v1475, %v1469
    %v1854 = vpack.c.b16 %v1476, %v1470
    %v1855 = vpack.c.b16 %v1477, %v1471
    %v1856 = vpack.c.b16 %v1484, %v1478
    %v1857 = vpack.c.b16 %v1485, %v1479
    %v1858 = vpack.c.b16 %v1486, %v1480
    %v1859 = vpack.c.b16 %v1487, %v1481
    %v1860 = vpack.c.b16 %v1488, %v1482
    %v1861 = vpack.c.b16 %v1489, %v1483
    %v1862 = vpack.c.b16 %v1496, %v1490
    %v1863 = vpack.c.b16 %v1497, %v1491
    %v1864 = vpack.c.b16 %v1498, %v1492
    %v1865 = vpack.c.b16 %v1499, %v1493
    %v1866 = vpack.c.b16 %v1500, %v1494
    %v1867 = vpack.c.b16 %v1501, %v1495
    %v1868 = vpack.c.b16 %v1508, %v1502
    %v1869 = vpack.c.b16 %v1509, %v1503
    %v1870 = vpack.c.b16 %v1510, %v1504
    %v1871 = vpack.c.b16 %v1511, %v1505
    %v1872 = vpack.c.b16 %v1512, %v1506
    %v1873 = vpack.c.b16 %v1513, %v1507
    %v1874 = vpack.c.b16 %v1520, %v1514
    %v1875 = vpack.c.b16 %v1521, %v1515
    %v1876 = vpack.c.b16 %v1522, %v1516
    %v1877 = vpack.c.b16 %v1523, %v1517
    %v1878 = vpack.c.b16 %v1524, %v1518
    %v1879 = vpack.c.b16 %v1525, %v1519
    %v1880 = vpack.c.b16 %v1532, %v1526
    %v1881 = vpack.c.b16 %v1533, %v1527
    %v1882 = vpack.c.b16 %v1534, %v1528
    %v1883 = vpack.c.b16 %v1535, %v1529
    %v1884 = vpack.c.b16 %v1536, %v1530
    %v1885 = vpack.c.b16 %v1537, %v1531
    %v1886 = vpack.c.b16 %v1544, %v1538
    %v1887 = vpack.c.b16 %v1545, %v1539
    %v1888 = vpack.c.b16 %v1546, %v1540
    %v1889 = vpack.c.b16 %v1547, %v1541
    %v1890 = vpack.c.b16 %v1548, %v1542
    %v1891 = vpack.c.b16 %v1549, %v1543
    %v1892 = vpack.c.b16 %v1556, %v1550
    %v1893 = vpack.c.b16 %v1557, %v1551
    %v1894 = vpack.c.b16 %v1558, %v1552
    %v1895 = vpack.c.b16 %v1559, %v1553
    %v1896 = vpack.c.b16 %v1560, %v1554
    %v1897 = vpack.c.b16 %v1561, %v1555
    %v1898 = vpack.c.b16 %v1568, %v1562
    %v1899 = vpack.c.b16 %v1569, %v1563
    %v1900 = vpack.c.b16 %v1570, %v1564
    %v1901 = vpack.c.b16 %v1571, %v1565
    %v1902 = vpack.c.b16 %v1572, %v1566
    %v1903 = vpack.c.b16 %v1573, %v1567
    %v1904 = vpack.c.b16 %v1580, %v1574
    %v1905 = vpack.c.b16 %v1581, %v1575
    %v1906 = vpack.c.b16 %v1582, %v1576
    %v1907 = vpack.c.b16 %v1583, %v1577
    %v1908 = vpack.c.b16 %v1584, %v1578
    %v1909 = vpack.c.b16 %v1585, %v1579
    %v1910 = vpack.c.b16 %v1592, %v1586
    %v1911 = vpack.c.b16 %v1593, %v1587
    %v1912 = vpack.c.b16 %v1594, %v1588
    %v1913 = vpack.c.b16 %v1595, %v1589
    %v1914 = vpack.c.b16 %v1596, %v1590
    %v1915 = vpack.c.b16 %v1597, %v1591
    %v1916 = vpack.c.b16 %v1604, %v1598
    %v1917 = vpack.c.b16 %v1605, %v1599
    %v1918 = vpack.c.b16 %v1606, %v1600
    %v1919 = vpack.c.b16 %v1607, %v1601
    %v1920 = vpack.c.b16 %v1608, %v1602
    %v1921 = vpack.c.b16 %v1609, %v1603
    %v1922 = vpack.c.b16 %v1616, %v1610
    %v1923 = vpack.c.b16 %v1617, %v1611
    %v1924 = vpack.c.b16 %v1618, %v1612
    %v1925 = vpack.c.b16 %v1619, %v1613
    %v1926 = vpack.c.b16 %v1620, %v1614
    %v1927 = vpack.c.b16 %v1621, %v1615
    %v1928 = vpack.c.b16 %v1628, %v1622
    %v1929 = vpack.c.b16 %v1629, %v1623
    %v1930 = vpack.c.b16 %v1630, %v1624
    %v1931 = vpack.c.b16 %v1631, %v1625
    %v1932 = vpack.c.b16 %v1632, %v1626
    %v1933 = vpack.c.b16 %v1633, %v1627
    %v1934 = vpack.c.b16 %v1640, %v1634
    %v1935 = vpack.c.b16 %v1641, %v1635
    %v1936 = vpack.c.b16 %v1642, %v1636
    %v1937 = vpack.c.b16 %v1643, %v1637
    %v1938 = vpack.c.b16 %v1644, %v1638
    %v1939 = vpack.c.b16 %v1645, %v1639
    %v1940 = vpack.c.b16 %v1652, %v1646
    %v1941 = vpack.c.b16 %v1653, %v1647
    %v1942 = vpack.c.b16 %v1654, %v1648
    %v1943 = vpack.c.b16 %v1655, %v1649
    %v1944 = vpack.c.b16 %v1656, %v1650
    %v1945 = vpack.c.b16 %v1657, %v1651
    %v1946 = vpack.c.b16 %v1664, %v1658
    %v1947 = vpack.c.b16 %v1665, %v1659
    %v1948 = vpack.c.b16 %v1666, %v1660
    %v1949 = vpack.c.b16 %v1667, %v1661
    %v1950 = vpack.c.b16 %v1668, %v1662
    %v1951 = vpack.c.b16 %v1669, %v1663
    %v1952 = vpack.c.b16 %v1676, %v1670
    %v1953 = vpack.c.b16 %v1677, %v1671
    %v1954 = vpack.c.b16 %v1678, %v1672
    %v1955 = vpack.c.b16 %v1679, %v1673
    %v1956 = vpack.c.b16 %v1680, %v1674
    %v1957 = vpack.c.b16 %v1681, %v1675
    %v1958 = vpack.c.b16 %v1688, %v1682
    %v1959 = vpack.c.b16 %v1689, %v1683
    %v1960 = vpack.c.b16 %v1690, %v1684
    %v1961 = vpack.c.b16 %v1691, %v1685
    %v1962 = vpack.c.b16 %v1692, %v1686
    %v1963 = vpack.c.b16 %v1693, %v1687
    %v1964 = vpack.c.b16 %v1700, %v1694
    %v1965 = vpack.c.b16 %v1701, %v1695
    %v1966 = vpack.c.b16 %v1702, %v1696
    %v1967 = vpack.c.b16 %v1703, %v1697
    %v1968 = vpack.c.b16 %v1704, %v1698
    %v1969 = vpack.c.b16 %v1705, %v1699
    %v1970 = vpack.c.b16 %v1712, %v1706
    %v1971 = vpack.c.b16 %v1713, %v1707
    %v1972 = vpack.c.b16 %v1714, %v1708
    %v1973 = vpack.c.b16 %v1715, %v1709
    %v1974 = vpack.c.b16 %v1716, %v1710
    %v1975 = vpack.c.b16 %v1717, %v1711
    %v1976 = vpack.c.b16 %v1724, %v1718
    %v1977 = vpack.c.b16 %v1725, %v1719
    %v1978 = vpack.c.b16 %v1726, %v1720
    %v1979 = vpack.c.b16 %v1727, %v1721
    %v1980 = vpack.c.b16 %v1728, %v1722
    %v1981 = vpack.c.b16 %v1729, %v1723
    %v1982 = vpack.c.b16 %v1736, %v1730
    %v1983 = vpack.c.b16 %v1737, %v1731
    %v1984 = vpack.c.b16 %v1738, %v1732
    %v1985 = vpack.c.b16 %v1739, %v1733
    %v1986 = vpack.c.b16 %v1740, %v1734
    %v1987 = vpack.c.b16 %v1741, %v1735
    %v1988 = vpack.c.b16 %v1748, %v1742
    %v1989 = vpack.c.b16 %v1749, %v1743
    %v1990 = vpack.c.b16 %v1750, %v1744
    %v1991 = vpack.c.b16 %v1751, %v1745
    %v1992 = vpack.c.b16 %v1752, %v1746
    %v1993 = vpack.c.b16 %v1753, %v1747
    %v1994 = vpack.c.b16 %v1760, %v1754
    %v1995 = vpack.c.b16 %v1761, %v1755
    %v1996 = vpack.c.b16 %v1762, %v1756
    %v1997 = vpack.c.b16 %v1763, %v1757
    %v1998 = vpack.c.b16 %v1764, %v1758
    %v1999 = vpack.c.b16 %v1765, %v1759
    %v2000 = vpack.c.b16 %v1772, %v1766
    %v2001 = vpack.c.b16 %v1773, %v1767
    %v2002 = vpack.c.b16 %v1774, %v1768
    %v2003 = vpack.c.b16 %v1775, %v1769
    %v2004 = vpack.c.b16 %v1776, %v1770
    %v2005 = vpack.c.b16 %v1777, %v1771
    %v2006 = vpack.c.b16 %v1784, %v1778
    %v2007 = vpack.c.b16 %v1785, %v1779
    %v2008 = vpack.c.b16 %v1786, %v1780
    %v2009 = vpack.c.b16 %v1787, %v1781
    %v2010 = vpack.c.b16 %v1788, %v1782
    %v2011 = vpack.c.b16 %v1789, %v1783
    %v2012 = vpack.c.b16 %v1796, %v1790
    %v2013 = vpack.c.b16 %v1797, %v1791
    %v2014 = vpack.c.b16 %v1798, %v1792
    %v2015 = vpack.c.b16 %v1799, %v1793
    %v2016 = vpack.c.b16 %v1800, %v1794
    %v2017 = vpack.c.b16 %v1801, %v1795
    %v2018 = vpack.c.b16 %v1808, %v1802
    %v2019 = vpack.c.b16 %v1809, %v1803
    %v2020 = vpack.c.b16 %v1810, %v1804
    %v2021 = vpack.c.b16 %v1811, %v1805
    %v2022 = vpack.c.b16 %v1812, %v1806
    %v2023 = vpack.c.b16 %v1813, %v1807
    %v2024 = vpack.c.b16 %v1820, %v1814
    %v2025 = vpack.c.b16 %v1821, %v1815
    %v2026 = vpack.c.b16 %v1822, %v1816
    %v2027 = vpack.c.b16 %v1823, %v1817
    %v2028 = vpack.c.b16 %v1824, %v1818
    %v2029 = vpack.c.b16 %v1825, %v1819
    %v2030 = vpack.c.b16 %v1832, %v1826
    %v2031 = vpack.c.b16 %v1833, %v1827
    %v2032 = vpack.c.b16 %v1834, %v1828
    %v2033 = vpack.c.b16 %v1835, %v1829
    %v2034 = vpack.c.b16 %v1836, %v1830
    %v2035 = vpack.c.b16 %v1837, %v1831
    %v2036 = vpack.c.b16 %v1844, %v1838
    %v2037 = vpack.c.b16 %v1845, %v1839
    %v2038 = vpack.c.b16 %v1846, %v1840
    %v2039 = vpack.c.b16 %v1847, %v1841
    %v2040 = vpack.c.b16 %v1848, %v1842
    %v2041 = vpack.c.b16 %v1849, %v1843
    %2234 = vmatprep.subr.bf16.mxu0 %v1851
    %2235 = vmatpush1.bf16.msra.mxu0 %v1850
    %2236 = vmatprep.subr.bf16.mxu0 %v1857
    %2237 = vmatpush1.bf16.msra.mxu0 %v1856
    %2238 = vmatprep.subr.bf16.mxu0 %v1863
    %2239 = vmatpush1.bf16.msra.mxu0 %v1862
    %2240 = vmatprep.subr.bf16.mxu0 %v1869
    %2241 = vmatpush1.bf16.msra.mxu0 %v1868
    %2242 = vmatprep.subr.bf16.mxu0 %v1875
    %2243 = vmatpush1.bf16.msra.mxu0 %v1874
    %2244 = vmatprep.subr.bf16.mxu0 %v1881
    %2245 = vmatpush1.bf16.msra.mxu0 %v1880
    %2246 = vmatprep.subr.bf16.mxu0 %v1887
    %2247 = vmatpush1.bf16.msra.mxu0 %v1886
    %2248 = vmatprep.subr.bf16.mxu0 %v1893
    %2249 = vmatpush1.bf16.msra.mxu0 %v1892
    %2250 = vmatprep.subr.bf16.mxu0 %v1899
    %2251 = vmatpush1.bf16.msra.mxu0 %v1898
    %2252 = vmatprep.subr.bf16.mxu0 %v1905
    %2253 = vmatpush1.bf16.msra.mxu0 %v1904
    %2254 = vmatprep.subr.bf16.mxu0 %v1911
    %2255 = vmatpush1.bf16.msra.mxu0 %v1910
    %2256 = vmatprep.subr.bf16.mxu0 %v1917
    %2257 = vmatpush1.bf16.msra.mxu0 %v1916
    %2258 = vmatprep.subr.bf16.mxu0 %v1923
    %2259 = vmatpush1.bf16.msra.mxu0 %v1922
    %2260 = vmatprep.subr.bf16.mxu0 %v1929
    %2261 = vmatpush1.bf16.msra.mxu0 %v1928
    %2262 = vmatprep.subr.bf16.mxu0 %v1935
    %2263 = vmatpush1.bf16.msra.mxu0 %v1934
    %2264 = vmatprep.subr.bf16.mxu0 %v1941
    %2265 = vmatpush1.bf16.msra.mxu0 %v1940
    %2266 = vmatprep.mubr.bf16.mxu0 %v1079
    %2267 = vmatmul.mubr.bf16.gmra.mrb[0].mxu0 %v1078
    %v2268 = vpop.f32.mrb[0].mxu0
    %v2269 = vadd.f32 0.0, %v2268
    %v2270 = vpop.f32.mrb[0].mxu0
    %v2271 = vadd.f32 0.0, %v2270
    %v2272 = vpop.f32.mrb[0].mxu0
    %v2273 = vadd.f32 0.0, %v2272
    %v2274 = vpop.f32.mrb[0].mxu0
    %v2275 = vadd.f32 0.0, %v2274
    %2276 = vdwg.mxu0
    %2277 = vmatprep.subr.bf16.mxu0 %v1947
    %2278 = vmatpush1.bf16.msra.mxu0 %v1946
    %2279 = vmatprep.subr.bf16.mxu0 %v1953
    %2280 = vmatpush1.bf16.msra.mxu0 %v1952
    %2281 = vmatprep.subr.bf16.mxu0 %v1959
    %2282 = vmatpush1.bf16.msra.mxu0 %v1958
    %2283 = vmatprep.subr.bf16.mxu0 %v1965
    %2284 = vmatpush1.bf16.msra.mxu0 %v1964
    %2285 = vmatprep.subr.bf16.mxu0 %v1971
    %2286 = vmatpush1.bf16.msra.mxu0 %v1970
    %2287 = vmatprep.subr.bf16.mxu0 %v1977
    %2288 = vmatpush1.bf16.msra.mxu0 %v1976
    %2289 = vmatprep.subr.bf16.mxu0 %v1983
    %2290 = vmatpush1.bf16.msra.mxu0 %v1982
    %2291 = vmatprep.subr.bf16.mxu0 %v1989
    %2292 = vmatpush1.bf16.msra.mxu0 %v1988
    %2293 = vmatprep.subr.bf16.mxu0 %v1995
    %2294 = vmatpush1.bf16.msra.mxu0 %v1994
    %2295 = vmatprep.subr.bf16.mxu0 %v2001
    %2296 = vmatpush1.bf16.msra.mxu0 %v2000
    %2297 = vmatprep.subr.bf16.mxu0 %v2007
    %2298 = vmatpush1.bf16.msra.mxu0 %v2006
    %2299 = vmatprep.subr.bf16.mxu0 %v2013
    %2300 = vmatpush1.bf16.msra.mxu0 %v2012
    %2301 = vmatprep.subr.bf16.mxu0 %v2019
    %2302 = vmatpush1.bf16.msra.mxu0 %v2018
    %2303 = vmatprep.subr.bf16.mxu0 %v2025
    %2304 = vmatpush1.bf16.msra.mxu0 %v2024
    %2305 = vmatprep.subr.bf16.mxu0 %v2031
    %2306 = vmatpush1.bf16.msra.mxu0 %v2030
    %2307 = vmatprep.subr.bf16.mxu0 %v2037
    %2308 = vmatpush1.bf16.msra.mxu0 %v2036
    %2309 = vmatprep.mubr.bf16.mxu0 %v1081
    %2310 = vmatmul.mubr.bf16.gmra.mrb[0].mxu0 %v1080
    %v2311 = vpop.f32.mrb[0].mxu0
    %v2312 = vadd.f32 %v2269, %v2311
    %v2313 = vpop.f32.mrb[0].mxu0
    %v2314 = vadd.f32 %v2271, %v2313
    %v2315 = vpop.f32.mrb[0].mxu0
    %v2316 = vadd.f32 %v2273, %v2315
    %v2317 = vpop.f32.mrb[0].mxu0
    %v2318 = vadd.f32 %v2275, %v2317
    %2319 = vdwg.mxu0
    %2320 = vmatprep.subr.bf16.mxu0 %v1853
    %2321 = vmatpush1.bf16.msra.mxu0 %v1852
    %2322 = vmatprep.subr.bf16.mxu0 %v1859
    %2323 = vmatpush1.bf16.msra.mxu0 %v1858
    %2324 = vmatprep.subr.bf16.mxu0 %v1865
    %2325 = vmatpush1.bf16.msra.mxu0 %v1864
    %2326 = vmatprep.subr.bf16.mxu0 %v1871
    %2327 = vmatpush1.bf16.msra.mxu0 %v1870
    %2328 = vmatprep.subr.bf16.mxu0 %v1877
    %2329 = vmatpush1.bf16.msra.mxu0 %v1876
    %2330 = vmatprep.subr.bf16.mxu0 %v1883
    %2331 = vmatpush1.bf16.msra.mxu0 %v1882
    %2332 = vmatprep.subr.bf16.mxu0 %v1889
    %2333 = vmatpush1.bf16.msra.mxu0 %v1888
    %2334 = vmatprep.subr.bf16.mxu0 %v1895
    %2335 = vmatpush1.bf16.msra.mxu0 %v1894
    %2336 = vmatprep.subr.bf16.mxu0 %v1901
    %2337 = vmatpush1.bf16.msra.mxu0 %v1900
    %2338 = vmatprep.subr.bf16.mxu0 %v1907
    %2339 = vmatpush1.bf16.msra.mxu0 %v1906
    %2340 = vmatprep.subr.bf16.mxu0 %v1913
    %2341 = vmatpush1.bf16.msra.mxu0 %v1912
    %2342 = vmatprep.subr.bf16.mxu0 %v1919
    %2343 = vmatpush1.bf16.msra.mxu0 %v1918
    %2344 = vmatprep.subr.bf16.mxu0 %v1925
    %2345 = vmatpush1.bf16.msra.mxu0 %v1924
    %2346 = vmatprep.subr.bf16.mxu0 %v1931
    %2347 = vmatpush1.bf16.msra.mxu0 %v1930
    %2348 = vmatprep.subr.bf16.mxu0 %v1937
    %2349 = vmatpush1.bf16.msra.mxu0 %v1936
    %2350 = vmatprep.subr.bf16.mxu0 %v1943
    %2351 = vmatpush1.bf16.msra.mxu0 %v1942
    %2352 = vmatprep.mubr.bf16.mxu0 %v1079
    %2353 = vmatmul.mubr.bf16.gmra.mrb[0].mxu0 %v1078
    %v2354 = vpop.f32.mrb[0].mxu0
    %v2355 = vadd.f32 0.0, %v2354
    %v2356 = vpop.f32.mrb[0].mxu0
    %v2357 = vadd.f32 0.0, %v2356
    %v2358 = vpop.f32.mrb[0].mxu0
    %v2359 = vadd.f32 0.0, %v2358
    %v2360 = vpop.f32.mrb[0].mxu0
    %v2361 = vadd.f32 0.0, %v2360
    %2362 = vdwg.mxu0
    %2363 = vmatprep.subr.bf16.mxu0 %v1949
    %2364 = vmatpush1.bf16.msra.mxu0 %v1948
    %2365 = vmatprep.subr.bf16.mxu0 %v1955
    %2366 = vmatpush1.bf16.msra.mxu0 %v1954
    %2367 = vmatprep.subr.bf16.mxu0 %v1961
    %2368 = vmatpush1.bf16.msra.mxu0 %v1960
    %2369 = vmatprep.subr.bf16.mxu0 %v1967
    %2370 = vmatpush1.bf16.msra.mxu0 %v1966
    %2371 = vmatprep.subr.bf16.mxu0 %v1973
    %2372 = vmatpush1.bf16.msra.mxu0 %v1972
    %2373 = vmatprep.subr.bf16.mxu0 %v1979
    %2374 = vmatpush1.bf16.msra.mxu0 %v1978
    %2375 = vmatprep.subr.bf16.mxu0 %v1985
    %2376 = vmatpush1.bf16.msra.mxu0 %v1984
    %2377 = vmatprep.subr.bf16.mxu0 %v1991
    %2378 = vmatpush1.bf16.msra.mxu0 %v1990
    %2379 = vmatprep.subr.bf16.mxu0 %v1997
    %2380 = vmatpush1.bf16.msra.mxu0 %v1996
    %2381 = vmatprep.subr.bf16.mxu0 %v2003
    %2382 = vmatpush1.bf16.msra.mxu0 %v2002
    %2383 = vmatprep.subr.bf16.mxu0 %v2009
    %2384 = vmatpush1.bf16.msra.mxu0 %v2008
    %2385 = vmatprep.subr.bf16.mxu0 %v2015
    %2386 = vmatpush1.bf16.msra.mxu0 %v2014
    %2387 = vmatprep.subr.bf16.mxu0 %v2021
    %2388 = vmatpush1.bf16.msra.mxu0 %v2020
    %2389 = vmatprep.subr.bf16.mxu0 %v2027
    %2390 = vmatpush1.bf16.msra.mxu0 %v2026
    %2391 = vmatprep.subr.bf16.mxu0 %v2033
    %2392 = vmatpush1.bf16.msra.mxu0 %v2032
    %2393 = vmatprep.subr.bf16.mxu0 %v2039
    %2394 = vmatpush1.bf16.msra.mxu0 %v2038
    %2395 = vmatprep.mubr.bf16.mxu0 %v1081
    %2396 = vmatmul.mubr.bf16.gmra.mrb[0].mxu0 %v1080
    %v2397 = vpop.f32.mrb[0].mxu0
    %v2398 = vadd.f32 %v2355, %v2397
    %v2399 = vpop.f32.mrb[0].mxu0
    %v2400 = vadd.f32 %v2357, %v2399
    %v2401 = vpop.f32.mrb[0].mxu0
    %v2402 = vadd.f32 %v2359, %v2401
    %v2403 = vpop.f32.mrb[0].mxu0
    %v2404 = vadd.f32 %v2361, %v2403
    %2405 = vdwg.mxu0
    %2406 = vmatprep.subr.bf16.mxu0 %v1855
    %2407 = vmatpush1.bf16.msra.mxu0 %v1854
    %2408 = vmatprep.subr.bf16.mxu0 %v1861
    %2409 = vmatpush1.bf16.msra.mxu0 %v1860
    %2410 = vmatprep.subr.bf16.mxu0 %v1867
    %2411 = vmatpush1.bf16.msra.mxu0 %v1866
    %2412 = vmatprep.subr.bf16.mxu0 %v1873
    %2413 = vmatpush1.bf16.msra.mxu0 %v1872
    %2414 = vmatprep.subr.bf16.mxu0 %v1879
    %2415 = vmatpush1.bf16.msra.mxu0 %v1878
    %2416 = vmatprep.subr.bf16.mxu0 %v1885
    %2417 = vmatpush1.bf16.msra.mxu0 %v1884
    %2418 = vmatprep.subr.bf16.mxu0 %v1891
    %2419 = vmatpush1.bf16.msra.mxu0 %v1890
    %2420 = vmatprep.subr.bf16.mxu0 %v1897
    %2421 = vmatpush1.bf16.msra.mxu0 %v1896
    %2422 = vmatprep.subr.bf16.mxu0 %v1903
    %2423 = vmatpush1.bf16.msra.mxu0 %v1902
    %2424 = vmatprep.subr.bf16.mxu0 %v1909
    %2425 = vmatpush1.bf16.msra.mxu0 %v1908
    %2426 = vmatprep.subr.bf16.mxu0 %v1915
    %2427 = vmatpush1.bf16.msra.mxu0 %v1914
    %2428 = vmatprep.subr.bf16.mxu0 %v1921
    %2429 = vmatpush1.bf16.msra.mxu0 %v1920
    %2430 = vmatprep.subr.bf16.mxu0 %v1927
    %2431 = vmatpush1.bf16.msra.mxu0 %v1926
    %2432 = vmatprep.subr.bf16.mxu0 %v1933
    %2433 = vmatpush1.bf16.msra.mxu0 %v1932
    %2434 = vmatprep.subr.bf16.mxu0 %v1939
    %2435 = vmatpush1.bf16.msra.mxu0 %v1938
    %2436 = vmatprep.subr.bf16.mxu0 %v1945
    %2437 = vmatpush1.bf16.msra.mxu0 %v1944
    %2438 = vmatprep.mubr.bf16.mxu0 %v1079
    %2439 = vmatmul.mubr.bf16.gmra.mrb[0].mxu0 %v1078
    %v2440 = vpop.f32.mrb[0].mxu0
    %v2441 = vadd.f32 0.0, %v2440
    %v2442 = vpop.f32.mrb[0].mxu0
    %v2443 = vadd.f32 0.0, %v2442
    %v2444 = vpop.f32.mrb[0].mxu0
    %v2445 = vadd.f32 0.0, %v2444
    %v2446 = vpop.f32.mrb[0].mxu0
    %v2447 = vadd.f32 0.0, %v2446
    %2448 = vdwg.mxu0
    %2449 = vmatprep.subr.bf16.mxu0 %v1951
    %2450 = vmatpush1.bf16.msra.mxu0 %v1950
    %2451 = vmatprep.subr.bf16.mxu0 %v1957
    %2452 = vmatpush1.bf16.msra.mxu0 %v1956
    %2453 = vmatprep.subr.bf16.mxu0 %v1963
    %2454 = vmatpush1.bf16.msra.mxu0 %v1962
    %2455 = vmatprep.subr.bf16.mxu0 %v1969
    %2456 = vmatpush1.bf16.msra.mxu0 %v1968
    %2457 = vmatprep.subr.bf16.mxu0 %v1975
    %2458 = vmatpush1.bf16.msra.mxu0 %v1974
    %2459 = vmatprep.subr.bf16.mxu0 %v1981
    %2460 = vmatpush1.bf16.msra.mxu0 %v1980
    %2461 = vmatprep.subr.bf16.mxu0 %v1987
    %2462 = vmatpush1.bf16.msra.mxu0 %v1986
    %2463 = vmatprep.subr.bf16.mxu0 %v1993
    %2464 = vmatpush1.bf16.msra.mxu0 %v1992
    %2465 = vmatprep.subr.bf16.mxu0 %v1999
    %2466 = vmatpush1.bf16.msra.mxu0 %v1998
    %2467 = vmatprep.subr.bf16.mxu0 %v2005
    %2468 = vmatpush1.bf16.msra.mxu0 %v2004
    %2469 = vmatprep.subr.bf16.mxu0 %v2011
    %2470 = vmatpush1.bf16.msra.mxu0 %v2010
    %2471 = vmatprep.subr.bf16.mxu0 %v2017
    %2472 = vmatpush1.bf16.msra.mxu0 %v2016
    %2473 = vmatprep.subr.bf16.mxu0 %v2023
    %2474 = vmatpush1.bf16.msra.mxu0 %v2022
    %2475 = vmatprep.subr.bf16.mxu0 %v2029
    %2476 = vmatpush1.bf16.msra.mxu0 %v2028
    %2477 = vmatprep.subr.bf16.mxu0 %v2035
    %2478 = vmatpush1.bf16.msra.mxu0 %v2034
    %2479 = vmatprep.subr.bf16.mxu0 %v2041
    %2480 = vmatpush1.bf16.msra.mxu0 %v2040
    %2481 = vmatprep.mubr.bf16.mxu0 %v1081
    %2482 = vmatmul.mubr.bf16.gmra.mrb[0].mxu0 %v1080
    %v2483 = vpop.f32.mrb[0].mxu0
    %v2484 = vadd.f32 %v2441, %v2483
    %v2485 = vpop.f32.mrb[0].mxu0
    %v2486 = vadd.f32 %v2443, %v2485
    %v2487 = vpop.f32.mrb[0].mxu0
    %v2488 = vadd.f32 %v2445, %v2487
    %v2489 = vpop.f32.mrb[0].mxu0
    %v2490 = vadd.f32 %v2447, %v2489
    %2491 = vdwg.mxu0
    %v2492 = vmax.f32 %v2312, 0.0
    %v2493 = vmax.f32 %v2314, 0.0
    %v2494 = vmax.f32 %v2398, 0.0
    %v2495 = vmax.f32 %v2400, 0.0
    %v2496 = vmax.f32 %v2484, 0.0
    %v2497 = vmax.f32 %v2486, 0.0
    %v2498 = vmax.f32 %v2316, 0.0
    %v2499 = vmax.f32 %v2318, 0.0
    %v2500 = vmax.f32 %v2402, 0.0
    %v2501 = vmax.f32 %v2404, 0.0
    %v2502 = vmax.f32 %v2488, 0.0
    %v2503 = vmax.f32 %v2490, 0.0
    %v2504 = vpack.c.bf16 %v2498, %v2492
    %v2505 = vpack.c.bf16 %v2499, %v2493
    %v2506 = vpack.c.bf16 %v2500, %v2494
    %v2507 = vpack.c.bf16 %v2501, %v2495
    %v2508 = vpack.c.bf16 %v2502, %v2496
    %v2509 = vpack.c.bf16 %v2503, %v2497
    %v2510 = vld [vmem:[#allocation8] sm:$0xf]
    %v2511 = vld [vmem:[#allocation8 + $0x4] sm:$0xf]
    %v2512 = vld [vmem:[#allocation8 + $0x8] sm:$0xf]
    %v2513 = vld [vmem:[#allocation8 + $0xc] sm:$0xf]
    %v2514 = vld [vmem:[#allocation8 + $0x10] sm:$0xf]
    %v2515 = vld [vmem:[#allocation8 + $0x14] sm:$0xf]
    %v2516 = vld [vmem:[#allocation8 + $0x18] sm:$0xf]
    %v2517 = vld [vmem:[#allocation8 + $0x1c] sm:$0xf]
    %v2518 = vld [vmem:[#allocation8 + $0x20] sm:$0xf]
    %v2519 = vld [vmem:[#allocation8 + $0x24] sm:$0xf]
    %v2520 = vld [vmem:[#allocation8 + $0x28] sm:$0xf]
    %v2521 = vld [vmem:[#allocation8 + $0x2c] sm:$0xf]
    %v2522 = vld [vmem:[#allocation8 + $0x30] sm:$0xf]
    %v2523 = vld [vmem:[#allocation8 + $0x34] sm:$0xf]
    %v2524 = vld [vmem:[#allocation8 + $0x38] sm:$0xf]
    %v2525 = vld [vmem:[#allocation8 + $0x3c] sm:$0xf]
    %v2526 = vld [vmem:[#allocation8 + $0x40] sm:$0xf]
    %v2527 = vld [vmem:[#allocation8 + $0x44] sm:$0xf]
    %v2528 = vld [vmem:[#allocation8 + $0x48] sm:$0xf]
    %v2529 = vld [vmem:[#allocation8 + $0x4c] sm:$0xf]
    %v2530 = vld [vmem:[#allocation8 + $0x50] sm:$0xf]
    %v2531 = vld [vmem:[#allocation8 + $0x54] sm:$0xf]
    %v2532 = vld [vmem:[#allocation8 + $0x58] sm:$0xf]
    %v2533 = vld [vmem:[#allocation8 + $0x5c] sm:$0xf]
    %v2534 = vld [vmem:[#allocation8 + $0x60] sm:$0xf]
    %v2535 = vld [vmem:[#allocation8 + $0x64] sm:$0xf]
    %v2536 = vld [vmem:[#allocation8 + $0x68] sm:$0xf]
    %v2537 = vld [vmem:[#allocation8 + $0x6c] sm:$0xf]
    %v2538 = vld [vmem:[#allocation8 + $0x70] sm:$0xf]
    %v2539 = vld [vmem:[#allocation8 + $0x74] sm:$0xf]
    %v2540 = vld [vmem:[#allocation8 + $0x78] sm:$0xf]
    %v2541 = vld [vmem:[#allocation8 + $0x7c] sm:$0xf]
    %v2542 = vld [vmem:[#allocation8 + $0x80] sm:$0xf]
    %v2543 = vld [vmem:[#allocation8 + $0x84] sm:$0xf]
    %v2544 = vld [vmem:[#allocation8 + $0x88] sm:$0xf]
    %v2545 = vld [vmem:[#allocation8 + $0x8c] sm:$0xf]
    %v2546 = vld [vmem:[#allocation8 + $0x90] sm:$0xf]
    %v2547 = vld [vmem:[#allocation8 + $0x94] sm:$0xf]
    %v2548 = vld [vmem:[#allocation8 + $0x98] sm:$0xf]
    %v2549 = vld [vmem:[#allocation8 + $0x9c] sm:$0xf]
    %v2550 = vld [vmem:[#allocation8 + $0xa0] sm:$0xf]
    %v2551 = vld [vmem:[#allocation8 + $0xa4] sm:$0xf]
    %v2552 = vld [vmem:[#allocation8 + $0xa8] sm:$0xf]
    %v2553 = vld [vmem:[#allocation8 + $0xac] sm:$0xf]
    %v2554 = vld [vmem:[#allocation8 + $0xb0] sm:$0xf]
    %v2555 = vld [vmem:[#allocation8 + $0xb4] sm:$0xf]
    %v2556 = vld [vmem:[#allocation8 + $0xb8] sm:$0xf]
    %v2557 = vld [vmem:[#allocation8 + $0xbc] sm:$0xf]
    %v2558 = vld [vmem:[#allocation8 + $0xc0] sm:$0xf]
    %v2559 = vld [vmem:[#allocation8 + $0xc4] sm:$0xf]
    %v2560 = vld [vmem:[#allocation8 + $0xc8] sm:$0xf]
    %v2561 = vld [vmem:[#allocation8 + $0xcc] sm:$0xf]
    %v2562 = vld [vmem:[#allocation8 + $0xd0] sm:$0xf]
    %v2563 = vld [vmem:[#allocation8 + $0xd4] sm:$0xf]
    %v2564 = vld [vmem:[#allocation8 + $0xd8] sm:$0xf]
    %v2565 = vld [vmem:[#allocation8 + $0xdc] sm:$0xf]
    %v2566 = vld [vmem:[#allocation8 + $0xe0] sm:$0xf]
    %v2567 = vld [vmem:[#allocation8 + $0xe4] sm:$0xf]
    %v2568 = vld [vmem:[#allocation8 + $0xe8] sm:$0xf]
    %v2569 = vld [vmem:[#allocation8 + $0xec] sm:$0xf]
    %v2570 = vld [vmem:[#allocation8 + $0xf0] sm:$0xf]
    %v2571 = vld [vmem:[#allocation8 + $0xf4] sm:$0xf]
    %v2572 = vld [vmem:[#allocation8 + $0xf8] sm:$0xf]
    %v2573 = vld [vmem:[#allocation8 + $0xfc] sm:$0xf]
    %v2574 = vld [vmem:[#allocation8 + $0x100] sm:$0xf]
    %v2575 = vld [vmem:[#allocation8 + $0x104] sm:$0xf]
    %v2576 = vld [vmem:[#allocation8 + $0x108] sm:$0xf]
    %v2577 = vld [vmem:[#allocation8 + $0x10c] sm:$0xf]
    %v2578 = vld [vmem:[#allocation8 + $0x110] sm:$0xf]
    %v2579 = vld [vmem:[#allocation8 + $0x114] sm:$0xf]
    %v2580 = vld [vmem:[#allocation8 + $0x118] sm:$0xf]
    %v2581 = vld [vmem:[#allocation8 + $0x11c] sm:$0xf]
    %v2582 = vld [vmem:[#allocation8 + $0x120] sm:$0xf]
    %v2583 = vld [vmem:[#allocation8 + $0x124] sm:$0xf]
    %v2584 = vld [vmem:[#allocation8 + $0x128] sm:$0xf]
    %v2585 = vld [vmem:[#allocation8 + $0x12c] sm:$0xf]
    %v2586 = vld [vmem:[#allocation8 + $0x130] sm:$0xf]
    %v2587 = vld [vmem:[#allocation8 + $0x134] sm:$0xf]
    %v2588 = vld [vmem:[#allocation8 + $0x138] sm:$0xf]
    %v2589 = vld [vmem:[#allocation8 + $0x13c] sm:$0xf]
    %v2590 = vld [vmem:[#allocation8 + $0x140] sm:$0xf]
    %v2591 = vld [vmem:[#allocation8 + $0x144] sm:$0xf]
    %v2592 = vld [vmem:[#allocation8 + $0x148] sm:$0xf]
    %v2593 = vld [vmem:[#allocation8 + $0x14c] sm:$0xf]
    %v2594 = vld [vmem:[#allocation8 + $0x150] sm:$0xf]
    %v2595 = vld [vmem:[#allocation8 + $0x154] sm:$0xf]
    %v2596 = vld [vmem:[#allocation8 + $0x158] sm:$0xf]
    %v2597 = vld [vmem:[#allocation8 + $0x15c] sm:$0xf]
    %v2598 = vld [vmem:[#allocation8 + $0x160] sm:$0xf]
    %v2599 = vld [vmem:[#allocation8 + $0x164] sm:$0xf]
    %v2600 = vld [vmem:[#allocation8 + $0x168] sm:$0xf]
    %v2601 = vld [vmem:[#allocation8 + $0x16c] sm:$0xf]
    %v2602 = vld [vmem:[#allocation8 + $0x170] sm:$0xf]
    %v2603 = vld [vmem:[#allocation8 + $0x174] sm:$0xf]
    %v2604 = vld [vmem:[#allocation8 + $0x178] sm:$0xf]
    %v2605 = vld [vmem:[#allocation8 + $0x17c] sm:$0xf]
    %v2606 = vld [vmem:[%s5] sm:$0x1]
    %v2608 = vlaneseq
    %v2609 = vshrl.u32 %v2608, 7
    %v2610 = vsub.s32 0, %v2609
    %v2611 = vrot.slane %v2606, %v2610
    %v2709 = vunpack.c.l.b16 %v2510
    %v2710 = vunpack.c.l.b16 %v2511
    %v2711 = vunpack.c.l.b16 %v2512
    %v2712 = vunpack.c.l.b16 %v2513
    %v2713 = vunpack.c.l.b16 %v2514
    %v2714 = vunpack.c.l.b16 %v2515
    %v2715 = vunpack.c.l.b16 %v2516
    %v2716 = vunpack.c.l.b16 %v2517
    %v2717 = vunpack.c.l.b16 %v2518
    %v2718 = vunpack.c.l.b16 %v2519
    %v2719 = vunpack.c.l.b16 %v2520
    %v2720 = vunpack.c.l.b16 %v2521
    %v2721 = vunpack.c.l.b16 %v2522
    %v2722 = vunpack.c.l.b16 %v2523
    %v2723 = vunpack.c.l.b16 %v2524
    %v2724 = vunpack.c.l.b16 %v2525
    %v2725 = vunpack.c.l.b16 %v2526
    %v2726 = vunpack.c.l.b16 %v2527
    %v2727 = vunpack.c.l.b16 %v2528
    %v2728 = vunpack.c.l.b16 %v2529
    %v2729 = vunpack.c.l.b16 %v2530
    %v2730 = vunpack.c.l.b16 %v2531
    %v2731 = vunpack.c.l.b16 %v2532
    %v2732 = vunpack.c.l.b16 %v2533
    %v2733 = vunpack.c.l.b16 %v2534
    %v2734 = vunpack.c.l.b16 %v2535
    %v2735 = vunpack.c.l.b16 %v2536
    %v2736 = vunpack.c.l.b16 %v2537
    %v2737 = vunpack.c.l.b16 %v2538
    %v2738 = vunpack.c.l.b16 %v2539
    %v2739 = vunpack.c.l.b16 %v2540
    %v2740 = vunpack.c.l.b16 %v2541
    %v2741 = vunpack.c.l.b16 %v2542
    %v2742 = vunpack.c.l.b16 %v2543
    %v2743 = vunpack.c.l.b16 %v2544
    %v2744 = vunpack.c.l.b16 %v2545
    %v2745 = vunpack.c.l.b16 %v2546
    %v2746 = vunpack.c.l.b16 %v2547
    %v2747 = vunpack.c.l.b16 %v2548
    %v2748 = vunpack.c.l.b16 %v2549
    %v2749 = vunpack.c.l.b16 %v2550
    %v2750 = vunpack.c.l.b16 %v2551
    %v2751 = vunpack.c.l.b16 %v2552
    %v2752 = vunpack.c.l.b16 %v2553
    %v2753 = vunpack.c.l.b16 %v2554
    %v2754 = vunpack.c.l.b16 %v2555
    %v2755 = vunpack.c.l.b16 %v2556
    %v2756 = vunpack.c.l.b16 %v2557
    %v2757 = vunpack.c.l.b16 %v2558
    %v2758 = vunpack.c.l.b16 %v2559
    %v2759 = vunpack.c.l.b16 %v2560
    %v2760 = vunpack.c.l.b16 %v2561
    %v2761 = vunpack.c.l.b16 %v2562
    %v2762 = vunpack.c.l.b16 %v2563
    %v2763 = vunpack.c.l.b16 %v2564
    %v2764 = vunpack.c.l.b16 %v2565
    %v2765 = vunpack.c.l.b16 %v2566
    %v2766 = vunpack.c.l.b16 %v2567
    %v2767 = vunpack.c.l.b16 %v2568
    %v2768 = vunpack.c.l.b16 %v2569
    %v2769 = vunpack.c.l.b16 %v2570
    %v2770 = vunpack.c.l.b16 %v2571
    %v2771 = vunpack.c.l.b16 %v2572
    %v2772 = vunpack.c.l.b16 %v2573
    %v2773 = vunpack.c.l.b16 %v2574
    %v2774 = vunpack.c.l.b16 %v2575
    %v2775 = vunpack.c.l.b16 %v2576
    %v2776 = vunpack.c.l.b16 %v2577
    %v2777 = vunpack.c.l.b16 %v2578
    %v2778 = vunpack.c.l.b16 %v2579
    %v2779 = vunpack.c.l.b16 %v2580
    %v2780 = vunpack.c.l.b16 %v2581
    %v2781 = vunpack.c.l.b16 %v2582
    %v2782 = vunpack.c.l.b16 %v2583
    %v2783 = vunpack.c.l.b16 %v2584
    %v2784 = vunpack.c.l.b16 %v2585
    %v2785 = vunpack.c.l.b16 %v2586
    %v2786 = vunpack.c.l.b16 %v2587
    %v2787 = vunpack.c.l.b16 %v2588
    %v2788 = vunpack.c.l.b16 %v2589
    %v2789 = vunpack.c.l.b16 %v2590
    %v2790 = vunpack.c.l.b16 %v2591
    %v2791 = vunpack.c.l.b16 %v2592
    %v2792 = vunpack.c.l.b16 %v2593
    %v2793 = vunpack.c.l.b16 %v2594
    %v2794 = vunpack.c.l.b16 %v2595
    %v2795 = vunpack.c.l.b16 %v2596
    %v2796 = vunpack.c.l.b16 %v2597
    %v2797 = vunpack.c.l.b16 %v2598
    %v2798 = vunpack.c.l.b16 %v2599
    %v2799 = vunpack.c.l.b16 %v2600
    %v2800 = vunpack.c.l.b16 %v2601
    %v2801 = vunpack.c.l.b16 %v2602
    %v2802 = vunpack.c.l.b16 %v2603
    %v2803 = vunpack.c.l.b16 %v2604
    %v2804 = vunpack.c.l.b16 %v2605
    %v2805 = vpack.c.b16 %v2710, %v2709
    %v2806 = vpack.c.b16 %v2712, %v2711
    %v2807 = vpack.c.b16 %v2714, %v2713
    %v2808 = vpack.c.b16 %v2716, %v2715
    %v2809 = vpack.c.b16 %v2718, %v2717
    %v2810 = vpack.c.b16 %v2720, %v2719
    %v2811 = vpack.c.b16 %v2722, %v2721
    %v2812 = vpack.c.b16 %v2724, %v2723
    %v2813 = vpack.c.b16 %v2726, %v2725
    %v2814 = vpack.c.b16 %v2728, %v2727
    %v2815 = vpack.c.b16 %v2730, %v2729
    %v2816 = vpack.c.b16 %v2732, %v2731
    %v2817 = vpack.c.b16 %v2734, %v2733
    %v2818 = vpack.c.b16 %v2736, %v2735
    %v2819 = vpack.c.b16 %v2738, %v2737
    %v2820 = vpack.c.b16 %v2740, %v2739
    %v2821 = vpack.c.b16 %v2742, %v2741
    %v2822 = vpack.c.b16 %v2744, %v2743
    %v2823 = vpack.c.b16 %v2746, %v2745
    %v2824 = vpack.c.b16 %v2748, %v2747
    %v2825 = vpack.c.b16 %v2750, %v2749
    %v2826 = vpack.c.b16 %v2752, %v2751
    %v2827 = vpack.c.b16 %v2754, %v2753
    %v2828 = vpack.c.b16 %v2756, %v2755
    %v2829 = vpack.c.b16 %v2758, %v2757
    %v2830 = vpack.c.b16 %v2760, %v2759
    %v2831 = vpack.c.b16 %v2762, %v2761
    %v2832 = vpack.c.b16 %v2764, %v2763
    %v2833 = vpack.c.b16 %v2766, %v2765
    %v2834 = vpack.c.b16 %v2768, %v2767
    %v2835 = vpack.c.b16 %v2770, %v2769
    %v2836 = vpack.c.b16 %v2772, %v2771
    %v2837 = vpack.c.b16 %v2774, %v2773
    %v2838 = vpack.c.b16 %v2776, %v2775
    %v2839 = vpack.c.b16 %v2778, %v2777
    %v2840 = vpack.c.b16 %v2780, %v2779
    %v2841 = vpack.c.b16 %v2782, %v2781
    %v2842 = vpack.c.b16 %v2784, %v2783
    %v2843 = vpack.c.b16 %v2786, %v2785
    %v2844 = vpack.c.b16 %v2788, %v2787
    %v2845 = vpack.c.b16 %v2790, %v2789
    %v2846 = vpack.c.b16 %v2792, %v2791
    %v2847 = vpack.c.b16 %v2794, %v2793
    %v2848 = vpack.c.b16 %v2796, %v2795
    %v2849 = vpack.c.b16 %v2798, %v2797
    %v2850 = vpack.c.b16 %v2800, %v2799
    %v2851 = vpack.c.b16 %v2802, %v2801
    %v2852 = vpack.c.b16 %v2804, %v2803
    %2901 = vmatprep.subr.bf16.mxu0 0
    %2902 = vmatpush1.bf16.msra.mxu0 %v2805
    %2903 = vmatprep.subr.bf16.mxu0 0
    %2904 = vmatpush1.bf16.msra.mxu0 %v2806
    %2905 = vmatprep.subr.bf16.mxu0 0
    %2906 = vmatpush1.bf16.msra.mxu0 %v2807
    %2907 = vmatprep.subr.bf16.mxu0 0
    %2908 = vmatpush1.bf16.msra.mxu0 %v2808
    %2909 = vmatprep.subr.bf16.mxu0 0
    %2910 = vmatpush1.bf16.msra.mxu0 %v2809
    %2911 = vmatprep.subr.bf16.mxu0 0
    %2912 = vmatpush1.bf16.msra.mxu0 %v2810
    %2913 = vmatprep.subr.bf16.mxu0 0
    %2914 = vmatpush1.bf16.msra.mxu0 %v2811
    %2915 = vmatprep.subr.bf16.mxu0 0
    %2916 = vmatpush1.bf16.msra.mxu0 %v2812
    %2917 = vmatprep.subr.bf16.mxu0 0
    %2918 = vmatpush1.bf16.msra.mxu0 %v2813
    %2919 = vmatprep.subr.bf16.mxu0 0
    %2920 = vmatpush1.bf16.msra.mxu0 %v2814
    %2921 = vmatprep.subr.bf16.mxu0 0
    %2922 = vmatpush1.bf16.msra.mxu0 %v2815
    %2923 = vmatprep.subr.bf16.mxu0 0
    %2924 = vmatpush1.bf16.msra.mxu0 %v2816
    %2925 = vmatprep.subr.bf16.mxu0 0
    %2926 = vmatpush1.bf16.msra.mxu0 %v2817
    %2927 = vmatprep.subr.bf16.mxu0 0
    %2928 = vmatpush1.bf16.msra.mxu0 %v2818
    %2929 = vmatprep.subr.bf16.mxu0 0
    %2930 = vmatpush1.bf16.msra.mxu0 %v2819
    %2931 = vmatprep.subr.bf16.mxu0 0
    %2932 = vmatpush1.bf16.msra.mxu0 %v2820
    %2933 = vmatprep.mubr.bf16.mxu0 %v2505
    %2934 = vmatmul.mubr.bf16.gmra.mrb[0].mxu0 %v2504
    %v2935 = vpop.f32.mrb[0].mxu0
    %v2936 = vadd.f32 %v2611, %v2935
    %v2937 = vpop.f32.mrb[0].mxu0
    %v2938 = vpop.f32.mrb[0].mxu0
    %v2939 = vadd.f32 %v2611, %v2938
    %v2940 = vpop.f32.mrb[0].mxu0
    %2941 = vdwg.mxu0
    %2942 = vmatprep.subr.bf16.mxu0 0
    %2943 = vmatpush1.bf16.msra.mxu0 %v2821
    %2944 = vmatprep.subr.bf16.mxu0 0
    %2945 = vmatpush1.bf16.msra.mxu0 %v2822
    %2946 = vmatprep.subr.bf16.mxu0 0
    %2947 = vmatpush1.bf16.msra.mxu0 %v2823
    %2948 = vmatprep.subr.bf16.mxu0 0
    %2949 = vmatpush1.bf16.msra.mxu0 %v2824
    %2950 = vmatprep.subr.bf16.mxu0 0
    %2951 = vmatpush1.bf16.msra.mxu0 %v2825
    %2952 = vmatprep.subr.bf16.mxu0 0
    %2953 = vmatpush1.bf16.msra.mxu0 %v2826
    %2954 = vmatprep.subr.bf16.mxu0 0
    %2955 = vmatpush1.bf16.msra.mxu0 %v2827
    %2956 = vmatprep.subr.bf16.mxu0 0
    %2957 = vmatpush1.bf16.msra.mxu0 %v2828
    %2958 = vmatprep.subr.bf16.mxu0 0
    %2959 = vmatpush1.bf16.msra.mxu0 %v2829
    %2960 = vmatprep.subr.bf16.mxu0 0
    %2961 = vmatpush1.bf16.msra.mxu0 %v2830
    %2962 = vmatprep.subr.bf16.mxu0 0
    %2963 = vmatpush1.bf16.msra.mxu0 %v2831
    %2964 = vmatprep.subr.bf16.mxu0 0
    %2965 = vmatpush1.bf16.msra.mxu0 %v2832
    %2966 = vmatprep.subr.bf16.mxu0 0
    %2967 = vmatpush1.bf16.msra.mxu0 %v2833
    %2968 = vmatprep.subr.bf16.mxu0 0
    %2969 = vmatpush1.bf16.msra.mxu0 %v2834
    %2970 = vmatprep.subr.bf16.mxu0 0
    %2971 = vmatpush1.bf16.msra.mxu0 %v2835
    %2972 = vmatprep.subr.bf16.mxu0 0
    %2973 = vmatpush1.bf16.msra.mxu0 %v2836
    %2974 = vmatprep.mubr.bf16.mxu0 %v2507
    %2975 = vmatmul.mubr.bf16.gmra.mrb[0].mxu0 %v2506
    %v2976 = vpop.f32.mrb[0].mxu0
    %v2977 = vadd.f32 %v2936, %v2976
    %v2978 = vpop.f32.mrb[0].mxu0
    %v2979 = vpop.f32.mrb[0].mxu0
    %v2980 = vadd.f32 %v2939, %v2979
    %v2981 = vpop.f32.mrb[0].mxu0
    %2982 = vdwg.mxu0
    %2983 = vmatprep.subr.bf16.mxu0 0
    %2984 = vmatpush1.bf16.msra.mxu0 %v2837
    %2985 = vmatprep.subr.bf16.mxu0 0
    %2986 = vmatpush1.bf16.msra.mxu0 %v2838
    %2987 = vmatprep.subr.bf16.mxu0 0
    %2988 = vmatpush1.bf16.msra.mxu0 %v2839
    %2989 = vmatprep.subr.bf16.mxu0 0
    %2990 = vmatpush1.bf16.msra.mxu0 %v2840
    %2991 = vmatprep.subr.bf16.mxu0 0
    %2992 = vmatpush1.bf16.msra.mxu0 %v2841
    %2993 = vmatprep.subr.bf16.mxu0 0
    %2994 = vmatpush1.bf16.msra.mxu0 %v2842
    %2995 = vmatprep.subr.bf16.mxu0 0
    %2996 = vmatpush1.bf16.msra.mxu0 %v2843
    %2997 = vmatprep.subr.bf16.mxu0 0
    %2998 = vmatpush1.bf16.msra.mxu0 %v2844
    %2999 = vmatprep.subr.bf16.mxu0 0
    %3000 = vmatpush1.bf16.msra.mxu0 %v2845
    %3001 = vmatprep.subr.bf16.mxu0 0
    %3002 = vmatpush1.bf16.msra.mxu0 %v2846
    %3003 = vmatprep.subr.bf16.mxu0 0
    %3004 = vmatpush1.bf16.msra.mxu0 %v2847
    %3005 = vmatprep.subr.bf16.mxu0 0
    %3006 = vmatpush1.bf16.msra.mxu0 %v2848
    %3007 = vmatprep.subr.bf16.mxu0 0
    %3008 = vmatpush1.bf16.msra.mxu0 %v2849
    %3009 = vmatprep.subr.bf16.mxu0 0
    %3010 = vmatpush1.bf16.msra.mxu0 %v2850
    %3011 = vmatprep.subr.bf16.mxu0 0
    %3012 = vmatpush1.bf16.msra.mxu0 %v2851
    %3013 = vmatprep.subr.bf16.mxu0 0
    %3014 = vmatpush1.bf16.msra.mxu0 %v2852
    %3015 = vmatprep.mubr.bf16.mxu0 %v2509
    %3016 = vmatmul.mubr.bf16.gmra.mrb[0].mxu0 %v2508
    %v3017 = vpop.f32.mrb[0].mxu0
    %v3018 = vadd.f32 %v2977, %v3017
    %v3019 = vpop.f32.mrb[0].mxu0
    %v3020 = vpop.f32.mrb[0].mxu0
    %v3021 = vadd.f32 %v2980, %v3020
    %v3022 = vpop.f32.mrb[0].mxu0
    %3023 = vdwg.mxu0
    %3024 = vst [vmem:[#allocation10] sm:$0xff] %v3018
    %3025 = vst [vmem:[#allocation10 + $0x8] sm:$0xff] %v3021
    // Predicated region
    $region42: #{tpu_custom_call.1} parent=1 // pred_check
      _
    $region43: #{tpu_custom_call.1} parent=1 // pred_check_branch
      %3027 = sbr.rel (0) target = $region45
    $region44: #{tpu_custom_call.1} parent=1 // pred_region
      %s3029 = ssub.s32 256, 256
      %3030 = vsyncadd [#allocation4], %s3029
      %s3031 = sshll.u32 [#allocation10], 4
      %s3032 = int_to_ptr.vmem [resolvable:$true] %s3031
      %3037 = dma.vmem_to_hbm [thread:$0]  %s3032, 256, %s6, [#allocation4], 128, 128, 8
    $region45: #{tpu_custom_call.1} parent=1 // pred_fallthru
      _
    // Predicated region
    $region46: #{tpu_custom_call.1} parent=1 // pred_check
      _
    $region47: #{tpu_custom_call.1} parent=1 // pred_check_branch
      %3039 = sbr.rel (0) target = $region49
    $region48: #{tpu_custom_call.1} parent=1 // pred_region
      %3040 = dma.done [#allocation4], 256
    $region49: #{tpu_custom_call.1} parent=1 // pred_fallthru
      _
    %3041 = vsyncpa [#allocation3], 1
    %3042 = vsyncpa [#allocation6], 1
    %3043 = vsyncpa [#allocation9], 1
    %3044 = vsyncpa [#allocation4], 1

</llo_original>
